<compile_context>
chip_gen: v6e
topology: v6e:2x2x1
jax: 0.10.0
libtpu: 0.0.40
codegen_flags: <defaults>
</compile_context>

<pallas_src>
import math
import functools
import numpy as np

import jax
import jax.numpy as jnp
from jax import lax
from jax.experimental import pallas as pl
from jax.experimental.pallas import tpu as pltpu


# 32 MiB scoped VMEM: comfortable on v5e/v6e (128 MiB) and v7x (64 MiB).
_VMEM_LIMIT = 32 * 1024 * 1024


def _compiler_params():
    return pltpu.CompilerParams(dimension_semantics=("arbitrary",),
                                vmem_limit_bytes=_VMEM_LIMIT)


# ----------------------------------------------------------------------------
# Pallas kernels
# ----------------------------------------------------------------------------

def _apply_post_act(x, post_act):
    if post_act is None:
        return x
    if post_act == "leaky":
        return jnp.where(x >= 0, x, 0.1 * x)
    if post_act == "relu":
        return jnp.maximum(x, 0.0)
    if post_act == "gelu":
        return jax.nn.gelu(x)
    if post_act == "tanh":
        return jnp.tanh(x)
    raise ValueError(post_act)


def _make_fused_matmul_kernel(pre_leaky, post_act, has_mask, has_residual):
    def kernel(*refs):
        i = 0
        w_ref = refs[i]; i += 1
        x_ref = refs[i]; i += 1
        b_ref = refs[i]; i += 1
        mask_ref = None
        res_ref = None
        if has_mask:
            mask_ref = refs[i]; i += 1
        if has_residual:
            res_ref = refs[i]; i += 1
        o_ref = refs[i]

        x = x_ref[...]
        if pre_leaky:                                  # fused leaky-relu prologue
            x = jnp.where(x >= 0, x, 0.1 * x)
        acc = jnp.dot(w_ref[...], x, preferred_element_type=jnp.float32)
        acc = acc + b_ref[...]
        acc = _apply_post_act(acc, post_act)
        if has_mask:
            acc = acc * mask_ref[...]                  # (1, N) broadcast
        if has_residual:
            acc = acc + res_ref[...]
        o_ref[...] = acc.astype(o_ref.dtype)
    return kernel


def fused_matmul(w, x, b, *, mask=None, residual=None, pre_leaky=False,
                 post_act=None):
    """out = post_act(W @ pre_act(x) + b) [* mask] [+ residual].

    W: (M, K); x: (K, N) with N = batch*time folded onto the lane axis.
    One pallas_call, whole problem in VMEM (small model sizes)."""
    M, K = w.shape
    K2, N = x.shape
    assert K == K2
    args = [w.astype(jnp.float32), x.astype(jnp.float32),
            b.reshape(M, 1).astype(jnp.float32)]
    in_specs = [pl.BlockSpec((M, K), lambda i: (0, 0)),
                pl.BlockSpec((K, N), lambda i: (0, 0)),
                pl.BlockSpec((M, 1), lambda i: (0, 0))]
    if mask is not None:
        args.append(mask.reshape(1, N).astype(jnp.float32))
        in_specs.append(pl.BlockSpec((1, N), lambda i: (0, 0)))
    if residual is not None:
        args.append(residual.astype(jnp.float32))
        in_specs.append(pl.BlockSpec((M, N), lambda i: (0, 0)))
    trans = M * N if post_act in ("tanh", "gelu") else 0
    return pl.pallas_call(
        _make_fused_matmul_kernel(pre_leaky, post_act, mask is not None,
                                  residual is not None),
        out_shape=jax.ShapeDtypeStruct((M, N), jnp.float32),
        grid=(1,),
        in_specs=in_specs,
        out_specs=pl.BlockSpec((M, N), lambda i: (0, 0)),
        compiler_params=_compiler_params(),
        cost_estimate=pl.CostEstimate(
            flops=2 * M * K * N, transcendentals=trans,
            bytes_accessed=4 * (M * K + K * N + 2 * M * N + N)),
    )(*args)


def _make_bmm_kernel(B):
    def kernel(a_ref, b_ref, o_ref):
        for bi in range(B):            # static unroll: whole batch in ONE call
            o_ref[bi] = jnp.dot(a_ref[bi], b_ref[bi],
                                preferred_element_type=jnp.float32
                                ).astype(o_ref.dtype)
    return kernel


def bmm(a, b):
    """Batched matmul (B, M, K) x (B, K, N) -> (B, M, N) in one pallas_call."""
    B, M, K = a.shape
    Bb, K2, N = b.shape
    assert B == Bb and K == K2
    return pl.pallas_call(
        _make_bmm_kernel(B),
        out_shape=jax.ShapeDtypeStruct((B, M, N), jnp.float32),
        grid=(1,),
        in_specs=[pl.BlockSpec((B, M, K), lambda i: (0, 0, 0)),
                  pl.BlockSpec((B, K, N), lambda i: (0, 0, 0))],
        out_specs=pl.BlockSpec((B, M, N), lambda i: (0, 0, 0)),
        compiler_params=_compiler_params(),
        cost_estimate=pl.CostEstimate(
            flops=2 * B * M * K * N, transcendentals=0,
            bytes_accessed=4 * B * (M * K + K * N + M * N)),
    )(a.astype(jnp.float32), b.astype(jnp.float32))


def _make_wn_layer_kernel(H, is_last):
    def kernel(w_in_ref, xcol_ref, b_in_ref, w_rs_ref, b_rs_ref,
               x_ref, skip_ref, mask_ref, newx_ref, skip_out_ref):
        # dilated in-conv as one im2col matmul (contraction = K*H)
        h = jnp.dot(w_in_ref[...], xcol_ref[...],
                    preferred_element_type=jnp.float32) + b_in_ref[...]
        # gated activation (EUP) fused in
        acts = jnp.tanh(h[:H]) * jax.nn.sigmoid(h[H:])
        # 1x1 res/skip conv fused in
        rs = jnp.dot(w_rs_ref[...], acts,
                     preferred_element_type=jnp.float32) + b_rs_ref[...]
        mask = mask_ref[...]
        if not is_last:
            newx_ref[...] = (x_ref[...] + rs[:H]) * mask
            skip_out_ref[...] = skip_ref[...] + rs[H:]
        else:
            newx_ref[...] = x_ref[...]
            skip_out_ref[...] = (skip_ref[...] + rs) * mask
    return kernel


def wn_layer(w_in2, b_in, w_rs2, b_rs, xcol, x2, skip2, mask2, is_last):
    """One fused WaveNet layer: in-conv -> gate -> res/skip 1x1 -> residual."""
    C2, Kc = w_in2.shape          # (2H, K*H)
    H = C2 // 2
    Crs = w_rs2.shape[0]
    _, N = x2.shape
    flops = 2 * (C2 * Kc * N + Crs * H * N)
    bytes_acc = 4 * (C2 * Kc + Kc * N + Crs * H + 4 * H * N + N)
    return pl.pallas_call(
        _make_wn_layer_kernel(H, is_last),
        out_shape=(jax.ShapeDtypeStruct((H, N), jnp.float32),
                   jax.ShapeDtypeStruct((H, N), jnp.float32)),
        grid=(1,),
        in_specs=[pl.BlockSpec((C2, Kc), lambda i: (0, 0)),
                  pl.BlockSpec((Kc, N), lambda i: (0, 0)),
                  pl.BlockSpec((C2, 1), lambda i: (0, 0)),
                  pl.BlockSpec((Crs, H), lambda i: (0, 0)),
                  pl.BlockSpec((Crs, 1), lambda i: (0, 0)),
                  pl.BlockSpec((H, N), lambda i: (0, 0)),
                  pl.BlockSpec((H, N), lambda i: (0, 0)),
                  pl.BlockSpec((1, N), lambda i: (0, 0))],
        out_specs=(pl.BlockSpec((H, N), lambda i: (0, 0)),
                   pl.BlockSpec((H, N), lambda i: (0, 0))),
        compiler_params=_compiler_params(),
        cost_estimate=pl.CostEstimate(flops=flops, transcendentals=2 * H * N,
                                      bytes_accessed=bytes_acc),
    )(w_in2.astype(jnp.float32), xcol.astype(jnp.float32),
      b_in.reshape(C2, 1).astype(jnp.float32),
      w_rs2.astype(jnp.float32), b_rs.reshape(Crs, 1).astype(jnp.float32),
      x2.astype(jnp.float32), skip2.astype(jnp.float32),
      mask2.astype(jnp.float32))


# ----------------------------------------------------------------------------
# Conv wrappers (channels-first (C, B, T) layout, im2col + fused matmul)
# ----------------------------------------------------------------------------

def _im2col(x_cbt, K, dilation, padding):
    """(C, B, T) -> (K*C, B*T_out) with taps stacked on the contraction axis."""
    C, B, T = x_cbt.shape
    if padding > 0:
        x_cbt = jnp.pad(x_cbt, ((0, 0), (0, 0), (padding, padding)))
    T_pad = x_cbt.shape[-1]
    T_out = T_pad - dilation * (K - 1)
    cols = jnp.concatenate([x_cbt[:, :, k * dilation:k * dilation + T_out]
                            for k in range(K)], axis=0)      # (K*C, B, T_out)
    return cols.reshape(K * C, B * T_out), T_out


def conv1d_cbt(x_cbt, w, b, dilation=1, padding=0, *, mask=None, residual=None,
               pre_leaky=False, post_act=None):
    """PyTorch-semantics Conv1d in (C, B, T) layout via one fused matmul.

    w: (C_out, C_in, K); mask: (1, B*T) or None; residual: (C_out, B, T_out)."""
    C_in, B, T = x_cbt.shape
    C_out, C_in_w, K = w.shape
    assert C_in == C_in_w
    if K == 1 and dilation == 1 and padding == 0:
        xcol = x_cbt.reshape(C_in, B * T)
        T_out = T
        w2 = w[:, :, 0]
    else:
        xcol, T_out = _im2col(x_cbt, K, dilation, padding)
        w2 = jnp.transpose(w, (0, 2, 1)).reshape(C_out, K * C_in)
    res2 = None if residual is None else residual.reshape(C_out, B * T_out)
    out2 = fused_matmul(w2, xcol, b, mask=mask, residual=res2,
                        pre_leaky=pre_leaky, post_act=post_act)
    return out2.reshape(C_out, B, T_out)


def conv_transpose1d_cbt(x_cbt, w, b, stride, padding, pre_leaky=False):
    """Polyphase ConvTranspose1d in (C, B, T) layout (no zero-stuffing).

    w: (C_in, C_out, K).  Each output phase is a small dense conv on the
    un-stuffed input; phases are interleaved afterwards."""
    C_in, B, T_in = x_cbt.shape
    _, C_out, K = w.shape
    L_full = (T_in - 1) * stride + K
    T_out = (T_in - 1) * stride - 2 * padding + K
    full = jnp.zeros((C_out, B, L_full), jnp.float32)
    for ph in range(stride):
        taps = list(range(ph, K, stride))
        Mp = len(taps)
        assert Mp >= 1, "upsample kernel smaller than stride is unsupported"
        w_ph = jnp.stack([jnp.transpose(w[:, :, taps[Mp - 1 - m]], (1, 0))
                          for m in range(Mp)], axis=-1)       # (C_out, C_in, Mp)
        y_ph = conv1d_cbt(x_cbt, w_ph, b, dilation=1, padding=Mp - 1,
                          pre_leaky=pre_leaky)                # (C_out,B,T_in+Mp-1)
        full = full.at[:, :, ph::stride].set(y_ph)
    return full[:, :, padding:padding + T_out]


# ----------------------------------------------------------------------------
# Deterministic parameter initialization
# ----------------------------------------------------------------------------

class ParamGen:
    def __init__(self, seed=0):
        self._key = jax.random.PRNGKey(seed)

    def __call__(self, shape, scale=None):
        self._key, sub = jax.random.split(self._key)
        if scale is None:
            fan_in = int(np.prod(shape[1:])) if len(shape) > 1 else shape[0]
            scale = 1.0 / math.sqrt(max(fan_in, 1))
        return scale * jax.random.normal(sub, shape, jnp.float32)


# ----------------------------------------------------------------------------
# Small helpers (glue)
# ----------------------------------------------------------------------------

def sequence_mask(lengths, max_len):
    return (jnp.arange(max_len)[None, :] < lengths[:, None]).astype(jnp.float32)


def layer_norm(x, g, b, eps=1e-5):
    mu = jnp.mean(x, axis=-1, keepdims=True)
    var = jnp.var(x, axis=-1, keepdims=True)
    return (x - mu) / jnp.sqrt(var + eps) * g + b


# ----------------------------------------------------------------------------
# Text encoder (embedding + simplified transformer block + projection)
# ----------------------------------------------------------------------------

def init_text_encoder(pg, vocabs, H, ffn):
    z = jnp.zeros
    return dict(
        emb=pg((vocabs, H), scale=1.0),
        wq=pg((H, H)), bq=z(H), wk=pg((H, H)), bk=z(H),
        wv=pg((H, H)), bv=z(H), wo=pg((H, H)), bo=z(H),
        ln1_g=jnp.ones(H), ln1_b=z(H), ln2_g=jnp.ones(H), ln2_b=z(H),
        ffn_w1=pg((H, ffn)), ffn_b1=z(ffn), ffn_w2=pg((ffn, H)), ffn_b2=z(H),
        proj_w=pg((2 * H, H, 1)), proj_b=z(2 * H),
    )


def text_encoder(p, text, text_lengths, heads):
    # TODO(synk): full conformer blocks (macaron FFN, rel-pos attention, conv
    # module) are reduced to a single vanilla self-attention + FFN block.
    B, T = text.shape
    H = p["emb"].shape[1]
    x_mask = sequence_mask(text_lengths, T)[:, None, :]          # (B, 1, T)
    x_mask2 = x_mask[:, 0, :].reshape(1, B * T)
    x = p["emb"][text] * math.sqrt(H)                            # (B, T, H)

    xf = x.reshape(B * T, H).T                                   # (H, B*T)
    q = fused_matmul(p["wq"].T, xf, p["bq"]).T.reshape(B, T, H)
    k = fused_matmul(p["wk"].T, xf, p["bk"]).T.reshape(B, T, H)
    v = fused_matmul(p["wv"].T, xf, p["bv"]).T.reshape(B, T, H)
    dk = H // heads

    def split_heads(t):
        return t.reshape(B, T, heads, dk).transpose(0, 2, 1, 3).reshape(
            B * heads, T, dk)

    qh, kh, vh = split_heads(q), split_heads(k), split_heads(v)
    scores = bmm(qh, jnp.transpose(kh, (0, 2, 1))) / math.sqrt(dk)
    key_mask = x_mask[:, 0, :]                                   # (B, T)
    bias = (1.0 - key_mask)[:, None, None, :] * (-1e9)
    scores = scores.reshape(B, heads, T, T) + bias
    attn = jax.nn.softmax(scores, axis=-1).reshape(B * heads, T, T)
    ctx = bmm(attn, vh)                                          # (B*h, T, dk)
    ctx = ctx.reshape(B, heads, T, dk).transpose(0, 2, 1, 3).reshape(B * T, H)
    out = fused_matmul(p["wo"].T, ctx.T, p["bo"]).T.reshape(B, T, H)
    x = layer_norm(x + out, p["ln1_g"], p["ln1_b"])

    xt = x.reshape(B * T, H).T
    hff = fused_matmul(p["ffn_w1"].T, xt, p["ffn_b1"], post_act="relu")
    hff = fused_matmul(p["ffn_w2"].T, hff, p["ffn_b2"]).T.reshape(B, T, H)
    x = layer_norm(x + hff, p["ln2_g"], p["ln2_b"])

    x_cbt = jnp.transpose(x, (2, 0, 1)) * x_mask2.reshape(1, B, T)   # (H, B, T)
    stats = conv1d_cbt(x_cbt, p["proj_w"], p["proj_b"], mask=x_mask2)  # (2H,B,T)
    m_p_c, logs_p_c = jnp.split(stats, 2, axis=0)
    m_p = jnp.transpose(m_p_c, (1, 0, 2))                        # (B, H, T)
    logs_p = jnp.transpose(logs_p_c, (1, 0, 2))
    return x_cbt, m_p, logs_p, x_mask, x_mask2


# ----------------------------------------------------------------------------
# WaveNet (WN) residual stack (shared by posterior encoder and flow)
# ----------------------------------------------------------------------------

def init_wn(pg, hidden, kernel_size, layers):
    p = {"in": [], "rs": []}
    for i in range(layers):
        p["in"].append((pg((2 * hidden, hidden, kernel_size)),
                        jnp.zeros(2 * hidden)))
        rs_ch = 2 * hidden if i < layers - 1 else hidden
        p["rs"].append((pg((rs_ch, hidden, 1)), jnp.zeros(rs_ch)))
    return p


def wavenet(p, x_cbt, mask2, kernel_size, base_dilation):
    """x_cbt: (H, B, T), mask2: (1, B*T). One fused pallas_call per layer."""
    H, B, T = x_cbt.shape
    N = B * T
    layers = len(p["in"])
    skip = jnp.zeros((H, N), jnp.float32)
    for i in range(layers):
        dil = base_dilation ** i
        pad = (kernel_size - 1) // 2 * dil
        w_in, b_in = p["in"][i]
        w_rs, b_rs = p["rs"][i]
        xcol, _ = _im2col(x_cbt, kernel_size, dil, pad)          # (K*H, N)
        w_in2 = jnp.transpose(w_in, (0, 2, 1)).reshape(2 * H, kernel_size * H)
        w_rs2 = w_rs[:, :, 0]
        x2 = x_cbt.reshape(H, N)
        newx2, skip = wn_layer(w_in2, b_in, w_rs2, b_rs, xcol, x2, skip, mask2,
                               is_last=(i == layers - 1))
        x_cbt = newx2.reshape(H, B, T)
    return skip.reshape(H, B, T)


# ----------------------------------------------------------------------------
# Posterior encoder
# ----------------------------------------------------------------------------

def init_posterior(pg, in_ch, out_ch, hidden, K, layers):
    return dict(
        input=(pg((hidden, in_ch, 1)), jnp.zeros(hidden)),
        wn=init_wn(pg, hidden, K, layers),
        proj=(pg((2 * out_ch, hidden, 1)), jnp.zeros(2 * out_ch)),
    )


def posterior_encoder(p, feats, feats_lengths, key, K, base_dil):
    B, _, T = feats.shape
    y_mask = sequence_mask(feats_lengths, T)[:, None, :]         # (B, 1, T)
    y_mask2 = y_mask[:, 0, :].reshape(1, B * T)
    feats_cbt = jnp.transpose(feats, (1, 0, 2))                  # (aux, B, T)
    x = conv1d_cbt(feats_cbt, *p["input"], mask=y_mask2)         # (H, B, T)
    x = wavenet(p["wn"], x, y_mask2, K, base_dil)
    stats = conv1d_cbt(x, *p["proj"], mask=y_mask2)              # (2H, B, T)
    m_c, logs_c = jnp.split(stats, 2, axis=0)
    noise = jax.random.normal(key, m_c.shape)
    z_c = (m_c + noise * jnp.exp(logs_c)) * y_mask2.reshape(1, B, T)
    z_bct = jnp.transpose(z_c, (1, 0, 2))
    m_q = jnp.transpose(m_c, (1, 0, 2))
    logs_q = jnp.transpose(logs_c, (1, 0, 2))
    return z_c, z_bct, m_q, logs_q, y_mask, y_mask2


# ----------------------------------------------------------------------------
# Flow (residual affine coupling block, mean-only, with channel flips)
# ----------------------------------------------------------------------------

def init_flow(pg, H, hidden, flows, K, layers):
    half = H // 2
    ps = []
    for _ in range(flows):
        ps.append(dict(
            input=(pg((hidden, half, 1)), jnp.zeros(hidden)),
            wn=init_wn(pg, hidden, K, layers),
            proj=(pg((half, hidden, 1)), jnp.zeros(half)),
        ))
    return ps


def flow_forward(ps, z_cbt, mask2, K, base_dil):
    x = z_cbt                                                    # (H, B, T)
    for fp in ps:
        half = x.shape[0] // 2
        xa, xb = x[:half], x[half:]
        h = conv1d_cbt(xa, *fp["input"], mask=mask2)
        h = wavenet(fp["wn"], h, mask2, K, base_dil)
        # xb_new = proj(h)*mask + xb   (logs == 0, xb already masked)
        xb_new = conv1d_cbt(h, *fp["proj"], mask=mask2, residual=xb)
        x = jnp.concatenate([xa, xb_new], axis=0)
        x = jnp.flip(x, axis=0)                                  # FlipFlow
    return x


# ----------------------------------------------------------------------------
# Duration predictor (simplified stochastic duration predictor)
# ----------------------------------------------------------------------------

def init_dur_pred(pg, H, K, dds_layers):
    return dict(
        pre=(pg((H, H, 1)), jnp.zeros(H)),
        dds=[(pg((H, H, K)), jnp.zeros(H)) for _ in range(dds_layers)],
        proj=(pg((2, H, 1)), jnp.zeros(2)),
    )


def duration_predictor(p, x_cbt, x_mask, x_mask2, w, K):
    # TODO(synk): the spline-based normalizing-flow NLL of
    # StochasticDurationPredictor is not replicated; a Gaussian NLL on
    # log-durations from the conv stack is used.
    H, B, T = x_cbt.shape
    h = conv1d_cbt(x_cbt, *p["pre"], mask=x_mask2)
    for i, (wc, bc) in enumerate(p["dds"]):
        dil = K ** i
        pad = (K - 1) // 2 * dil
        h = conv1d_cbt(h, wc, bc, dilation=dil, padding=pad,
                       post_act="gelu", mask=x_mask2)
    stats = conv1d_cbt(h, *p["proj"], mask=x_mask2)              # (2, B, T)
    m = jnp.transpose(stats[0:1], (1, 0, 2))                     # (B, 1, T)
    logs = jnp.transpose(stats[1:2], (1, 0, 2))
    logw = jnp.log(jnp.clip(w, 1e-6, None))
    nll = 0.5 * ((logw - m) ** 2 * jnp.exp(-2.0 * logs) + 2.0 * logs
                 + math.log(2 * math.pi))
    return jnp.sum(nll * x_mask, axis=(1, 2))                    # (B,)


# ----------------------------------------------------------------------------
# Monotonic alignment search (sequential DP, plain JAX)
# ----------------------------------------------------------------------------

def maximum_path(value, mask):
    """value, mask: (B, T_feats, T_text) -> hard path (B, T_feats, T_text)."""
    B, t_y, t_x = value.shape
    neg_inf = -1e9
    y_lens = jnp.sum(mask[:, :, 0], axis=1).astype(jnp.int32)
    x_lens = jnp.sum(mask[:, 0, :], axis=1).astype(jnp.int32)

    def single(val, y_len, x_len):
        x_idx = jnp.arange(t_x)

        def fwd(prev, y):
            prev_shift = jnp.concatenate(
                [jnp.where(y == 0, 0.0, neg_inf)[None], prev[:-1]])
            v_cur = jnp.where(x_idx == y, neg_inf, prev)
            cur = val[y] + jnp.maximum(v_cur, prev_shift)
            allowed = ((x_idx <= y) & (x_idx >= x_len + y - y_len)
                       & (x_idx < x_len) & (y < y_len))
            cur = jnp.where(allowed, cur, neg_inf)
            return cur, cur

        _, Q = lax.scan(fwd, jnp.full((t_x,), neg_inf), jnp.arange(t_y))

        def bwd(index, y):
            active = y < y_len
            row = jnp.where(active, 1.0, 0.0) * jax.nn.one_hot(index, t_x)
            q_same = jnp.where(y > 0, Q[y - 1, index], neg_inf)
            q_left = jnp.where((y > 0) & (index > 0), Q[y - 1, index - 1],
                               neg_inf)
            move = (index != 0) & ((index == y) | (q_same < q_left))
            new_index = jnp.where(active & move, index - 1, index)
            return new_index, row

        _, rows = lax.scan(bwd, x_len - 1, jnp.arange(t_y - 1, -1, -1))
        return rows[::-1]

    return jax.vmap(single)(value, y_lens, x_lens)


# ----------------------------------------------------------------------------
# Random segments
# ----------------------------------------------------------------------------

def get_random_segments(x, x_lengths, segment_size, key):
    B, C, T = x.shape
    max_start = jnp.maximum(x_lengths - segment_size, 0).astype(jnp.float32)
    start = (jax.random.uniform(key, (B,)) * max_start).astype(jnp.int32)

    def seg(xb, s):
        return lax.dynamic_slice(xb, (0, s), (C, segment_size))

    return jax.vmap(seg)(x, start), start


# ----------------------------------------------------------------------------
# HiFiGAN decoder
# ----------------------------------------------------------------------------

def init_decoder(pg, in_ch, out_ch, channels, K, ups_scales, ups_kernels,
                 rb_kernels, rb_dils):
    p = dict(input=(pg((channels, in_ch, K)), jnp.zeros(channels)),
             ups=[], blocks=[])
    c = channels
    for i, (s, uk) in enumerate(zip(ups_scales, ups_kernels)):
        c_out = channels // (2 ** (i + 1))
        p["ups"].append((pg((c, c_out, uk)), jnp.zeros(c_out)))    # (in, out, K)
        stage = []
        for rk, dils in zip(rb_kernels, rb_dils):
            block = {"convs1": [], "convs2": []}
            for _ in dils:
                block["convs1"].append((pg((c_out, c_out, rk)), jnp.zeros(c_out)))
                block["convs2"].append((pg((c_out, c_out, rk)), jnp.zeros(c_out)))
            stage.append(block)
        p["blocks"].append(stage)
        c = c_out
    p["output"] = (pg((out_ch, c, K)), jnp.zeros(out_ch))
    return p


def _resblock(block, x, rk, dils):
    for (w1, b1), (w2, b2), d in zip(block["convs1"], block["convs2"], dils):
        xt = conv1d_cbt(x, w1, b1, dilation=d, padding=(rk - 1) // 2 * d,
                        pre_leaky=True)
        x = conv1d_cbt(xt, w2, b2, dilation=1, padding=(rk - 1) // 2,
                       pre_leaky=True, residual=x)
    return x


def decoder(p, z_cbt, K, ups_scales, ups_kernels, rb_kernels, rb_dils):
    x = conv1d_cbt(z_cbt, *p["input"], padding=(K - 1) // 2)
    for i, (s, uk) in enumerate(zip(ups_scales, ups_kernels)):
        w, b = p["ups"][i]
        x = conv_transpose1d_cbt(x, w, b, stride=s, padding=(uk - s) // 2,
                                 pre_leaky=True)
        xs = None
        for block, rk, dils in zip(p["blocks"][i], rb_kernels, rb_dils):
            r = _resblock(block, x, rk, dils)
            xs = r if xs is None else xs + r
        x = xs / float(len(p["blocks"][i]))
    x = conv1d_cbt(x, *p["output"], padding=(K - 1) // 2,
                   pre_leaky=True, post_act="tanh")
    return x                                                     # (1, B, Tw)


# ----------------------------------------------------------------------------
# Full VITSGenerator forward
# ----------------------------------------------------------------------------

def build_params(cfg, seed=0):
    pg = ParamGen(seed)
    H = cfg["hidden_channels"]
    return dict(
        text_encoder=init_text_encoder(pg, cfg["vocabs"], H,
                                       H * cfg["ffn_expand"]),
        posterior=init_posterior(pg, cfg["aux_channels"], H, H,
                                 cfg["pe_kernel"], cfg["pe_layers"]),
        flow=init_flow(pg, H, H, cfg["flow_flows"], cfg["flow_kernel"],
                       cfg["flow_layers"]),
        dur=init_dur_pred(pg, H, cfg["dp_kernel"], cfg["dp_dds_layers"]),
        decoder=init_decoder(pg, H, 1, cfg["dec_channels"], cfg["dec_kernel"],
                             cfg["ups_scales"], cfg["ups_kernels"],
                             cfg["rb_kernels"], cfg["rb_dils"]),
    )


def vits_generator_forward(params, cfg, text, text_lengths, feats,
                           feats_lengths, rng):
    # g = None: spks / spk_embed_dim / langs disabled (global_channels = -1).
    x_cbt, m_p, logs_p, x_mask, x_mask2 = text_encoder(
        params["text_encoder"], text, text_lengths, cfg["heads"])
    k_post, k_seg = jax.random.split(rng)
    z_cbt, z_bct, m_q, logs_q, y_mask, y_mask2 = posterior_encoder(
        params["posterior"], feats, feats_lengths, k_post,
        cfg["pe_kernel"], cfg["pe_base_dil"])
    z_p_cbt = flow_forward(params["flow"], z_cbt, y_mask2,
                           cfg["flow_kernel"], cfg["flow_base_dil"])
    z_p = jnp.transpose(z_p_cbt, (1, 0, 2))                      # (B, H, Tf)

    # Alignment scores (no-grad block in torch; grads irrelevant here).
    s_p_sq_r = jnp.exp(-2.0 * logs_p)                            # (B, H, Tt)
    neg_x_ent_1 = jnp.sum(-0.5 * math.log(2 * math.pi) - logs_p,
                          axis=1, keepdims=True)                 # (B, 1, Tt)
    neg_x_ent_2 = bmm(-0.5 * jnp.transpose(z_p ** 2, (0, 2, 1)), s_p_sq_r)
    neg_x_ent_3 = bmm(jnp.transpose(z_p, (0, 2, 1)), m_p * s_p_sq_r)
    neg_x_ent_4 = jnp.sum(-0.5 * m_p ** 2 * s_p_sq_r, axis=1, keepdims=True)
    neg_x_ent = neg_x_ent_1 + neg_x_ent_2 + neg_x_ent_3 + neg_x_ent_4

    attn_mask = x_mask[:, :, None, :] * y_mask[:, :, :, None]    # (B,1,Tf,Tt)
    attn = maximum_path(neg_x_ent, attn_mask[:, 0])[:, None]     # (B,1,Tf,Tt)

    w = jnp.sum(attn, axis=2)                                    # (B, 1, Tt)
    dur_nll = duration_predictor(params["dur"], x_cbt, x_mask, x_mask2, w,
                                 cfg["dp_kernel"])
    dur_nll = dur_nll / jnp.sum(x_mask)

    m_p_e = jnp.transpose(bmm(attn[:, 0], jnp.transpose(m_p, (0, 2, 1))),
                          (0, 2, 1))
    logs_p_e = jnp.transpose(bmm(attn[:, 0], jnp.transpose(logs_p, (0, 2, 1))),
                             (0, 2, 1))

    z_segments, z_start = get_random_segments(z_bct, feats_lengths,
                                              cfg["segment_size"], k_seg)
    z_seg_cbt = jnp.transpose(z_segments, (1, 0, 2))
    wav_cbt = decoder(params["decoder"], z_seg_cbt, cfg["dec_kernel"],
                      cfg["ups_scales"], cfg["ups_kernels"],
                      cfg["rb_kernels"], cfg["rb_dils"])
    wav = jnp.transpose(wav_cbt, (1, 0, 2))                      # (B, 1, Tw)

    return (wav, dur_nll, attn, z_start, x_mask, y_mask,
            (z_bct, z_p, m_p_e, logs_p_e, m_q, logs_q))


# ----------------------------------------------------------------------------
# Main
# ----------------------------------------------------------------------------

if __name__ == "__main__":
    cfg = dict(
        vocabs=20, aux_channels=16, hidden_channels=32, heads=2, ffn_expand=4,
        segment_size=4,
        pe_kernel=5, pe_layers=2, pe_base_dil=1,
        flow_flows=2, flow_kernel=5, flow_layers=2, flow_base_dil=1,
        dp_kernel=3, dp_dds_layers=2,
        dec_channels=32, dec_kernel=7,
        ups_scales=[2, 2], ups_kernels=[4, 4],
        rb_kernels=[3], rb_dils=[[1, 3]],
    )
    params = build_params(cfg, seed=0)

    key = jax.random.PRNGKey(0)
    k_text, k_feats, k_fwd = jax.random.split(key, 3)
    B, T_text, T_feats = 2, 8, 16
    text = jax.random.randint(k_text, (B, T_text), 0, cfg["vocabs"], jnp.int32)
    text_lengths = jnp.array([8, 6], jnp.int32)
    feats = jax.random.normal(k_feats, (B, cfg["aux_channels"], T_feats),
                              jnp.float32)
    feats_lengths = jnp.array([16, 12], jnp.int32)

    fwd = jax.jit(functools.partial(vits_generator_forward, params, cfg))
    out = fwd(text, text_lengths, feats, feats_lengths, k_fwd)
    out = jax.tree_util.tree_map(lambda a: jax.block_until_ready(a), out)

    wav, dur_nll, attn, z_start, x_mask, y_mask, hidden = out
    assert wav.shape == (B, 1,
                         cfg["segment_size"] * int(np.prod(cfg["ups_scales"])))
    assert dur_nll.shape == (B,)
    assert attn.shape == (B, 1, T_feats, T_text)
    assert hidden[0].shape == (B, cfg["hidden_channels"], T_feats)
    print("KERNEL_OK")
</pallas_src>

<mosaic_0001>
module attributes {stable_mosaic.version = 11 : i64} {
  func.func @kernel(%arg0: i32, %arg1: memref<32x16xf32, #tpu.memory_space<vmem>>, %arg2: memref<16x32xf32, #tpu.memory_space<vmem>>, %arg3: memref<32x1xf32, #tpu.memory_space<vmem>>, %arg4: memref<1x32xf32, #tpu.memory_space<vmem>>, %arg5: memref<32x32xf32, #tpu.memory_space<vmem>>) attributes {dimension_semantics = [#tpu.dimension_semantics<arbitrary>], iteration_bounds = array<i64: 1>, scalar_prefetch = 0 : i64, scratch_operands = 0 : i64, tpu.core_type = #tpu.core_type<tc>, window_params = [{pipeline_mode = #tpu.pipeline_mode<synchronous>, transform_indices = @transform_0, window_bounds = array<i64: 32, 16>}, {pipeline_mode = #tpu.pipeline_mode<synchronous>, transform_indices = @transform_1, window_bounds = array<i64: 16, 32>}, {pipeline_mode = #tpu.pipeline_mode<synchronous>, transform_indices = @transform_2, window_bounds = array<i64: 32, 1>}, {pipeline_mode = #tpu.pipeline_mode<synchronous>, transform_indices = @transform_3, window_bounds = array<i64: 1, 32>}, {pipeline_mode = #tpu.pipeline_mode<synchronous>, transform_indices = @transform_4, window_bounds = array<i64: 32, 32>}]} {
    %c0 = arith.constant 0 : index
    %c0_0 = arith.constant 0 : index
    %0 = vector.load %arg2[%c0, %c0_0] : memref<16x32xf32, #tpu.memory_space<vmem>>, vector<16x32xf32>
    %c0_1 = arith.constant 0 : index
    %c0_2 = arith.constant 0 : index
    %1 = vector.load %arg1[%c0_1, %c0_2] : memref<32x16xf32, #tpu.memory_space<vmem>>, vector<32x16xf32>
    %cst = arith.constant dense<0.000000e+00> : vector<32x32xf32>
    %2 = tpu.matmul %1, %0, %cst {dimension_numbers = #tpu.dot_dimension_numbers<[1], [0], [0], [1], [0, 0, 1, 1], [], []>} : vector<32x16xf32>, vector<16x32xf32>, vector<32x32xf32> -> vector<32x32xf32>
    %c0_3 = arith.constant 0 : index
    %c0_4 = arith.constant 0 : index
    %3 = vector.load %arg3[%c0_3, %c0_4] : memref<32x1xf32, #tpu.memory_space<vmem>>, vector<32x1xf32>
    %4 = vector.broadcast %3 : vector<32x1xf32> to vector<32x32xf32>
    %5 = arith.addf %2, %4 : vector<32x32xf32>
    %c0_5 = arith.constant 0 : index
    %c0_6 = arith.constant 0 : index
    %6 = vector.load %arg4[%c0_5, %c0_6] : memref<1x32xf32, #tpu.memory_space<vmem>>, vector<1x32xf32>
    %7 = vector.broadcast %6 : vector<1x32xf32> to vector<32x32xf32>
    %8 = arith.mulf %5, %7 : vector<32x32xf32>
    %c0_7 = arith.constant 0 : index
    %c0_8 = arith.constant 0 : index
    %9 = vector.load %arg5[%c0_7, %c0_8] : memref<32x32xf32, #tpu.memory_space<vmem>>, vector<32x32xf32>
    tpu.vector_store %arg5[%c0_7, %c0_8], %8 {strides = array<i32>} : memref<32x32xf32, #tpu.memory_space<vmem>>, vector<32x32xf32>,
    return
  }
  func.func @transform_0(%arg0: i32) -> (i32, i32) {
    %c0_i32 = arith.constant 0 : i32
    %c0_i32_0 = arith.constant 0 : i32
    %c0_i32_1 = arith.constant 0 : i32
    return %c0_i32, %c0_i32_0 : i32, i32
  }
  func.func @transform_1(%arg0: i32) -> (i32, i32) {
    %c0_i32 = arith.constant 0 : i32
    %c0_i32_0 = arith.constant 0 : i32
    %c0_i32_1 = arith.constant 0 : i32
    return %c0_i32, %c0_i32_0 : i32, i32
  }
  func.func @transform_2(%arg0: i32) -> (i32, i32) {
    %c0_i32 = arith.constant 0 : i32
    %c0_i32_0 = arith.constant 0 : i32
    %c0_i32_1 = arith.constant 0 : i32
    return %c0_i32, %c0_i32_0 : i32, i32
  }
  func.func @transform_3(%arg0: i32) -> (i32, i32) {
    %c0_i32 = arith.constant 0 : i32
    %c0_i32_0 = arith.constant 0 : i32
    %c0_i32_1 = arith.constant 0 : i32
    return %c0_i32, %c0_i32_0 : i32, i32
  }
  func.func @transform_4(%arg0: i32) -> (i32, i32) {
    %c0_i32 = arith.constant 0 : i32
    %c0_i32_0 = arith.constant 0 : i32
    %c0_i32_1 = arith.constant 0 : i32
    return %c0_i32, %c0_i32_0 : i32, i32
  }
}

module attributes {stable_mosaic.version = 11 : i64} {
  func.func @kernel(%arg0: i32, %arg1: memref<64x160xf32, #tpu.memory_space<vmem>>, %arg2: memref<160x32xf32, #tpu.memory_space<vmem>>, %arg3: memref<64x1xf32, #tpu.memory_space<vmem>>, %arg4: memref<32x32xf32, #tpu.memory_space<vmem>>, %arg5: memref<32x1xf32, #tpu.memory_space<vmem>>, %arg6: memref<32x32xf32, #tpu.memory_space<vmem>>, %arg7: memref<32x32xf32, #tpu.memory_space<vmem>>, %arg8: memref<1x32xf32, #tpu.memory_space<vmem>>, %arg9: memref<32x32xf32, #tpu.memory_space<vmem>>, %arg10: memref<32x32xf32, #tpu.memory_space<vmem>>) attributes {dimension_semantics = [#tpu.dimension_semantics<arbitrary>], iteration_bounds = array<i64: 1>, scalar_prefetch = 0 : i64, scratch_operands = 0 : i64, tpu.core_type = #tpu.core_type<tc>, window_params = [{pipeline_mode = #tpu.pipeline_mode<synchronous>, transform_indices = @transform_0, window_bounds = array<i64: 64, 160>}, {pipeline_mode = #tpu.pipeline_mode<synchronous>, transform_indices = @transform_1, window_bounds = array<i64: 160, 32>}, {pipeline_mode = #tpu.pipeline_mode<synchronous>, transform_indices = @transform_2, window_bounds = array<i64: 64, 1>}, {pipeline_mode = #tpu.pipeline_mode<synchronous>, transform_indices = @transform_3, window_bounds = array<i64: 32, 32>}, {pipeline_mode = #tpu.pipeline_mode<synchronous>, transform_indices = @transform_4, window_bounds = array<i64: 32, 1>}, {pipeline_mode = #tpu.pipeline_mode<synchronous>, transform_indices = @transform_5, window_bounds = array<i64: 32, 32>}, {pipeline_mode = #tpu.pipeline_mode<synchronous>, transform_indices = @transform_6, window_bounds = array<i64: 32, 32>}, {pipeline_mode = #tpu.pipeline_mode<synchronous>, transform_indices = @transform_7, window_bounds = array<i64: 1, 32>}, {pipeline_mode = #tpu.pipeline_mode<synchronous>, transform_indices = @transform_8, window_bounds = array<i64: 32, 32>}, {pipeline_mode = #tpu.pipeline_mode<synchronous>, transform_indices = @transform_9, window_bounds = array<i64: 32, 32>}]} {
    %c0 = arith.constant 0 : index
    %c0_0 = arith.constant 0 : index
    %0 = vector.load %arg1[%c0, %c0_0] : memref<64x160xf32, #tpu.memory_space<vmem>>, vector<64x160xf32>
    %c0_1 = arith.constant 0 : index
    %c0_2 = arith.constant 0 : index
    %1 = vector.load %arg2[%c0_1, %c0_2] : memref<160x32xf32, #tpu.memory_space<vmem>>, vector<160x32xf32>
    %cst = arith.constant dense<0.000000e+00> : vector<64x32xf32>
    %2 = tpu.matmul %0, %1, %cst {dimension_numbers = #tpu.dot_dimension_numbers<[1], [0], [0], [1], [0, 0, 1, 1], [], []>} : vector<64x160xf32>, vector<160x32xf32>, vector<64x32xf32> -> vector<64x32xf32>
    %c0_3 = arith.constant 0 : index
    %c0_4 = arith.constant 0 : index
    %3 = vector.load %arg3[%c0_3, %c0_4] : memref<64x1xf32, #tpu.memory_space<vmem>>, vector<64x1xf32>
    %4 = vector.broadcast %3 : vector<64x1xf32> to vector<64x32xf32>
    %5 = arith.addf %2, %4 : vector<64x32xf32>
    %6 = vector.extract_strided_slice %5 {offsets = [0, 0], sizes = [32, 32], strides = [1, 1]} : vector<64x32xf32> to vector<32x32xf32>
    %7 = math.tanh %6 : vector<32x32xf32>
    %8 = vector.extract_strided_slice %5 {offsets = [32, 0], sizes = [32, 32], strides = [1, 1]} : vector<64x32xf32> to vector<32x32xf32>
    %9 = arith.negf %8 : vector<32x32xf32>
    %10 = math.exp %9 : vector<32x32xf32>
    %cst_5 = arith.constant 1.000000e+00 : f32
    %11 = vector.broadcast %cst_5 : f32 to vector<32x32xf32>
    %12 = arith.addf %11, %10 : vector<32x32xf32>
    %13 = arith.divf %11, %12 : vector<32x32xf32>
    %14 = arith.mulf %7, %13 : vector<32x32xf32>
    %c0_6 = arith.constant 0 : index
    %c0_7 = arith.constant 0 : index
    %15 = vector.load %arg4[%c0_6, %c0_7] : memref<32x32xf32, #tpu.memory_space<vmem>>, vector<32x32xf32>
    %cst_8 = arith.constant dense<0.000000e+00> : vector<32x32xf32>
    %16 = tpu.matmul %15, %14, %cst_8 {dimension_numbers = #tpu.dot_dimension_numbers<[1], [0], [0], [1], [0, 0, 1, 1], [], []>} : vector<32x32xf32>, vector<32x32xf32>, vector<32x32xf32> -> vector<32x32xf32>
    %c0_9 = arith.constant 0 : index
    %c0_10 = arith.constant 0 : index
    %17 = vector.load %arg5[%c0_9, %c0_10] : memref<32x1xf32, #tpu.memory_space<vmem>>, vector<32x1xf32>
    %18 = vector.broadcast %17 : vector<32x1xf32> to vector<32x32xf32>
    %19 = arith.addf %16, %18 : vector<32x32xf32>
    %c0_11 = arith.constant 0 : index
    %c0_12 = arith.constant 0 : index
    %20 = vector.load %arg8[%c0_11, %c0_12] : memref<1x32xf32, #tpu.memory_space<vmem>>, vector<1x32xf32>
    %c0_13 = arith.constant 0 : index
    %c0_14 = arith.constant 0 : index
    %21 = vector.load %arg6[%c0_13, %c0_14] : memref<32x32xf32, #tpu.memory_space<vmem>>, vector<32x32xf32>
    %c0_15 = arith.constant 0 : index
    %c0_16 = arith.constant 0 : index
    %22 = vector.load %arg9[%c0_15, %c0_16] : memref<32x32xf32, #tpu.memory_space<vmem>>, vector<32x32xf32>
    tpu.vector_store %arg9[%c0_15, %c0_16], %21 {strides = array<i32>} : memref<32x32xf32, #tpu.memory_space<vmem>>, vector<32x32xf32>,
    %c0_17 = arith.constant 0 : index
    %c0_18 = arith.constant 0 : index
    %23 = vector.load %arg7[%c0_17, %c0_18] : memref<32x32xf32, #tpu.memory_space<vmem>>, vector<32x32xf32>
    %24 = arith.addf %23, %19 : vector<32x32xf32>
    %25 = vector.broadcast %20 : vector<1x32xf32> to vector<32x32xf32>
    %26 = arith.mulf %24, %25 : vector<32x32xf32>
    %c0_19 = arith.constant 0 : index
    %c0_20 = arith.constant 0 : index
    %27 = vector.load %arg10[%c0_19, %c0_20] : memref<32x32xf32, #tpu.memory_space<vmem>>, vector<32x32xf32>
    tpu.vector_store %arg10[%c0_19, %c0_20], %26 {strides = array<i32>} : memref<32x32xf32, #tpu.memory_space<vmem>>, vector<32x32xf32>,
    return
  }
  func.func @transform_0(%arg0: i32) -> (i32, i32) {
    %c0_i32 = arith.constant 0 : i32
    %c0_i32_0 = arith.constant 0 : i32
    %c0_i32_1 = arith.constant 0 : i32
    return %c0_i32, %c0_i32_0 : i32, i32
  }
  func.func @transform_1(%arg0: i32) -> (i32, i32) {
    %c0_i32 = arith.constant 0 : i32
    %c0_i32_0 = arith.constant 0 : i32
    %c0_i32_1 = arith.constant 0 : i32
    return %c0_i32, %c0_i32_0 : i32, i32
  }
  func.func @transform_2(%arg0: i32) -> (i32, i32) {
    %c0_i32 = arith.constant 0 : i32
    %c0_i32_0 = arith.constant 0 : i32
    %c0_i32_1 = arith.constant 0 : i32
    return %c0_i32, %c0_i32_0 : i32, i32
  }
  func.func @transform_3(%arg0: i32) -> (i32, i32) {
    %c0_i32 = arith.constant 0 : i32
    %c0_i32_0 = arith.constant 0 : i32
    %c0_i32_1 = arith.constant 0 : i32
    return %c0_i32, %c0_i32_0 : i32, i32
  }
  func.func @transform_4(%arg0: i32) -> (i32, i32) {
    %c0_i32 = arith.constant 0 : i32
    %c0_i32_0 = arith.constant 0 : i32
    %c0_i32_1 = arith.constant 0 : i32
    return %c0_i32, %c0_i32_0 : i32, i32
  }
  func.func @transform_5(%arg0: i32) -> (i32, i32) {
    %c0_i32 = arith.constant 0 : i32
    %c0_i32_0 = arith.constant 0 : i32
    %c0_i32_1 = arith.constant 0 : i32
    return %c0_i32, %c0_i32_0 : i32, i32
  }
  func.func @transform_6(%arg0: i32) -> (i32, i32) {
    %c0_i32 = arith.constant 0 : i32
    %c0_i32_0 = arith.constant 0 : i32
    %c0_i32_1 = arith.constant 0 : i32
    return %c0_i32, %c0_i32_0 : i32, i32
  }
  func.func @transform_7(%arg0: i32) -> (i32, i32) {
    %c0_i32 = arith.constant 0 : i32
    %c0_i32_0 = arith.constant 0 : i32
    %c0_i32_1 = arith.constant 0 : i32
    return %c0_i32, %c0_i32_0 : i32, i32
  }
  func.func @transform_8(%arg0: i32) -> (i32, i32) {
    %c0_i32 = arith.constant 0 : i32
    %c0_i32_0 = arith.constant 0 : i32
    %c0_i32_1 = arith.constant 0 : i32
    return %c0_i32, %c0_i32_0 : i32, i32
  }
  func.func @transform_9(%arg0: i32) -> (i32, i32) {
    %c0_i32 = arith.constant 0 : i32
    %c0_i32_0 = arith.constant 0 : i32
    %c0_i32_1 = arith.constant 0 : i32
    return %c0_i32, %c0_i32_0 : i32, i32
  }
}

module attributes {stable_mosaic.version = 11 : i64} {
  func.func @kernel(%arg0: i32, %arg1: memref<64x160xf32, #tpu.memory_space<vmem>>, %arg2: memref<160x32xf32, #tpu.memory_space<vmem>>, %arg3: memref<64x1xf32, #tpu.memory_space<vmem>>, %arg4: memref<64x32xf32, #tpu.memory_space<vmem>>, %arg5: memref<64x1xf32, #tpu.memory_space<vmem>>, %arg6: memref<32x32xf32, #tpu.memory_space<vmem>>, %arg7: memref<32x32xf32, #tpu.memory_space<vmem>>, %arg8: memref<1x32xf32, #tpu.memory_space<vmem>>, %arg9: memref<32x32xf32, #tpu.memory_space<vmem>>, %arg10: memref<32x32xf32, #tpu.memory_space<vmem>>) attributes {dimension_semantics = [#tpu.dimension_semantics<arbitrary>], iteration_bounds = array<i64: 1>, scalar_prefetch = 0 : i64, scratch_operands = 0 : i64, tpu.core_type = #tpu.core_type<tc>, window_params = [{pipeline_mode = #tpu.pipeline_mode<synchronous>, transform_indices = @transform_0, window_bounds = array<i64: 64, 160>}, {pipeline_mode = #tpu.pipeline_mode<synchronous>, transform_indices = @transform_1, window_bounds = array<i64: 160, 32>}, {pipeline_mode = #tpu.pipeline_mode<synchronous>, transform_indices = @transform_2, window_bounds = array<i64: 64, 1>}, {pipeline_mode = #tpu.pipeline_mode<synchronous>, transform_indices = @transform_3, window_bounds = array<i64: 64, 32>}, {pipeline_mode = #tpu.pipeline_mode<synchronous>, transform_indices = @transform_4, window_bounds = array<i64: 64, 1>}, {pipeline_mode = #tpu.pipeline_mode<synchronous>, transform_indices = @transform_5, window_bounds = array<i64: 32, 32>}, {pipeline_mode = #tpu.pipeline_mode<synchronous>, transform_indices = @transform_6, window_bounds = array<i64: 32, 32>}, {pipeline_mode = #tpu.pipeline_mode<synchronous>, transform_indices = @transform_7, window_bounds = array<i64: 1, 32>}, {pipeline_mode = #tpu.pipeline_mode<synchronous>, transform_indices = @transform_8, window_bounds = array<i64: 32, 32>}, {pipeline_mode = #tpu.pipeline_mode<synchronous>, transform_indices = @transform_9, window_bounds = array<i64: 32, 32>}]} {
    %c0 = arith.constant 0 : index
    %c0_0 = arith.constant 0 : index
    %0 = vector.load %arg1[%c0, %c0_0] : memref<64x160xf32, #tpu.memory_space<vmem>>, vector<64x160xf32>
    %c0_1 = arith.constant 0 : index
    %c0_2 = arith.constant 0 : index
    %1 = vector.load %arg2[%c0_1, %c0_2] : memref<160x32xf32, #tpu.memory_space<vmem>>, vector<160x32xf32>
    %cst = arith.constant dense<0.000000e+00> : vector<64x32xf32>
    %2 = tpu.matmul %0, %1, %cst {dimension_numbers = #tpu.dot_dimension_numbers<[1], [0], [0], [1], [0, 0, 1, 1], [], []>} : vector<64x160xf32>, vector<160x32xf32>, vector<64x32xf32> -> vector<64x32xf32>
    %c0_3 = arith.constant 0 : index
    %c0_4 = arith.constant 0 : index
    %3 = vector.load %arg3[%c0_3, %c0_4] : memref<64x1xf32, #tpu.memory_space<vmem>>, vector<64x1xf32>
    %4 = vector.broadcast %3 : vector<64x1xf32> to vector<64x32xf32>
    %5 = arith.addf %2, %4 : vector<64x32xf32>
    %6 = vector.extract_strided_slice %5 {offsets = [0, 0], sizes = [32, 32], strides = [1, 1]} : vector<64x32xf32> to vector<32x32xf32>
    %7 = math.tanh %6 : vector<32x32xf32>
    %8 = vector.extract_strided_slice %5 {offsets = [32, 0], sizes = [32, 32], strides = [1, 1]} : vector<64x32xf32> to vector<32x32xf32>
    %9 = arith.negf %8 : vector<32x32xf32>
    %10 = math.exp %9 : vector<32x32xf32>
    %cst_5 = arith.constant 1.000000e+00 : f32
    %11 = vector.broadcast %cst_5 : f32 to vector<32x32xf32>
    %12 = arith.addf %11, %10 : vector<32x32xf32>
    %13 = arith.divf %11, %12 : vector<32x32xf32>
    %14 = arith.mulf %7, %13 : vector<32x32xf32>
    %c0_6 = arith.constant 0 : index
    %c0_7 = arith.constant 0 : index
    %15 = vector.load %arg4[%c0_6, %c0_7] : memref<64x32xf32, #tpu.memory_space<vmem>>, vector<64x32xf32>
    %cst_8 = arith.constant dense<0.000000e+00> : vector<64x32xf32>
    %16 = tpu.matmul %15, %14, %cst_8 {dimension_numbers = #tpu.dot_dimension_numbers<[1], [0], [0], [1], [0, 0, 1, 1], [], []>} : vector<64x32xf32>, vector<32x32xf32>, vector<64x32xf32> -> vector<64x32xf32>
    %c0_9 = arith.constant 0 : index
    %c0_10 = arith.constant 0 : index
    %17 = vector.load %arg5[%c0_9, %c0_10] : memref<64x1xf32, #tpu.memory_space<vmem>>, vector<64x1xf32>
    %18 = vector.broadcast %17 : vector<64x1xf32> to vector<64x32xf32>
    %19 = arith.addf %16, %18 : vector<64x32xf32>
    %c0_11 = arith.constant 0 : index
    %c0_12 = arith.constant 0 : index
    %20 = vector.load %arg8[%c0_11, %c0_12] : memref<1x32xf32, #tpu.memory_space<vmem>>, vector<1x32xf32>
    %c0_13 = arith.constant 0 : index
    %c0_14 = arith.constant 0 : index
    %21 = vector.load %arg6[%c0_13, %c0_14] : memref<32x32xf32, #tpu.memory_space<vmem>>, vector<32x32xf32>
    %22 = vector.extract_strided_slice %19 {offsets = [0, 0], sizes = [32, 32], strides = [1, 1]} : vector<64x32xf32> to vector<32x32xf32>
    %23 = arith.addf %21, %22 : vector<32x32xf32>
    %24 = vector.broadcast %20 : vector<1x32xf32> to vector<32x32xf32>
    %25 = arith.mulf %23, %24 : vector<32x32xf32>
    %c0_15 = arith.constant 0 : index
    %c0_16 = arith.constant 0 : index
    %26 = vector.load %arg9[%c0_15, %c0_16] : memref<32x32xf32, #tpu.memory_space<vmem>>, vector<32x32xf32>
    tpu.vector_store %arg9[%c0_15, %c0_16], %25 {strides = array<i32>} : memref<32x32xf32, #tpu.memory_space<vmem>>, vector<32x32xf32>,
    %c0_17 = arith.constant 0 : index
    %c0_18 = arith.constant 0 : index
    %27 = vector.load %arg7[%c0_17, %c0_18] : memref<32x32xf32, #tpu.memory_space<vmem>>, vector<32x32xf32>
    %28 = vector.extract_strided_slice %19 {offsets = [32, 0], sizes = [32, 32], strides = [1, 1]} : vector<64x32xf32> to vector<32x32xf32>
    %29 = arith.addf %27, %28 : vector<32x32xf32>
    %c0_19 = arith.constant 0 : index
    %c0_20 = arith.constant 0 : index
    %30 = vector.load %arg10[%c0_19, %c0_20] : memref<32x32xf32, #tpu.memory_space<vmem>>, vector<32x32xf32>
    tpu.vector_store %arg10[%c0_19, %c0_20], %29 {strides = array<i32>} : memref<32x32xf32, #tpu.memory_space<vmem>>, vector<32x32xf32>,
    return
  }
  func.func @transform_0(%arg0: i32) -> (i32, i32) {
    %c0_i32 = arith.constant 0 : i32
    %c0_i32_0 = arith.constant 0 : i32
    %c0_i32_1 = arith.constant 0 : i32
    return %c0_i32, %c0_i32_0 : i32, i32
  }
  func.func @transform_1(%arg0: i32) -> (i32, i32) {
    %c0_i32 = arith.constant 0 : i32
    %c0_i32_0 = arith.constant 0 : i32
    %c0_i32_1 = arith.constant 0 : i32
    return %c0_i32, %c0_i32_0 : i32, i32
  }
  func.func @transform_2(%arg0: i32) -> (i32, i32) {
    %c0_i32 = arith.constant 0 : i32
    %c0_i32_0 = arith.constant 0 : i32
    %c0_i32_1 = arith.constant 0 : i32
    return %c0_i32, %c0_i32_0 : i32, i32
  }
  func.func @transform_3(%arg0: i32) -> (i32, i32) {
    %c0_i32 = arith.constant 0 : i32
    %c0_i32_0 = arith.constant 0 : i32
    %c0_i32_1 = arith.constant 0 : i32
    return %c0_i32, %c0_i32_0 : i32, i32
  }
  func.func @transform_4(%arg0: i32) -> (i32, i32) {
    %c0_i32 = arith.constant 0 : i32
    %c0_i32_0 = arith.constant 0 : i32
    %c0_i32_1 = arith.constant 0 : i32
    return %c0_i32, %c0_i32_0 : i32, i32
  }
  func.func @transform_5(%arg0: i32) -> (i32, i32) {
    %c0_i32 = arith.constant 0 : i32
    %c0_i32_0 = arith.constant 0 : i32
    %c0_i32_1 = arith.constant 0 : i32
    return %c0_i32, %c0_i32_0 : i32, i32
  }
  func.func @transform_6(%arg0: i32) -> (i32, i32) {
    %c0_i32 = arith.constant 0 : i32
    %c0_i32_0 = arith.constant 0 : i32
    %c0_i32_1 = arith.constant 0 : i32
    return %c0_i32, %c0_i32_0 : i32, i32
  }
  func.func @transform_7(%arg0: i32) -> (i32, i32) {
    %c0_i32 = arith.constant 0 : i32
    %c0_i32_0 = arith.constant 0 : i32
    %c0_i32_1 = arith.constant 0 : i32
    return %c0_i32, %c0_i32_0 : i32, i32
  }
  func.func @transform_8(%arg0: i32) -> (i32, i32) {
    %c0_i32 = arith.constant 0 : i32
    %c0_i32_0 = arith.constant 0 : i32
    %c0_i32_1 = arith.constant 0 : i32
    return %c0_i32, %c0_i32_0 : i32, i32
  }
  func.func @transform_9(%arg0: i32) -> (i32, i32) {
    %c0_i32 = arith.constant 0 : i32
    %c0_i32_0 = arith.constant 0 : i32
    %c0_i32_1 = arith.constant 0 : i32
    return %c0_i32, %c0_i32_0 : i32, i32
  }
}

module attributes {stable_mosaic.version = 11 : i64} {
  func.func @kernel(%arg0: i32, %arg1: memref<64x32xf32, #tpu.memory_space<vmem>>, %arg2: memref<32x32xf32, #tpu.memory_space<vmem>>, %arg3: memref<64x1xf32, #tpu.memory_space<vmem>>, %arg4: memref<1x32xf32, #tpu.memory_space<vmem>>, %arg5: memref<64x32xf32, #tpu.memory_space<vmem>>) attributes {dimension_semantics = [#tpu.dimension_semantics<arbitrary>], iteration_bounds = array<i64: 1>, scalar_prefetch = 0 : i64, scratch_operands = 0 : i64, tpu.core_type = #tpu.core_type<tc>, window_params = [{pipeline_mode = #tpu.pipeline_mode<synchronous>, transform_indices = @transform_0, window_bounds = array<i64: 64, 32>}, {pipeline_mode = #tpu.pipeline_mode<synchronous>, transform_indices = @transform_1, window_bounds = array<i64: 32, 32>}, {pipeline_mode = #tpu.pipeline_mode<synchronous>, transform_indices = @transform_2, window_bounds = array<i64: 64, 1>}, {pipeline_mode = #tpu.pipeline_mode<synchronous>, transform_indices = @transform_3, window_bounds = array<i64: 1, 32>}, {pipeline_mode = #tpu.pipeline_mode<synchronous>, transform_indices = @transform_4, window_bounds = array<i64: 64, 32>}]} {
    %c0 = arith.constant 0 : index
    %c0_0 = arith.constant 0 : index
    %0 = vector.load %arg2[%c0, %c0_0] : memref<32x32xf32, #tpu.memory_space<vmem>>, vector<32x32xf32>
    %c0_1 = arith.constant 0 : index
    %c0_2 = arith.constant 0 : index
    %1 = vector.load %arg1[%c0_1, %c0_2] : memref<64x32xf32, #tpu.memory_space<vmem>>, vector<64x32xf32>
    %cst = arith.constant dense<0.000000e+00> : vector<64x32xf32>
    %2 = tpu.matmul %1, %0, %cst {dimension_numbers = #tpu.dot_dimension_numbers<[1], [0], [0], [1], [0, 0, 1, 1], [], []>} : vector<64x32xf32>, vector<32x32xf32>, vector<64x32xf32> -> vector<64x32xf32>
    %c0_3 = arith.constant 0 : index
    %c0_4 = arith.constant 0 : index
    %3 = vector.load %arg3[%c0_3, %c0_4] : memref<64x1xf32, #tpu.memory_space<vmem>>, vector<64x1xf32>
    %4 = vector.broadcast %3 : vector<64x1xf32> to vector<64x32xf32>
    %5 = arith.addf %2, %4 : vector<64x32xf32>
    %c0_5 = arith.constant 0 : index
    %c0_6 = arith.constant 0 : index
    %6 = vector.load %arg4[%c0_5, %c0_6] : memref<1x32xf32, #tpu.memory_space<vmem>>, vector<1x32xf32>
    %7 = vector.broadcast %6 : vector<1x32xf32> to vector<64x32xf32>
    %8 = arith.mulf %5, %7 : vector<64x32xf32>
    %c0_7 = arith.constant 0 : index
    %c0_8 = arith.constant 0 : index
    %9 = vector.load %arg5[%c0_7, %c0_8] : memref<64x32xf32, #tpu.memory_space<vmem>>, vector<64x32xf32>
    tpu.vector_store %arg5[%c0_7, %c0_8], %8 {strides = array<i32>} : memref<64x32xf32, #tpu.memory_space<vmem>>, vector<64x32xf32>,
    return
  }
  func.func @transform_0(%arg0: i32) -> (i32, i32) {
    %c0_i32 = arith.constant 0 : i32
    %c0_i32_0 = arith.constant 0 : i32
    %c0_i32_1 = arith.constant 0 : i32
    return %c0_i32, %c0_i32_0 : i32, i32
  }
  func.func @transform_1(%arg0: i32) -> (i32, i32) {
    %c0_i32 = arith.constant 0 : i32
    %c0_i32_0 = arith.constant 0 : i32
    %c0_i32_1 = arith.constant 0 : i32
    return %c0_i32, %c0_i32_0 : i32, i32
  }
  func.func @transform_2(%arg0: i32) -> (i32, i32) {
    %c0_i32 = arith.constant 0 : i32
    %c0_i32_0 = arith.constant 0 : i32
    %c0_i32_1 = arith.constant 0 : i32
    return %c0_i32, %c0_i32_0 : i32, i32
  }
  func.func @transform_3(%arg0: i32) -> (i32, i32) {
    %c0_i32 = arith.constant 0 : i32
    %c0_i32_0 = arith.constant 0 : i32
    %c0_i32_1 = arith.constant 0 : i32
    return %c0_i32, %c0_i32_0 : i32, i32
  }
  func.func @transform_4(%arg0: i32) -> (i32, i32) {
    %c0_i32 = arith.constant 0 : i32
    %c0_i32_0 = arith.constant 0 : i32
    %c0_i32_1 = arith.constant 0 : i32
    return %c0_i32, %c0_i32_0 : i32, i32
  }
}

module attributes {stable_mosaic.version = 11 : i64} {
  func.func @kernel(%arg0: i32, %arg1: memref<16x32xf32, #tpu.memory_space<vmem>>, %arg2: memref<32x32xf32, #tpu.memory_space<vmem>>, %arg3: memref<16x1xf32, #tpu.memory_space<vmem>>, %arg4: memref<1x32xf32, #tpu.memory_space<vmem>>, %arg5: memref<16x32xf32, #tpu.memory_space<vmem>>, %arg6: memref<16x32xf32, #tpu.memory_space<vmem>>) attributes {dimension_semantics = [#tpu.dimension_semantics<arbitrary>], iteration_bounds = array<i64: 1>, scalar_prefetch = 0 : i64, scratch_operands = 0 : i64, tpu.core_type = #tpu.core_type<tc>, window_params = [{pipeline_mode = #tpu.pipeline_mode<synchronous>, transform_indices = @transform_0, window_bounds = array<i64: 16, 32>}, {pipeline_mode = #tpu.pipeline_mode<synchronous>, transform_indices = @transform_1, window_bounds = array<i64: 32, 32>}, {pipeline_mode = #tpu.pipeline_mode<synchronous>, transform_indices = @transform_2, window_bounds = array<i64: 16, 1>}, {pipeline_mode = #tpu.pipeline_mode<synchronous>, transform_indices = @transform_3, window_bounds = array<i64: 1, 32>}, {pipeline_mode = #tpu.pipeline_mode<synchronous>, transform_indices = @transform_4, window_bounds = array<i64: 16, 32>}, {pipeline_mode = #tpu.pipeline_mode<synchronous>, transform_indices = @transform_5, window_bounds = array<i64: 16, 32>}]} {
    %c0 = arith.constant 0 : index
    %c0_0 = arith.constant 0 : index
    %0 = vector.load %arg2[%c0, %c0_0] : memref<32x32xf32, #tpu.memory_space<vmem>>, vector<32x32xf32>
    %c0_1 = arith.constant 0 : index
    %c0_2 = arith.constant 0 : index
    %1 = vector.load %arg1[%c0_1, %c0_2] : memref<16x32xf32, #tpu.memory_space<vmem>>, vector<16x32xf32>
    %cst = arith.constant dense<0.000000e+00> : vector<16x32xf32>
    %2 = tpu.matmul %1, %0, %cst {dimension_numbers = #tpu.dot_dimension_numbers<[1], [0], [0], [1], [0, 0, 1, 1], [], []>} : vector<16x32xf32>, vector<32x32xf32>, vector<16x32xf32> -> vector<16x32xf32>
    %c0_3 = arith.constant 0 : index
    %c0_4 = arith.constant 0 : index
    %3 = vector.load %arg3[%c0_3, %c0_4] : memref<16x1xf32, #tpu.memory_space<vmem>>, vector<16x1xf32>
    %4 = vector.broadcast %3 : vector<16x1xf32> to vector<16x32xf32>
    %5 = arith.addf %2, %4 : vector<16x32xf32>
    %c0_5 = arith.constant 0 : index
    %c0_6 = arith.constant 0 : index
    %6 = vector.load %arg4[%c0_5, %c0_6] : memref<1x32xf32, #tpu.memory_space<vmem>>, vector<1x32xf32>
    %7 = vector.broadcast %6 : vector<1x32xf32> to vector<16x32xf32>
    %8 = arith.mulf %5, %7 : vector<16x32xf32>
    %c0_7 = arith.constant 0 : index
    %c0_8 = arith.constant 0 : index
    %9 = vector.load %arg5[%c0_7, %c0_8] : memref<16x32xf32, #tpu.memory_space<vmem>>, vector<16x32xf32>
    %10 = arith.addf %8, %9 : vector<16x32xf32>
    %c0_9 = arith.constant 0 : index
    %c0_10 = arith.constant 0 : index
    %11 = vector.load %arg6[%c0_9, %c0_10] : memref<16x32xf32, #tpu.memory_space<vmem>>, vector<16x32xf32>
    tpu.vector_store %arg6[%c0_9, %c0_10], %10 {strides = array<i32>} : memref<16x32xf32, #tpu.memory_space<vmem>>, vector<16x32xf32>,
    return
  }
  func.func @transform_0(%arg0: i32) -> (i32, i32) {
    %c0_i32 = arith.constant 0 : i32
    %c0_i32_0 = arith.constant 0 : i32
    %c0_i32_1 = arith.constant 0 : i32
    return %c0_i32, %c0_i32_0 : i32, i32
  }
  func.func @transform_1(%arg0: i32) -> (i32, i32) {
    %c0_i32 = arith.constant 0 : i32
    %c0_i32_0 = arith.constant 0 : i32
    %c0_i32_1 = arith.constant 0 : i32
    return %c0_i32, %c0_i32_0 : i32, i32
  }
  func.func @transform_2(%arg0: i32) -> (i32, i32) {
    %c0_i32 = arith.constant 0 : i32
    %c0_i32_0 = arith.constant 0 : i32
    %c0_i32_1 = arith.constant 0 : i32
    return %c0_i32, %c0_i32_0 : i32, i32
  }
  func.func @transform_3(%arg0: i32) -> (i32, i32) {
    %c0_i32 = arith.constant 0 : i32
    %c0_i32_0 = arith.constant 0 : i32
    %c0_i32_1 = arith.constant 0 : i32
    return %c0_i32, %c0_i32_0 : i32, i32
  }
  func.func @transform_4(%arg0: i32) -> (i32, i32) {
    %c0_i32 = arith.constant 0 : i32
    %c0_i32_0 = arith.constant 0 : i32
    %c0_i32_1 = arith.constant 0 : i32
    return %c0_i32, %c0_i32_0 : i32, i32
  }
  func.func @transform_5(%arg0: i32) -> (i32, i32) {
    %c0_i32 = arith.constant 0 : i32
    %c0_i32_0 = arith.constant 0 : i32
    %c0_i32_1 = arith.constant 0 : i32
    return %c0_i32, %c0_i32_0 : i32, i32
  }
}

module attributes {stable_mosaic.version = 11 : i64} {
  func.func @kernel(%arg0: i32, %arg1: memref<32x32xf32, #tpu.memory_space<vmem>>, %arg2: memref<32x16xf32, #tpu.memory_space<vmem>>, %arg3: memref<32x1xf32, #tpu.memory_space<vmem>>, %arg4: memref<32x16xf32, #tpu.memory_space<vmem>>) attributes {dimension_semantics = [#tpu.dimension_semantics<arbitrary>], iteration_bounds = array<i64: 1>, scalar_prefetch = 0 : i64, scratch_operands = 0 : i64, tpu.core_type = #tpu.core_type<tc>, window_params = [{pipeline_mode = #tpu.pipeline_mode<synchronous>, transform_indices = @transform_0, window_bounds = array<i64: 32, 32>}, {pipeline_mode = #tpu.pipeline_mode<synchronous>, transform_indices = @transform_1, window_bounds = array<i64: 32, 16>}, {pipeline_mode = #tpu.pipeline_mode<synchronous>, transform_indices = @transform_2, window_bounds = array<i64: 32, 1>}, {pipeline_mode = #tpu.pipeline_mode<synchronous>, transform_indices = @transform_3, window_bounds = array<i64: 32, 16>}]} {
    %c0 = arith.constant 0 : index
    %c0_0 = arith.constant 0 : index
    %0 = vector.load %arg2[%c0, %c0_0] : memref<32x16xf32, #tpu.memory_space<vmem>>, vector<32x16xf32>
    %c0_1 = arith.constant 0 : index
    %c0_2 = arith.constant 0 : index
    %1 = vector.load %arg1[%c0_1, %c0_2] : memref<32x32xf32, #tpu.memory_space<vmem>>, vector<32x32xf32>
    %cst = arith.constant dense<0.000000e+00> : vector<32x16xf32>
    %2 = tpu.matmul %1, %0, %cst {dimension_numbers = #tpu.dot_dimension_numbers<[1], [0], [0], [1], [0, 0, 1, 1], [], []>} : vector<32x32xf32>, vector<32x16xf32>, vector<32x16xf32> -> vector<32x16xf32>
    %c0_3 = arith.constant 0 : index
    %c0_4 = arith.constant 0 : index
    %3 = vector.load %arg3[%c0_3, %c0_4] : memref<32x1xf32, #tpu.memory_space<vmem>>, vector<32x1xf32>
    %4 = vector.broadcast %3 : vector<32x1xf32> to vector<32x16xf32>
    %5 = arith.addf %2, %4 : vector<32x16xf32>
    %c0_5 = arith.constant 0 : index
    %c0_6 = arith.constant 0 : index
    %6 = vector.load %arg4[%c0_5, %c0_6] : memref<32x16xf32, #tpu.memory_space<vmem>>, vector<32x16xf32>
    tpu.vector_store %arg4[%c0_5, %c0_6], %5 {strides = array<i32>} : memref<32x16xf32, #tpu.memory_space<vmem>>, vector<32x16xf32>,
    return
  }
  func.func @transform_0(%arg0: i32) -> (i32, i32) {
    %c0_i32 = arith.constant 0 : i32
    %c0_i32_0 = arith.constant 0 : i32
    %c0_i32_1 = arith.constant 0 : i32
    return %c0_i32, %c0_i32_0 : i32, i32
  }
  func.func @transform_1(%arg0: i32) -> (i32, i32) {
    %c0_i32 = arith.constant 0 : i32
    %c0_i32_0 = arith.constant 0 : i32
    %c0_i32_1 = arith.constant 0 : i32
    return %c0_i32, %c0_i32_0 : i32, i32
  }
  func.func @transform_2(%arg0: i32) -> (i32, i32) {
    %c0_i32 = arith.constant 0 : i32
    %c0_i32_0 = arith.constant 0 : i32
    %c0_i32_1 = arith.constant 0 : i32
    return %c0_i32, %c0_i32_0 : i32, i32
  }
  func.func @transform_3(%arg0: i32) -> (i32, i32) {
    %c0_i32 = arith.constant 0 : i32
    %c0_i32_0 = arith.constant 0 : i32
    %c0_i32_1 = arith.constant 0 : i32
    return %c0_i32, %c0_i32_0 : i32, i32
  }
}

module attributes {stable_mosaic.version = 11 : i64} {
  func.func @kernel(%arg0: i32, %arg1: memref<4x8x16xf32, #tpu.memory_space<vmem>>, %arg2: memref<4x16x8xf32, #tpu.memory_space<vmem>>, %arg3: memref<4x8x8xf32, #tpu.memory_space<vmem>>) attributes {dimension_semantics = [#tpu.dimension_semantics<arbitrary>], iteration_bounds = array<i64: 1>, scalar_prefetch = 0 : i64, scratch_operands = 0 : i64, tpu.core_type = #tpu.core_type<tc>, window_params = [{pipeline_mode = #tpu.pipeline_mode<synchronous>, transform_indices = @transform_0, window_bounds = array<i64: 4, 8, 16>}, {pipeline_mode = #tpu.pipeline_mode<synchronous>, transform_indices = @transform_1, window_bounds = array<i64: 4, 16, 8>}, {pipeline_mode = #tpu.pipeline_mode<synchronous>, transform_indices = @transform_2, window_bounds = array<i64: 4, 8, 8>}]} {
    %c0 = arith.constant 0 : index
    %c0_0 = arith.constant 0 : index
    %c0_1 = arith.constant 0 : index
    %0 = vector.load %arg1[%c0, %c0_0, %c0_1] : memref<4x8x16xf32, #tpu.memory_space<vmem>>, vector<1x8x16xf32>
    %1 = vector.shape_cast %0 : vector<1x8x16xf32> to vector<8x16xf32>
    %c0_2 = arith.constant 0 : index
    %c0_3 = arith.constant 0 : index
    %c0_4 = arith.constant 0 : index
    %2 = vector.load %arg2[%c0_2, %c0_3, %c0_4] : memref<4x16x8xf32, #tpu.memory_space<vmem>>, vector<1x16x8xf32>
    %3 = vector.shape_cast %2 : vector<1x16x8xf32> to vector<16x8xf32>
    %cst = arith.constant dense<0.000000e+00> : vector<8x8xf32>
    %4 = tpu.matmul %1, %3, %cst {dimension_numbers = #tpu.dot_dimension_numbers<[1], [0], [0], [1], [0, 0, 1, 1], [], []>} : vector<8x16xf32>, vector<16x8xf32>, vector<8x8xf32> -> vector<8x8xf32>
    %c0_5 = arith.constant 0 : index
    %c0_6 = arith.constant 0 : index
    %c0_7 = arith.constant 0 : index
    %5 = vector.load %arg3[%c0_5, %c0_6, %c0_7] : memref<4x8x8xf32, #tpu.memory_space<vmem>>, vector<1x8x8xf32>
    %6 = vector.shape_cast %5 : vector<1x8x8xf32> to vector<8x8xf32>
    %7 = vector.shape_cast %4 : vector<8x8xf32> to vector<1x8x8xf32>
    tpu.vector_store %arg3[%c0_5, %c0_6, %c0_7], %7 {strides = array<i32>} : memref<4x8x8xf32, #tpu.memory_space<vmem>>, vector<1x8x8xf32>,
    %c1 = arith.constant 1 : index
    %c0_8 = arith.constant 0 : index
    %c0_9 = arith.constant 0 : index
    %8 = vector.load %arg1[%c1, %c0_8, %c0_9] : memref<4x8x16xf32, #tpu.memory_space<vmem>>, vector<1x8x16xf32>
    %9 = vector.shape_cast %8 : vector<1x8x16xf32> to vector<8x16xf32>
    %c1_10 = arith.constant 1 : index
    %c0_11 = arith.constant 0 : index
    %c0_12 = arith.constant 0 : index
    %10 = vector.load %arg2[%c1_10, %c0_11, %c0_12] : memref<4x16x8xf32, #tpu.memory_space<vmem>>, vector<1x16x8xf32>
    %11 = vector.shape_cast %10 : vector<1x16x8xf32> to vector<16x8xf32>
    %cst_13 = arith.constant dense<0.000000e+00> : vector<8x8xf32>
    %12 = tpu.matmul %9, %11, %cst_13 {dimension_numbers = #tpu.dot_dimension_numbers<[1], [0], [0], [1], [0, 0, 1, 1], [], []>} : vector<8x16xf32>, vector<16x8xf32>, vector<8x8xf32> -> vector<8x8xf32>
    %c1_14 = arith.constant 1 : index
    %c0_15 = arith.constant 0 : index
    %c0_16 = arith.constant 0 : index
    %13 = vector.load %arg3[%c1_14, %c0_15, %c0_16] : memref<4x8x8xf32, #tpu.memory_space<vmem>>, vector<1x8x8xf32>
    %14 = vector.shape_cast %13 : vector<1x8x8xf32> to vector<8x8xf32>
    %15 = vector.shape_cast %12 : vector<8x8xf32> to vector<1x8x8xf32>
    tpu.vector_store %arg3[%c1_14, %c0_15, %c0_16], %15 {strides = array<i32>} : memref<4x8x8xf32, #tpu.memory_space<vmem>>, vector<1x8x8xf32>,
    %c2 = arith.constant 2 : index
    %c0_17 = arith.constant 0 : index
    %c0_18 = arith.constant 0 : index
    %16 = vector.load %arg1[%c2, %c0_17, %c0_18] : memref<4x8x16xf32, #tpu.memory_space<vmem>>, vector<1x8x16xf32>
    %17 = vector.shape_cast %16 : vector<1x8x16xf32> to vector<8x16xf32>
    %c2_19 = arith.constant 2 : index
    %c0_20 = arith.constant 0 : index
    %c0_21 = arith.constant 0 : index
    %18 = vector.load %arg2[%c2_19, %c0_20, %c0_21] : memref<4x16x8xf32, #tpu.memory_space<vmem>>, vector<1x16x8xf32>
    %19 = vector.shape_cast %18 : vector<1x16x8xf32> to vector<16x8xf32>
    %cst_22 = arith.constant dense<0.000000e+00> : vector<8x8xf32>
    %20 = tpu.matmul %17, %19, %cst_22 {dimension_numbers = #tpu.dot_dimension_numbers<[1], [0], [0], [1], [0, 0, 1, 1], [], []>} : vector<8x16xf32>, vector<16x8xf32>, vector<8x8xf32> -> vector<8x8xf32>
    %c2_23 = arith.constant 2 : index
    %c0_24 = arith.constant 0 : index
    %c0_25 = arith.constant 0 : index
    %21 = vector.load %arg3[%c2_23, %c0_24, %c0_25] : memref<4x8x8xf32, #tpu.memory_space<vmem>>, vector<1x8x8xf32>
    %22 = vector.shape_cast %21 : vector<1x8x8xf32> to vector<8x8xf32>
    %23 = vector.shape_cast %20 : vector<8x8xf32> to vector<1x8x8xf32>
    tpu.vector_store %arg3[%c2_23, %c0_24, %c0_25], %23 {strides = array<i32>} : memref<4x8x8xf32, #tpu.memory_space<vmem>>, vector<1x8x8xf32>,
    %c3 = arith.constant 3 : index
    %c0_26 = arith.constant 0 : index
    %c0_27 = arith.constant 0 : index
    %24 = vector.load %arg1[%c3, %c0_26, %c0_27] : memref<4x8x16xf32, #tpu.memory_space<vmem>>, vector<1x8x16xf32>
    %25 = vector.shape_cast %24 : vector<1x8x16xf32> to vector<8x16xf32>
    %c3_28 = arith.constant 3 : index
    %c0_29 = arith.constant 0 : index
    %c0_30 = arith.constant 0 : index
    %26 = vector.load %arg2[%c3_28, %c0_29, %c0_30] : memref<4x16x8xf32, #tpu.memory_space<vmem>>, vector<1x16x8xf32>
    %27 = vector.shape_cast %26 : vector<1x16x8xf32> to vector<16x8xf32>
    %cst_31 = arith.constant dense<0.000000e+00> : vector<8x8xf32>
    %28 = tpu.matmul %25, %27, %cst_31 {dimension_numbers = #tpu.dot_dimension_numbers<[1], [0], [0], [1], [0, 0, 1, 1], [], []>} : vector<8x16xf32>, vector<16x8xf32>, vector<8x8xf32> -> vector<8x8xf32>
    %c3_32 = arith.constant 3 : index
    %c0_33 = arith.constant 0 : index
    %c0_34 = arith.constant 0 : index
    %29 = vector.load %arg3[%c3_32, %c0_33, %c0_34] : memref<4x8x8xf32, #tpu.memory_space<vmem>>, vector<1x8x8xf32>
    %30 = vector.shape_cast %29 : vector<1x8x8xf32> to vector<8x8xf32>
    %31 = vector.shape_cast %28 : vector<8x8xf32> to vector<1x8x8xf32>
    tpu.vector_store %arg3[%c3_32, %c0_33, %c0_34], %31 {strides = array<i32>} : memref<4x8x8xf32, #tpu.memory_space<vmem>>, vector<1x8x8xf32>,
    return
  }
  func.func @transform_0(%arg0: i32) -> (i32, i32, i32) {
    %c0_i32 = arith.constant 0 : i32
    %c0_i32_0 = arith.constant 0 : i32
    %c0_i32_1 = arith.constant 0 : i32
    %c0_i32_2 = arith.constant 0 : i32
    return %c0_i32, %c0_i32_0, %c0_i32_1 : i32, i32, i32
  }
  func.func @transform_1(%arg0: i32) -> (i32, i32, i32) {
    %c0_i32 = arith.constant 0 : i32
    %c0_i32_0 = arith.constant 0 : i32
    %c0_i32_1 = arith.constant 0 : i32
    %c0_i32_2 = arith.constant 0 : i32
    return %c0_i32, %c0_i32_0, %c0_i32_1 : i32, i32, i32
  }
  func.func @transform_2(%arg0: i32) -> (i32, i32, i32) {
    %c0_i32 = arith.constant 0 : i32
    %c0_i32_0 = arith.constant 0 : i32
    %c0_i32_1 = arith.constant 0 : i32
    %c0_i32_2 = arith.constant 0 : i32
    return %c0_i32, %c0_i32_0, %c0_i32_1 : i32, i32, i32
  }
}

module attributes {stable_mosaic.version = 11 : i64} {
  func.func @kernel(%arg0: i32, %arg1: memref<4x8x8xf32, #tpu.memory_space<vmem>>, %arg2: memref<4x8x16xf32, #tpu.memory_space<vmem>>, %arg3: memref<4x8x16xf32, #tpu.memory_space<vmem>>) attributes {dimension_semantics = [#tpu.dimension_semantics<arbitrary>], iteration_bounds = array<i64: 1>, scalar_prefetch = 0 : i64, scratch_operands = 0 : i64, tpu.core_type = #tpu.core_type<tc>, window_params = [{pipeline_mode = #tpu.pipeline_mode<synchronous>, transform_indices = @transform_0, window_bounds = array<i64: 4, 8, 8>}, {pipeline_mode = #tpu.pipeline_mode<synchronous>, transform_indices = @transform_1, window_bounds = array<i64: 4, 8, 16>}, {pipeline_mode = #tpu.pipeline_mode<synchronous>, transform_indices = @transform_2, window_bounds = array<i64: 4, 8, 16>}]} {
    %c0 = arith.constant 0 : index
    %c0_0 = arith.constant 0 : index
    %c0_1 = arith.constant 0 : index
    %0 = vector.load %arg1[%c0, %c0_0, %c0_1] : memref<4x8x8xf32, #tpu.memory_space<vmem>>, vector<1x8x8xf32>
    %1 = vector.shape_cast %0 : vector<1x8x8xf32> to vector<8x8xf32>
    %c0_2 = arith.constant 0 : index
    %c0_3 = arith.constant 0 : index
    %c0_4 = arith.constant 0 : index
    %2 = vector.load %arg2[%c0_2, %c0_3, %c0_4] : memref<4x8x16xf32, #tpu.memory_space<vmem>>, vector<1x8x16xf32>
    %3 = vector.shape_cast %2 : vector<1x8x16xf32> to vector<8x16xf32>
    %cst = arith.constant dense<0.000000e+00> : vector<8x16xf32>
    %4 = tpu.matmul %1, %3, %cst {dimension_numbers = #tpu.dot_dimension_numbers<[1], [0], [0], [1], [0, 0, 1, 1], [], []>} : vector<8x8xf32>, vector<8x16xf32>, vector<8x16xf32> -> vector<8x16xf32>
    %c0_5 = arith.constant 0 : index
    %c0_6 = arith.constant 0 : index
    %c0_7 = arith.constant 0 : index
    %5 = vector.load %arg3[%c0_5, %c0_6, %c0_7] : memref<4x8x16xf32, #tpu.memory_space<vmem>>, vector<1x8x16xf32>
    %6 = vector.shape_cast %5 : vector<1x8x16xf32> to vector<8x16xf32>
    %7 = vector.shape_cast %4 : vector<8x16xf32> to vector<1x8x16xf32>
    tpu.vector_store %arg3[%c0_5, %c0_6, %c0_7], %7 {strides = array<i32>} : memref<4x8x16xf32, #tpu.memory_space<vmem>>, vector<1x8x16xf32>,
    %c1 = arith.constant 1 : index
    %c0_8 = arith.constant 0 : index
    %c0_9 = arith.constant 0 : index
    %8 = vector.load %arg1[%c1, %c0_8, %c0_9] : memref<4x8x8xf32, #tpu.memory_space<vmem>>, vector<1x8x8xf32>
    %9 = vector.shape_cast %8 : vector<1x8x8xf32> to vector<8x8xf32>
    %c1_10 = arith.constant 1 : index
    %c0_11 = arith.constant 0 : index
    %c0_12 = arith.constant 0 : index
    %10 = vector.load %arg2[%c1_10, %c0_11, %c0_12] : memref<4x8x16xf32, #tpu.memory_space<vmem>>, vector<1x8x16xf32>
    %11 = vector.shape_cast %10 : vector<1x8x16xf32> to vector<8x16xf32>
    %cst_13 = arith.constant dense<0.000000e+00> : vector<8x16xf32>
    %12 = tpu.matmul %9, %11, %cst_13 {dimension_numbers = #tpu.dot_dimension_numbers<[1], [0], [0], [1], [0, 0, 1, 1], [], []>} : vector<8x8xf32>, vector<8x16xf32>, vector<8x16xf32> -> vector<8x16xf32>
    %c1_14 = arith.constant 1 : index
    %c0_15 = arith.constant 0 : index
    %c0_16 = arith.constant 0 : index
    %13 = vector.load %arg3[%c1_14, %c0_15, %c0_16] : memref<4x8x16xf32, #tpu.memory_space<vmem>>, vector<1x8x16xf32>
    %14 = vector.shape_cast %13 : vector<1x8x16xf32> to vector<8x16xf32>
    %15 = vector.shape_cast %12 : vector<8x16xf32> to vector<1x8x16xf32>
    tpu.vector_store %arg3[%c1_14, %c0_15, %c0_16], %15 {strides = array<i32>} : memref<4x8x16xf32, #tpu.memory_space<vmem>>, vector<1x8x16xf32>,
    %c2 = arith.constant 2 : index
    %c0_17 = arith.constant 0 : index
    %c0_18 = arith.constant 0 : index
    %16 = vector.load %arg1[%c2, %c0_17, %c0_18] : memref<4x8x8xf32, #tpu.memory_space<vmem>>, vector<1x8x8xf32>
    %17 = vector.shape_cast %16 : vector<1x8x8xf32> to vector<8x8xf32>
    %c2_19 = arith.constant 2 : index
    %c0_20 = arith.constant 0 : index
    %c0_21 = arith.constant 0 : index
    %18 = vector.load %arg2[%c2_19, %c0_20, %c0_21] : memref<4x8x16xf32, #tpu.memory_space<vmem>>, vector<1x8x16xf32>
    %19 = vector.shape_cast %18 : vector<1x8x16xf32> to vector<8x16xf32>
    %cst_22 = arith.constant dense<0.000000e+00> : vector<8x16xf32>
    %20 = tpu.matmul %17, %19, %cst_22 {dimension_numbers = #tpu.dot_dimension_numbers<[1], [0], [0], [1], [0, 0, 1, 1], [], []>} : vector<8x8xf32>, vector<8x16xf32>, vector<8x16xf32> -> vector<8x16xf32>
    %c2_23 = arith.constant 2 : index
    %c0_24 = arith.constant 0 : index
    %c0_25 = arith.constant 0 : index
    %21 = vector.load %arg3[%c2_23, %c0_24, %c0_25] : memref<4x8x16xf32, #tpu.memory_space<vmem>>, vector<1x8x16xf32>
    %22 = vector.shape_cast %21 : vector<1x8x16xf32> to vector<8x16xf32>
    %23 = vector.shape_cast %20 : vector<8x16xf32> to vector<1x8x16xf32>
    tpu.vector_store %arg3[%c2_23, %c0_24, %c0_25], %23 {strides = array<i32>} : memref<4x8x16xf32, #tpu.memory_space<vmem>>, vector<1x8x16xf32>,
    %c3 = arith.constant 3 : index
    %c0_26 = arith.constant 0 : index
    %c0_27 = arith.constant 0 : index
    %24 = vector.load %arg1[%c3, %c0_26, %c0_27] : memref<4x8x8xf32, #tpu.memory_space<vmem>>, vector<1x8x8xf32>
    %25 = vector.shape_cast %24 : vector<1x8x8xf32> to vector<8x8xf32>
    %c3_28 = arith.constant 3 : index
    %c0_29 = arith.constant 0 : index
    %c0_30 = arith.constant 0 : index
    %26 = vector.load %arg2[%c3_28, %c0_29, %c0_30] : memref<4x8x16xf32, #tpu.memory_space<vmem>>, vector<1x8x16xf32>
    %27 = vector.shape_cast %26 : vector<1x8x16xf32> to vector<8x16xf32>
    %cst_31 = arith.constant dense<0.000000e+00> : vector<8x16xf32>
    %28 = tpu.matmul %25, %27, %cst_31 {dimension_numbers = #tpu.dot_dimension_numbers<[1], [0], [0], [1], [0, 0, 1, 1], [], []>} : vector<8x8xf32>, vector<8x16xf32>, vector<8x16xf32> -> vector<8x16xf32>
    %c3_32 = arith.constant 3 : index
    %c0_33 = arith.constant 0 : index
    %c0_34 = arith.constant 0 : index
    %29 = vector.load %arg3[%c3_32, %c0_33, %c0_34] : memref<4x8x16xf32, #tpu.memory_space<vmem>>, vector<1x8x16xf32>
    %30 = vector.shape_cast %29 : vector<1x8x16xf32> to vector<8x16xf32>
    %31 = vector.shape_cast %28 : vector<8x16xf32> to vector<1x8x16xf32>
    tpu.vector_store %arg3[%c3_32, %c0_33, %c0_34], %31 {strides = array<i32>} : memref<4x8x16xf32, #tpu.memory_space<vmem>>, vector<1x8x16xf32>,
    return
  }
  func.func @transform_0(%arg0: i32) -> (i32, i32, i32) {
    %c0_i32 = arith.constant 0 : i32
    %c0_i32_0 = arith.constant 0 : i32
    %c0_i32_1 = arith.constant 0 : i32
    %c0_i32_2 = arith.constant 0 : i32
    return %c0_i32, %c0_i32_0, %c0_i32_1 : i32, i32, i32
  }
  func.func @transform_1(%arg0: i32) -> (i32, i32, i32) {
    %c0_i32 = arith.constant 0 : i32
    %c0_i32_0 = arith.constant 0 : i32
    %c0_i32_1 = arith.constant 0 : i32
    %c0_i32_2 = arith.constant 0 : i32
    return %c0_i32, %c0_i32_0, %c0_i32_1 : i32, i32, i32
  }
  func.func @transform_2(%arg0: i32) -> (i32, i32, i32) {
    %c0_i32 = arith.constant 0 : i32
    %c0_i32_0 = arith.constant 0 : i32
    %c0_i32_1 = arith.constant 0 : i32
    %c0_i32_2 = arith.constant 0 : i32
    return %c0_i32, %c0_i32_0, %c0_i32_1 : i32, i32, i32
  }
}

module attributes {stable_mosaic.version = 11 : i64} {
  func.func @kernel(%arg0: i32, %arg1: memref<128x32xf32, #tpu.memory_space<vmem>>, %arg2: memref<32x16xf32, #tpu.memory_space<vmem>>, %arg3: memref<128x1xf32, #tpu.memory_space<vmem>>, %arg4: memref<128x16xf32, #tpu.memory_space<vmem>>) attributes {dimension_semantics = [#tpu.dimension_semantics<arbitrary>], iteration_bounds = array<i64: 1>, scalar_prefetch = 0 : i64, scratch_operands = 0 : i64, tpu.core_type = #tpu.core_type<tc>, window_params = [{pipeline_mode = #tpu.pipeline_mode<synchronous>, transform_indices = @transform_0, window_bounds = array<i64: 128, 32>}, {pipeline_mode = #tpu.pipeline_mode<synchronous>, transform_indices = @transform_1, window_bounds = array<i64: 32, 16>}, {pipeline_mode = #tpu.pipeline_mode<synchronous>, transform_indices = @transform_2, window_bounds = array<i64: 128, 1>}, {pipeline_mode = #tpu.pipeline_mode<synchronous>, transform_indices = @transform_3, window_bounds = array<i64: 128, 16>}]} {
    %c0 = arith.constant 0 : index
    %c0_0 = arith.constant 0 : index
    %0 = vector.load %arg2[%c0, %c0_0] : memref<32x16xf32, #tpu.memory_space<vmem>>, vector<32x16xf32>
    %c0_1 = arith.constant 0 : index
    %c0_2 = arith.constant 0 : index
    %1 = vector.load %arg1[%c0_1, %c0_2] : memref<128x32xf32, #tpu.memory_space<vmem>>, vector<128x32xf32>
    %cst = arith.constant dense<0.000000e+00> : vector<128x16xf32>
    %2 = tpu.matmul %1, %0, %cst {dimension_numbers = #tpu.dot_dimension_numbers<[1], [0], [0], [1], [0, 0, 1, 1], [], []>} : vector<128x32xf32>, vector<32x16xf32>, vector<128x16xf32> -> vector<128x16xf32>
    %c0_3 = arith.constant 0 : index
    %c0_4 = arith.constant 0 : index
    %3 = vector.load %arg3[%c0_3, %c0_4] : memref<128x1xf32, #tpu.memory_space<vmem>>, vector<128x1xf32>
    %4 = vector.broadcast %3 : vector<128x1xf32> to vector<128x16xf32>
    %5 = arith.addf %2, %4 : vector<128x16xf32>
    %cst_5 = arith.constant 0.000000e+00 : f32
    %6 = vector.broadcast %cst_5 : f32 to vector<128x16xf32>
    %7 = arith.maximumf %5, %6 : vector<128x16xf32>
    %c0_6 = arith.constant 0 : index
    %c0_7 = arith.constant 0 : index
    %8 = vector.load %arg4[%c0_6, %c0_7] : memref<128x16xf32, #tpu.memory_space<vmem>>, vector<128x16xf32>
    tpu.vector_store %arg4[%c0_6, %c0_7], %7 {strides = array<i32>} : memref<128x16xf32, #tpu.memory_space<vmem>>, vector<128x16xf32>,
    return
  }
  func.func @transform_0(%arg0: i32) -> (i32, i32) {
    %c0_i32 = arith.constant 0 : i32
    %c0_i32_0 = arith.constant 0 : i32
    %c0_i32_1 = arith.constant 0 : i32
    return %c0_i32, %c0_i32_0 : i32, i32
  }
  func.func @transform_1(%arg0: i32) -> (i32, i32) {
    %c0_i32 = arith.constant 0 : i32
    %c0_i32_0 = arith.constant 0 : i32
    %c0_i32_1 = arith.constant 0 : i32
    return %c0_i32, %c0_i32_0 : i32, i32
  }
  func.func @transform_2(%arg0: i32) -> (i32, i32) {
    %c0_i32 = arith.constant 0 : i32
    %c0_i32_0 = arith.constant 0 : i32
    %c0_i32_1 = arith.constant 0 : i32
    return %c0_i32, %c0_i32_0 : i32, i32
  }
  func.func @transform_3(%arg0: i32) -> (i32, i32) {
    %c0_i32 = arith.constant 0 : i32
    %c0_i32_0 = arith.constant 0 : i32
    %c0_i32_1 = arith.constant 0 : i32
    return %c0_i32, %c0_i32_0 : i32, i32
  }
}

module attributes {stable_mosaic.version = 11 : i64} {
  func.func @kernel(%arg0: i32, %arg1: memref<32x128xf32, #tpu.memory_space<vmem>>, %arg2: memref<128x16xf32, #tpu.memory_space<vmem>>, %arg3: memref<32x1xf32, #tpu.memory_space<vmem>>, %arg4: memref<32x16xf32, #tpu.memory_space<vmem>>) attributes {dimension_semantics = [#tpu.dimension_semantics<arbitrary>], iteration_bounds = array<i64: 1>, scalar_prefetch = 0 : i64, scratch_operands = 0 : i64, tpu.core_type = #tpu.core_type<tc>, window_params = [{pipeline_mode = #tpu.pipeline_mode<synchronous>, transform_indices = @transform_0, window_bounds = array<i64: 32, 128>}, {pipeline_mode = #tpu.pipeline_mode<synchronous>, transform_indices = @transform_1, window_bounds = array<i64: 128, 16>}, {pipeline_mode = #tpu.pipeline_mode<synchronous>, transform_indices = @transform_2, window_bounds = array<i64: 32, 1>}, {pipeline_mode = #tpu.pipeline_mode<synchronous>, transform_indices = @transform_3, window_bounds = array<i64: 32, 16>}]} {
    %c0 = arith.constant 0 : index
    %c0_0 = arith.constant 0 : index
    %0 = vector.load %arg2[%c0, %c0_0] : memref<128x16xf32, #tpu.memory_space<vmem>>, vector<128x16xf32>
    %c0_1 = arith.constant 0 : index
    %c0_2 = arith.constant 0 : index
    %1 = vector.load %arg1[%c0_1, %c0_2] : memref<32x128xf32, #tpu.memory_space<vmem>>, vector<32x128xf32>
    %cst = arith.constant dense<0.000000e+00> : vector<32x16xf32>
    %2 = tpu.matmul %1, %0, %cst {dimension_numbers = #tpu.dot_dimension_numbers<[1], [0], [0], [1], [0, 0, 1, 1], [], []>} : vector<32x128xf32>, vector<128x16xf32>, vector<32x16xf32> -> vector<32x16xf32>
    %c0_3 = arith.constant 0 : index
    %c0_4 = arith.constant 0 : index
    %3 = vector.load %arg3[%c0_3, %c0_4] : memref<32x1xf32, #tpu.memory_space<vmem>>, vector<32x1xf32>
    %4 = vector.broadcast %3 : vector<32x1xf32> to vector<32x16xf32>
    %5 = arith.addf %2, %4 : vector<32x16xf32>
    %c0_5 = arith.constant 0 : index
    %c0_6 = arith.constant 0 : index
    %6 = vector.load %arg4[%c0_5, %c0_6] : memref<32x16xf32, #tpu.memory_space<vmem>>, vector<32x16xf32>
    tpu.vector_store %arg4[%c0_5, %c0_6], %5 {strides = array<i32>} : memref<32x16xf32, #tpu.memory_space<vmem>>, vector<32x16xf32>,
    return
  }
  func.func @transform_0(%arg0: i32) -> (i32, i32) {
    %c0_i32 = arith.constant 0 : i32
    %c0_i32_0 = arith.constant 0 : i32
    %c0_i32_1 = arith.constant 0 : i32
    return %c0_i32, %c0_i32_0 : i32, i32
  }
  func.func @transform_1(%arg0: i32) -> (i32, i32) {
    %c0_i32 = arith.constant 0 : i32
    %c0_i32_0 = arith.constant 0 : i32
    %c0_i32_1 = arith.constant 0 : i32
    return %c0_i32, %c0_i32_0 : i32, i32
  }
  func.func @transform_2(%arg0: i32) -> (i32, i32) {
    %c0_i32 = arith.constant 0 : i32
    %c0_i32_0 = arith.constant 0 : i32
    %c0_i32_1 = arith.constant 0 : i32
    return %c0_i32, %c0_i32_0 : i32, i32
  }
  func.func @transform_3(%arg0: i32) -> (i32, i32) {
    %c0_i32 = arith.constant 0 : i32
    %c0_i32_0 = arith.constant 0 : i32
    %c0_i32_1 = arith.constant 0 : i32
    return %c0_i32, %c0_i32_0 : i32, i32
  }
}

module attributes {stable_mosaic.version = 11 : i64} {
  func.func @kernel(%arg0: i32, %arg1: memref<64x32xf32, #tpu.memory_space<vmem>>, %arg2: memref<32x16xf32, #tpu.memory_space<vmem>>, %arg3: memref<64x1xf32, #tpu.memory_space<vmem>>, %arg4: memref<1x16xf32, #tpu.memory_space<vmem>>, %arg5: memref<64x16xf32, #tpu.memory_space<vmem>>) attributes {dimension_semantics = [#tpu.dimension_semantics<arbitrary>], iteration_bounds = array<i64: 1>, scalar_prefetch = 0 : i64, scratch_operands = 0 : i64, tpu.core_type = #tpu.core_type<tc>, window_params = [{pipeline_mode = #tpu.pipeline_mode<synchronous>, transform_indices = @transform_0, window_bounds = array<i64: 64, 32>}, {pipeline_mode = #tpu.pipeline_mode<synchronous>, transform_indices = @transform_1, window_bounds = array<i64: 32, 16>}, {pipeline_mode = #tpu.pipeline_mode<synchronous>, transform_indices = @transform_2, window_bounds = array<i64: 64, 1>}, {pipeline_mode = #tpu.pipeline_mode<synchronous>, transform_indices = @transform_3, window_bounds = array<i64: 1, 16>}, {pipeline_mode = #tpu.pipeline_mode<synchronous>, transform_indices = @transform_4, window_bounds = array<i64: 64, 16>}]} {
    %c0 = arith.constant 0 : index
    %c0_0 = arith.constant 0 : index
    %0 = vector.load %arg2[%c0, %c0_0] : memref<32x16xf32, #tpu.memory_space<vmem>>, vector<32x16xf32>
    %c0_1 = arith.constant 0 : index
    %c0_2 = arith.constant 0 : index
    %1 = vector.load %arg1[%c0_1, %c0_2] : memref<64x32xf32, #tpu.memory_space<vmem>>, vector<64x32xf32>
    %cst = arith.constant dense<0.000000e+00> : vector<64x16xf32>
    %2 = tpu.matmul %1, %0, %cst {dimension_numbers = #tpu.dot_dimension_numbers<[1], [0], [0], [1], [0, 0, 1, 1], [], []>} : vector<64x32xf32>, vector<32x16xf32>, vector<64x16xf32> -> vector<64x16xf32>
    %c0_3 = arith.constant 0 : index
    %c0_4 = arith.constant 0 : index
    %3 = vector.load %arg3[%c0_3, %c0_4] : memref<64x1xf32, #tpu.memory_space<vmem>>, vector<64x1xf32>
    %4 = vector.broadcast %3 : vector<64x1xf32> to vector<64x16xf32>
    %5 = arith.addf %2, %4 : vector<64x16xf32>
    %c0_5 = arith.constant 0 : index
    %c0_6 = arith.constant 0 : index
    %6 = vector.load %arg4[%c0_5, %c0_6] : memref<1x16xf32, #tpu.memory_space<vmem>>, vector<1x16xf32>
    %7 = vector.broadcast %6 : vector<1x16xf32> to vector<64x16xf32>
    %8 = arith.mulf %5, %7 : vector<64x16xf32>
    %c0_7 = arith.constant 0 : index
    %c0_8 = arith.constant 0 : index
    %9 = vector.load %arg5[%c0_7, %c0_8] : memref<64x16xf32, #tpu.memory_space<vmem>>, vector<64x16xf32>
    tpu.vector_store %arg5[%c0_7, %c0_8], %8 {strides = array<i32>} : memref<64x16xf32, #tpu.memory_space<vmem>>, vector<64x16xf32>,
    return
  }
  func.func @transform_0(%arg0: i32) -> (i32, i32) {
    %c0_i32 = arith.constant 0 : i32
    %c0_i32_0 = arith.constant 0 : i32
    %c0_i32_1 = arith.constant 0 : i32
    return %c0_i32, %c0_i32_0 : i32, i32
  }
  func.func @transform_1(%arg0: i32) -> (i32, i32) {
    %c0_i32 = arith.constant 0 : i32
    %c0_i32_0 = arith.constant 0 : i32
    %c0_i32_1 = arith.constant 0 : i32
    return %c0_i32, %c0_i32_0 : i32, i32
  }
  func.func @transform_2(%arg0: i32) -> (i32, i32) {
    %c0_i32 = arith.constant 0 : i32
    %c0_i32_0 = arith.constant 0 : i32
    %c0_i32_1 = arith.constant 0 : i32
    return %c0_i32, %c0_i32_0 : i32, i32
  }
  func.func @transform_3(%arg0: i32) -> (i32, i32) {
    %c0_i32 = arith.constant 0 : i32
    %c0_i32_0 = arith.constant 0 : i32
    %c0_i32_1 = arith.constant 0 : i32
    return %c0_i32, %c0_i32_0 : i32, i32
  }
  func.func @transform_4(%arg0: i32) -> (i32, i32) {
    %c0_i32 = arith.constant 0 : i32
    %c0_i32_0 = arith.constant 0 : i32
    %c0_i32_1 = arith.constant 0 : i32
    return %c0_i32, %c0_i32_0 : i32, i32
  }
}

module attributes {stable_mosaic.version = 11 : i64} {
  func.func @kernel(%arg0: i32, %arg1: memref<2x16x32xf32, #tpu.memory_space<vmem>>, %arg2: memref<2x32x8xf32, #tpu.memory_space<vmem>>, %arg3: memref<2x16x8xf32, #tpu.memory_space<vmem>>) attributes {dimension_semantics = [#tpu.dimension_semantics<arbitrary>], iteration_bounds = array<i64: 1>, scalar_prefetch = 0 : i64, scratch_operands = 0 : i64, tpu.core_type = #tpu.core_type<tc>, window_params = [{pipeline_mode = #tpu.pipeline_mode<synchronous>, transform_indices = @transform_0, window_bounds = array<i64: 2, 16, 32>}, {pipeline_mode = #tpu.pipeline_mode<synchronous>, transform_indices = @transform_1, window_bounds = array<i64: 2, 32, 8>}, {pipeline_mode = #tpu.pipeline_mode<synchronous>, transform_indices = @transform_2, window_bounds = array<i64: 2, 16, 8>}]} {
    %c0 = arith.constant 0 : index
    %c0_0 = arith.constant 0 : index
    %c0_1 = arith.constant 0 : index
    %0 = vector.load %arg1[%c0, %c0_0, %c0_1] : memref<2x16x32xf32, #tpu.memory_space<vmem>>, vector<1x16x32xf32>
    %1 = vector.shape_cast %0 : vector<1x16x32xf32> to vector<16x32xf32>
    %c0_2 = arith.constant 0 : index
    %c0_3 = arith.constant 0 : index
    %c0_4 = arith.constant 0 : index
    %2 = vector.load %arg2[%c0_2, %c0_3, %c0_4] : memref<2x32x8xf32, #tpu.memory_space<vmem>>, vector<1x32x8xf32>
    %3 = vector.shape_cast %2 : vector<1x32x8xf32> to vector<32x8xf32>
    %cst = arith.constant dense<0.000000e+00> : vector<16x8xf32>
    %4 = tpu.matmul %1, %3, %cst {dimension_numbers = #tpu.dot_dimension_numbers<[1], [0], [0], [1], [0, 0, 1, 1], [], []>} : vector<16x32xf32>, vector<32x8xf32>, vector<16x8xf32> -> vector<16x8xf32>
    %c0_5 = arith.constant 0 : index
    %c0_6 = arith.constant 0 : index
    %c0_7 = arith.constant 0 : index
    %5 = vector.load %arg3[%c0_5, %c0_6, %c0_7] : memref<2x16x8xf32, #tpu.memory_space<vmem>>, vector<1x16x8xf32>
    %6 = vector.shape_cast %5 : vector<1x16x8xf32> to vector<16x8xf32>
    %7 = vector.shape_cast %4 : vector<16x8xf32> to vector<1x16x8xf32>
    tpu.vector_store %arg3[%c0_5, %c0_6, %c0_7], %7 {strides = array<i32>} : memref<2x16x8xf32, #tpu.memory_space<vmem>>, vector<1x16x8xf32>,
    %c1 = arith.constant 1 : index
    %c0_8 = arith.constant 0 : index
    %c0_9 = arith.constant 0 : index
    %8 = vector.load %arg1[%c1, %c0_8, %c0_9] : memref<2x16x32xf32, #tpu.memory_space<vmem>>, vector<1x16x32xf32>
    %9 = vector.shape_cast %8 : vector<1x16x32xf32> to vector<16x32xf32>
    %c1_10 = arith.constant 1 : index
    %c0_11 = arith.constant 0 : index
    %c0_12 = arith.constant 0 : index
    %10 = vector.load %arg2[%c1_10, %c0_11, %c0_12] : memref<2x32x8xf32, #tpu.memory_space<vmem>>, vector<1x32x8xf32>
    %11 = vector.shape_cast %10 : vector<1x32x8xf32> to vector<32x8xf32>
    %cst_13 = arith.constant dense<0.000000e+00> : vector<16x8xf32>
    %12 = tpu.matmul %9, %11, %cst_13 {dimension_numbers = #tpu.dot_dimension_numbers<[1], [0], [0], [1], [0, 0, 1, 1], [], []>} : vector<16x32xf32>, vector<32x8xf32>, vector<16x8xf32> -> vector<16x8xf32>
    %c1_14 = arith.constant 1 : index
    %c0_15 = arith.constant 0 : index
    %c0_16 = arith.constant 0 : index
    %13 = vector.load %arg3[%c1_14, %c0_15, %c0_16] : memref<2x16x8xf32, #tpu.memory_space<vmem>>, vector<1x16x8xf32>
    %14 = vector.shape_cast %13 : vector<1x16x8xf32> to vector<16x8xf32>
    %15 = vector.shape_cast %12 : vector<16x8xf32> to vector<1x16x8xf32>
    tpu.vector_store %arg3[%c1_14, %c0_15, %c0_16], %15 {strides = array<i32>} : memref<2x16x8xf32, #tpu.memory_space<vmem>>, vector<1x16x8xf32>,
    return
  }
  func.func @transform_0(%arg0: i32) -> (i32, i32, i32) {
    %c0_i32 = arith.constant 0 : i32
    %c0_i32_0 = arith.constant 0 : i32
    %c0_i32_1 = arith.constant 0 : i32
    %c0_i32_2 = arith.constant 0 : i32
    return %c0_i32, %c0_i32_0, %c0_i32_1 : i32, i32, i32
  }
  func.func @transform_1(%arg0: i32) -> (i32, i32, i32) {
    %c0_i32 = arith.constant 0 : i32
    %c0_i32_0 = arith.constant 0 : i32
    %c0_i32_1 = arith.constant 0 : i32
    %c0_i32_2 = arith.constant 0 : i32
    return %c0_i32, %c0_i32_0, %c0_i32_1 : i32, i32, i32
  }
  func.func @transform_2(%arg0: i32) -> (i32, i32, i32) {
    %c0_i32 = arith.constant 0 : i32
    %c0_i32_0 = arith.constant 0 : i32
    %c0_i32_1 = arith.constant 0 : i32
    %c0_i32_2 = arith.constant 0 : i32
    return %c0_i32, %c0_i32_0, %c0_i32_1 : i32, i32, i32
  }
}

module attributes {stable_mosaic.version = 11 : i64} {
  func.func @kernel(%arg0: i32, %arg1: memref<2x16x8xf32, #tpu.memory_space<vmem>>, %arg2: memref<2x8x32xf32, #tpu.memory_space<vmem>>, %arg3: memref<2x16x32xf32, #tpu.memory_space<vmem>>) attributes {dimension_semantics = [#tpu.dimension_semantics<arbitrary>], iteration_bounds = array<i64: 1>, scalar_prefetch = 0 : i64, scratch_operands = 0 : i64, tpu.core_type = #tpu.core_type<tc>, window_params = [{pipeline_mode = #tpu.pipeline_mode<synchronous>, transform_indices = @transform_0, window_bounds = array<i64: 2, 16, 8>}, {pipeline_mode = #tpu.pipeline_mode<synchronous>, transform_indices = @transform_1, window_bounds = array<i64: 2, 8, 32>}, {pipeline_mode = #tpu.pipeline_mode<synchronous>, transform_indices = @transform_2, window_bounds = array<i64: 2, 16, 32>}]} {
    %c0 = arith.constant 0 : index
    %c0_0 = arith.constant 0 : index
    %c0_1 = arith.constant 0 : index
    %0 = vector.load %arg1[%c0, %c0_0, %c0_1] : memref<2x16x8xf32, #tpu.memory_space<vmem>>, vector<1x16x8xf32>
    %1 = vector.shape_cast %0 : vector<1x16x8xf32> to vector<16x8xf32>
    %c0_2 = arith.constant 0 : index
    %c0_3 = arith.constant 0 : index
    %c0_4 = arith.constant 0 : index
    %2 = vector.load %arg2[%c0_2, %c0_3, %c0_4] : memref<2x8x32xf32, #tpu.memory_space<vmem>>, vector<1x8x32xf32>
    %3 = vector.shape_cast %2 : vector<1x8x32xf32> to vector<8x32xf32>
    %cst = arith.constant dense<0.000000e+00> : vector<16x32xf32>
    %4 = tpu.matmul %1, %3, %cst {dimension_numbers = #tpu.dot_dimension_numbers<[1], [0], [0], [1], [0, 0, 1, 1], [], []>} : vector<16x8xf32>, vector<8x32xf32>, vector<16x32xf32> -> vector<16x32xf32>
    %c0_5 = arith.constant 0 : index
    %c0_6 = arith.constant 0 : index
    %c0_7 = arith.constant 0 : index
    %5 = vector.load %arg3[%c0_5, %c0_6, %c0_7] : memref<2x16x32xf32, #tpu.memory_space<vmem>>, vector<1x16x32xf32>
    %6 = vector.shape_cast %5 : vector<1x16x32xf32> to vector<16x32xf32>
    %7 = vector.shape_cast %4 : vector<16x32xf32> to vector<1x16x32xf32>
    tpu.vector_store %arg3[%c0_5, %c0_6, %c0_7], %7 {strides = array<i32>} : memref<2x16x32xf32, #tpu.memory_space<vmem>>, vector<1x16x32xf32>,
    %c1 = arith.constant 1 : index
    %c0_8 = arith.constant 0 : index
    %c0_9 = arith.constant 0 : index
    %8 = vector.load %arg1[%c1, %c0_8, %c0_9] : memref<2x16x8xf32, #tpu.memory_space<vmem>>, vector<1x16x8xf32>
    %9 = vector.shape_cast %8 : vector<1x16x8xf32> to vector<16x8xf32>
    %c1_10 = arith.constant 1 : index
    %c0_11 = arith.constant 0 : index
    %c0_12 = arith.constant 0 : index
    %10 = vector.load %arg2[%c1_10, %c0_11, %c0_12] : memref<2x8x32xf32, #tpu.memory_space<vmem>>, vector<1x8x32xf32>
    %11 = vector.shape_cast %10 : vector<1x8x32xf32> to vector<8x32xf32>
    %cst_13 = arith.constant dense<0.000000e+00> : vector<16x32xf32>
    %12 = tpu.matmul %9, %11, %cst_13 {dimension_numbers = #tpu.dot_dimension_numbers<[1], [0], [0], [1], [0, 0, 1, 1], [], []>} : vector<16x8xf32>, vector<8x32xf32>, vector<16x32xf32> -> vector<16x32xf32>
    %c1_14 = arith.constant 1 : index
    %c0_15 = arith.constant 0 : index
    %c0_16 = arith.constant 0 : index
    %13 = vector.load %arg3[%c1_14, %c0_15, %c0_16] : memref<2x16x32xf32, #tpu.memory_space<vmem>>, vector<1x16x32xf32>
    %14 = vector.shape_cast %13 : vector<1x16x32xf32> to vector<16x32xf32>
    %15 = vector.shape_cast %12 : vector<16x32xf32> to vector<1x16x32xf32>
    tpu.vector_store %arg3[%c1_14, %c0_15, %c0_16], %15 {strides = array<i32>} : memref<2x16x32xf32, #tpu.memory_space<vmem>>, vector<1x16x32xf32>,
    return
  }
  func.func @transform_0(%arg0: i32) -> (i32, i32, i32) {
    %c0_i32 = arith.constant 0 : i32
    %c0_i32_0 = arith.constant 0 : i32
    %c0_i32_1 = arith.constant 0 : i32
    %c0_i32_2 = arith.constant 0 : i32
    return %c0_i32, %c0_i32_0, %c0_i32_1 : i32, i32, i32
  }
  func.func @transform_1(%arg0: i32) -> (i32, i32, i32) {
    %c0_i32 = arith.constant 0 : i32
    %c0_i32_0 = arith.constant 0 : i32
    %c0_i32_1 = arith.constant 0 : i32
    %c0_i32_2 = arith.constant 0 : i32
    return %c0_i32, %c0_i32_0, %c0_i32_1 : i32, i32, i32
  }
  func.func @transform_2(%arg0: i32) -> (i32, i32, i32) {
    %c0_i32 = arith.constant 0 : i32
    %c0_i32_0 = arith.constant 0 : i32
    %c0_i32_1 = arith.constant 0 : i32
    %c0_i32_2 = arith.constant 0 : i32
    return %c0_i32, %c0_i32_0, %c0_i32_1 : i32, i32, i32
  }
}

module attributes {stable_mosaic.version = 11 : i64} {
  func.func @kernel(%arg0: i32, %arg1: memref<32x32xf32, #tpu.memory_space<vmem>>, %arg2: memref<32x16xf32, #tpu.memory_space<vmem>>, %arg3: memref<32x1xf32, #tpu.memory_space<vmem>>, %arg4: memref<1x16xf32, #tpu.memory_space<vmem>>, %arg5: memref<32x16xf32, #tpu.memory_space<vmem>>) attributes {dimension_semantics = [#tpu.dimension_semantics<arbitrary>], iteration_bounds = array<i64: 1>, scalar_prefetch = 0 : i64, scratch_operands = 0 : i64, tpu.core_type = #tpu.core_type<tc>, window_params = [{pipeline_mode = #tpu.pipeline_mode<synchronous>, transform_indices = @transform_0, window_bounds = array<i64: 32, 32>}, {pipeline_mode = #tpu.pipeline_mode<synchronous>, transform_indices = @transform_1, window_bounds = array<i64: 32, 16>}, {pipeline_mode = #tpu.pipeline_mode<synchronous>, transform_indices = @transform_2, window_bounds = array<i64: 32, 1>}, {pipeline_mode = #tpu.pipeline_mode<synchronous>, transform_indices = @transform_3, window_bounds = array<i64: 1, 16>}, {pipeline_mode = #tpu.pipeline_mode<synchronous>, transform_indices = @transform_4, window_bounds = array<i64: 32, 16>}]} {
    %c0 = arith.constant 0 : index
    %c0_0 = arith.constant 0 : index
    %0 = vector.load %arg2[%c0, %c0_0] : memref<32x16xf32, #tpu.memory_space<vmem>>, vector<32x16xf32>
    %c0_1 = arith.constant 0 : index
    %c0_2 = arith.constant 0 : index
    %1 = vector.load %arg1[%c0_1, %c0_2] : memref<32x32xf32, #tpu.memory_space<vmem>>, vector<32x32xf32>
    %cst = arith.constant dense<0.000000e+00> : vector<32x16xf32>
    %2 = tpu.matmul %1, %0, %cst {dimension_numbers = #tpu.dot_dimension_numbers<[1], [0], [0], [1], [0, 0, 1, 1], [], []>} : vector<32x32xf32>, vector<32x16xf32>, vector<32x16xf32> -> vector<32x16xf32>
    %c0_3 = arith.constant 0 : index
    %c0_4 = arith.constant 0 : index
    %3 = vector.load %arg3[%c0_3, %c0_4] : memref<32x1xf32, #tpu.memory_space<vmem>>, vector<32x1xf32>
    %4 = vector.broadcast %3 : vector<32x1xf32> to vector<32x16xf32>
    %5 = arith.addf %2, %4 : vector<32x16xf32>
    %c0_5 = arith.constant 0 : index
    %c0_6 = arith.constant 0 : index
    %6 = vector.load %arg4[%c0_5, %c0_6] : memref<1x16xf32, #tpu.memory_space<vmem>>, vector<1x16xf32>
    %7 = vector.broadcast %6 : vector<1x16xf32> to vector<32x16xf32>
    %8 = arith.mulf %5, %7 : vector<32x16xf32>
    %c0_7 = arith.constant 0 : index
    %c0_8 = arith.constant 0 : index
    %9 = vector.load %arg5[%c0_7, %c0_8] : memref<32x16xf32, #tpu.memory_space<vmem>>, vector<32x16xf32>
    tpu.vector_store %arg5[%c0_7, %c0_8], %8 {strides = array<i32>} : memref<32x16xf32, #tpu.memory_space<vmem>>, vector<32x16xf32>,
    return
  }
  func.func @transform_0(%arg0: i32) -> (i32, i32) {
    %c0_i32 = arith.constant 0 : i32
    %c0_i32_0 = arith.constant 0 : i32
    %c0_i32_1 = arith.constant 0 : i32
    return %c0_i32, %c0_i32_0 : i32, i32
  }
  func.func @transform_1(%arg0: i32) -> (i32, i32) {
    %c0_i32 = arith.constant 0 : i32
    %c0_i32_0 = arith.constant 0 : i32
    %c0_i32_1 = arith.constant 0 : i32
    return %c0_i32, %c0_i32_0 : i32, i32
  }
  func.func @transform_2(%arg0: i32) -> (i32, i32) {
    %c0_i32 = arith.constant 0 : i32
    %c0_i32_0 = arith.constant 0 : i32
    %c0_i32_1 = arith.constant 0 : i32
    return %c0_i32, %c0_i32_0 : i32, i32
  }
  func.func @transform_3(%arg0: i32) -> (i32, i32) {
    %c0_i32 = arith.constant 0 : i32
    %c0_i32_0 = arith.constant 0 : i32
    %c0_i32_1 = arith.constant 0 : i32
    return %c0_i32, %c0_i32_0 : i32, i32
  }
  func.func @transform_4(%arg0: i32) -> (i32, i32) {
    %c0_i32 = arith.constant 0 : i32
    %c0_i32_0 = arith.constant 0 : i32
    %c0_i32_1 = arith.constant 0 : i32
    return %c0_i32, %c0_i32_0 : i32, i32
  }
}

module attributes {stable_mosaic.version = 11 : i64} {
  func.func @kernel(%arg0: i32, %arg1: memref<2x32xf32, #tpu.memory_space<vmem>>, %arg2: memref<32x16xf32, #tpu.memory_space<vmem>>, %arg3: memref<2x1xf32, #tpu.memory_space<vmem>>, %arg4: memref<1x16xf32, #tpu.memory_space<vmem>>, %arg5: memref<2x16xf32, #tpu.memory_space<vmem>>) attributes {dimension_semantics = [#tpu.dimension_semantics<arbitrary>], iteration_bounds = array<i64: 1>, scalar_prefetch = 0 : i64, scratch_operands = 0 : i64, tpu.core_type = #tpu.core_type<tc>, window_params = [{pipeline_mode = #tpu.pipeline_mode<synchronous>, transform_indices = @transform_0, window_bounds = array<i64: 2, 32>}, {pipeline_mode = #tpu.pipeline_mode<synchronous>, transform_indices = @transform_1, window_bounds = array<i64: 32, 16>}, {pipeline_mode = #tpu.pipeline_mode<synchronous>, transform_indices = @transform_2, window_bounds = array<i64: 2, 1>}, {pipeline_mode = #tpu.pipeline_mode<synchronous>, transform_indices = @transform_3, window_bounds = array<i64: 1, 16>}, {pipeline_mode = #tpu.pipeline_mode<synchronous>, transform_indices = @transform_4, window_bounds = array<i64: 2, 16>}]} {
    %c0 = arith.constant 0 : index
    %c0_0 = arith.constant 0 : index
    %0 = vector.load %arg2[%c0, %c0_0] : memref<32x16xf32, #tpu.memory_space<vmem>>, vector<32x16xf32>
    %c0_1 = arith.constant 0 : index
    %c0_2 = arith.constant 0 : index
    %1 = vector.load %arg1[%c0_1, %c0_2] : memref<2x32xf32, #tpu.memory_space<vmem>>, vector<2x32xf32>
    %cst = arith.constant dense<0.000000e+00> : vector<2x16xf32>
    %2 = tpu.matmul %1, %0, %cst {dimension_numbers = #tpu.dot_dimension_numbers<[1], [0], [0], [1], [0, 0, 1, 1], [], []>} : vector<2x32xf32>, vector<32x16xf32>, vector<2x16xf32> -> vector<2x16xf32>
    %c0_3 = arith.constant 0 : index
    %c0_4 = arith.constant 0 : index
    %3 = vector.load %arg3[%c0_3, %c0_4] : memref<2x1xf32, #tpu.memory_space<vmem>>, vector<2x1xf32>
    %4 = vector.broadcast %3 : vector<2x1xf32> to vector<2x16xf32>
    %5 = arith.addf %2, %4 : vector<2x16xf32>
    %c0_5 = arith.constant 0 : index
    %c0_6 = arith.constant 0 : index
    %6 = vector.load %arg4[%c0_5, %c0_6] : memref<1x16xf32, #tpu.memory_space<vmem>>, vector<1x16xf32>
    %7 = vector.broadcast %6 : vector<1x16xf32> to vector<2x16xf32>
    %8 = arith.mulf %5, %7 : vector<2x16xf32>
    %c0_7 = arith.constant 0 : index
    %c0_8 = arith.constant 0 : index
    %9 = vector.load %arg5[%c0_7, %c0_8] : memref<2x16xf32, #tpu.memory_space<vmem>>, vector<2x16xf32>
    tpu.vector_store %arg5[%c0_7, %c0_8], %8 {strides = array<i32>} : memref<2x16xf32, #tpu.memory_space<vmem>>, vector<2x16xf32>,
    return
  }
  func.func @transform_0(%arg0: i32) -> (i32, i32) {
    %c0_i32 = arith.constant 0 : i32
    %c0_i32_0 = arith.constant 0 : i32
    %c0_i32_1 = arith.constant 0 : i32
    return %c0_i32, %c0_i32_0 : i32, i32
  }
  func.func @transform_1(%arg0: i32) -> (i32, i32) {
    %c0_i32 = arith.constant 0 : i32
    %c0_i32_0 = arith.constant 0 : i32
    %c0_i32_1 = arith.constant 0 : i32
    return %c0_i32, %c0_i32_0 : i32, i32
  }
  func.func @transform_2(%arg0: i32) -> (i32, i32) {
    %c0_i32 = arith.constant 0 : i32
    %c0_i32_0 = arith.constant 0 : i32
    %c0_i32_1 = arith.constant 0 : i32
    return %c0_i32, %c0_i32_0 : i32, i32
  }
  func.func @transform_3(%arg0: i32) -> (i32, i32) {
    %c0_i32 = arith.constant 0 : i32
    %c0_i32_0 = arith.constant 0 : i32
    %c0_i32_1 = arith.constant 0 : i32
    return %c0_i32, %c0_i32_0 : i32, i32
  }
  func.func @transform_4(%arg0: i32) -> (i32, i32) {
    %c0_i32 = arith.constant 0 : i32
    %c0_i32_0 = arith.constant 0 : i32
    %c0_i32_1 = arith.constant 0 : i32
    return %c0_i32, %c0_i32_0 : i32, i32
  }
}

module attributes {stable_mosaic.version = 11 : i64} {
  func.func @kernel(%arg0: i32, %arg1: memref<32x96xf32, #tpu.memory_space<vmem>>, %arg2: memref<96x16xf32, #tpu.memory_space<vmem>>, %arg3: memref<32x1xf32, #tpu.memory_space<vmem>>, %arg4: memref<1x16xf32, #tpu.memory_space<vmem>>, %arg5: memref<32x16xf32, #tpu.memory_space<vmem>>) attributes {dimension_semantics = [#tpu.dimension_semantics<arbitrary>], iteration_bounds = array<i64: 1>, scalar_prefetch = 0 : i64, scratch_operands = 0 : i64, tpu.core_type = #tpu.core_type<tc>, window_params = [{pipeline_mode = #tpu.pipeline_mode<synchronous>, transform_indices = @transform_0, window_bounds = array<i64: 32, 96>}, {pipeline_mode = #tpu.pipeline_mode<synchronous>, transform_indices = @transform_1, window_bounds = array<i64: 96, 16>}, {pipeline_mode = #tpu.pipeline_mode<synchronous>, transform_indices = @transform_2, window_bounds = array<i64: 32, 1>}, {pipeline_mode = #tpu.pipeline_mode<synchronous>, transform_indices = @transform_3, window_bounds = array<i64: 1, 16>}, {pipeline_mode = #tpu.pipeline_mode<synchronous>, transform_indices = @transform_4, window_bounds = array<i64: 32, 16>}]} {
    %c0 = arith.constant 0 : index
    %c0_0 = arith.constant 0 : index
    %0 = vector.load %arg2[%c0, %c0_0] : memref<96x16xf32, #tpu.memory_space<vmem>>, vector<96x16xf32>
    %c0_1 = arith.constant 0 : index
    %c0_2 = arith.constant 0 : index
    %1 = vector.load %arg1[%c0_1, %c0_2] : memref<32x96xf32, #tpu.memory_space<vmem>>, vector<32x96xf32>
    %cst = arith.constant dense<0.000000e+00> : vector<32x16xf32>
    %2 = tpu.matmul %1, %0, %cst {dimension_numbers = #tpu.dot_dimension_numbers<[1], [0], [0], [1], [0, 0, 1, 1], [], []>} : vector<32x96xf32>, vector<96x16xf32>, vector<32x16xf32> -> vector<32x16xf32>
    %c0_3 = arith.constant 0 : index
    %c0_4 = arith.constant 0 : index
    %3 = vector.load %arg3[%c0_3, %c0_4] : memref<32x1xf32, #tpu.memory_space<vmem>>, vector<32x1xf32>
    %4 = vector.broadcast %3 : vector<32x1xf32> to vector<32x16xf32>
    %5 = arith.addf %2, %4 : vector<32x16xf32>
    %6 = arith.mulf %5, %5 : vector<32x16xf32>
    %7 = arith.mulf %5, %6 : vector<32x16xf32>
    %cst_5 = arith.constant 4.471500e-02 : f32
    %8 = vector.broadcast %cst_5 : f32 to vector<32x16xf32>
    %9 = arith.mulf %8, %7 : vector<32x16xf32>
    %10 = arith.addf %5, %9 : vector<32x16xf32>
    %cst_6 = arith.constant 0.797884583 : f32
    %11 = vector.broadcast %cst_6 : f32 to vector<32x16xf32>
    %12 = arith.mulf %11, %10 : vector<32x16xf32>
    %13 = math.tanh %12 : vector<32x16xf32>
    %cst_7 = arith.constant 1.000000e+00 : f32
    %14 = vector.broadcast %cst_7 : f32 to vector<32x16xf32>
    %15 = arith.addf %14, %13 : vector<32x16xf32>
    %cst_8 = arith.constant 5.000000e-01 : f32
    %16 = vector.broadcast %cst_8 : f32 to vector<32x16xf32>
    %17 = arith.mulf %16, %15 : vector<32x16xf32>
    %18 = arith.mulf %5, %17 : vector<32x16xf32>
    %c0_9 = arith.constant 0 : index
    %c0_10 = arith.constant 0 : index
    %19 = vector.load %arg4[%c0_9, %c0_10] : memref<1x16xf32, #tpu.memory_space<vmem>>, vector<1x16xf32>
    %20 = vector.broadcast %19 : vector<1x16xf32> to vector<32x16xf32>
    %21 = arith.mulf %18, %20 : vector<32x16xf32>
    %c0_11 = arith.constant 0 : index
    %c0_12 = arith.constant 0 : index
    %22 = vector.load %arg5[%c0_11, %c0_12] : memref<32x16xf32, #tpu.memory_space<vmem>>, vector<32x16xf32>
    tpu.vector_store %arg5[%c0_11, %c0_12], %21 {strides = array<i32>} : memref<32x16xf32, #tpu.memory_space<vmem>>, vector<32x16xf32>,
    return
  }
  func.func @transform_0(%arg0: i32) -> (i32, i32) {
    %c0_i32 = arith.constant 0 : i32
    %c0_i32_0 = arith.constant 0 : i32
    %c0_i32_1 = arith.constant 0 : i32
    return %c0_i32, %c0_i32_0 : i32, i32
  }
  func.func @transform_1(%arg0: i32) -> (i32, i32) {
    %c0_i32 = arith.constant 0 : i32
    %c0_i32_0 = arith.constant 0 : i32
    %c0_i32_1 = arith.constant 0 : i32
    return %c0_i32, %c0_i32_0 : i32, i32
  }
  func.func @transform_2(%arg0: i32) -> (i32, i32) {
    %c0_i32 = arith.constant 0 : i32
    %c0_i32_0 = arith.constant 0 : i32
    %c0_i32_1 = arith.constant 0 : i32
    return %c0_i32, %c0_i32_0 : i32, i32
  }
  func.func @transform_3(%arg0: i32) -> (i32, i32) {
    %c0_i32 = arith.constant 0 : i32
    %c0_i32_0 = arith.constant 0 : i32
    %c0_i32_1 = arith.constant 0 : i32
    return %c0_i32, %c0_i32_0 : i32, i32
  }
  func.func @transform_4(%arg0: i32) -> (i32, i32) {
    %c0_i32 = arith.constant 0 : i32
    %c0_i32_0 = arith.constant 0 : i32
    %c0_i32_1 = arith.constant 0 : i32
    return %c0_i32, %c0_i32_0 : i32, i32
  }
}

module attributes {stable_mosaic.version = 11 : i64} {
  func.func @kernel(%arg0: i32, %arg1: memref<32x224xf32, #tpu.memory_space<vmem>>, %arg2: memref<224x8xf32, #tpu.memory_space<vmem>>, %arg3: memref<32x1xf32, #tpu.memory_space<vmem>>, %arg4: memref<32x8xf32, #tpu.memory_space<vmem>>) attributes {dimension_semantics = [#tpu.dimension_semantics<arbitrary>], iteration_bounds = array<i64: 1>, scalar_prefetch = 0 : i64, scratch_operands = 0 : i64, tpu.core_type = #tpu.core_type<tc>, window_params = [{pipeline_mode = #tpu.pipeline_mode<synchronous>, transform_indices = @transform_0, window_bounds = array<i64: 32, 224>}, {pipeline_mode = #tpu.pipeline_mode<synchronous>, transform_indices = @transform_1, window_bounds = array<i64: 224, 8>}, {pipeline_mode = #tpu.pipeline_mode<synchronous>, transform_indices = @transform_2, window_bounds = array<i64: 32, 1>}, {pipeline_mode = #tpu.pipeline_mode<synchronous>, transform_indices = @transform_3, window_bounds = array<i64: 32, 8>}]} {
    %c0 = arith.constant 0 : index
    %c0_0 = arith.constant 0 : index
    %0 = vector.load %arg2[%c0, %c0_0] : memref<224x8xf32, #tpu.memory_space<vmem>>, vector<224x8xf32>
    %c0_1 = arith.constant 0 : index
    %c0_2 = arith.constant 0 : index
    %1 = vector.load %arg1[%c0_1, %c0_2] : memref<32x224xf32, #tpu.memory_space<vmem>>, vector<32x224xf32>
    %cst = arith.constant dense<0.000000e+00> : vector<32x8xf32>
    %2 = tpu.matmul %1, %0, %cst {dimension_numbers = #tpu.dot_dimension_numbers<[1], [0], [0], [1], [0, 0, 1, 1], [], []>} : vector<32x224xf32>, vector<224x8xf32>, vector<32x8xf32> -> vector<32x8xf32>
    %c0_3 = arith.constant 0 : index
    %c0_4 = arith.constant 0 : index
    %3 = vector.load %arg3[%c0_3, %c0_4] : memref<32x1xf32, #tpu.memory_space<vmem>>, vector<32x1xf32>
    %4 = vector.broadcast %3 : vector<32x1xf32> to vector<32x8xf32>
    %5 = arith.addf %2, %4 : vector<32x8xf32>
    %c0_5 = arith.constant 0 : index
    %c0_6 = arith.constant 0 : index
    %6 = vector.load %arg4[%c0_5, %c0_6] : memref<32x8xf32, #tpu.memory_space<vmem>>, vector<32x8xf32>
    tpu.vector_store %arg4[%c0_5, %c0_6], %5 {strides = array<i32>} : memref<32x8xf32, #tpu.memory_space<vmem>>, vector<32x8xf32>,
    return
  }
  func.func @transform_0(%arg0: i32) -> (i32, i32) {
    %c0_i32 = arith.constant 0 : i32
    %c0_i32_0 = arith.constant 0 : i32
    %c0_i32_1 = arith.constant 0 : i32
    return %c0_i32, %c0_i32_0 : i32, i32
  }
  func.func @transform_1(%arg0: i32) -> (i32, i32) {
    %c0_i32 = arith.constant 0 : i32
    %c0_i32_0 = arith.constant 0 : i32
    %c0_i32_1 = arith.constant 0 : i32
    return %c0_i32, %c0_i32_0 : i32, i32
  }
  func.func @transform_2(%arg0: i32) -> (i32, i32) {
    %c0_i32 = arith.constant 0 : i32
    %c0_i32_0 = arith.constant 0 : i32
    %c0_i32_1 = arith.constant 0 : i32
    return %c0_i32, %c0_i32_0 : i32, i32
  }
  func.func @transform_3(%arg0: i32) -> (i32, i32) {
    %c0_i32 = arith.constant 0 : i32
    %c0_i32_0 = arith.constant 0 : i32
    %c0_i32_1 = arith.constant 0 : i32
    return %c0_i32, %c0_i32_0 : i32, i32
  }
}

module attributes {stable_mosaic.version = 11 : i64} {
  func.func @kernel(%arg0: i32, %arg1: memref<16x64xf32, #tpu.memory_space<vmem>>, %arg2: memref<64x10xf32, #tpu.memory_space<vmem>>, %arg3: memref<16x1xf32, #tpu.memory_space<vmem>>, %arg4: memref<16x10xf32, #tpu.memory_space<vmem>>) attributes {dimension_semantics = [#tpu.dimension_semantics<arbitrary>], iteration_bounds = array<i64: 1>, scalar_prefetch = 0 : i64, scratch_operands = 0 : i64, tpu.core_type = #tpu.core_type<tc>, window_params = [{pipeline_mode = #tpu.pipeline_mode<synchronous>, transform_indices = @transform_0, window_bounds = array<i64: 16, 64>}, {pipeline_mode = #tpu.pipeline_mode<synchronous>, transform_indices = @transform_1, window_bounds = array<i64: 64, 10>}, {pipeline_mode = #tpu.pipeline_mode<synchronous>, transform_indices = @transform_2, window_bounds = array<i64: 16, 1>}, {pipeline_mode = #tpu.pipeline_mode<synchronous>, transform_indices = @transform_3, window_bounds = array<i64: 16, 10>}]} {
    %c0 = arith.constant 0 : index
    %c0_0 = arith.constant 0 : index
    %0 = vector.load %arg2[%c0, %c0_0] : memref<64x10xf32, #tpu.memory_space<vmem>>, vector<64x10xf32>
    %cst = arith.constant 0.000000e+00 : f32
    %1 = vector.broadcast %cst : f32 to vector<64x10xf32>
    %2 = arith.cmpf oge, %0, %1 : vector<64x10xf32>
    %cst_1 = arith.constant 1.000000e-01 : f32
    %3 = vector.broadcast %cst_1 : f32 to vector<64x10xf32>
    %4 = arith.mulf %3, %0 : vector<64x10xf32>
    %5 = arith.select %2, %0, %4 : vector<64x10xi1>, vector<64x10xf32>
    %c0_2 = arith.constant 0 : index
    %c0_3 = arith.constant 0 : index
    %6 = vector.load %arg1[%c0_2, %c0_3] : memref<16x64xf32, #tpu.memory_space<vmem>>, vector<16x64xf32>
    %cst_4 = arith.constant dense<0.000000e+00> : vector<16x10xf32>
    %7 = tpu.matmul %6, %5, %cst_4 {dimension_numbers = #tpu.dot_dimension_numbers<[1], [0], [0], [1], [0, 0, 1, 1], [], []>} : vector<16x64xf32>, vector<64x10xf32>, vector<16x10xf32> -> vector<16x10xf32>
    %c0_5 = arith.constant 0 : index
    %c0_6 = arith.constant 0 : index
    %8 = vector.load %arg3[%c0_5, %c0_6] : memref<16x1xf32, #tpu.memory_space<vmem>>, vector<16x1xf32>
    %9 = vector.broadcast %8 : vector<16x1xf32> to vector<16x10xf32>
    %10 = arith.addf %7, %9 : vector<16x10xf32>
    %c0_7 = arith.constant 0 : index
    %c0_8 = arith.constant 0 : index
    %11 = vector.load %arg4[%c0_7, %c0_8] : memref<16x10xf32, #tpu.memory_space<vmem>>, vector<16x10xf32>
    tpu.vector_store %arg4[%c0_7, %c0_8], %10 {strides = array<i32>} : memref<16x10xf32, #tpu.memory_space<vmem>>, vector<16x10xf32>,
    return
  }
  func.func @transform_0(%arg0: i32) -> (i32, i32) {
    %c0_i32 = arith.constant 0 : i32
    %c0_i32_0 = arith.constant 0 : i32
    %c0_i32_1 = arith.constant 0 : i32
    return %c0_i32, %c0_i32_0 : i32, i32
  }
  func.func @transform_1(%arg0: i32) -> (i32, i32) {
    %c0_i32 = arith.constant 0 : i32
    %c0_i32_0 = arith.constant 0 : i32
    %c0_i32_1 = arith.constant 0 : i32
    return %c0_i32, %c0_i32_0 : i32, i32
  }
  func.func @transform_2(%arg0: i32) -> (i32, i32) {
    %c0_i32 = arith.constant 0 : i32
    %c0_i32_0 = arith.constant 0 : i32
    %c0_i32_1 = arith.constant 0 : i32
    return %c0_i32, %c0_i32_0 : i32, i32
  }
  func.func @transform_3(%arg0: i32) -> (i32, i32) {
    %c0_i32 = arith.constant 0 : i32
    %c0_i32_0 = arith.constant 0 : i32
    %c0_i32_1 = arith.constant 0 : i32
    return %c0_i32, %c0_i32_0 : i32, i32
  }
}

module attributes {stable_mosaic.version = 11 : i64} {
  func.func @kernel(%arg0: i32, %arg1: memref<16x48xf32, #tpu.memory_space<vmem>>, %arg2: memref<48x16xf32, #tpu.memory_space<vmem>>, %arg3: memref<16x1xf32, #tpu.memory_space<vmem>>, %arg4: memref<16x16xf32, #tpu.memory_space<vmem>>) attributes {dimension_semantics = [#tpu.dimension_semantics<arbitrary>], iteration_bounds = array<i64: 1>, scalar_prefetch = 0 : i64, scratch_operands = 0 : i64, tpu.core_type = #tpu.core_type<tc>, window_params = [{pipeline_mode = #tpu.pipeline_mode<synchronous>, transform_indices = @transform_0, window_bounds = array<i64: 16, 48>}, {pipeline_mode = #tpu.pipeline_mode<synchronous>, transform_indices = @transform_1, window_bounds = array<i64: 48, 16>}, {pipeline_mode = #tpu.pipeline_mode<synchronous>, transform_indices = @transform_2, window_bounds = array<i64: 16, 1>}, {pipeline_mode = #tpu.pipeline_mode<synchronous>, transform_indices = @transform_3, window_bounds = array<i64: 16, 16>}]} {
    %c0 = arith.constant 0 : index
    %c0_0 = arith.constant 0 : index
    %0 = vector.load %arg2[%c0, %c0_0] : memref<48x16xf32, #tpu.memory_space<vmem>>, vector<48x16xf32>
    %cst = arith.constant 0.000000e+00 : f32
    %1 = vector.broadcast %cst : f32 to vector<48x16xf32>
    %2 = arith.cmpf oge, %0, %1 : vector<48x16xf32>
    %cst_1 = arith.constant 1.000000e-01 : f32
    %3 = vector.broadcast %cst_1 : f32 to vector<48x16xf32>
    %4 = arith.mulf %3, %0 : vector<48x16xf32>
    %5 = arith.select %2, %0, %4 : vector<48x16xi1>, vector<48x16xf32>
    %c0_2 = arith.constant 0 : index
    %c0_3 = arith.constant 0 : index
    %6 = vector.load %arg1[%c0_2, %c0_3] : memref<16x48xf32, #tpu.memory_space<vmem>>, vector<16x48xf32>
    %cst_4 = arith.constant dense<0.000000e+00> : vector<16x16xf32>
    %7 = tpu.matmul %6, %5, %cst_4 {dimension_numbers = #tpu.dot_dimension_numbers<[1], [0], [0], [1], [0, 0, 1, 1], [], []>} : vector<16x48xf32>, vector<48x16xf32>, vector<16x16xf32> -> vector<16x16xf32>
    %c0_5 = arith.constant 0 : index
    %c0_6 = arith.constant 0 : index
    %8 = vector.load %arg3[%c0_5, %c0_6] : memref<16x1xf32, #tpu.memory_space<vmem>>, vector<16x1xf32>
    %9 = vector.broadcast %8 : vector<16x1xf32> to vector<16x16xf32>
    %10 = arith.addf %7, %9 : vector<16x16xf32>
    %c0_7 = arith.constant 0 : index
    %c0_8 = arith.constant 0 : index
    %11 = vector.load %arg4[%c0_7, %c0_8] : memref<16x16xf32, #tpu.memory_space<vmem>>, vector<16x16xf32>
    tpu.vector_store %arg4[%c0_7, %c0_8], %10 {strides = array<i32>} : memref<16x16xf32, #tpu.memory_space<vmem>>, vector<16x16xf32>,
    return
  }
  func.func @transform_0(%arg0: i32) -> (i32, i32) {
    %c0_i32 = arith.constant 0 : i32
    %c0_i32_0 = arith.constant 0 : i32
    %c0_i32_1 = arith.constant 0 : i32
    return %c0_i32, %c0_i32_0 : i32, i32
  }
  func.func @transform_1(%arg0: i32) -> (i32, i32) {
    %c0_i32 = arith.constant 0 : i32
    %c0_i32_0 = arith.constant 0 : i32
    %c0_i32_1 = arith.constant 0 : i32
    return %c0_i32, %c0_i32_0 : i32, i32
  }
  func.func @transform_2(%arg0: i32) -> (i32, i32) {
    %c0_i32 = arith.constant 0 : i32
    %c0_i32_0 = arith.constant 0 : i32
    %c0_i32_1 = arith.constant 0 : i32
    return %c0_i32, %c0_i32_0 : i32, i32
  }
  func.func @transform_3(%arg0: i32) -> (i32, i32) {
    %c0_i32 = arith.constant 0 : i32
    %c0_i32_0 = arith.constant 0 : i32
    %c0_i32_1 = arith.constant 0 : i32
    return %c0_i32, %c0_i32_0 : i32, i32
  }
}

module attributes {stable_mosaic.version = 11 : i64} {
  func.func @kernel(%arg0: i32, %arg1: memref<16x48xf32, #tpu.memory_space<vmem>>, %arg2: memref<48x16xf32, #tpu.memory_space<vmem>>, %arg3: memref<16x1xf32, #tpu.memory_space<vmem>>, %arg4: memref<16x16xf32, #tpu.memory_space<vmem>>, %arg5: memref<16x16xf32, #tpu.memory_space<vmem>>) attributes {dimension_semantics = [#tpu.dimension_semantics<arbitrary>], iteration_bounds = array<i64: 1>, scalar_prefetch = 0 : i64, scratch_operands = 0 : i64, tpu.core_type = #tpu.core_type<tc>, window_params = [{pipeline_mode = #tpu.pipeline_mode<synchronous>, transform_indices = @transform_0, window_bounds = array<i64: 16, 48>}, {pipeline_mode = #tpu.pipeline_mode<synchronous>, transform_indices = @transform_1, window_bounds = array<i64: 48, 16>}, {pipeline_mode = #tpu.pipeline_mode<synchronous>, transform_indices = @transform_2, window_bounds = array<i64: 16, 1>}, {pipeline_mode = #tpu.pipeline_mode<synchronous>, transform_indices = @transform_3, window_bounds = array<i64: 16, 16>}, {pipeline_mode = #tpu.pipeline_mode<synchronous>, transform_indices = @transform_4, window_bounds = array<i64: 16, 16>}]} {
    %c0 = arith.constant 0 : index
    %c0_0 = arith.constant 0 : index
    %0 = vector.load %arg2[%c0, %c0_0] : memref<48x16xf32, #tpu.memory_space<vmem>>, vector<48x16xf32>
    %cst = arith.constant 0.000000e+00 : f32
    %1 = vector.broadcast %cst : f32 to vector<48x16xf32>
    %2 = arith.cmpf oge, %0, %1 : vector<48x16xf32>
    %cst_1 = arith.constant 1.000000e-01 : f32
    %3 = vector.broadcast %cst_1 : f32 to vector<48x16xf32>
    %4 = arith.mulf %3, %0 : vector<48x16xf32>
    %5 = arith.select %2, %0, %4 : vector<48x16xi1>, vector<48x16xf32>
    %c0_2 = arith.constant 0 : index
    %c0_3 = arith.constant 0 : index
    %6 = vector.load %arg1[%c0_2, %c0_3] : memref<16x48xf32, #tpu.memory_space<vmem>>, vector<16x48xf32>
    %cst_4 = arith.constant dense<0.000000e+00> : vector<16x16xf32>
    %7 = tpu.matmul %6, %5, %cst_4 {dimension_numbers = #tpu.dot_dimension_numbers<[1], [0], [0], [1], [0, 0, 1, 1], [], []>} : vector<16x48xf32>, vector<48x16xf32>, vector<16x16xf32> -> vector<16x16xf32>
    %c0_5 = arith.constant 0 : index
    %c0_6 = arith.constant 0 : index
    %8 = vector.load %arg3[%c0_5, %c0_6] : memref<16x1xf32, #tpu.memory_space<vmem>>, vector<16x1xf32>
    %9 = vector.broadcast %8 : vector<16x1xf32> to vector<16x16xf32>
    %10 = arith.addf %7, %9 : vector<16x16xf32>
    %c0_7 = arith.constant 0 : index
    %c0_8 = arith.constant 0 : index
    %11 = vector.load %arg4[%c0_7, %c0_8] : memref<16x16xf32, #tpu.memory_space<vmem>>, vector<16x16xf32>
    %12 = arith.addf %10, %11 : vector<16x16xf32>
    %c0_9 = arith.constant 0 : index
    %c0_10 = arith.constant 0 : index
    %13 = vector.load %arg5[%c0_9, %c0_10] : memref<16x16xf32, #tpu.memory_space<vmem>>, vector<16x16xf32>
    tpu.vector_store %arg5[%c0_9, %c0_10], %12 {strides = array<i32>} : memref<16x16xf32, #tpu.memory_space<vmem>>, vector<16x16xf32>,
    return
  }
  func.func @transform_0(%arg0: i32) -> (i32, i32) {
    %c0_i32 = arith.constant 0 : i32
    %c0_i32_0 = arith.constant 0 : i32
    %c0_i32_1 = arith.constant 0 : i32
    return %c0_i32, %c0_i32_0 : i32, i32
  }
  func.func @transform_1(%arg0: i32) -> (i32, i32) {
    %c0_i32 = arith.constant 0 : i32
    %c0_i32_0 = arith.constant 0 : i32
    %c0_i32_1 = arith.constant 0 : i32
    return %c0_i32, %c0_i32_0 : i32, i32
  }
  func.func @transform_2(%arg0: i32) -> (i32, i32) {
    %c0_i32 = arith.constant 0 : i32
    %c0_i32_0 = arith.constant 0 : i32
    %c0_i32_1 = arith.constant 0 : i32
    return %c0_i32, %c0_i32_0 : i32, i32
  }
  func.func @transform_3(%arg0: i32) -> (i32, i32) {
    %c0_i32 = arith.constant 0 : i32
    %c0_i32_0 = arith.constant 0 : i32
    %c0_i32_1 = arith.constant 0 : i32
    return %c0_i32, %c0_i32_0 : i32, i32
  }
  func.func @transform_4(%arg0: i32) -> (i32, i32) {
    %c0_i32 = arith.constant 0 : i32
    %c0_i32_0 = arith.constant 0 : i32
    %c0_i32_1 = arith.constant 0 : i32
    return %c0_i32, %c0_i32_0 : i32, i32
  }
}

module attributes {stable_mosaic.version = 11 : i64} {
  func.func @kernel(%arg0: i32, %arg1: memref<8x32xf32, #tpu.memory_space<vmem>>, %arg2: memref<32x18xf32, #tpu.memory_space<vmem>>, %arg3: memref<8x1xf32, #tpu.memory_space<vmem>>, %arg4: memref<8x18xf32, #tpu.memory_space<vmem>>) attributes {dimension_semantics = [#tpu.dimension_semantics<arbitrary>], iteration_bounds = array<i64: 1>, scalar_prefetch = 0 : i64, scratch_operands = 0 : i64, tpu.core_type = #tpu.core_type<tc>, window_params = [{pipeline_mode = #tpu.pipeline_mode<synchronous>, transform_indices = @transform_0, window_bounds = array<i64: 8, 32>}, {pipeline_mode = #tpu.pipeline_mode<synchronous>, transform_indices = @transform_1, window_bounds = array<i64: 32, 18>}, {pipeline_mode = #tpu.pipeline_mode<synchronous>, transform_indices = @transform_2, window_bounds = array<i64: 8, 1>}, {pipeline_mode = #tpu.pipeline_mode<synchronous>, transform_indices = @transform_3, window_bounds = array<i64: 8, 18>}]} {
    %c0 = arith.constant 0 : index
    %c0_0 = arith.constant 0 : index
    %0 = vector.load %arg2[%c0, %c0_0] : memref<32x18xf32, #tpu.memory_space<vmem>>, vector<32x18xf32>
    %cst = arith.constant 0.000000e+00 : f32
    %1 = vector.broadcast %cst : f32 to vector<32x18xf32>
    %2 = arith.cmpf oge, %0, %1 : vector<32x18xf32>
    %cst_1 = arith.constant 1.000000e-01 : f32
    %3 = vector.broadcast %cst_1 : f32 to vector<32x18xf32>
    %4 = arith.mulf %3, %0 : vector<32x18xf32>
    %5 = arith.select %2, %0, %4 : vector<32x18xi1>, vector<32x18xf32>
    %c0_2 = arith.constant 0 : index
    %c0_3 = arith.constant 0 : index
    %6 = vector.load %arg1[%c0_2, %c0_3] : memref<8x32xf32, #tpu.memory_space<vmem>>, vector<8x32xf32>
    %cst_4 = arith.constant dense<0.000000e+00> : vector<8x18xf32>
    %7 = tpu.matmul %6, %5, %cst_4 {dimension_numbers = #tpu.dot_dimension_numbers<[1], [0], [0], [1], [0, 0, 1, 1], [], []>} : vector<8x32xf32>, vector<32x18xf32>, vector<8x18xf32> -> vector<8x18xf32>
    %c0_5 = arith.constant 0 : index
    %c0_6 = arith.constant 0 : index
    %8 = vector.load %arg3[%c0_5, %c0_6] : memref<8x1xf32, #tpu.memory_space<vmem>>, vector<8x1xf32>
    %9 = vector.broadcast %8 : vector<8x1xf32> to vector<8x18xf32>
    %10 = arith.addf %7, %9 : vector<8x18xf32>
    %c0_7 = arith.constant 0 : index
    %c0_8 = arith.constant 0 : index
    %11 = vector.load %arg4[%c0_7, %c0_8] : memref<8x18xf32, #tpu.memory_space<vmem>>, vector<8x18xf32>
    tpu.vector_store %arg4[%c0_7, %c0_8], %10 {strides = array<i32>} : memref<8x18xf32, #tpu.memory_space<vmem>>, vector<8x18xf32>,
    return
  }
  func.func @transform_0(%arg0: i32) -> (i32, i32) {
    %c0_i32 = arith.constant 0 : i32
    %c0_i32_0 = arith.constant 0 : i32
    %c0_i32_1 = arith.constant 0 : i32
    return %c0_i32, %c0_i32_0 : i32, i32
  }
  func.func @transform_1(%arg0: i32) -> (i32, i32) {
    %c0_i32 = arith.constant 0 : i32
    %c0_i32_0 = arith.constant 0 : i32
    %c0_i32_1 = arith.constant 0 : i32
    return %c0_i32, %c0_i32_0 : i32, i32
  }
  func.func @transform_2(%arg0: i32) -> (i32, i32) {
    %c0_i32 = arith.constant 0 : i32
    %c0_i32_0 = arith.constant 0 : i32
    %c0_i32_1 = arith.constant 0 : i32
    return %c0_i32, %c0_i32_0 : i32, i32
  }
  func.func @transform_3(%arg0: i32) -> (i32, i32) {
    %c0_i32 = arith.constant 0 : i32
    %c0_i32_0 = arith.constant 0 : i32
    %c0_i32_1 = arith.constant 0 : i32
    return %c0_i32, %c0_i32_0 : i32, i32
  }
}

module attributes {stable_mosaic.version = 11 : i64} {
  func.func @kernel(%arg0: i32, %arg1: memref<8x24xf32, #tpu.memory_space<vmem>>, %arg2: memref<24x32xf32, #tpu.memory_space<vmem>>, %arg3: memref<8x1xf32, #tpu.memory_space<vmem>>, %arg4: memref<8x32xf32, #tpu.memory_space<vmem>>) attributes {dimension_semantics = [#tpu.dimension_semantics<arbitrary>], iteration_bounds = array<i64: 1>, scalar_prefetch = 0 : i64, scratch_operands = 0 : i64, tpu.core_type = #tpu.core_type<tc>, window_params = [{pipeline_mode = #tpu.pipeline_mode<synchronous>, transform_indices = @transform_0, window_bounds = array<i64: 8, 24>}, {pipeline_mode = #tpu.pipeline_mode<synchronous>, transform_indices = @transform_1, window_bounds = array<i64: 24, 32>}, {pipeline_mode = #tpu.pipeline_mode<synchronous>, transform_indices = @transform_2, window_bounds = array<i64: 8, 1>}, {pipeline_mode = #tpu.pipeline_mode<synchronous>, transform_indices = @transform_3, window_bounds = array<i64: 8, 32>}]} {
    %c0 = arith.constant 0 : index
    %c0_0 = arith.constant 0 : index
    %0 = vector.load %arg2[%c0, %c0_0] : memref<24x32xf32, #tpu.memory_space<vmem>>, vector<24x32xf32>
    %cst = arith.constant 0.000000e+00 : f32
    %1 = vector.broadcast %cst : f32 to vector<24x32xf32>
    %2 = arith.cmpf oge, %0, %1 : vector<24x32xf32>
    %cst_1 = arith.constant 1.000000e-01 : f32
    %3 = vector.broadcast %cst_1 : f32 to vector<24x32xf32>
    %4 = arith.mulf %3, %0 : vector<24x32xf32>
    %5 = arith.select %2, %0, %4 : vector<24x32xi1>, vector<24x32xf32>
    %c0_2 = arith.constant 0 : index
    %c0_3 = arith.constant 0 : index
    %6 = vector.load %arg1[%c0_2, %c0_3] : memref<8x24xf32, #tpu.memory_space<vmem>>, vector<8x24xf32>
    %cst_4 = arith.constant dense<0.000000e+00> : vector<8x32xf32>
    %7 = tpu.matmul %6, %5, %cst_4 {dimension_numbers = #tpu.dot_dimension_numbers<[1], [0], [0], [1], [0, 0, 1, 1], [], []>} : vector<8x24xf32>, vector<24x32xf32>, vector<8x32xf32> -> vector<8x32xf32>
    %c0_5 = arith.constant 0 : index
    %c0_6 = arith.constant 0 : index
    %8 = vector.load %arg3[%c0_5, %c0_6] : memref<8x1xf32, #tpu.memory_space<vmem>>, vector<8x1xf32>
    %9 = vector.broadcast %8 : vector<8x1xf32> to vector<8x32xf32>
    %10 = arith.addf %7, %9 : vector<8x32xf32>
    %c0_7 = arith.constant 0 : index
    %c0_8 = arith.constant 0 : index
    %11 = vector.load %arg4[%c0_7, %c0_8] : memref<8x32xf32, #tpu.memory_space<vmem>>, vector<8x32xf32>
    tpu.vector_store %arg4[%c0_7, %c0_8], %10 {strides = array<i32>} : memref<8x32xf32, #tpu.memory_space<vmem>>, vector<8x32xf32>,
    return
  }
  func.func @transform_0(%arg0: i32) -> (i32, i32) {
    %c0_i32 = arith.constant 0 : i32
    %c0_i32_0 = arith.constant 0 : i32
    %c0_i32_1 = arith.constant 0 : i32
    return %c0_i32, %c0_i32_0 : i32, i32
  }
  func.func @transform_1(%arg0: i32) -> (i32, i32) {
    %c0_i32 = arith.constant 0 : i32
    %c0_i32_0 = arith.constant 0 : i32
    %c0_i32_1 = arith.constant 0 : i32
    return %c0_i32, %c0_i32_0 : i32, i32
  }
  func.func @transform_2(%arg0: i32) -> (i32, i32) {
    %c0_i32 = arith.constant 0 : i32
    %c0_i32_0 = arith.constant 0 : i32
    %c0_i32_1 = arith.constant 0 : i32
    return %c0_i32, %c0_i32_0 : i32, i32
  }
  func.func @transform_3(%arg0: i32) -> (i32, i32) {
    %c0_i32 = arith.constant 0 : i32
    %c0_i32_0 = arith.constant 0 : i32
    %c0_i32_1 = arith.constant 0 : i32
    return %c0_i32, %c0_i32_0 : i32, i32
  }
}

module attributes {stable_mosaic.version = 11 : i64} {
  func.func @kernel(%arg0: i32, %arg1: memref<8x24xf32, #tpu.memory_space<vmem>>, %arg2: memref<24x32xf32, #tpu.memory_space<vmem>>, %arg3: memref<8x1xf32, #tpu.memory_space<vmem>>, %arg4: memref<8x32xf32, #tpu.memory_space<vmem>>, %arg5: memref<8x32xf32, #tpu.memory_space<vmem>>) attributes {dimension_semantics = [#tpu.dimension_semantics<arbitrary>], iteration_bounds = array<i64: 1>, scalar_prefetch = 0 : i64, scratch_operands = 0 : i64, tpu.core_type = #tpu.core_type<tc>, window_params = [{pipeline_mode = #tpu.pipeline_mode<synchronous>, transform_indices = @transform_0, window_bounds = array<i64: 8, 24>}, {pipeline_mode = #tpu.pipeline_mode<synchronous>, transform_indices = @transform_1, window_bounds = array<i64: 24, 32>}, {pipeline_mode = #tpu.pipeline_mode<synchronous>, transform_indices = @transform_2, window_bounds = array<i64: 8, 1>}, {pipeline_mode = #tpu.pipeline_mode<synchronous>, transform_indices = @transform_3, window_bounds = array<i64: 8, 32>}, {pipeline_mode = #tpu.pipeline_mode<synchronous>, transform_indices = @transform_4, window_bounds = array<i64: 8, 32>}]} {
    %c0 = arith.constant 0 : index
    %c0_0 = arith.constant 0 : index
    %0 = vector.load %arg2[%c0, %c0_0] : memref<24x32xf32, #tpu.memory_space<vmem>>, vector<24x32xf32>
    %cst = arith.constant 0.000000e+00 : f32
    %1 = vector.broadcast %cst : f32 to vector<24x32xf32>
    %2 = arith.cmpf oge, %0, %1 : vector<24x32xf32>
    %cst_1 = arith.constant 1.000000e-01 : f32
    %3 = vector.broadcast %cst_1 : f32 to vector<24x32xf32>
    %4 = arith.mulf %3, %0 : vector<24x32xf32>
    %5 = arith.select %2, %0, %4 : vector<24x32xi1>, vector<24x32xf32>
    %c0_2 = arith.constant 0 : index
    %c0_3 = arith.constant 0 : index
    %6 = vector.load %arg1[%c0_2, %c0_3] : memref<8x24xf32, #tpu.memory_space<vmem>>, vector<8x24xf32>
    %cst_4 = arith.constant dense<0.000000e+00> : vector<8x32xf32>
    %7 = tpu.matmul %6, %5, %cst_4 {dimension_numbers = #tpu.dot_dimension_numbers<[1], [0], [0], [1], [0, 0, 1, 1], [], []>} : vector<8x24xf32>, vector<24x32xf32>, vector<8x32xf32> -> vector<8x32xf32>
    %c0_5 = arith.constant 0 : index
    %c0_6 = arith.constant 0 : index
    %8 = vector.load %arg3[%c0_5, %c0_6] : memref<8x1xf32, #tpu.memory_space<vmem>>, vector<8x1xf32>
    %9 = vector.broadcast %8 : vector<8x1xf32> to vector<8x32xf32>
    %10 = arith.addf %7, %9 : vector<8x32xf32>
    %c0_7 = arith.constant 0 : index
    %c0_8 = arith.constant 0 : index
    %11 = vector.load %arg4[%c0_7, %c0_8] : memref<8x32xf32, #tpu.memory_space<vmem>>, vector<8x32xf32>
    %12 = arith.addf %10, %11 : vector<8x32xf32>
    %c0_9 = arith.constant 0 : index
    %c0_10 = arith.constant 0 : index
    %13 = vector.load %arg5[%c0_9, %c0_10] : memref<8x32xf32, #tpu.memory_space<vmem>>, vector<8x32xf32>
    tpu.vector_store %arg5[%c0_9, %c0_10], %12 {strides = array<i32>} : memref<8x32xf32, #tpu.memory_space<vmem>>, vector<8x32xf32>,
    return
  }
  func.func @transform_0(%arg0: i32) -> (i32, i32) {
    %c0_i32 = arith.constant 0 : i32
    %c0_i32_0 = arith.constant 0 : i32
    %c0_i32_1 = arith.constant 0 : i32
    return %c0_i32, %c0_i32_0 : i32, i32
  }
  func.func @transform_1(%arg0: i32) -> (i32, i32) {
    %c0_i32 = arith.constant 0 : i32
    %c0_i32_0 = arith.constant 0 : i32
    %c0_i32_1 = arith.constant 0 : i32
    return %c0_i32, %c0_i32_0 : i32, i32
  }
  func.func @transform_2(%arg0: i32) -> (i32, i32) {
    %c0_i32 = arith.constant 0 : i32
    %c0_i32_0 = arith.constant 0 : i32
    %c0_i32_1 = arith.constant 0 : i32
    return %c0_i32, %c0_i32_0 : i32, i32
  }
  func.func @transform_3(%arg0: i32) -> (i32, i32) {
    %c0_i32 = arith.constant 0 : i32
    %c0_i32_0 = arith.constant 0 : i32
    %c0_i32_1 = arith.constant 0 : i32
    return %c0_i32, %c0_i32_0 : i32, i32
  }
  func.func @transform_4(%arg0: i32) -> (i32, i32) {
    %c0_i32 = arith.constant 0 : i32
    %c0_i32_0 = arith.constant 0 : i32
    %c0_i32_1 = arith.constant 0 : i32
    return %c0_i32, %c0_i32_0 : i32, i32
  }
}

module attributes {stable_mosaic.version = 11 : i64} {
  func.func @kernel(%arg0: i32, %arg1: memref<1x56xf32, #tpu.memory_space<vmem>>, %arg2: memref<56x32xf32, #tpu.memory_space<vmem>>, %arg3: memref<1x1xf32, #tpu.memory_space<vmem>>, %arg4: memref<1x32xf32, #tpu.memory_space<vmem>>) attributes {dimension_semantics = [#tpu.dimension_semantics<arbitrary>], iteration_bounds = array<i64: 1>, scalar_prefetch = 0 : i64, scratch_operands = 0 : i64, tpu.core_type = #tpu.core_type<tc>, window_params = [{pipeline_mode = #tpu.pipeline_mode<synchronous>, transform_indices = @transform_0, window_bounds = array<i64: 1, 56>}, {pipeline_mode = #tpu.pipeline_mode<synchronous>, transform_indices = @transform_1, window_bounds = array<i64: 56, 32>}, {pipeline_mode = #tpu.pipeline_mode<synchronous>, transform_indices = @transform_2, window_bounds = array<i64: 1, 1>}, {pipeline_mode = #tpu.pipeline_mode<synchronous>, transform_indices = @transform_3, window_bounds = array<i64: 1, 32>}]} {
    %c0 = arith.constant 0 : index
    %c0_0 = arith.constant 0 : index
    %0 = vector.load %arg2[%c0, %c0_0] : memref<56x32xf32, #tpu.memory_space<vmem>>, vector<56x32xf32>
    %cst = arith.constant 0.000000e+00 : f32
    %1 = vector.broadcast %cst : f32 to vector<56x32xf32>
    %2 = arith.cmpf oge, %0, %1 : vector<56x32xf32>
    %cst_1 = arith.constant 1.000000e-01 : f32
    %3 = vector.broadcast %cst_1 : f32 to vector<56x32xf32>
    %4 = arith.mulf %3, %0 : vector<56x32xf32>
    %5 = arith.select %2, %0, %4 : vector<56x32xi1>, vector<56x32xf32>
    %c0_2 = arith.constant 0 : index
    %c0_3 = arith.constant 0 : index
    %6 = vector.load %arg1[%c0_2, %c0_3] : memref<1x56xf32, #tpu.memory_space<vmem>>, vector<1x56xf32>
    %cst_4 = arith.constant dense<0.000000e+00> : vector<1x32xf32>
    %7 = tpu.matmul %6, %5, %cst_4 {dimension_numbers = #tpu.dot_dimension_numbers<[1], [0], [0], [1], [0, 0, 1, 1], [], []>} : vector<1x56xf32>, vector<56x32xf32>, vector<1x32xf32> -> vector<1x32xf32>
    %c0_5 = arith.constant 0 : index
    %c0_6 = arith.constant 0 : index
    %8 = vector.load %arg3[%c0_5, %c0_6] : memref<1x1xf32, #tpu.memory_space<vmem>>, vector<1x1xf32>
    %9 = vector.broadcast %8 : vector<1x1xf32> to vector<1x32xf32>
    %10 = arith.addf %7, %9 : vector<1x32xf32>
    %11 = math.tanh %10 : vector<1x32xf32>
    %c0_7 = arith.constant 0 : index
    %c0_8 = arith.constant 0 : index
    %12 = vector.load %arg4[%c0_7, %c0_8] : memref<1x32xf32, #tpu.memory_space<vmem>>, vector<1x32xf32>
    tpu.vector_store %arg4[%c0_7, %c0_8], %11 {strides = array<i32>} : memref<1x32xf32, #tpu.memory_space<vmem>>, vector<1x32xf32>,
    return
  }
  func.func @transform_0(%arg0: i32) -> (i32, i32) {
    %c0_i32 = arith.constant 0 : i32
    %c0_i32_0 = arith.constant 0 : i32
    %c0_i32_1 = arith.constant 0 : i32
    return %c0_i32, %c0_i32_0 : i32, i32
  }
  func.func @transform_1(%arg0: i32) -> (i32, i32) {
    %c0_i32 = arith.constant 0 : i32
    %c0_i32_0 = arith.constant 0 : i32
    %c0_i32_1 = arith.constant 0 : i32
    return %c0_i32, %c0_i32_0 : i32, i32
  }
  func.func @transform_2(%arg0: i32) -> (i32, i32) {
    %c0_i32 = arith.constant 0 : i32
    %c0_i32_0 = arith.constant 0 : i32
    %c0_i32_1 = arith.constant 0 : i32
    return %c0_i32, %c0_i32_0 : i32, i32
  }
  func.func @transform_3(%arg0: i32) -> (i32, i32) {
    %c0_i32 = arith.constant 0 : i32
    %c0_i32_0 = arith.constant 0 : i32
    %c0_i32_1 = arith.constant 0 : i32
    return %c0_i32, %c0_i32_0 : i32, i32
  }
}

</mosaic_0001>

<llo_original>
// kernel: vits_generator_forward.43
$region0: #{vits_generator_forward.43}
  #allocation0 [shape = 'u32[]', space=smem, size = 0x4, offset = 0x4, fixed_abs, tag = 'smem constant byte address 0x4 - core index']
  #allocation1 [shape = 'u32[144,128]{1,0:T(1,128)}', space=vmem, size = 0x12000, scoped, tag = 'internal scratch']
  %s0 = inlined_call_operand.vmem [shape: f32[32,16], index: 0, kind: input, shape index: {}]
  %s1 = inlined_call_operand.vmem [shape: f32[16,32], index: 1, kind: input, shape index: {}]
  %s2 = inlined_call_operand.vmem [shape: f32[32,1], index: 2, kind: input, shape index: {}]
  %s3 = inlined_call_operand.vmem [shape: f32[1,32], index: 3, kind: input, shape index: {}]
  %s4 = inlined_call_operand.vmem [shape: f32[32,32], index: 4, kind: output, shape index: {}]
  %s5 = sld [smem:[#allocation0]]
  $region26: #{vits_generator_forward.43} parent=0
    _
  %s7 = ssub.s32 1, %s5
  %s8 = scalar_select 0, %s7, %s5
  // Predicated region
  $region2: #{vits_generator_forward.43} parent=0 // pred_check
    _
  $region3: #{vits_generator_forward.43} parent=0 // pred_check_branch
    %10 = sbr.rel (0) target = $region5
  $region4: #{vits_generator_forward.43} parent=0 // pred_region
    _
  $region5: #{vits_generator_forward.43} parent=0 // pred_fallthru
    _
  // Predicated region
  $region6: #{vits_generator_forward.43} parent=0 // pred_check
    _
  $region7: #{vits_generator_forward.43} parent=0 // pred_check_branch
    %12 = sbr.rel (0) target = $region9
  $region8: #{vits_generator_forward.43} parent=0 // pred_region
    _
  $region9: #{vits_generator_forward.43} parent=0 // pred_fallthru
    _
  // Predicated region
  $region10: #{vits_generator_forward.43} parent=0 // pred_check
    _
  $region11: #{vits_generator_forward.43} parent=0 // pred_check_branch
    %14 = sbr.rel (0) target = $region13
  $region12: #{vits_generator_forward.43} parent=0 // pred_region
    _
  $region13: #{vits_generator_forward.43} parent=0 // pred_fallthru
    _
  // Predicated region
  $region14: #{vits_generator_forward.43} parent=0 // pred_check
    _
  $region15: #{vits_generator_forward.43} parent=0 // pred_check_branch
    %16 = sbr.rel (0) target = $region17
  $region16: #{vits_generator_forward.43} parent=0 // pred_region
    _
  $region17: #{vits_generator_forward.43} parent=0 // pred_fallthru
    _
  %v17 = vld [vmem:[%s1] sm:$0xff]
  %v18 = vld [vmem:[%s1 + $0x8] sm:$0xff]
  %v19 = vld [vmem:[%s0] sm:$0xff]
  %v20 = vld [vmem:[%s0 + $0x8] sm:$0xff]
  %v21 = vld [vmem:[%s0 + $0x10] sm:$0xff]
  %v22 = vld [vmem:[%s0 + $0x18] sm:$0xff]
  %v23 = vld [vmem:[%s2] sm:$0xff]
  %v24 = vld [vmem:[%s2 + $0x8] sm:$0xff]
  %v25 = vld [vmem:[%s2 + $0x10] sm:$0xff]
  %v26 = vld [vmem:[%s2 + $0x18] sm:$0xff]
  %28 = vset.pattern.permute.xlu0 0
  %29 = vperm.xlu0 %28, %v23
  %v30 = vpop.permute.xlu0 %29
  %33 = vset.pattern.permute.xlu0 0
  %34 = vperm.xlu0 %33, %v24
  %v35 = vpop.permute.xlu0 %34
  %38 = vset.pattern.permute.xlu0 0
  %39 = vperm.xlu0 %38, %v25
  %v40 = vpop.permute.xlu0 %39
  %43 = vset.pattern.permute.xlu0 0
  %44 = vperm.xlu0 %43, %v26
  %v45 = vpop.permute.xlu0 %44
  %vm47 = vcmask 130048
  %v49 = vsel %vm47, %v19, 0
  %v52 = vsel %vm47, %v20, 0
  %v55 = vsel %vm47, %v21, 0
  %v58 = vsel %vm47, %v22, 0
  %60 = vmatprep.subr.mxu0 0.0
  %61 = vmatpush1.msra.mxu0 0.0
  %62 = vmatprep.subr.mxu0 0.0
  %63 = vmatpush1.msra.mxu0 0.0
  %64 = vmatprep.subr.mxu0 0.0
  %65 = vmatpush1.msra.mxu0 0.0
  %66 = vmatprep.subr.mxu0 0.0
  %67 = vmatpush1.msra.mxu0 0.0
  %68 = vmatprep.subr.mxu0 0.0
  %69 = vmatpush1.msra.mxu0 0.0
  %70 = vmatprep.subr.mxu0 0.0
  %71 = vmatpush1.msra.mxu0 0.0
  %72 = vmatprep.subr.mxu0 0.0
  %73 = vmatpush1.msra.mxu0 0.0
  %74 = vmatprep.subr.mxu0 0.0
  %75 = vmatpush1.msra.mxu0 0.0
  %76 = vmatprep.subr.mxu0 0.0
  %77 = vmatpush1.msra.mxu0 0.0
  %78 = vmatprep.subr.mxu0 0.0
  %79 = vmatpush1.msra.mxu0 0.0
  %80 = vmatprep.subr.mxu0 0.0
  %81 = vmatpush1.msra.mxu0 0.0
  %82 = vmatprep.subr.mxu0 0.0
  %83 = vmatpush1.msra.mxu0 0.0
  %84 = vmatprep.subr.mxu0 0.0
  %85 = vmatpush1.msra.mxu0 0.0
  %86 = vmatprep.subr.mxu0 0.0
  %87 = vmatpush1.msra.mxu0 0.0
  %88 = vmatprep.subr.mxu0 0.0
  %89 = vmatpush1.msra.mxu0 %v18
  %90 = vmatprep.subr.mxu0 0.0
  %91 = vmatpush1.msra.mxu0 %v17
  %92 = vmatprep.subr.mxu0 0.0
  %93 = vmatpush2.msra.mxu0 0.0
  %94 = vmatprep.subr.mxu0 0.0
  %95 = vmatpush2.msra.mxu0 0.0
  %96 = vmatprep.subr.mxu0 0.0
  %97 = vmatpush2.msra.mxu0 0.0
  %98 = vmatprep.subr.mxu0 0.0
  %99 = vmatpush2.msra.mxu0 0.0
  %100 = vmatprep.subr.mxu0 0.0
  %101 = vmatpush2.msra.mxu0 0.0
  %102 = vmatprep.subr.mxu0 0.0
  %103 = vmatpush2.msra.mxu0 0.0
  %104 = vmatprep.subr.mxu0 0.0
  %105 = vmatpush2.msra.mxu0 0.0
  %106 = vmatprep.subr.mxu0 0.0
  %107 = vmatpush2.msra.mxu0 0.0
  %108 = vmatprep.subr.mxu0 0.0
  %109 = vmatpush2.msra.mxu0 0.0
  %110 = vmatprep.subr.mxu0 0.0
  %111 = vmatpush2.msra.mxu0 0.0
  %112 = vmatprep.subr.mxu0 0.0
  %113 = vmatpush2.msra.mxu0 0.0
  %114 = vmatprep.subr.mxu0 0.0
  %115 = vmatpush2.msra.mxu0 0.0
  %116 = vmatprep.subr.mxu0 0.0
  %117 = vmatpush2.msra.mxu0 0.0
  %118 = vmatprep.subr.mxu0 0.0
  %119 = vmatpush2.msra.mxu0 0.0
  %120 = vmatprep.subr.mxu0 0.0
  %121 = vmatpush2.msra.mxu0 0.0
  %122 = vmatprep.subr.mxu0 0.0
  %123 = vmatpush2.msra.mxu0 0.0
  %124 = vmatprep.mubr.f32.mxu0 0.0
  %125 = vmatmul.mubr.f32.gmra.mxu0 %v49
  %v126 = vpop.f32.mrf.mxu0
  %v127 = vadd.f32 %v30, %v126
  %v128 = vpop.f32.mrf.mxu0
  %129 = vmatprep.mubr.f32.mxu0 0.0
  %130 = vmatmul.mubr.f32.gmra.mxu0 %v52
  %v131 = vpop.f32.mrf.mxu0
  %v132 = vadd.f32 %v35, %v131
  %v133 = vpop.f32.mrf.mxu0
  %134 = vmatprep.mubr.f32.mxu0 0.0
  %135 = vmatmul.mubr.f32.gmra.mxu0 %v55
  %v136 = vpop.f32.mrf.mxu0
  %v137 = vadd.f32 %v40, %v136
  %v138 = vpop.f32.mrf.mxu0
  %139 = vmatprep.mubr.f32.mxu0 0.0
  %140 = vmatmul.mubr.f32.gmra.mxu0 %v58
  %v141 = vpop.f32.mrf.mxu0
  %v142 = vadd.f32 %v45, %v141
  %v143 = vpop.f32.mrf.mxu0
  %144 = vdwg.mxu0
  %v145 = vld [vmem:[%s3] sm:$0x1]
  %v147 = vlaneseq
  %v148 = vshrl.u32 %v147, 7
  %v149 = vsub.s32 0, %v148
  %v150 = vrot.slane %v145, %v149
  %v152 = vmul.f32 %v127, %v150
  %v153 = vmul.f32 %v132, %v150
  %v154 = vmul.f32 %v137, %v150
  %v155 = vmul.f32 %v142, %v150
  %vm156 = vcmask 261120
  %157 = vst.msk [vmem:[%s4] sm:$0xff] %vm156, %v152
  %158 = vst.msk [vmem:[%s4 + $0x8] sm:$0xff] %vm156, %v153
  %159 = vst.msk [vmem:[%s4 + $0x10] sm:$0xff] %vm156, %v154
  %160 = vst.msk [vmem:[%s4 + $0x18] sm:$0xff] %vm156, %v155
  // Predicated region
  $region18: #{vits_generator_forward.43} parent=0 // pred_check
    _
  $region19: #{vits_generator_forward.43} parent=0 // pred_check_branch
    %162 = sbr.rel (0) target = $region21
  $region20: #{vits_generator_forward.43} parent=0 // pred_region
    _
  $region21: #{vits_generator_forward.43} parent=0 // pred_fallthru
    _
  // Predicated region
  $region22: #{vits_generator_forward.43} parent=0 // pred_check
    _
  $region23: #{vits_generator_forward.43} parent=0 // pred_check_branch
    %164 = sbr.rel (0) target = $region25
  $region24: #{vits_generator_forward.43} parent=0 // pred_region
    _
  $region25: #{vits_generator_forward.43} parent=0 // pred_fallthru
    _

// kernel: vits_generator_forward.46
$region0: #{vits_generator_forward.46}
  #allocation0 [shape = 'u32[]', space=smem, size = 0x4, offset = 0x4, fixed_abs, tag = 'smem constant byte address 0x4 - core index']
  #allocation1 [shape = 'u32[144,128]{1,0:T(1,128)}', space=vmem, size = 0x12000, scoped, tag = 'internal scratch']
  %s0 = inlined_call_operand.vmem [shape: f32[64,32], index: 0, kind: input, shape index: {}]
  %s1 = inlined_call_operand.vmem [shape: f32[32,32], index: 1, kind: input, shape index: {}]
  %s2 = inlined_call_operand.vmem [shape: f32[64,1], index: 2, kind: input, shape index: {}]
  %s3 = inlined_call_operand.vmem [shape: f32[1,32], index: 3, kind: input, shape index: {}]
  %s4 = inlined_call_operand.vmem [shape: f32[64,32], index: 4, kind: output, shape index: {}]
  %s5 = sld [smem:[#allocation0]]
  $region26: #{vits_generator_forward.46} parent=0
    _
  %s7 = ssub.s32 1, %s5
  %s8 = scalar_select 0, %s7, %s5
  // Predicated region
  $region2: #{vits_generator_forward.46} parent=0 // pred_check
    _
  $region3: #{vits_generator_forward.46} parent=0 // pred_check_branch
    %10 = sbr.rel (0) target = $region5
  $region4: #{vits_generator_forward.46} parent=0 // pred_region
    _
  $region5: #{vits_generator_forward.46} parent=0 // pred_fallthru
    _
  // Predicated region
  $region6: #{vits_generator_forward.46} parent=0 // pred_check
    _
  $region7: #{vits_generator_forward.46} parent=0 // pred_check_branch
    %12 = sbr.rel (0) target = $region9
  $region8: #{vits_generator_forward.46} parent=0 // pred_region
    _
  $region9: #{vits_generator_forward.46} parent=0 // pred_fallthru
    _
  // Predicated region
  $region10: #{vits_generator_forward.46} parent=0 // pred_check
    _
  $region11: #{vits_generator_forward.46} parent=0 // pred_check_branch
    %14 = sbr.rel (0) target = $region13
  $region12: #{vits_generator_forward.46} parent=0 // pred_region
    _
  $region13: #{vits_generator_forward.46} parent=0 // pred_fallthru
    _
  // Predicated region
  $region14: #{vits_generator_forward.46} parent=0 // pred_check
    _
  $region15: #{vits_generator_forward.46} parent=0 // pred_check_branch
    %16 = sbr.rel (0) target = $region17
  $region16: #{vits_generator_forward.46} parent=0 // pred_region
    _
  $region17: #{vits_generator_forward.46} parent=0 // pred_fallthru
    _
  %v17 = vld [vmem:[%s1] sm:$0xff]
  %v18 = vld [vmem:[%s1 + $0x8] sm:$0xff]
  %v19 = vld [vmem:[%s1 + $0x10] sm:$0xff]
  %v20 = vld [vmem:[%s1 + $0x18] sm:$0xff]
  %v21 = vld [vmem:[%s0] sm:$0xff]
  %v22 = vld [vmem:[%s0 + $0x8] sm:$0xff]
  %v23 = vld [vmem:[%s0 + $0x10] sm:$0xff]
  %v24 = vld [vmem:[%s0 + $0x18] sm:$0xff]
  %v25 = vld [vmem:[%s0 + $0x20] sm:$0xff]
  %v26 = vld [vmem:[%s0 + $0x28] sm:$0xff]
  %v27 = vld [vmem:[%s0 + $0x30] sm:$0xff]
  %v28 = vld [vmem:[%s0 + $0x38] sm:$0xff]
  %v29 = vld [vmem:[%s2] sm:$0xff]
  %v30 = vld [vmem:[%s2 + $0x8] sm:$0xff]
  %v31 = vld [vmem:[%s2 + $0x10] sm:$0xff]
  %v32 = vld [vmem:[%s2 + $0x18] sm:$0xff]
  %v33 = vld [vmem:[%s2 + $0x20] sm:$0xff]
  %v34 = vld [vmem:[%s2 + $0x28] sm:$0xff]
  %v35 = vld [vmem:[%s2 + $0x30] sm:$0xff]
  %v36 = vld [vmem:[%s2 + $0x38] sm:$0xff]
  %38 = vset.pattern.permute.xlu0 0
  %39 = vperm.xlu0 %38, %v29
  %v40 = vpop.permute.xlu0 %39
  %43 = vset.pattern.permute.xlu0 0
  %44 = vperm.xlu0 %43, %v30
  %v45 = vpop.permute.xlu0 %44
  %48 = vset.pattern.permute.xlu0 0
  %49 = vperm.xlu0 %48, %v31
  %v50 = vpop.permute.xlu0 %49
  %53 = vset.pattern.permute.xlu0 0
  %54 = vperm.xlu0 %53, %v32
  %v55 = vpop.permute.xlu0 %54
  %58 = vset.pattern.permute.xlu0 0
  %59 = vperm.xlu0 %58, %v33
  %v60 = vpop.permute.xlu0 %59
  %63 = vset.pattern.permute.xlu0 0
  %64 = vperm.xlu0 %63, %v34
  %v65 = vpop.permute.xlu0 %64
  %68 = vset.pattern.permute.xlu0 0
  %69 = vperm.xlu0 %68, %v35
  %v70 = vpop.permute.xlu0 %69
  %73 = vset.pattern.permute.xlu0 0
  %74 = vperm.xlu0 %73, %v36
  %v75 = vpop.permute.xlu0 %74
  %vm77 = vcmask 261120
  %v79 = vsel %vm77, %v21, 0
  %v82 = vsel %vm77, %v22, 0
  %v85 = vsel %vm77, %v23, 0
  %v88 = vsel %vm77, %v24, 0
  %v91 = vsel %vm77, %v25, 0
  %v94 = vsel %vm77, %v26, 0
  %v97 = vsel %vm77, %v27, 0
  %v100 = vsel %vm77, %v28, 0
  %102 = vmatprep.subr.mxu0 0.0
  %103 = vmatpush1.msra.mxu0 0.0
  %104 = vmatprep.subr.mxu0 0.0
  %105 = vmatpush1.msra.mxu0 0.0
  %106 = vmatprep.subr.mxu0 0.0
  %107 = vmatpush1.msra.mxu0 0.0
  %108 = vmatprep.subr.mxu0 0.0
  %109 = vmatpush1.msra.mxu0 0.0
  %110 = vmatprep.subr.mxu0 0.0
  %111 = vmatpush1.msra.mxu0 0.0
  %112 = vmatprep.subr.mxu0 0.0
  %113 = vmatpush1.msra.mxu0 0.0
  %114 = vmatprep.subr.mxu0 0.0
  %115 = vmatpush1.msra.mxu0 0.0
  %116 = vmatprep.subr.mxu0 0.0
  %117 = vmatpush1.msra.mxu0 0.0
  %118 = vmatprep.subr.mxu0 0.0
  %119 = vmatpush1.msra.mxu0 0.0
  %120 = vmatprep.subr.mxu0 0.0
  %121 = vmatpush1.msra.mxu0 0.0
  %122 = vmatprep.subr.mxu0 0.0
  %123 = vmatpush1.msra.mxu0 0.0
  %124 = vmatprep.subr.mxu0 0.0
  %125 = vmatpush1.msra.mxu0 0.0
  %126 = vmatprep.subr.mxu0 0.0
  %127 = vmatpush1.msra.mxu0 %v20
  %128 = vmatprep.subr.mxu0 0.0
  %129 = vmatpush1.msra.mxu0 %v19
  %130 = vmatprep.subr.mxu0 0.0
  %131 = vmatpush1.msra.mxu0 %v18
  %132 = vmatprep.subr.mxu0 0.0
  %133 = vmatpush1.msra.mxu0 %v17
  %134 = vmatprep.subr.mxu0 0.0
  %135 = vmatpush2.msra.mxu0 0.0
  %136 = vmatprep.subr.mxu0 0.0
  %137 = vmatpush2.msra.mxu0 0.0
  %138 = vmatprep.subr.mxu0 0.0
  %139 = vmatpush2.msra.mxu0 0.0
  %140 = vmatprep.subr.mxu0 0.0
  %141 = vmatpush2.msra.mxu0 0.0
  %142 = vmatprep.subr.mxu0 0.0
  %143 = vmatpush2.msra.mxu0 0.0
  %144 = vmatprep.subr.mxu0 0.0
  %145 = vmatpush2.msra.mxu0 0.0
  %146 = vmatprep.subr.mxu0 0.0
  %147 = vmatpush2.msra.mxu0 0.0
  %148 = vmatprep.subr.mxu0 0.0
  %149 = vmatpush2.msra.mxu0 0.0
  %150 = vmatprep.subr.mxu0 0.0
  %151 = vmatpush2.msra.mxu0 0.0
  %152 = vmatprep.subr.mxu0 0.0
  %153 = vmatpush2.msra.mxu0 0.0
  %154 = vmatprep.subr.mxu0 0.0
  %155 = vmatpush2.msra.mxu0 0.0
  %156 = vmatprep.subr.mxu0 0.0
  %157 = vmatpush2.msra.mxu0 0.0
  %158 = vmatprep.subr.mxu0 0.0
  %159 = vmatpush2.msra.mxu0 0.0
  %160 = vmatprep.subr.mxu0 0.0
  %161 = vmatpush2.msra.mxu0 0.0
  %162 = vmatprep.subr.mxu0 0.0
  %163 = vmatpush2.msra.mxu0 0.0
  %164 = vmatprep.subr.mxu0 0.0
  %165 = vmatpush2.msra.mxu0 0.0
  %166 = vmatprep.mubr.f32.mxu0 0.0
  %167 = vmatmul.mubr.f32.gmra.mxu0 %v79
  %v168 = vpop.f32.mrf.mxu0
  %v169 = vadd.f32 %v40, %v168
  %v170 = vpop.f32.mrf.mxu0
  %171 = vmatprep.mubr.f32.mxu0 0.0
  %172 = vmatmul.mubr.f32.gmra.mxu0 %v82
  %v173 = vpop.f32.mrf.mxu0
  %v174 = vadd.f32 %v45, %v173
  %v175 = vpop.f32.mrf.mxu0
  %176 = vmatprep.mubr.f32.mxu0 0.0
  %177 = vmatmul.mubr.f32.gmra.mxu0 %v85
  %v178 = vpop.f32.mrf.mxu0
  %v179 = vadd.f32 %v50, %v178
  %v180 = vpop.f32.mrf.mxu0
  %181 = vmatprep.mubr.f32.mxu0 0.0
  %182 = vmatmul.mubr.f32.gmra.mxu0 %v88
  %v183 = vpop.f32.mrf.mxu0
  %v184 = vadd.f32 %v55, %v183
  %v185 = vpop.f32.mrf.mxu0
  %186 = vmatprep.mubr.f32.mxu0 0.0
  %187 = vmatmul.mubr.f32.gmra.mxu0 %v91
  %v188 = vpop.f32.mrf.mxu0
  %v189 = vadd.f32 %v60, %v188
  %v190 = vpop.f32.mrf.mxu0
  %191 = vmatprep.mubr.f32.mxu0 0.0
  %192 = vmatmul.mubr.f32.gmra.mxu0 %v94
  %v193 = vpop.f32.mrf.mxu0
  %v194 = vadd.f32 %v65, %v193
  %v195 = vpop.f32.mrf.mxu0
  %196 = vmatprep.mubr.f32.mxu0 0.0
  %197 = vmatmul.mubr.f32.gmra.mxu0 %v97
  %v198 = vpop.f32.mrf.mxu0
  %v199 = vadd.f32 %v70, %v198
  %v200 = vpop.f32.mrf.mxu0
  %201 = vmatprep.mubr.f32.mxu0 0.0
  %202 = vmatmul.mubr.f32.gmra.mxu0 %v100
  %v203 = vpop.f32.mrf.mxu0
  %v204 = vadd.f32 %v75, %v203
  %v205 = vpop.f32.mrf.mxu0
  %206 = vdwg.mxu0
  %v207 = vld [vmem:[%s3] sm:$0x1]
  %v209 = vlaneseq
  %v210 = vshrl.u32 %v209, 7
  %v211 = vsub.s32 0, %v210
  %v212 = vrot.slane %v207, %v211
  %v214 = vmul.f32 %v169, %v212
  %v215 = vmul.f32 %v174, %v212
  %v216 = vmul.f32 %v179, %v212
  %v217 = vmul.f32 %v184, %v212
  %v218 = vmul.f32 %v189, %v212
  %v219 = vmul.f32 %v194, %v212
  %v220 = vmul.f32 %v199, %v212
  %v221 = vmul.f32 %v204, %v212
  %222 = vst.msk [vmem:[%s4] sm:$0xff] %vm77, %v214
  %223 = vst.msk [vmem:[%s4 + $0x8] sm:$0xff] %vm77, %v215
  %224 = vst.msk [vmem:[%s4 + $0x10] sm:$0xff] %vm77, %v216
  %225 = vst.msk [vmem:[%s4 + $0x18] sm:$0xff] %vm77, %v217
  %226 = vst.msk [vmem:[%s4 + $0x20] sm:$0xff] %vm77, %v218
  %227 = vst.msk [vmem:[%s4 + $0x28] sm:$0xff] %vm77, %v219
  %228 = vst.msk [vmem:[%s4 + $0x30] sm:$0xff] %vm77, %v220
  %229 = vst.msk [vmem:[%s4 + $0x38] sm:$0xff] %vm77, %v221
  // Predicated region
  $region18: #{vits_generator_forward.46} parent=0 // pred_check
    _
  $region19: #{vits_generator_forward.46} parent=0 // pred_check_branch
    %231 = sbr.rel (0) target = $region21
  $region20: #{vits_generator_forward.46} parent=0 // pred_region
    _
  $region21: #{vits_generator_forward.46} parent=0 // pred_fallthru
    _
  // Predicated region
  $region22: #{vits_generator_forward.46} parent=0 // pred_check
    _
  $region23: #{vits_generator_forward.46} parent=0 // pred_check_branch
    %233 = sbr.rel (0) target = $region25
  $region24: #{vits_generator_forward.46} parent=0 // pred_region
    _
  $region25: #{vits_generator_forward.46} parent=0 // pred_fallthru
    _

// kernel: vits_generator_forward.45
$region0: #{vits_generator_forward.45}
  #allocation0 [shape = 'u32[]', space=smem, size = 0x4, offset = 0x4, fixed_abs, tag = 'smem constant byte address 0x4 - core index']
  #allocation1 [shape = 'u32[144,128]{1,0:T(1,128)}', space=vmem, size = 0x12000, scoped, tag = 'internal scratch']
  %s0 = inlined_call_operand.vmem [shape: f32[64,160], index: 0, kind: input, shape index: {}]
  %s1 = inlined_call_operand.vmem [shape: f32[160,32], index: 1, kind: input, shape index: {}]
  %s2 = inlined_call_operand.vmem [shape: f32[64,1], index: 2, kind: input, shape index: {}]
  %s3 = inlined_call_operand.vmem [shape: f32[32,32], index: 3, kind: input, shape index: {}]
  %s4 = inlined_call_operand.vmem [shape: f32[32,1], index: 4, kind: input, shape index: {}]
  %s5 = inlined_call_operand.vmem [shape: f32[32,32], index: 5, kind: input, shape index: {}]
  %s6 = inlined_call_operand.vmem [shape: f32[32,32], index: 6, kind: input, shape index: {}]
  %s7 = inlined_call_operand.vmem [shape: f32[1,32], index: 7, kind: input, shape index: {}]
  %s8 = inlined_call_operand.hbm [shape: f32[32,32], index: 8, kind: output, shape index: {0}]
  %s9 = inlined_call_operand.vmem [shape: f32[32,32], index: 9, kind: output, shape index: {1}]
  %10 = xla_tuple %s8, %s9
  %s11 = sld [smem:[#allocation0]]
  $region50: #{vits_generator_forward.45} parent=0
    _
  %s13 = ssub.s32 1, %s11
  %s14 = scalar_select 0, %s13, %s11
  $region1: #{vits_generator_forward.45} parent=0
    #allocation2 [shape = 'u8[16384]{0}', space=vmem, size = 0x4000, scoped, tag = 'output window, operand 0, single buffered']
    #allocation3 [shape = 's32[1]{0}', space=sflag, size = 0x4, scoped, tag = 'scoped memory for vits_generator_forward.45']
    %15 = vsyncpa [#allocation3], 0
    // Predicated region
    $region2: #{vits_generator_forward.45} parent=1 // pred_check
      _
    $region3: #{vits_generator_forward.45} parent=1 // pred_check_branch
      %17 = sbr.rel (0) target = $region5
    $region4: #{vits_generator_forward.45} parent=1 // pred_region
      _
    $region5: #{vits_generator_forward.45} parent=1 // pred_fallthru
      _
    // Predicated region
    $region6: #{vits_generator_forward.45} parent=1 // pred_check
      _
    $region7: #{vits_generator_forward.45} parent=1 // pred_check_branch
      %19 = sbr.rel (0) target = $region9
    $region8: #{vits_generator_forward.45} parent=1 // pred_region
      _
    $region9: #{vits_generator_forward.45} parent=1 // pred_fallthru
      _
    // Predicated region
    $region10: #{vits_generator_forward.45} parent=1 // pred_check
      _
    $region11: #{vits_generator_forward.45} parent=1 // pred_check_branch
      %21 = sbr.rel (0) target = $region13
    $region12: #{vits_generator_forward.45} parent=1 // pred_region
      _
    $region13: #{vits_generator_forward.45} parent=1 // pred_fallthru
      _
    // Predicated region
    $region14: #{vits_generator_forward.45} parent=1 // pred_check
      _
    $region15: #{vits_generator_forward.45} parent=1 // pred_check_branch
      %23 = sbr.rel (0) target = $region17
    $region16: #{vits_generator_forward.45} parent=1 // pred_region
      _
    $region17: #{vits_generator_forward.45} parent=1 // pred_fallthru
      _
    // Predicated region
    $region18: #{vits_generator_forward.45} parent=1 // pred_check
      _
    $region19: #{vits_generator_forward.45} parent=1 // pred_check_branch
      %25 = sbr.rel (0) target = $region21
    $region20: #{vits_generator_forward.45} parent=1 // pred_region
      _
    $region21: #{vits_generator_forward.45} parent=1 // pred_fallthru
      _
    // Predicated region
    $region22: #{vits_generator_forward.45} parent=1 // pred_check
      _
    $region23: #{vits_generator_forward.45} parent=1 // pred_check_branch
      %27 = sbr.rel (0) target = $region25
    $region24: #{vits_generator_forward.45} parent=1 // pred_region
      _
    $region25: #{vits_generator_forward.45} parent=1 // pred_fallthru
      _
    // Predicated region
    $region26: #{vits_generator_forward.45} parent=1 // pred_check
      _
    $region27: #{vits_generator_forward.45} parent=1 // pred_check_branch
      %29 = sbr.rel (0) target = $region29
    $region28: #{vits_generator_forward.45} parent=1 // pred_region
      _
    $region29: #{vits_generator_forward.45} parent=1 // pred_fallthru
      _
    // Predicated region
    $region30: #{vits_generator_forward.45} parent=1 // pred_check
      _
    $region31: #{vits_generator_forward.45} parent=1 // pred_check_branch
      %31 = sbr.rel (0) target = $region33
    $region32: #{vits_generator_forward.45} parent=1 // pred_region
      _
    $region33: #{vits_generator_forward.45} parent=1 // pred_fallthru
      _
    %v32 = vld [vmem:[%s0] sm:$0xff]
    %v33 = vld [vmem:[%s0 + $0x8] sm:$0xff]
    %v34 = vld [vmem:[%s0 + $0x10] sm:$0xff]
    %v35 = vld [vmem:[%s0 + $0x18] sm:$0xff]
    %v36 = vld [vmem:[%s0 + $0x20] sm:$0xff]
    %v37 = vld [vmem:[%s0 + $0x28] sm:$0xff]
    %v38 = vld [vmem:[%s0 + $0x30] sm:$0xff]
    %v39 = vld [vmem:[%s0 + $0x38] sm:$0xff]
    %v40 = vld [vmem:[%s0 + $0x40] sm:$0xff]
    %v41 = vld [vmem:[%s0 + $0x48] sm:$0xff]
    %v42 = vld [vmem:[%s0 + $0x50] sm:$0xff]
    %v43 = vld [vmem:[%s0 + $0x58] sm:$0xff]
    %v44 = vld [vmem:[%s0 + $0x60] sm:$0xff]
    %v45 = vld [vmem:[%s0 + $0x68] sm:$0xff]
    %v46 = vld [vmem:[%s0 + $0x70] sm:$0xff]
    %v47 = vld [vmem:[%s0 + $0x78] sm:$0xff]
    %v48 = vld [vmem:[%s1] sm:$0xff]
    %v49 = vld [vmem:[%s1 + $0x8] sm:$0xff]
    %v50 = vld [vmem:[%s1 + $0x10] sm:$0xff]
    %v51 = vld [vmem:[%s1 + $0x18] sm:$0xff]
    %v52 = vld [vmem:[%s1 + $0x20] sm:$0xff]
    %v53 = vld [vmem:[%s1 + $0x28] sm:$0xff]
    %v54 = vld [vmem:[%s1 + $0x30] sm:$0xff]
    %v55 = vld [vmem:[%s1 + $0x38] sm:$0xff]
    %v56 = vld [vmem:[%s1 + $0x40] sm:$0xff]
    %v57 = vld [vmem:[%s1 + $0x48] sm:$0xff]
    %v58 = vld [vmem:[%s1 + $0x50] sm:$0xff]
    %v59 = vld [vmem:[%s1 + $0x58] sm:$0xff]
    %v60 = vld [vmem:[%s1 + $0x60] sm:$0xff]
    %v61 = vld [vmem:[%s1 + $0x68] sm:$0xff]
    %v62 = vld [vmem:[%s1 + $0x70] sm:$0xff]
    %v63 = vld [vmem:[%s1 + $0x78] sm:$0xff]
    %v64 = vld [vmem:[%s1 + $0x80] sm:$0xff]
    %v65 = vld [vmem:[%s1 + $0x88] sm:$0xff]
    %v66 = vld [vmem:[%s1 + $0x90] sm:$0xff]
    %v67 = vld [vmem:[%s1 + $0x98] sm:$0xff]
    %v68 = vld [vmem:[%s2] sm:$0xff]
    %v69 = vld [vmem:[%s2 + $0x8] sm:$0xff]
    %v70 = vld [vmem:[%s2 + $0x10] sm:$0xff]
    %v71 = vld [vmem:[%s2 + $0x18] sm:$0xff]
    %v72 = vld [vmem:[%s2 + $0x20] sm:$0xff]
    %v73 = vld [vmem:[%s2 + $0x28] sm:$0xff]
    %v74 = vld [vmem:[%s2 + $0x30] sm:$0xff]
    %v75 = vld [vmem:[%s2 + $0x38] sm:$0xff]
    %77 = vset.pattern.permute.xlu0 0
    %78 = vperm.xlu0 %77, %v68
    %v79 = vpop.permute.xlu0 %78
    %82 = vset.pattern.permute.xlu0 0
    %83 = vperm.xlu0 %82, %v69
    %v84 = vpop.permute.xlu0 %83
    %87 = vset.pattern.permute.xlu0 0
    %88 = vperm.xlu0 %87, %v70
    %v89 = vpop.permute.xlu0 %88
    %92 = vset.pattern.permute.xlu0 0
    %93 = vperm.xlu0 %92, %v71
    %v94 = vpop.permute.xlu0 %93
    %97 = vset.pattern.permute.xlu0 0
    %98 = vperm.xlu0 %97, %v72
    %v99 = vpop.permute.xlu0 %98
    %102 = vset.pattern.permute.xlu0 0
    %103 = vperm.xlu0 %102, %v73
    %v104 = vpop.permute.xlu0 %103
    %107 = vset.pattern.permute.xlu0 0
    %108 = vperm.xlu0 %107, %v74
    %v109 = vpop.permute.xlu0 %108
    %112 = vset.pattern.permute.xlu0 0
    %113 = vperm.xlu0 %112, %v75
    %v114 = vpop.permute.xlu0 %113
    %vm116 = vcmask 261120
    %v118 = vsel %vm116, %v33, 0
    %v121 = vsel %vm116, %v35, 0
    %v124 = vsel %vm116, %v37, 0
    %v127 = vsel %vm116, %v39, 0
    %v130 = vsel %vm116, %v41, 0
    %v133 = vsel %vm116, %v43, 0
    %v136 = vsel %vm116, %v45, 0
    %v139 = vsel %vm116, %v47, 0
    %141 = vmatprep.subr.mxu0 0.0
    %142 = vmatpush1.msra.mxu0 %v63
    %143 = vmatprep.subr.mxu0 0.0
    %144 = vmatpush1.msra.mxu0 %v62
    %145 = vmatprep.subr.mxu0 0.0
    %146 = vmatpush1.msra.mxu0 %v61
    %147 = vmatprep.subr.mxu0 0.0
    %148 = vmatpush1.msra.mxu0 %v60
    %149 = vmatprep.subr.mxu0 0.0
    %150 = vmatpush1.msra.mxu0 %v59
    %151 = vmatprep.subr.mxu0 0.0
    %152 = vmatpush1.msra.mxu0 %v58
    %153 = vmatprep.subr.mxu0 0.0
    %154 = vmatpush1.msra.mxu0 %v57
    %155 = vmatprep.subr.mxu0 0.0
    %156 = vmatpush1.msra.mxu0 %v56
    %157 = vmatprep.subr.mxu0 0.0
    %158 = vmatpush1.msra.mxu0 %v55
    %159 = vmatprep.subr.mxu0 0.0
    %160 = vmatpush1.msra.mxu0 %v54
    %161 = vmatprep.subr.mxu0 0.0
    %162 = vmatpush1.msra.mxu0 %v53
    %163 = vmatprep.subr.mxu0 0.0
    %164 = vmatpush1.msra.mxu0 %v52
    %165 = vmatprep.subr.mxu0 0.0
    %166 = vmatpush1.msra.mxu0 %v51
    %167 = vmatprep.subr.mxu0 0.0
    %168 = vmatpush1.msra.mxu0 %v50
    %169 = vmatprep.subr.mxu0 0.0
    %170 = vmatpush1.msra.mxu0 %v49
    %171 = vmatprep.subr.mxu0 0.0
    %172 = vmatpush1.msra.mxu0 %v48
    %173 = vmatprep.subr.mxu0 0.0
    %174 = vmatpush2.msra.mxu0 0.0
    %175 = vmatprep.subr.mxu0 0.0
    %176 = vmatpush2.msra.mxu0 0.0
    %177 = vmatprep.subr.mxu0 0.0
    %178 = vmatpush2.msra.mxu0 0.0
    %179 = vmatprep.subr.mxu0 0.0
    %180 = vmatpush2.msra.mxu0 0.0
    %181 = vmatprep.subr.mxu0 0.0
    %182 = vmatpush2.msra.mxu0 0.0
    %183 = vmatprep.subr.mxu0 0.0
    %184 = vmatpush2.msra.mxu0 0.0
    %185 = vmatprep.subr.mxu0 0.0
    %186 = vmatpush2.msra.mxu0 0.0
    %187 = vmatprep.subr.mxu0 0.0
    %188 = vmatpush2.msra.mxu0 0.0
    %189 = vmatprep.subr.mxu0 0.0
    %190 = vmatpush2.msra.mxu0 0.0
    %191 = vmatprep.subr.mxu0 0.0
    %192 = vmatpush2.msra.mxu0 0.0
    %193 = vmatprep.subr.mxu0 0.0
    %194 = vmatpush2.msra.mxu0 0.0
    %195 = vmatprep.subr.mxu0 0.0
    %196 = vmatpush2.msra.mxu0 0.0
    %197 = vmatprep.subr.mxu0 0.0
    %198 = vmatpush2.msra.mxu0 %v67
    %199 = vmatprep.subr.mxu0 0.0
    %200 = vmatpush2.msra.mxu0 %v66
    %201 = vmatprep.subr.mxu0 0.0
    %202 = vmatpush2.msra.mxu0 %v65
    %203 = vmatprep.subr.mxu0 0.0
    %204 = vmatpush2.msra.mxu0 %v64
    %205 = vmatprep.mubr.f32.mxu0 %v118
    %206 = vmatmul.mubr.f32.gmra.mxu0 %v32
    %v207 = vpop.f32.mrf.mxu0
    %v208 = vadd.f32 %v79, %v207
    %v209 = vpop.f32.mrf.mxu0
    %210 = vmatprep.mubr.f32.mxu0 %v121
    %211 = vmatmul.mubr.f32.gmra.mxu0 %v34
    %v212 = vpop.f32.mrf.mxu0
    %v213 = vadd.f32 %v84, %v212
    %v214 = vpop.f32.mrf.mxu0
    %215 = vmatprep.mubr.f32.mxu0 %v124
    %216 = vmatmul.mubr.f32.gmra.mxu0 %v36
    %v217 = vpop.f32.mrf.mxu0
    %v218 = vadd.f32 %v89, %v217
    %v219 = vpop.f32.mrf.mxu0
    %220 = vmatprep.mubr.f32.mxu0 %v127
    %221 = vmatmul.mubr.f32.gmra.mxu0 %v38
    %v222 = vpop.f32.mrf.mxu0
    %v223 = vadd.f32 %v94, %v222
    %v224 = vpop.f32.mrf.mxu0
    %225 = vmatprep.mubr.f32.mxu0 %v130
    %226 = vmatmul.mubr.f32.gmra.mxu0 %v40
    %v227 = vpop.f32.mrf.mxu0
    %v228 = vadd.f32 %v99, %v227
    %v229 = vpop.f32.mrf.mxu0
    %230 = vmatprep.mubr.f32.mxu0 %v133
    %231 = vmatmul.mubr.f32.gmra.mxu0 %v42
    %v232 = vpop.f32.mrf.mxu0
    %v233 = vadd.f32 %v104, %v232
    %v234 = vpop.f32.mrf.mxu0
    %235 = vmatprep.mubr.f32.mxu0 %v136
    %236 = vmatmul.mubr.f32.gmra.mxu0 %v44
    %v237 = vpop.f32.mrf.mxu0
    %v238 = vadd.f32 %v109, %v237
    %v239 = vpop.f32.mrf.mxu0
    %240 = vmatprep.mubr.f32.mxu0 %v139
    %241 = vmatmul.mubr.f32.gmra.mxu0 %v46
    %v242 = vpop.f32.mrf.mxu0
    %v243 = vadd.f32 %v114, %v242
    %v244 = vpop.f32.mrf.mxu0
    %245 = vdwg.mxu0
    %v246 = vtanh.pop %v208
    %v247 = vtanh.pop %v213
    %v248 = vtanh.pop %v218
    %v249 = vtanh.pop %v223
    %v250 = vxor.u32 %v228, 2147483648
    %v251 = vxor.u32 %v233, 2147483648
    %v252 = vxor.u32 %v238, 2147483648
    %v253 = vxor.u32 %v243, 2147483648
    %v254 = vmul.f32 %v250, 1.442695
    %v255 = vpow.pop %v254
    %v256 = vmul.f32 %v251, 1.442695
    %v257 = vpow.pop %v256
    %v258 = vmul.f32 %v252, 1.442695
    %v259 = vpow.pop %v258
    %v260 = vmul.f32 %v253, 1.442695
    %v261 = vpow.pop %v260
    %v262 = vadd.f32 %v255, 1.0
    %v263 = vadd.f32 %v257, 1.0
    %v264 = vadd.f32 %v259, 1.0
    %v265 = vadd.f32 %v261, 1.0
    %v266 = vrcp.pop %v262
    %v267 = vmul.f32 1.0, %v266
    %v268 = vrcp.pop %v263
    %v269 = vmul.f32 1.0, %v268
    %v270 = vrcp.pop %v264
    %v271 = vmul.f32 1.0, %v270
    %v272 = vrcp.pop %v265
    %v273 = vmul.f32 1.0, %v272
    %v274 = vmul.f32 %v246, %v267
    %v275 = vmul.f32 %v247, %v269
    %v276 = vmul.f32 %v248, %v271
    %v277 = vmul.f32 %v249, %v273
    %v278 = vld [vmem:[%s3] sm:$0xff]
    %v279 = vld [vmem:[%s3 + $0x8] sm:$0xff]
    %v280 = vld [vmem:[%s3 + $0x10] sm:$0xff]
    %v281 = vld [vmem:[%s3 + $0x18] sm:$0xff]
    %v282 = vld [vmem:[%s4] sm:$0xff]
    %v283 = vld [vmem:[%s4 + $0x8] sm:$0xff]
    %v284 = vld [vmem:[%s4 + $0x10] sm:$0xff]
    %v285 = vld [vmem:[%s4 + $0x18] sm:$0xff]
    %287 = vset.pattern.permute.xlu0 0
    %288 = vperm.xlu0 %287, %v282
    %v289 = vpop.permute.xlu0 %288
    %292 = vset.pattern.permute.xlu0 0
    %293 = vperm.xlu0 %292, %v283
    %v294 = vpop.permute.xlu0 %293
    %297 = vset.pattern.permute.xlu0 0
    %298 = vperm.xlu0 %297, %v284
    %v299 = vpop.permute.xlu0 %298
    %302 = vset.pattern.permute.xlu0 0
    %303 = vperm.xlu0 %302, %v285
    %v304 = vpop.permute.xlu0 %303
    %v307 = vsel %vm116, %v278, 0
    %v310 = vsel %vm116, %v279, 0
    %v313 = vsel %vm116, %v280, 0
    %v316 = vsel %vm116, %v281, 0
    %318 = vmatprep.subr.mxu0 0.0
    %319 = vmatpush1.msra.mxu0 0.0
    %320 = vmatprep.subr.mxu0 0.0
    %321 = vmatpush1.msra.mxu0 0.0
    %322 = vmatprep.subr.mxu0 0.0
    %323 = vmatpush1.msra.mxu0 0.0
    %324 = vmatprep.subr.mxu0 0.0
    %325 = vmatpush1.msra.mxu0 0.0
    %326 = vmatprep.subr.mxu0 0.0
    %327 = vmatpush1.msra.mxu0 0.0
    %328 = vmatprep.subr.mxu0 0.0
    %329 = vmatpush1.msra.mxu0 0.0
    %330 = vmatprep.subr.mxu0 0.0
    %331 = vmatpush1.msra.mxu0 0.0
    %332 = vmatprep.subr.mxu0 0.0
    %333 = vmatpush1.msra.mxu0 0.0
    %334 = vmatprep.subr.mxu0 0.0
    %335 = vmatpush1.msra.mxu0 0.0
    %336 = vmatprep.subr.mxu0 0.0
    %337 = vmatpush1.msra.mxu0 0.0
    %338 = vmatprep.subr.mxu0 0.0
    %339 = vmatpush1.msra.mxu0 0.0
    %340 = vmatprep.subr.mxu0 0.0
    %341 = vmatpush1.msra.mxu0 0.0
    %342 = vmatprep.subr.mxu0 0.0
    %343 = vmatpush1.msra.mxu0 %v277
    %344 = vmatprep.subr.mxu0 0.0
    %345 = vmatpush1.msra.mxu0 %v276
    %346 = vmatprep.subr.mxu0 0.0
    %347 = vmatpush1.msra.mxu0 %v275
    %348 = vmatprep.subr.mxu0 0.0
    %349 = vmatpush1.msra.mxu0 %v274
    %350 = vmatprep.subr.mxu0 0.0
    %351 = vmatpush2.msra.mxu0 0.0
    %352 = vmatprep.subr.mxu0 0.0
    %353 = vmatpush2.msra.mxu0 0.0
    %354 = vmatprep.subr.mxu0 0.0
    %355 = vmatpush2.msra.mxu0 0.0
    %356 = vmatprep.subr.mxu0 0.0
    %357 = vmatpush2.msra.mxu0 0.0
    %358 = vmatprep.subr.mxu0 0.0
    %359 = vmatpush2.msra.mxu0 0.0
    %360 = vmatprep.subr.mxu0 0.0
    %361 = vmatpush2.msra.mxu0 0.0
    %362 = vmatprep.subr.mxu0 0.0
    %363 = vmatpush2.msra.mxu0 0.0
    %364 = vmatprep.subr.mxu0 0.0
    %365 = vmatpush2.msra.mxu0 0.0
    %366 = vmatprep.subr.mxu0 0.0
    %367 = vmatpush2.msra.mxu0 0.0
    %368 = vmatprep.subr.mxu0 0.0
    %369 = vmatpush2.msra.mxu0 0.0
    %370 = vmatprep.subr.mxu0 0.0
    %371 = vmatpush2.msra.mxu0 0.0
    %372 = vmatprep.subr.mxu0 0.0
    %373 = vmatpush2.msra.mxu0 0.0
    %374 = vmatprep.subr.mxu0 0.0
    %375 = vmatpush2.msra.mxu0 0.0
    %376 = vmatprep.subr.mxu0 0.0
    %377 = vmatpush2.msra.mxu0 0.0
    %378 = vmatprep.subr.mxu0 0.0
    %379 = vmatpush2.msra.mxu0 0.0
    %380 = vmatprep.subr.mxu0 0.0
    %381 = vmatpush2.msra.mxu0 0.0
    %382 = vmatprep.mubr.f32.mxu0 0.0
    %383 = vmatmul.mubr.f32.gmra.mxu0 %v307
    %v384 = vpop.f32.mrf.mxu0
    %v385 = vadd.f32 %v289, %v384
    %v386 = vpop.f32.mrf.mxu0
    %387 = vmatprep.mubr.f32.mxu0 0.0
    %388 = vmatmul.mubr.f32.gmra.mxu0 %v310
    %v389 = vpop.f32.mrf.mxu0
    %v390 = vadd.f32 %v294, %v389
    %v391 = vpop.f32.mrf.mxu0
    %392 = vmatprep.mubr.f32.mxu0 0.0
    %393 = vmatmul.mubr.f32.gmra.mxu0 %v313
    %v394 = vpop.f32.mrf.mxu0
    %v395 = vadd.f32 %v299, %v394
    %v396 = vpop.f32.mrf.mxu0
    %397 = vmatprep.mubr.f32.mxu0 0.0
    %398 = vmatmul.mubr.f32.gmra.mxu0 %v316
    %v399 = vpop.f32.mrf.mxu0
    %v400 = vadd.f32 %v304, %v399
    %v401 = vpop.f32.mrf.mxu0
    %402 = vdwg.mxu0
    %v403 = vld [vmem:[%s7] sm:$0x1]
    %v404 = vld [vmem:[%s5] sm:$0xff]
    %v405 = vld [vmem:[%s5 + $0x8] sm:$0xff]
    %v406 = vld [vmem:[%s5 + $0x10] sm:$0xff]
    %v407 = vld [vmem:[%s5 + $0x18] sm:$0xff]
    %408 = vst.msk [vmem:[#allocation2] sm:$0xff] %vm116, %v404
    %409 = vst.msk [vmem:[#allocation2 + $0x8] sm:$0xff] %vm116, %v405
    %410 = vst.msk [vmem:[#allocation2 + $0x10] sm:$0xff] %vm116, %v406
    %411 = vst.msk [vmem:[#allocation2 + $0x18] sm:$0xff] %vm116, %v407
    %v412 = vld [vmem:[%s6] sm:$0xff]
    %v413 = vld [vmem:[%s6 + $0x8] sm:$0xff]
    %v414 = vld [vmem:[%s6 + $0x10] sm:$0xff]
    %v415 = vld [vmem:[%s6 + $0x18] sm:$0xff]
    %v416 = vadd.f32 %v412, %v385
    %v417 = vadd.f32 %v413, %v390
    %v418 = vadd.f32 %v414, %v395
    %v419 = vadd.f32 %v415, %v400
    %v421 = vlaneseq
    %v422 = vshrl.u32 %v421, 7
    %v423 = vsub.s32 0, %v422
    %v424 = vrot.slane %v403, %v423
    %v426 = vmul.f32 %v416, %v424
    %v427 = vmul.f32 %v417, %v424
    %v428 = vmul.f32 %v418, %v424
    %v429 = vmul.f32 %v419, %v424
    %430 = vst.msk [vmem:[%s9] sm:$0xff] %vm116, %v426
    %431 = vst.msk [vmem:[%s9 + $0x8] sm:$0xff] %vm116, %v427
    %432 = vst.msk [vmem:[%s9 + $0x10] sm:$0xff] %vm116, %v428
    %433 = vst.msk [vmem:[%s9 + $0x18] sm:$0xff] %vm116, %v429
    // Predicated region
    $region34: #{vits_generator_forward.45} parent=1 // pred_check
      _
    $region35: #{vits_generator_forward.45} parent=1 // pred_check_branch
      %435 = sbr.rel (0) target = $region37
    $region36: #{vits_generator_forward.45} parent=1 // pred_region
      %s437 = ssub.s32 512, 512
      %438 = vsyncadd [#allocation3], %s437
      %s439 = sshll.u32 [#allocation2], 4
      %s440 = int_to_ptr.vmem [resolvable:$true] %s439
      %445 = dma.vmem_to_hbm [thread:$0]  %s440, 512, %s8, [#allocation3], 128, 128, 8
    $region37: #{vits_generator_forward.45} parent=1 // pred_fallthru
      _
    // Predicated region
    $region38: #{vits_generator_forward.45} parent=1 // pred_check
      _
    $region39: #{vits_generator_forward.45} parent=1 // pred_check_branch
      %447 = sbr.rel (0) target = $region41
    $region40: #{vits_generator_forward.45} parent=1 // pred_region
      _
    $region41: #{vits_generator_forward.45} parent=1 // pred_fallthru
      _
    // Predicated region
    $region42: #{vits_generator_forward.45} parent=1 // pred_check
      _
    $region43: #{vits_generator_forward.45} parent=1 // pred_check_branch
      %449 = sbr.rel (0) target = $region45
    $region44: #{vits_generator_forward.45} parent=1 // pred_region
      %450 = dma.done [#allocation3], 512
    $region45: #{vits_generator_forward.45} parent=1 // pred_fallthru
      _
    // Predicated region
    $region46: #{vits_generator_forward.45} parent=1 // pred_check
      _
    $region47: #{vits_generator_forward.45} parent=1 // pred_check_branch
      %452 = sbr.rel (0) target = $region49
    $region48: #{vits_generator_forward.45} parent=1 // pred_region
      _
    $region49: #{vits_generator_forward.45} parent=1 // pred_fallthru
      _
    %453 = vsyncpa [#allocation3], 1

// kernel: vits_generator_forward.44
$region0: #{vits_generator_forward.44}
  #allocation0 [shape = 'u32[]', space=smem, size = 0x4, offset = 0x4, fixed_abs, tag = 'smem constant byte address 0x4 - core index']
  #allocation1 [shape = 'u32[144,128]{1,0:T(1,128)}', space=vmem, size = 0x12000, scoped, tag = 'internal scratch']
  %s0 = inlined_call_operand.vmem [shape: f32[64,160], index: 0, kind: input, shape index: {}]
  %s1 = inlined_call_operand.vmem [shape: f32[160,32], index: 1, kind: input, shape index: {}]
  %s2 = inlined_call_operand.vmem [shape: f32[64,1], index: 2, kind: input, shape index: {}, may-alias: {2,4}]
  %s3 = inlined_call_operand.vmem [shape: f32[64,32], index: 3, kind: input, shape index: {}]
  %s4 = inlined_call_operand.vmem [shape: f32[64,1], index: 4, kind: input, shape index: {}, may-alias: {2,4}]
  %s5 = inlined_call_operand.vmem [shape: f32[32,32], index: 5, kind: input, shape index: {}]
  %s6 = inlined_call_operand.vmem [shape: f32[32,32], index: 6, kind: input, shape index: {}]
  %s7 = inlined_call_operand.vmem [shape: f32[1,32], index: 7, kind: input, shape index: {}]
  %s8 = inlined_call_operand.vmem [shape: f32[32,32], index: 8, kind: output, shape index: {0}]
  %s9 = inlined_call_operand.vmem [shape: f32[32,32], index: 9, kind: output, shape index: {1}]
  %10 = xla_tuple %s8, %s9
  %s11 = sld [smem:[#allocation0]]
  $region50: #{vits_generator_forward.44} parent=0
    _
  %s13 = ssub.s32 1, %s11
  %s14 = scalar_select 0, %s13, %s11
  // Predicated region
  $region2: #{vits_generator_forward.44} parent=0 // pred_check
    _
  $region3: #{vits_generator_forward.44} parent=0 // pred_check_branch
    %16 = sbr.rel (0) target = $region5
  $region4: #{vits_generator_forward.44} parent=0 // pred_region
    _
  $region5: #{vits_generator_forward.44} parent=0 // pred_fallthru
    _
  // Predicated region
  $region6: #{vits_generator_forward.44} parent=0 // pred_check
    _
  $region7: #{vits_generator_forward.44} parent=0 // pred_check_branch
    %18 = sbr.rel (0) target = $region9
  $region8: #{vits_generator_forward.44} parent=0 // pred_region
    _
  $region9: #{vits_generator_forward.44} parent=0 // pred_fallthru
    _
  // Predicated region
  $region10: #{vits_generator_forward.44} parent=0 // pred_check
    _
  $region11: #{vits_generator_forward.44} parent=0 // pred_check_branch
    %20 = sbr.rel (0) target = $region13
  $region12: #{vits_generator_forward.44} parent=0 // pred_region
    _
  $region13: #{vits_generator_forward.44} parent=0 // pred_fallthru
    _
  // Predicated region
  $region14: #{vits_generator_forward.44} parent=0 // pred_check
    _
  $region15: #{vits_generator_forward.44} parent=0 // pred_check_branch
    %22 = sbr.rel (0) target = $region17
  $region16: #{vits_generator_forward.44} parent=0 // pred_region
    _
  $region17: #{vits_generator_forward.44} parent=0 // pred_fallthru
    _
  // Predicated region
  $region18: #{vits_generator_forward.44} parent=0 // pred_check
    _
  $region19: #{vits_generator_forward.44} parent=0 // pred_check_branch
    %24 = sbr.rel (0) target = $region21
  $region20: #{vits_generator_forward.44} parent=0 // pred_region
    _
  $region21: #{vits_generator_forward.44} parent=0 // pred_fallthru
    _
  // Predicated region
  $region22: #{vits_generator_forward.44} parent=0 // pred_check
    _
  $region23: #{vits_generator_forward.44} parent=0 // pred_check_branch
    %26 = sbr.rel (0) target = $region25
  $region24: #{vits_generator_forward.44} parent=0 // pred_region
    _
  $region25: #{vits_generator_forward.44} parent=0 // pred_fallthru
    _
  // Predicated region
  $region26: #{vits_generator_forward.44} parent=0 // pred_check
    _
  $region27: #{vits_generator_forward.44} parent=0 // pred_check_branch
    %28 = sbr.rel (0) target = $region29
  $region28: #{vits_generator_forward.44} parent=0 // pred_region
    _
  $region29: #{vits_generator_forward.44} parent=0 // pred_fallthru
    _
  // Predicated region
  $region30: #{vits_generator_forward.44} parent=0 // pred_check
    _
  $region31: #{vits_generator_forward.44} parent=0 // pred_check_branch
    %30 = sbr.rel (0) target = $region33
  $region32: #{vits_generator_forward.44} parent=0 // pred_region
    _
  $region33: #{vits_generator_forward.44} parent=0 // pred_fallthru
    _
  %v31 = vld [vmem:[%s0] sm:$0xff]
  %v32 = vld [vmem:[%s0 + $0x8] sm:$0xff]
  %v33 = vld [vmem:[%s0 + $0x10] sm:$0xff]
  %v34 = vld [vmem:[%s0 + $0x18] sm:$0xff]
  %v35 = vld [vmem:[%s0 + $0x20] sm:$0xff]
  %v36 = vld [vmem:[%s0 + $0x28] sm:$0xff]
  %v37 = vld [vmem:[%s0 + $0x30] sm:$0xff]
  %v38 = vld [vmem:[%s0 + $0x38] sm:$0xff]
  %v39 = vld [vmem:[%s0 + $0x40] sm:$0xff]
  %v40 = vld [vmem:[%s0 + $0x48] sm:$0xff]
  %v41 = vld [vmem:[%s0 + $0x50] sm:$0xff]
  %v42 = vld [vmem:[%s0 + $0x58] sm:$0xff]
  %v43 = vld [vmem:[%s0 + $0x60] sm:$0xff]
  %v44 = vld [vmem:[%s0 + $0x68] sm:$0xff]
  %v45 = vld [vmem:[%s0 + $0x70] sm:$0xff]
  %v46 = vld [vmem:[%s0 + $0x78] sm:$0xff]
  %v47 = vld [vmem:[%s1] sm:$0xff]
  %v48 = vld [vmem:[%s1 + $0x8] sm:$0xff]
  %v49 = vld [vmem:[%s1 + $0x10] sm:$0xff]
  %v50 = vld [vmem:[%s1 + $0x18] sm:$0xff]
  %v51 = vld [vmem:[%s1 + $0x20] sm:$0xff]
  %v52 = vld [vmem:[%s1 + $0x28] sm:$0xff]
  %v53 = vld [vmem:[%s1 + $0x30] sm:$0xff]
  %v54 = vld [vmem:[%s1 + $0x38] sm:$0xff]
  %v55 = vld [vmem:[%s1 + $0x40] sm:$0xff]
  %v56 = vld [vmem:[%s1 + $0x48] sm:$0xff]
  %v57 = vld [vmem:[%s1 + $0x50] sm:$0xff]
  %v58 = vld [vmem:[%s1 + $0x58] sm:$0xff]
  %v59 = vld [vmem:[%s1 + $0x60] sm:$0xff]
  %v60 = vld [vmem:[%s1 + $0x68] sm:$0xff]
  %v61 = vld [vmem:[%s1 + $0x70] sm:$0xff]
  %v62 = vld [vmem:[%s1 + $0x78] sm:$0xff]
  %v63 = vld [vmem:[%s1 + $0x80] sm:$0xff]
  %v64 = vld [vmem:[%s1 + $0x88] sm:$0xff]
  %v65 = vld [vmem:[%s1 + $0x90] sm:$0xff]
  %v66 = vld [vmem:[%s1 + $0x98] sm:$0xff]
  %v67 = vld [vmem:[%s2] sm:$0xff]
  %v68 = vld [vmem:[%s2 + $0x8] sm:$0xff]
  %v69 = vld [vmem:[%s2 + $0x10] sm:$0xff]
  %v70 = vld [vmem:[%s2 + $0x18] sm:$0xff]
  %v71 = vld [vmem:[%s2 + $0x20] sm:$0xff]
  %v72 = vld [vmem:[%s2 + $0x28] sm:$0xff]
  %v73 = vld [vmem:[%s2 + $0x30] sm:$0xff]
  %v74 = vld [vmem:[%s2 + $0x38] sm:$0xff]
  %76 = vset.pattern.permute.xlu0 0
  %77 = vperm.xlu0 %76, %v67
  %v78 = vpop.permute.xlu0 %77
  %81 = vset.pattern.permute.xlu0 0
  %82 = vperm.xlu0 %81, %v68
  %v83 = vpop.permute.xlu0 %82
  %86 = vset.pattern.permute.xlu0 0
  %87 = vperm.xlu0 %86, %v69
  %v88 = vpop.permute.xlu0 %87
  %91 = vset.pattern.permute.xlu0 0
  %92 = vperm.xlu0 %91, %v70
  %v93 = vpop.permute.xlu0 %92
  %96 = vset.pattern.permute.xlu0 0
  %97 = vperm.xlu0 %96, %v71
  %v98 = vpop.permute.xlu0 %97
  %101 = vset.pattern.permute.xlu0 0
  %102 = vperm.xlu0 %101, %v72
  %v103 = vpop.permute.xlu0 %102
  %106 = vset.pattern.permute.xlu0 0
  %107 = vperm.xlu0 %106, %v73
  %v108 = vpop.permute.xlu0 %107
  %111 = vset.pattern.permute.xlu0 0
  %112 = vperm.xlu0 %111, %v74
  %v113 = vpop.permute.xlu0 %112
  %vm115 = vcmask 261120
  %v117 = vsel %vm115, %v32, 0
  %v120 = vsel %vm115, %v34, 0
  %v123 = vsel %vm115, %v36, 0
  %v126 = vsel %vm115, %v38, 0
  %v129 = vsel %vm115, %v40, 0
  %v132 = vsel %vm115, %v42, 0
  %v135 = vsel %vm115, %v44, 0
  %v138 = vsel %vm115, %v46, 0
  %140 = vmatprep.subr.mxu0 0.0
  %141 = vmatpush1.msra.mxu0 %v62
  %142 = vmatprep.subr.mxu0 0.0
  %143 = vmatpush1.msra.mxu0 %v61
  %144 = vmatprep.subr.mxu0 0.0
  %145 = vmatpush1.msra.mxu0 %v60
  %146 = vmatprep.subr.mxu0 0.0
  %147 = vmatpush1.msra.mxu0 %v59
  %148 = vmatprep.subr.mxu0 0.0
  %149 = vmatpush1.msra.mxu0 %v58
  %150 = vmatprep.subr.mxu0 0.0
  %151 = vmatpush1.msra.mxu0 %v57
  %152 = vmatprep.subr.mxu0 0.0
  %153 = vmatpush1.msra.mxu0 %v56
  %154 = vmatprep.subr.mxu0 0.0
  %155 = vmatpush1.msra.mxu0 %v55
  %156 = vmatprep.subr.mxu0 0.0
  %157 = vmatpush1.msra.mxu0 %v54
  %158 = vmatprep.subr.mxu0 0.0
  %159 = vmatpush1.msra.mxu0 %v53
  %160 = vmatprep.subr.mxu0 0.0
  %161 = vmatpush1.msra.mxu0 %v52
  %162 = vmatprep.subr.mxu0 0.0
  %163 = vmatpush1.msra.mxu0 %v51
  %164 = vmatprep.subr.mxu0 0.0
  %165 = vmatpush1.msra.mxu0 %v50
  %166 = vmatprep.subr.mxu0 0.0
  %167 = vmatpush1.msra.mxu0 %v49
  %168 = vmatprep.subr.mxu0 0.0
  %169 = vmatpush1.msra.mxu0 %v48
  %170 = vmatprep.subr.mxu0 0.0
  %171 = vmatpush1.msra.mxu0 %v47
  %172 = vmatprep.subr.mxu0 0.0
  %173 = vmatpush2.msra.mxu0 0.0
  %174 = vmatprep.subr.mxu0 0.0
  %175 = vmatpush2.msra.mxu0 0.0
  %176 = vmatprep.subr.mxu0 0.0
  %177 = vmatpush2.msra.mxu0 0.0
  %178 = vmatprep.subr.mxu0 0.0
  %179 = vmatpush2.msra.mxu0 0.0
  %180 = vmatprep.subr.mxu0 0.0
  %181 = vmatpush2.msra.mxu0 0.0
  %182 = vmatprep.subr.mxu0 0.0
  %183 = vmatpush2.msra.mxu0 0.0
  %184 = vmatprep.subr.mxu0 0.0
  %185 = vmatpush2.msra.mxu0 0.0
  %186 = vmatprep.subr.mxu0 0.0
  %187 = vmatpush2.msra.mxu0 0.0
  %188 = vmatprep.subr.mxu0 0.0
  %189 = vmatpush2.msra.mxu0 0.0
  %190 = vmatprep.subr.mxu0 0.0
  %191 = vmatpush2.msra.mxu0 0.0
  %192 = vmatprep.subr.mxu0 0.0
  %193 = vmatpush2.msra.mxu0 0.0
  %194 = vmatprep.subr.mxu0 0.0
  %195 = vmatpush2.msra.mxu0 0.0
  %196 = vmatprep.subr.mxu0 0.0
  %197 = vmatpush2.msra.mxu0 %v66
  %198 = vmatprep.subr.mxu0 0.0
  %199 = vmatpush2.msra.mxu0 %v65
  %200 = vmatprep.subr.mxu0 0.0
  %201 = vmatpush2.msra.mxu0 %v64
  %202 = vmatprep.subr.mxu0 0.0
  %203 = vmatpush2.msra.mxu0 %v63
  %204 = vmatprep.mubr.f32.mxu0 %v117
  %205 = vmatmul.mubr.f32.gmra.mxu0 %v31
  %v206 = vpop.f32.mrf.mxu0
  %v207 = vadd.f32 %v78, %v206
  %v208 = vpop.f32.mrf.mxu0
  %209 = vmatprep.mubr.f32.mxu0 %v120
  %210 = vmatmul.mubr.f32.gmra.mxu0 %v33
  %v211 = vpop.f32.mrf.mxu0
  %v212 = vadd.f32 %v83, %v211
  %v213 = vpop.f32.mrf.mxu0
  %214 = vmatprep.mubr.f32.mxu0 %v123
  %215 = vmatmul.mubr.f32.gmra.mxu0 %v35
  %v216 = vpop.f32.mrf.mxu0
  %v217 = vadd.f32 %v88, %v216
  %v218 = vpop.f32.mrf.mxu0
  %219 = vmatprep.mubr.f32.mxu0 %v126
  %220 = vmatmul.mubr.f32.gmra.mxu0 %v37
  %v221 = vpop.f32.mrf.mxu0
  %v222 = vadd.f32 %v93, %v221
  %v223 = vpop.f32.mrf.mxu0
  %224 = vmatprep.mubr.f32.mxu0 %v129
  %225 = vmatmul.mubr.f32.gmra.mxu0 %v39
  %v226 = vpop.f32.mrf.mxu0
  %v227 = vadd.f32 %v98, %v226
  %v228 = vpop.f32.mrf.mxu0
  %229 = vmatprep.mubr.f32.mxu0 %v132
  %230 = vmatmul.mubr.f32.gmra.mxu0 %v41
  %v231 = vpop.f32.mrf.mxu0
  %v232 = vadd.f32 %v103, %v231
  %v233 = vpop.f32.mrf.mxu0
  %234 = vmatprep.mubr.f32.mxu0 %v135
  %235 = vmatmul.mubr.f32.gmra.mxu0 %v43
  %v236 = vpop.f32.mrf.mxu0
  %v237 = vadd.f32 %v108, %v236
  %v238 = vpop.f32.mrf.mxu0
  %239 = vmatprep.mubr.f32.mxu0 %v138
  %240 = vmatmul.mubr.f32.gmra.mxu0 %v45
  %v241 = vpop.f32.mrf.mxu0
  %v242 = vadd.f32 %v113, %v241
  %v243 = vpop.f32.mrf.mxu0
  %244 = vdwg.mxu0
  %v245 = vtanh.pop %v207
  %v246 = vtanh.pop %v212
  %v247 = vtanh.pop %v217
  %v248 = vtanh.pop %v222
  %v249 = vxor.u32 %v227, 2147483648
  %v250 = vxor.u32 %v232, 2147483648
  %v251 = vxor.u32 %v237, 2147483648
  %v252 = vxor.u32 %v242, 2147483648
  %v253 = vmul.f32 %v249, 1.442695
  %v254 = vpow.pop %v253
  %v255 = vmul.f32 %v250, 1.442695
  %v256 = vpow.pop %v255
  %v257 = vmul.f32 %v251, 1.442695
  %v258 = vpow.pop %v257
  %v259 = vmul.f32 %v252, 1.442695
  %v260 = vpow.pop %v259
  %v261 = vadd.f32 %v254, 1.0
  %v262 = vadd.f32 %v256, 1.0
  %v263 = vadd.f32 %v258, 1.0
  %v264 = vadd.f32 %v260, 1.0
  %v265 = vrcp.pop %v261
  %v266 = vmul.f32 1.0, %v265
  %v267 = vrcp.pop %v262
  %v268 = vmul.f32 1.0, %v267
  %v269 = vrcp.pop %v263
  %v270 = vmul.f32 1.0, %v269
  %v271 = vrcp.pop %v264
  %v272 = vmul.f32 1.0, %v271
  %v273 = vmul.f32 %v245, %v266
  %v274 = vmul.f32 %v246, %v268
  %v275 = vmul.f32 %v247, %v270
  %v276 = vmul.f32 %v248, %v272
  %v277 = vld [vmem:[%s3] sm:$0xff]
  %v278 = vld [vmem:[%s3 + $0x8] sm:$0xff]
  %v279 = vld [vmem:[%s3 + $0x10] sm:$0xff]
  %v280 = vld [vmem:[%s3 + $0x18] sm:$0xff]
  %v281 = vld [vmem:[%s3 + $0x20] sm:$0xff]
  %v282 = vld [vmem:[%s3 + $0x28] sm:$0xff]
  %v283 = vld [vmem:[%s3 + $0x30] sm:$0xff]
  %v284 = vld [vmem:[%s3 + $0x38] sm:$0xff]
  %v285 = vld [vmem:[%s4] sm:$0xff]
  %v286 = vld [vmem:[%s4 + $0x8] sm:$0xff]
  %v287 = vld [vmem:[%s4 + $0x10] sm:$0xff]
  %v288 = vld [vmem:[%s4 + $0x18] sm:$0xff]
  %v289 = vld [vmem:[%s4 + $0x20] sm:$0xff]
  %v290 = vld [vmem:[%s4 + $0x28] sm:$0xff]
  %v291 = vld [vmem:[%s4 + $0x30] sm:$0xff]
  %v292 = vld [vmem:[%s4 + $0x38] sm:$0xff]
  %294 = vset.pattern.permute.xlu0 0
  %295 = vperm.xlu0 %294, %v285
  %v296 = vpop.permute.xlu0 %295
  %299 = vset.pattern.permute.xlu0 0
  %300 = vperm.xlu0 %299, %v286
  %v301 = vpop.permute.xlu0 %300
  %304 = vset.pattern.permute.xlu0 0
  %305 = vperm.xlu0 %304, %v287
  %v306 = vpop.permute.xlu0 %305
  %309 = vset.pattern.permute.xlu0 0
  %310 = vperm.xlu0 %309, %v288
  %v311 = vpop.permute.xlu0 %310
  %314 = vset.pattern.permute.xlu0 0
  %315 = vperm.xlu0 %314, %v289
  %v316 = vpop.permute.xlu0 %315
  %319 = vset.pattern.permute.xlu0 0
  %320 = vperm.xlu0 %319, %v290
  %v321 = vpop.permute.xlu0 %320
  %324 = vset.pattern.permute.xlu0 0
  %325 = vperm.xlu0 %324, %v291
  %v326 = vpop.permute.xlu0 %325
  %329 = vset.pattern.permute.xlu0 0
  %330 = vperm.xlu0 %329, %v292
  %v331 = vpop.permute.xlu0 %330
  %v334 = vsel %vm115, %v277, 0
  %v337 = vsel %vm115, %v278, 0
  %v340 = vsel %vm115, %v279, 0
  %v343 = vsel %vm115, %v280, 0
  %v346 = vsel %vm115, %v281, 0
  %v349 = vsel %vm115, %v282, 0
  %v352 = vsel %vm115, %v283, 0
  %v355 = vsel %vm115, %v284, 0
  %357 = vmatprep.subr.mxu0 0.0
  %358 = vmatpush1.msra.mxu0 0.0
  %359 = vmatprep.subr.mxu0 0.0
  %360 = vmatpush1.msra.mxu0 0.0
  %361 = vmatprep.subr.mxu0 0.0
  %362 = vmatpush1.msra.mxu0 0.0
  %363 = vmatprep.subr.mxu0 0.0
  %364 = vmatpush1.msra.mxu0 0.0
  %365 = vmatprep.subr.mxu0 0.0
  %366 = vmatpush1.msra.mxu0 0.0
  %367 = vmatprep.subr.mxu0 0.0
  %368 = vmatpush1.msra.mxu0 0.0
  %369 = vmatprep.subr.mxu0 0.0
  %370 = vmatpush1.msra.mxu0 0.0
  %371 = vmatprep.subr.mxu0 0.0
  %372 = vmatpush1.msra.mxu0 0.0
  %373 = vmatprep.subr.mxu0 0.0
  %374 = vmatpush1.msra.mxu0 0.0
  %375 = vmatprep.subr.mxu0 0.0
  %376 = vmatpush1.msra.mxu0 0.0
  %377 = vmatprep.subr.mxu0 0.0
  %378 = vmatpush1.msra.mxu0 0.0
  %379 = vmatprep.subr.mxu0 0.0
  %380 = vmatpush1.msra.mxu0 0.0
  %381 = vmatprep.subr.mxu0 0.0
  %382 = vmatpush1.msra.mxu0 %v276
  %383 = vmatprep.subr.mxu0 0.0
  %384 = vmatpush1.msra.mxu0 %v275
  %385 = vmatprep.subr.mxu0 0.0
  %386 = vmatpush1.msra.mxu0 %v274
  %387 = vmatprep.subr.mxu0 0.0
  %388 = vmatpush1.msra.mxu0 %v273
  %389 = vmatprep.subr.mxu0 0.0
  %390 = vmatpush2.msra.mxu0 0.0
  %391 = vmatprep.subr.mxu0 0.0
  %392 = vmatpush2.msra.mxu0 0.0
  %393 = vmatprep.subr.mxu0 0.0
  %394 = vmatpush2.msra.mxu0 0.0
  %395 = vmatprep.subr.mxu0 0.0
  %396 = vmatpush2.msra.mxu0 0.0
  %397 = vmatprep.subr.mxu0 0.0
  %398 = vmatpush2.msra.mxu0 0.0
  %399 = vmatprep.subr.mxu0 0.0
  %400 = vmatpush2.msra.mxu0 0.0
  %401 = vmatprep.subr.mxu0 0.0
  %402 = vmatpush2.msra.mxu0 0.0
  %403 = vmatprep.subr.mxu0 0.0
  %404 = vmatpush2.msra.mxu0 0.0
  %405 = vmatprep.subr.mxu0 0.0
  %406 = vmatpush2.msra.mxu0 0.0
  %407 = vmatprep.subr.mxu0 0.0
  %408 = vmatpush2.msra.mxu0 0.0
  %409 = vmatprep.subr.mxu0 0.0
  %410 = vmatpush2.msra.mxu0 0.0
  %411 = vmatprep.subr.mxu0 0.0
  %412 = vmatpush2.msra.mxu0 0.0
  %413 = vmatprep.subr.mxu0 0.0
  %414 = vmatpush2.msra.mxu0 0.0
  %415 = vmatprep.subr.mxu0 0.0
  %416 = vmatpush2.msra.mxu0 0.0
  %417 = vmatprep.subr.mxu0 0.0
  %418 = vmatpush2.msra.mxu0 0.0
  %419 = vmatprep.subr.mxu0 0.0
  %420 = vmatpush2.msra.mxu0 0.0
  %421 = vmatprep.mubr.f32.mxu0 0.0
  %422 = vmatmul.mubr.f32.gmra.mxu0 %v334
  %v423 = vpop.f32.mrf.mxu0
  %v424 = vadd.f32 %v296, %v423
  %v425 = vpop.f32.mrf.mxu0
  %426 = vmatprep.mubr.f32.mxu0 0.0
  %427 = vmatmul.mubr.f32.gmra.mxu0 %v337
  %v428 = vpop.f32.mrf.mxu0
  %v429 = vadd.f32 %v301, %v428
  %v430 = vpop.f32.mrf.mxu0
  %431 = vmatprep.mubr.f32.mxu0 0.0
  %432 = vmatmul.mubr.f32.gmra.mxu0 %v340
  %v433 = vpop.f32.mrf.mxu0
  %v434 = vadd.f32 %v306, %v433
  %v435 = vpop.f32.mrf.mxu0
  %436 = vmatprep.mubr.f32.mxu0 0.0
  %437 = vmatmul.mubr.f32.gmra.mxu0 %v343
  %v438 = vpop.f32.mrf.mxu0
  %v439 = vadd.f32 %v311, %v438
  %v440 = vpop.f32.mrf.mxu0
  %441 = vmatprep.mubr.f32.mxu0 0.0
  %442 = vmatmul.mubr.f32.gmra.mxu0 %v346
  %v443 = vpop.f32.mrf.mxu0
  %v444 = vadd.f32 %v316, %v443
  %v445 = vpop.f32.mrf.mxu0
  %446 = vmatprep.mubr.f32.mxu0 0.0
  %447 = vmatmul.mubr.f32.gmra.mxu0 %v349
  %v448 = vpop.f32.mrf.mxu0
  %v449 = vadd.f32 %v321, %v448
  %v450 = vpop.f32.mrf.mxu0
  %451 = vmatprep.mubr.f32.mxu0 0.0
  %452 = vmatmul.mubr.f32.gmra.mxu0 %v352
  %v453 = vpop.f32.mrf.mxu0
  %v454 = vadd.f32 %v326, %v453
  %v455 = vpop.f32.mrf.mxu0
  %456 = vmatprep.mubr.f32.mxu0 0.0
  %457 = vmatmul.mubr.f32.gmra.mxu0 %v355
  %v458 = vpop.f32.mrf.mxu0
  %v459 = vadd.f32 %v331, %v458
  %v460 = vpop.f32.mrf.mxu0
  %461 = vdwg.mxu0
  %v462 = vld [vmem:[%s7] sm:$0x1]
  %v463 = vld [vmem:[%s5] sm:$0xff]
  %v464 = vld [vmem:[%s5 + $0x8] sm:$0xff]
  %v465 = vld [vmem:[%s5 + $0x10] sm:$0xff]
  %v466 = vld [vmem:[%s5 + $0x18] sm:$0xff]
  %v467 = vadd.f32 %v463, %v424
  %v468 = vadd.f32 %v464, %v429
  %v469 = vadd.f32 %v465, %v434
  %v470 = vadd.f32 %v466, %v439
  %v472 = vlaneseq
  %v473 = vshrl.u32 %v472, 7
  %v474 = vsub.s32 0, %v473
  %v475 = vrot.slane %v462, %v474
  %v477 = vmul.f32 %v467, %v475
  %v478 = vmul.f32 %v468, %v475
  %v479 = vmul.f32 %v469, %v475
  %v480 = vmul.f32 %v470, %v475
  %481 = vst.msk [vmem:[%s8] sm:$0xff] %vm115, %v477
  %482 = vst.msk [vmem:[%s8 + $0x8] sm:$0xff] %vm115, %v478
  %483 = vst.msk [vmem:[%s8 + $0x10] sm:$0xff] %vm115, %v479
  %484 = vst.msk [vmem:[%s8 + $0x18] sm:$0xff] %vm115, %v480
  %v485 = vld [vmem:[%s6] sm:$0xff]
  %v486 = vld [vmem:[%s6 + $0x8] sm:$0xff]
  %v487 = vld [vmem:[%s6 + $0x10] sm:$0xff]
  %v488 = vld [vmem:[%s6 + $0x18] sm:$0xff]
  %v489 = vadd.f32 %v485, %v444
  %v490 = vadd.f32 %v486, %v449
  %v491 = vadd.f32 %v487, %v454
  %v492 = vadd.f32 %v488, %v459
  %493 = vst.msk [vmem:[%s9] sm:$0xff] %vm115, %v489
  %494 = vst.msk [vmem:[%s9 + $0x8] sm:$0xff] %vm115, %v490
  %495 = vst.msk [vmem:[%s9 + $0x10] sm:$0xff] %vm115, %v491
  %496 = vst.msk [vmem:[%s9 + $0x18] sm:$0xff] %vm115, %v492
  // Predicated region
  $region34: #{vits_generator_forward.44} parent=0 // pred_check
    _
  $region35: #{vits_generator_forward.44} parent=0 // pred_check_branch
    %498 = sbr.rel (0) target = $region37
  $region36: #{vits_generator_forward.44} parent=0 // pred_region
    _
  $region37: #{vits_generator_forward.44} parent=0 // pred_fallthru
    _
  // Predicated region
  $region38: #{vits_generator_forward.44} parent=0 // pred_check
    _
  $region39: #{vits_generator_forward.44} parent=0 // pred_check_branch
    %500 = sbr.rel (0) target = $region41
  $region40: #{vits_generator_forward.44} parent=0 // pred_region
    _
  $region41: #{vits_generator_forward.44} parent=0 // pred_fallthru
    _
  // Predicated region
  $region42: #{vits_generator_forward.44} parent=0 // pred_check
    _
  $region43: #{vits_generator_forward.44} parent=0 // pred_check_branch
    %502 = sbr.rel (0) target = $region45
  $region44: #{vits_generator_forward.44} parent=0 // pred_region
    _
  $region45: #{vits_generator_forward.44} parent=0 // pred_fallthru
    _
  // Predicated region
  $region46: #{vits_generator_forward.44} parent=0 // pred_check
    _
  $region47: #{vits_generator_forward.44} parent=0 // pred_check_branch
    %504 = sbr.rel (0) target = $region49
  $region48: #{vits_generator_forward.44} parent=0 // pred_region
    _
  $region49: #{vits_generator_forward.44} parent=0 // pred_fallthru
    _

// kernel: reverse
$region0: #{reverse}
  %s0 = inlined_call_operand.vmem [shape: f32[16,2,16], index: 0, kind: input, shape index: {}]
  %s1 = inlined_call_operand.vmem [shape: f32[16,2,16], index: 1, kind: output, shape index: {}]
  %v2 = vlaneseq
  %v3 = vsub.s32 15, %v2
  %4 = vset.pattern.permute.xlu0 %v3
  $region1: #{reverse} parent=0
    #allocation0 [shape = 'u8[16384]{0}', space=vmem, size = 0x4000, scoped, tag = 'operand span for operand 0']
    #allocation1 [shape = 'u8[16384]{0}', space=vmem, size = 0x4000, scoped, tag = 'operand span for operand 1']
    // Predicated region
    $region2: #{reverse} parent=1 // pred_check
      _
    $region3: #{reverse} parent=1 // pred_check_branch
      %6 = sbr.rel (0) target = $region5
    $region4: #{reverse} parent=1 // pred_region
      // Predicated region
      $region6: #{reverse} parent=4 // pred_check
        _
      $region7: #{reverse} parent=4 // pred_check_branch
        %8 = sbr.rel (0) target = $region9
      $region8: #{reverse} parent=4 // pred_region
        // Predicated region
        $region21: #{reverse} parent=8 // pred_check
          _
        $region22: #{reverse} parent=8 // pred_check_branch
          %30 = sbr.rel (0) target = $region24
        $region23: #{reverse} parent=8 // pred_region
          loop: start=0, step=1, limit=1
          $region25: #{reverse} parent=23 // loop_pre_header
            _
          $region26: #{reverse} parent=23 // loop_header
            %s32 = sphi 0, %s36
            %p33 = scmp.ge.s32.totalorder %s32, 1
            %s37 = sphi %s0, %s0
            %s38 = sphi [#allocation0], [#allocation0]
          $region27: #{reverse} parent=23 // loop_header_branch
            %35 = sbr.rel (%p33) target = $region31
          $region28: #{reverse} parent=23 // loop_body
            %v39 = vld [vmem:[%s37] sm:$0xff]
            %40 = vst [vmem:[%s38] sm:$0xff] %v39
            %v41 = vld [vmem:[%s37 + $0x8] sm:$0xff]
            %42 = vst [vmem:[%s38 + $0x8] sm:$0xff] %v41
            %v43 = vld [vmem:[%s37 + $0x10] sm:$0xff]
            %44 = vst [vmem:[%s38 + $0x10] sm:$0xff] %v43
            %v45 = vld [vmem:[%s37 + $0x18] sm:$0xff]
            %46 = vst [vmem:[%s38 + $0x18] sm:$0xff] %v45
          $region29: #{reverse} parent=23 // loop_footer
            %s36 = sadd.s32 1, %s32
          $region30: #{reverse} parent=23 // loop_footer_branch
            %31 = sbr.rel target = $region26
          $region31: #{reverse} parent=23 // loop_exit
            _
        $region24: #{reverse} parent=8 // pred_fallthru
          _
        // Predicated region
        $region32: #{reverse} parent=8 // pred_check
          _
        $region33: #{reverse} parent=8 // pred_check_branch
          %48 = sbr.rel target = $region35
        $region34: #{reverse} parent=8 // pred_region
          _
        $region35: #{reverse} parent=8 // pred_fallthru
          _
      $region9: #{reverse} parent=4 // pred_fallthru
        _
      // Predicated region
      $region10: #{reverse} parent=4 // pred_check
        _
      $region11: #{reverse} parent=4 // pred_check_branch
        %10 = sbr.rel target = $region13
      $region12: #{reverse} parent=4 // pred_region
        %s12 = ssub.s32 256, 1
        loop: start=0, step=1, limit=1
        $region14: #{reverse} parent=12 // loop_pre_header
          _
        $region15: #{reverse} parent=12 // loop_header
          %s14 = sphi 0, %s18
          %p15 = scmp.ge.s32.totalorder %s14, 1
          %s19 = sphi %s0, %s0
          %s20 = sphi [#allocation0], [#allocation0]
        $region16: #{reverse} parent=12 // loop_header_branch
          %17 = sbr.rel (%p15) target = $region20
        $region17: #{reverse} parent=12 // loop_body
          %v21 = vld [vmem:[%s19] sm:%s12]
          %22 = vst [vmem:[%s20] sm:%s12] %v21
          %v23 = vld [vmem:[%s19 + $0x8] sm:%s12]
          %24 = vst [vmem:[%s20 + $0x8] sm:%s12] %v23
          %v25 = vld [vmem:[%s19 + $0x10] sm:%s12]
          %26 = vst [vmem:[%s20 + $0x10] sm:%s12] %v25
          %v27 = vld [vmem:[%s19 + $0x18] sm:%s12]
          %28 = vst [vmem:[%s20 + $0x18] sm:%s12] %v27
        $region18: #{reverse} parent=12 // loop_footer
          %s18 = sadd.s32 1, %s14
        $region19: #{reverse} parent=12 // loop_footer_branch
          %13 = sbr.rel target = $region15
        $region20: #{reverse} parent=12 // loop_exit
          _
      $region13: #{reverse} parent=4 // pred_fallthru
        _
    $region5: #{reverse} parent=1 // pred_fallthru
      _
    %49 = vnop
    %v50 = vld [vmem:[#allocation0] sm:$0xff]
    %51 = vperm.xlu0 %4, %v50
    %v52 = vpop.permute.xlu0 %51
    %53 = vst [vmem:[#allocation1] sm:$0xff] %v52
    %s54 = scalar_lea.vmem [#allocation1], 8
    %s55 = scalar_lea.vmem [#allocation0], 8
    %v56 = vld [vmem:[%s55] sm:$0xff]
    %57 = vperm.xlu0 %4, %v56
    %v58 = vpop.permute.xlu0 %57
    %59 = vst [vmem:[%s54] sm:$0xff] %v58
    %s60 = scalar_lea.vmem [#allocation1], 16
    %s61 = scalar_lea.vmem [#allocation0], 16
    %v62 = vld [vmem:[%s61] sm:$0xff]
    %63 = vperm.xlu0 %4, %v62
    %v64 = vpop.permute.xlu0 %63
    %65 = vst [vmem:[%s60] sm:$0xff] %v64
    %s66 = scalar_lea.vmem %s60, 8 [#allocation1]
    %s67 = scalar_lea.vmem %s61, 8 [#allocation0]
    %v68 = vld [vmem:[%s67] sm:$0xff]
    %69 = vperm.xlu0 %4, %v68
    %v70 = vpop.permute.xlu0 %69
    %71 = vst [vmem:[%s66] sm:$0xff] %v70
    // Predicated region
    $region36: #{reverse} parent=1 // pred_check
      _
    $region37: #{reverse} parent=1 // pred_check_branch
      %73 = sbr.rel (0) target = $region39
    $region38: #{reverse} parent=1 // pred_region
      // Predicated region
      $region40: #{reverse} parent=38 // pred_check
        _
      $region41: #{reverse} parent=38 // pred_check_branch
        %75 = sbr.rel (0) target = $region43
      $region42: #{reverse} parent=38 // pred_region
        // Predicated region
        $region55: #{reverse} parent=42 // pred_check
          _
        $region56: #{reverse} parent=42 // pred_check_branch
          %97 = sbr.rel (0) target = $region58
        $region57: #{reverse} parent=42 // pred_region
          loop: start=0, step=1, limit=1
          $region59: #{reverse} parent=57 // loop_pre_header
            _
          $region60: #{reverse} parent=57 // loop_header
            %s99 = sphi 0, %s103
            %p100 = scmp.ge.s32.totalorder %s99, 1
            %s104 = sphi [#allocation1], [#allocation1]
            %s105 = sphi %s1, %s1
          $region61: #{reverse} parent=57 // loop_header_branch
            %102 = sbr.rel (%p100) target = $region65
          $region62: #{reverse} parent=57 // loop_body
            %v106 = vld [vmem:[%s104] sm:$0xff]
            %107 = vst [vmem:[%s105] sm:$0xff] %v106
            %v108 = vld [vmem:[%s104 + $0x8] sm:$0xff]
            %109 = vst [vmem:[%s105 + $0x8] sm:$0xff] %v108
            %v110 = vld [vmem:[%s104 + $0x10] sm:$0xff]
            %111 = vst [vmem:[%s105 + $0x10] sm:$0xff] %v110
            %v112 = vld [vmem:[%s104 + $0x18] sm:$0xff]
            %113 = vst [vmem:[%s105 + $0x18] sm:$0xff] %v112
          $region63: #{reverse} parent=57 // loop_footer
            %s103 = sadd.s32 1, %s99
          $region64: #{reverse} parent=57 // loop_footer_branch
            %98 = sbr.rel target = $region60
          $region65: #{reverse} parent=57 // loop_exit
            _
        $region58: #{reverse} parent=42 // pred_fallthru
          _
        // Predicated region
        $region66: #{reverse} parent=42 // pred_check
          _
        $region67: #{reverse} parent=42 // pred_check_branch
          %115 = sbr.rel target = $region69
        $region68: #{reverse} parent=42 // pred_region
          _
        $region69: #{reverse} parent=42 // pred_fallthru
          _
      $region43: #{reverse} parent=38 // pred_fallthru
        _
      // Predicated region
      $region44: #{reverse} parent=38 // pred_check
        _
      $region45: #{reverse} parent=38 // pred_check_branch
        %77 = sbr.rel target = $region47
      $region46: #{reverse} parent=38 // pred_region
        %s79 = ssub.s32 256, 1
        loop: start=0, step=1, limit=1
        $region48: #{reverse} parent=46 // loop_pre_header
          _
        $region49: #{reverse} parent=46 // loop_header
          %s81 = sphi 0, %s85
          %p82 = scmp.ge.s32.totalorder %s81, 1
          %s86 = sphi [#allocation1], [#allocation1]
          %s87 = sphi %s1, %s1
        $region50: #{reverse} parent=46 // loop_header_branch
          %84 = sbr.rel (%p82) target = $region54
        $region51: #{reverse} parent=46 // loop_body
          %v88 = vld [vmem:[%s86] sm:%s79]
          %89 = vst [vmem:[%s87] sm:%s79] %v88
          %v90 = vld [vmem:[%s86 + $0x8] sm:%s79]
          %91 = vst [vmem:[%s87 + $0x8] sm:%s79] %v90
          %v92 = vld [vmem:[%s86 + $0x10] sm:%s79]
          %93 = vst [vmem:[%s87 + $0x10] sm:%s79] %v92
          %v94 = vld [vmem:[%s86 + $0x18] sm:%s79]
          %95 = vst [vmem:[%s87 + $0x18] sm:%s79] %v94
        $region52: #{reverse} parent=46 // loop_footer
          %s85 = sadd.s32 1, %s81
        $region53: #{reverse} parent=46 // loop_footer_branch
          %80 = sbr.rel target = $region49
        $region54: #{reverse} parent=46 // loop_exit
          _
      $region47: #{reverse} parent=38 // pred_fallthru
        _
    $region39: #{reverse} parent=1 // pred_fallthru
      _
    %116 = vnop

// kernel: vits_generator_forward.73
$region0: #{vits_generator_forward.73}
  #allocation0 [shape = 'u32[]', space=smem, size = 0x4, offset = 0x4, fixed_abs, tag = 'smem constant byte address 0x4 - core index']
  #allocation1 [shape = 'u32[144,128]{1,0:T(1,128)}', space=vmem, size = 0x12000, scoped, tag = 'internal scratch']
  %s0 = inlined_call_operand.vmem [shape: f32[16,32], index: 0, kind: input, shape index: {}]
  %s1 = inlined_call_operand.vmem [shape: f32[32,32], index: 1, kind: input, shape index: {}]
  %s2 = inlined_call_operand.vmem [shape: f32[16,1], index: 2, kind: input, shape index: {}]
  %s3 = inlined_call_operand.vmem [shape: f32[1,32], index: 3, kind: input, shape index: {}]
  %s4 = inlined_call_operand.vmem [shape: f32[16,32], index: 4, kind: input, shape index: {}]
  %s5 = inlined_call_operand.vmem [shape: f32[16,32], index: 5, kind: output, shape index: {}]
  %s6 = sld [smem:[#allocation0]]
  $region30: #{vits_generator_forward.73} parent=0
    _
  %s8 = ssub.s32 1, %s6
  %s9 = scalar_select 0, %s8, %s6
  // Predicated region
  $region2: #{vits_generator_forward.73} parent=0 // pred_check
    _
  $region3: #{vits_generator_forward.73} parent=0 // pred_check_branch
    %11 = sbr.rel (0) target = $region5
  $region4: #{vits_generator_forward.73} parent=0 // pred_region
    _
  $region5: #{vits_generator_forward.73} parent=0 // pred_fallthru
    _
  // Predicated region
  $region6: #{vits_generator_forward.73} parent=0 // pred_check
    _
  $region7: #{vits_generator_forward.73} parent=0 // pred_check_branch
    %13 = sbr.rel (0) target = $region9
  $region8: #{vits_generator_forward.73} parent=0 // pred_region
    _
  $region9: #{vits_generator_forward.73} parent=0 // pred_fallthru
    _
  // Predicated region
  $region10: #{vits_generator_forward.73} parent=0 // pred_check
    _
  $region11: #{vits_generator_forward.73} parent=0 // pred_check_branch
    %15 = sbr.rel (0) target = $region13
  $region12: #{vits_generator_forward.73} parent=0 // pred_region
    _
  $region13: #{vits_generator_forward.73} parent=0 // pred_fallthru
    _
  // Predicated region
  $region14: #{vits_generator_forward.73} parent=0 // pred_check
    _
  $region15: #{vits_generator_forward.73} parent=0 // pred_check_branch
    %17 = sbr.rel (0) target = $region17
  $region16: #{vits_generator_forward.73} parent=0 // pred_region
    _
  $region17: #{vits_generator_forward.73} parent=0 // pred_fallthru
    _
  // Predicated region
  $region18: #{vits_generator_forward.73} parent=0 // pred_check
    _
  $region19: #{vits_generator_forward.73} parent=0 // pred_check_branch
    %19 = sbr.rel (0) target = $region21
  $region20: #{vits_generator_forward.73} parent=0 // pred_region
    _
  $region21: #{vits_generator_forward.73} parent=0 // pred_fallthru
    _
  %v20 = vld [vmem:[%s1] sm:$0xff]
  %v21 = vld [vmem:[%s1 + $0x8] sm:$0xff]
  %v22 = vld [vmem:[%s1 + $0x10] sm:$0xff]
  %v23 = vld [vmem:[%s1 + $0x18] sm:$0xff]
  %v24 = vld [vmem:[%s0] sm:$0xff]
  %v25 = vld [vmem:[%s0 + $0x8] sm:$0xff]
  %v26 = vld [vmem:[%s2] sm:$0xff]
  %v27 = vld [vmem:[%s2 + $0x8] sm:$0xff]
  %29 = vset.pattern.permute.xlu0 0
  %30 = vperm.xlu0 %29, %v26
  %v31 = vpop.permute.xlu0 %30
  %34 = vset.pattern.permute.xlu0 0
  %35 = vperm.xlu0 %34, %v27
  %v36 = vpop.permute.xlu0 %35
  %vm38 = vcmask 261120
  %v40 = vsel %vm38, %v24, 0
  %v43 = vsel %vm38, %v25, 0
  %45 = vmatprep.subr.mxu0 0.0
  %46 = vmatpush1.msra.mxu0 0.0
  %47 = vmatprep.subr.mxu0 0.0
  %48 = vmatpush1.msra.mxu0 0.0
  %49 = vmatprep.subr.mxu0 0.0
  %50 = vmatpush1.msra.mxu0 0.0
  %51 = vmatprep.subr.mxu0 0.0
  %52 = vmatpush1.msra.mxu0 0.0
  %53 = vmatprep.subr.mxu0 0.0
  %54 = vmatpush1.msra.mxu0 0.0
  %55 = vmatprep.subr.mxu0 0.0
  %56 = vmatpush1.msra.mxu0 0.0
  %57 = vmatprep.subr.mxu0 0.0
  %58 = vmatpush1.msra.mxu0 0.0
  %59 = vmatprep.subr.mxu0 0.0
  %60 = vmatpush1.msra.mxu0 0.0
  %61 = vmatprep.subr.mxu0 0.0
  %62 = vmatpush1.msra.mxu0 0.0
  %63 = vmatprep.subr.mxu0 0.0
  %64 = vmatpush1.msra.mxu0 0.0
  %65 = vmatprep.subr.mxu0 0.0
  %66 = vmatpush1.msra.mxu0 0.0
  %67 = vmatprep.subr.mxu0 0.0
  %68 = vmatpush1.msra.mxu0 0.0
  %69 = vmatprep.subr.mxu0 0.0
  %70 = vmatpush1.msra.mxu0 %v23
  %71 = vmatprep.subr.mxu0 0.0
  %72 = vmatpush1.msra.mxu0 %v22
  %73 = vmatprep.subr.mxu0 0.0
  %74 = vmatpush1.msra.mxu0 %v21
  %75 = vmatprep.subr.mxu0 0.0
  %76 = vmatpush1.msra.mxu0 %v20
  %77 = vmatprep.subr.mxu0 0.0
  %78 = vmatpush2.msra.mxu0 0.0
  %79 = vmatprep.subr.mxu0 0.0
  %80 = vmatpush2.msra.mxu0 0.0
  %81 = vmatprep.subr.mxu0 0.0
  %82 = vmatpush2.msra.mxu0 0.0
  %83 = vmatprep.subr.mxu0 0.0
  %84 = vmatpush2.msra.mxu0 0.0
  %85 = vmatprep.subr.mxu0 0.0
  %86 = vmatpush2.msra.mxu0 0.0
  %87 = vmatprep.subr.mxu0 0.0
  %88 = vmatpush2.msra.mxu0 0.0
  %89 = vmatprep.subr.mxu0 0.0
  %90 = vmatpush2.msra.mxu0 0.0
  %91 = vmatprep.subr.mxu0 0.0
  %92 = vmatpush2.msra.mxu0 0.0
  %93 = vmatprep.subr.mxu0 0.0
  %94 = vmatpush2.msra.mxu0 0.0
  %95 = vmatprep.subr.mxu0 0.0
  %96 = vmatpush2.msra.mxu0 0.0
  %97 = vmatprep.subr.mxu0 0.0
  %98 = vmatpush2.msra.mxu0 0.0
  %99 = vmatprep.subr.mxu0 0.0
  %100 = vmatpush2.msra.mxu0 0.0
  %101 = vmatprep.subr.mxu0 0.0
  %102 = vmatpush2.msra.mxu0 0.0
  %103 = vmatprep.subr.mxu0 0.0
  %104 = vmatpush2.msra.mxu0 0.0
  %105 = vmatprep.subr.mxu0 0.0
  %106 = vmatpush2.msra.mxu0 0.0
  %107 = vmatprep.subr.mxu0 0.0
  %108 = vmatpush2.msra.mxu0 0.0
  %109 = vmatprep.mubr.f32.mxu0 0.0
  %110 = vmatmul.mubr.f32.gmra.mxu0 %v40
  %v111 = vpop.f32.mrf.mxu0
  %v112 = vadd.f32 %v31, %v111
  %v113 = vpop.f32.mrf.mxu0
  %114 = vmatprep.mubr.f32.mxu0 0.0
  %115 = vmatmul.mubr.f32.gmra.mxu0 %v43
  %v116 = vpop.f32.mrf.mxu0
  %v117 = vadd.f32 %v36, %v116
  %v118 = vpop.f32.mrf.mxu0
  %119 = vdwg.mxu0
  %v120 = vld [vmem:[%s3] sm:$0x1]
  %v122 = vlaneseq
  %v123 = vshrl.u32 %v122, 7
  %v124 = vsub.s32 0, %v123
  %v125 = vrot.slane %v120, %v124
  %v127 = vmul.f32 %v112, %v125
  %v128 = vmul.f32 %v117, %v125
  %v129 = vld [vmem:[%s4] sm:$0xff]
  %v130 = vld [vmem:[%s4 + $0x8] sm:$0xff]
  %v131 = vadd.f32 %v127, %v129
  %v132 = vadd.f32 %v128, %v130
  %133 = vst.msk [vmem:[%s5] sm:$0xff] %vm38, %v131
  %134 = vst.msk [vmem:[%s5 + $0x8] sm:$0xff] %vm38, %v132
  // Predicated region
  $region22: #{vits_generator_forward.73} parent=0 // pred_check
    _
  $region23: #{vits_generator_forward.73} parent=0 // pred_check_branch
    %136 = sbr.rel (0) target = $region25
  $region24: #{vits_generator_forward.73} parent=0 // pred_region
    _
  $region25: #{vits_generator_forward.73} parent=0 // pred_fallthru
    _
  // Predicated region
  $region26: #{vits_generator_forward.73} parent=0 // pred_check
    _
  $region27: #{vits_generator_forward.73} parent=0 // pred_check_branch
    %138 = sbr.rel (0) target = $region29
  $region28: #{vits_generator_forward.73} parent=0 // pred_region
    _
  $region29: #{vits_generator_forward.73} parent=0 // pred_fallthru
    _

// kernel: vits_generator_forward.62
$region0: #{vits_generator_forward.62}
  #allocation0 [shape = 'u32[]', space=smem, size = 0x4, offset = 0x4, fixed_abs, tag = 'smem constant byte address 0x4 - core index']
  #allocation1 [shape = 'u32[144,128]{1,0:T(1,128)}', space=vmem, size = 0x12000, scoped, tag = 'internal scratch']
  %s0 = inlined_call_operand.vmem [shape: f32[32,32], index: 0, kind: input, shape index: {}]
  %s1 = inlined_call_operand.vmem [shape: f32[32,16], index: 1, kind: input, shape index: {}]
  %s2 = inlined_call_operand.vmem [shape: f32[32,1], index: 2, kind: input, shape index: {}]
  %s3 = inlined_call_operand.vmem [shape: f32[32,16], index: 3, kind: output, shape index: {}]
  %s4 = sld [smem:[#allocation0]]
  $region22: #{vits_generator_forward.62} parent=0
    _
  %s6 = ssub.s32 1, %s4
  %s7 = scalar_select 0, %s6, %s4
  // Predicated region
  $region2: #{vits_generator_forward.62} parent=0 // pred_check
    _
  $region3: #{vits_generator_forward.62} parent=0 // pred_check_branch
    %9 = sbr.rel (0) target = $region5
  $region4: #{vits_generator_forward.62} parent=0 // pred_region
    _
  $region5: #{vits_generator_forward.62} parent=0 // pred_fallthru
    _
  // Predicated region
  $region6: #{vits_generator_forward.62} parent=0 // pred_check
    _
  $region7: #{vits_generator_forward.62} parent=0 // pred_check_branch
    %11 = sbr.rel (0) target = $region9
  $region8: #{vits_generator_forward.62} parent=0 // pred_region
    _
  $region9: #{vits_generator_forward.62} parent=0 // pred_fallthru
    _
  // Predicated region
  $region10: #{vits_generator_forward.62} parent=0 // pred_check
    _
  $region11: #{vits_generator_forward.62} parent=0 // pred_check_branch
    %13 = sbr.rel (0) target = $region13
  $region12: #{vits_generator_forward.62} parent=0 // pred_region
    _
  $region13: #{vits_generator_forward.62} parent=0 // pred_fallthru
    _
  %v14 = vld [vmem:[%s1] sm:$0xff]
  %v15 = vld [vmem:[%s1 + $0x8] sm:$0xff]
  %v16 = vld [vmem:[%s1 + $0x10] sm:$0xff]
  %v17 = vld [vmem:[%s1 + $0x18] sm:$0xff]
  %v18 = vld [vmem:[%s0] sm:$0xff]
  %v19 = vld [vmem:[%s0 + $0x8] sm:$0xff]
  %v20 = vld [vmem:[%s0 + $0x10] sm:$0xff]
  %v21 = vld [vmem:[%s0 + $0x18] sm:$0xff]
  %v22 = vld [vmem:[%s2] sm:$0xff]
  %v23 = vld [vmem:[%s2 + $0x8] sm:$0xff]
  %v24 = vld [vmem:[%s2 + $0x10] sm:$0xff]
  %v25 = vld [vmem:[%s2 + $0x18] sm:$0xff]
  %27 = vset.pattern.permute.xlu0 0
  %28 = vperm.xlu0 %27, %v22
  %v29 = vpop.permute.xlu0 %28
  %32 = vset.pattern.permute.xlu0 0
  %33 = vperm.xlu0 %32, %v23
  %v34 = vpop.permute.xlu0 %33
  %37 = vset.pattern.permute.xlu0 0
  %38 = vperm.xlu0 %37, %v24
  %v39 = vpop.permute.xlu0 %38
  %42 = vset.pattern.permute.xlu0 0
  %43 = vperm.xlu0 %42, %v25
  %v44 = vpop.permute.xlu0 %43
  %vm46 = vcmask 261120
  %v48 = vsel %vm46, %v18, 0
  %v51 = vsel %vm46, %v19, 0
  %v54 = vsel %vm46, %v20, 0
  %v57 = vsel %vm46, %v21, 0
  %59 = vmatprep.subr.mxu0 0.0
  %60 = vmatpush1.msra.mxu0 0.0
  %61 = vmatprep.subr.mxu0 0.0
  %62 = vmatpush1.msra.mxu0 0.0
  %63 = vmatprep.subr.mxu0 0.0
  %64 = vmatpush1.msra.mxu0 0.0
  %65 = vmatprep.subr.mxu0 0.0
  %66 = vmatpush1.msra.mxu0 0.0
  %67 = vmatprep.subr.mxu0 0.0
  %68 = vmatpush1.msra.mxu0 0.0
  %69 = vmatprep.subr.mxu0 0.0
  %70 = vmatpush1.msra.mxu0 0.0
  %71 = vmatprep.subr.mxu0 0.0
  %72 = vmatpush1.msra.mxu0 0.0
  %73 = vmatprep.subr.mxu0 0.0
  %74 = vmatpush1.msra.mxu0 0.0
  %75 = vmatprep.subr.mxu0 0.0
  %76 = vmatpush1.msra.mxu0 0.0
  %77 = vmatprep.subr.mxu0 0.0
  %78 = vmatpush1.msra.mxu0 0.0
  %79 = vmatprep.subr.mxu0 0.0
  %80 = vmatpush1.msra.mxu0 0.0
  %81 = vmatprep.subr.mxu0 0.0
  %82 = vmatpush1.msra.mxu0 0.0
  %83 = vmatprep.subr.mxu0 0.0
  %84 = vmatpush1.msra.mxu0 %v17
  %85 = vmatprep.subr.mxu0 0.0
  %86 = vmatpush1.msra.mxu0 %v16
  %87 = vmatprep.subr.mxu0 0.0
  %88 = vmatpush1.msra.mxu0 %v15
  %89 = vmatprep.subr.mxu0 0.0
  %90 = vmatpush1.msra.mxu0 %v14
  %91 = vmatprep.subr.mxu0 0.0
  %92 = vmatpush2.msra.mxu0 0.0
  %93 = vmatprep.subr.mxu0 0.0
  %94 = vmatpush2.msra.mxu0 0.0
  %95 = vmatprep.subr.mxu0 0.0
  %96 = vmatpush2.msra.mxu0 0.0
  %97 = vmatprep.subr.mxu0 0.0
  %98 = vmatpush2.msra.mxu0 0.0
  %99 = vmatprep.subr.mxu0 0.0
  %100 = vmatpush2.msra.mxu0 0.0
  %101 = vmatprep.subr.mxu0 0.0
  %102 = vmatpush2.msra.mxu0 0.0
  %103 = vmatprep.subr.mxu0 0.0
  %104 = vmatpush2.msra.mxu0 0.0
  %105 = vmatprep.subr.mxu0 0.0
  %106 = vmatpush2.msra.mxu0 0.0
  %107 = vmatprep.subr.mxu0 0.0
  %108 = vmatpush2.msra.mxu0 0.0
  %109 = vmatprep.subr.mxu0 0.0
  %110 = vmatpush2.msra.mxu0 0.0
  %111 = vmatprep.subr.mxu0 0.0
  %112 = vmatpush2.msra.mxu0 0.0
  %113 = vmatprep.subr.mxu0 0.0
  %114 = vmatpush2.msra.mxu0 0.0
  %115 = vmatprep.subr.mxu0 0.0
  %116 = vmatpush2.msra.mxu0 0.0
  %117 = vmatprep.subr.mxu0 0.0
  %118 = vmatpush2.msra.mxu0 0.0
  %119 = vmatprep.subr.mxu0 0.0
  %120 = vmatpush2.msra.mxu0 0.0
  %121 = vmatprep.subr.mxu0 0.0
  %122 = vmatpush2.msra.mxu0 0.0
  %123 = vmatprep.mubr.f32.mxu0 0.0
  %124 = vmatmul.mubr.f32.gmra.mxu0 %v48
  %v125 = vpop.f32.mrf.mxu0
  %v126 = vadd.f32 %v29, %v125
  %v127 = vpop.f32.mrf.mxu0
  %128 = vmatprep.mubr.f32.mxu0 0.0
  %129 = vmatmul.mubr.f32.gmra.mxu0 %v51
  %v130 = vpop.f32.mrf.mxu0
  %v131 = vadd.f32 %v34, %v130
  %v132 = vpop.f32.mrf.mxu0
  %133 = vmatprep.mubr.f32.mxu0 0.0
  %134 = vmatmul.mubr.f32.gmra.mxu0 %v54
  %v135 = vpop.f32.mrf.mxu0
  %v136 = vadd.f32 %v39, %v135
  %v137 = vpop.f32.mrf.mxu0
  %138 = vmatprep.mubr.f32.mxu0 0.0
  %139 = vmatmul.mubr.f32.gmra.mxu0 %v57
  %v140 = vpop.f32.mrf.mxu0
  %v141 = vadd.f32 %v44, %v140
  %v142 = vpop.f32.mrf.mxu0
  %143 = vdwg.mxu0
  %vm144 = vcmask 130048
  %145 = vst.msk [vmem:[%s3] sm:$0xff] %vm144, %v126
  %146 = vst.msk [vmem:[%s3 + $0x8] sm:$0xff] %vm144, %v131
  %147 = vst.msk [vmem:[%s3 + $0x10] sm:$0xff] %vm144, %v136
  %148 = vst.msk [vmem:[%s3 + $0x18] sm:$0xff] %vm144, %v141
  // Predicated region
  $region14: #{vits_generator_forward.62} parent=0 // pred_check
    _
  $region15: #{vits_generator_forward.62} parent=0 // pred_check_branch
    %150 = sbr.rel (0) target = $region17
  $region16: #{vits_generator_forward.62} parent=0 // pred_region
    _
  $region17: #{vits_generator_forward.62} parent=0 // pred_fallthru
    _
  // Predicated region
  $region18: #{vits_generator_forward.62} parent=0 // pred_check
    _
  $region19: #{vits_generator_forward.62} parent=0 // pred_check_branch
    %152 = sbr.rel (0) target = $region21
  $region20: #{vits_generator_forward.62} parent=0 // pred_region
    _
  $region21: #{vits_generator_forward.62} parent=0 // pred_fallthru
    _

// kernel: vits_generator_forward.63
$region0: #{vits_generator_forward.63}
  #allocation0 [shape = 'u32[]', space=smem, size = 0x4, offset = 0x4, fixed_abs, tag = 'smem constant byte address 0x4 - core index']
  #allocation1 [shape = 'u32[144,128]{1,0:T(1,128)}', space=vmem, size = 0x12000, scoped, tag = 'internal scratch']
  %s0 = inlined_call_operand.vmem [shape: f32[4,8,16], index: 0, kind: input, shape index: {}]
  %s1 = inlined_call_operand.vmem [shape: f32[4,16,8], index: 1, kind: input, shape index: {}]
  %s2 = inlined_call_operand.vmem [shape: f32[4,8,8], index: 2, kind: output, shape index: {}]
  %s3 = sld [smem:[#allocation0]]
  $region18: #{vits_generator_forward.63} parent=0
    _
  %s5 = ssub.s32 1, %s3
  %s6 = scalar_select 0, %s5, %s3
  // Predicated region
  $region2: #{vits_generator_forward.63} parent=0 // pred_check
    _
  $region3: #{vits_generator_forward.63} parent=0 // pred_check_branch
    %8 = sbr.rel (0) target = $region5
  $region4: #{vits_generator_forward.63} parent=0 // pred_region
    _
  $region5: #{vits_generator_forward.63} parent=0 // pred_fallthru
    _
  // Predicated region
  $region6: #{vits_generator_forward.63} parent=0 // pred_check
    _
  $region7: #{vits_generator_forward.63} parent=0 // pred_check_branch
    %10 = sbr.rel (0) target = $region9
  $region8: #{vits_generator_forward.63} parent=0 // pred_region
    _
  $region9: #{vits_generator_forward.63} parent=0 // pred_fallthru
    _
  %v11 = vld [vmem:[%s0] sm:$0xff]
  %v12 = vld [vmem:[%s1] sm:$0xff]
  %v13 = vld [vmem:[%s1 + $0x8] sm:$0xff]
  %vm14 = vcmask 130048
  %v16 = vsel %vm14, %v11, 0
  %18 = vmatprep.subr.mxu0 0.0
  %19 = vmatpush1.msra.mxu0 0.0
  %20 = vmatprep.subr.mxu0 0.0
  %21 = vmatpush1.msra.mxu0 0.0
  %22 = vmatprep.subr.mxu0 0.0
  %23 = vmatpush1.msra.mxu0 0.0
  %24 = vmatprep.subr.mxu0 0.0
  %25 = vmatpush1.msra.mxu0 0.0
  %26 = vmatprep.subr.mxu0 0.0
  %27 = vmatpush1.msra.mxu0 0.0
  %28 = vmatprep.subr.mxu0 0.0
  %29 = vmatpush1.msra.mxu0 0.0
  %30 = vmatprep.subr.mxu0 0.0
  %31 = vmatpush1.msra.mxu0 0.0
  %32 = vmatprep.subr.mxu0 0.0
  %33 = vmatpush1.msra.mxu0 0.0
  %34 = vmatprep.subr.mxu0 0.0
  %35 = vmatpush1.msra.mxu0 0.0
  %36 = vmatprep.subr.mxu0 0.0
  %37 = vmatpush1.msra.mxu0 0.0
  %38 = vmatprep.subr.mxu0 0.0
  %39 = vmatpush1.msra.mxu0 0.0
  %40 = vmatprep.subr.mxu0 0.0
  %41 = vmatpush1.msra.mxu0 0.0
  %42 = vmatprep.subr.mxu0 0.0
  %43 = vmatpush1.msra.mxu0 0.0
  %44 = vmatprep.subr.mxu0 0.0
  %45 = vmatpush1.msra.mxu0 0.0
  %46 = vmatprep.subr.mxu0 0.0
  %47 = vmatpush1.msra.mxu0 %v13
  %48 = vmatprep.subr.mxu0 0.0
  %49 = vmatpush1.msra.mxu0 %v12
  %50 = vmatprep.subr.mxu0 0.0
  %51 = vmatpush2.msra.mxu0 0.0
  %52 = vmatprep.subr.mxu0 0.0
  %53 = vmatpush2.msra.mxu0 0.0
  %54 = vmatprep.subr.mxu0 0.0
  %55 = vmatpush2.msra.mxu0 0.0
  %56 = vmatprep.subr.mxu0 0.0
  %57 = vmatpush2.msra.mxu0 0.0
  %58 = vmatprep.subr.mxu0 0.0
  %59 = vmatpush2.msra.mxu0 0.0
  %60 = vmatprep.subr.mxu0 0.0
  %61 = vmatpush2.msra.mxu0 0.0
  %62 = vmatprep.subr.mxu0 0.0
  %63 = vmatpush2.msra.mxu0 0.0
  %64 = vmatprep.subr.mxu0 0.0
  %65 = vmatpush2.msra.mxu0 0.0
  %66 = vmatprep.subr.mxu0 0.0
  %67 = vmatpush2.msra.mxu0 0.0
  %68 = vmatprep.subr.mxu0 0.0
  %69 = vmatpush2.msra.mxu0 0.0
  %70 = vmatprep.subr.mxu0 0.0
  %71 = vmatpush2.msra.mxu0 0.0
  %72 = vmatprep.subr.mxu0 0.0
  %73 = vmatpush2.msra.mxu0 0.0
  %74 = vmatprep.subr.mxu0 0.0
  %75 = vmatpush2.msra.mxu0 0.0
  %76 = vmatprep.subr.mxu0 0.0
  %77 = vmatpush2.msra.mxu0 0.0
  %78 = vmatprep.subr.mxu0 0.0
  %79 = vmatpush2.msra.mxu0 0.0
  %80 = vmatprep.subr.mxu0 0.0
  %81 = vmatpush2.msra.mxu0 0.0
  %82 = vmatprep.mubr.f32.mxu0 0.0
  %83 = vmatmul.mubr.f32.gmra.mxu0 %v16
  %v84 = vpop.f32.mrf.mxu0
  %v85 = vadd.f32 0.0, %v84
  %v86 = vpop.f32.mrf.mxu0
  %87 = vdwg.mxu0
  %vm88 = vcmask 64512
  %89 = vst.msk [vmem:[%s2] sm:$0xff] %vm88, %v85
  %s90 = scalar_lea.vmem %s0, 8
  %v91 = vld [vmem:[%s90] sm:$0xff]
  %s92 = scalar_lea.vmem %s1, 16
  %v93 = vld [vmem:[%s92] sm:$0xff]
  %v94 = vld [vmem:[%s92 + $0x8] sm:$0xff]
  %v96 = vsel %vm14, %v91, 0
  %98 = vmatprep.subr.mxu0 0.0
  %99 = vmatpush1.msra.mxu0 0.0
  %100 = vmatprep.subr.mxu0 0.0
  %101 = vmatpush1.msra.mxu0 0.0
  %102 = vmatprep.subr.mxu0 0.0
  %103 = vmatpush1.msra.mxu0 0.0
  %104 = vmatprep.subr.mxu0 0.0
  %105 = vmatpush1.msra.mxu0 0.0
  %106 = vmatprep.subr.mxu0 0.0
  %107 = vmatpush1.msra.mxu0 0.0
  %108 = vmatprep.subr.mxu0 0.0
  %109 = vmatpush1.msra.mxu0 0.0
  %110 = vmatprep.subr.mxu0 0.0
  %111 = vmatpush1.msra.mxu0 0.0
  %112 = vmatprep.subr.mxu0 0.0
  %113 = vmatpush1.msra.mxu0 0.0
  %114 = vmatprep.subr.mxu0 0.0
  %115 = vmatpush1.msra.mxu0 0.0
  %116 = vmatprep.subr.mxu0 0.0
  %117 = vmatpush1.msra.mxu0 0.0
  %118 = vmatprep.subr.mxu0 0.0
  %119 = vmatpush1.msra.mxu0 0.0
  %120 = vmatprep.subr.mxu0 0.0
  %121 = vmatpush1.msra.mxu0 0.0
  %122 = vmatprep.subr.mxu0 0.0
  %123 = vmatpush1.msra.mxu0 0.0
  %124 = vmatprep.subr.mxu0 0.0
  %125 = vmatpush1.msra.mxu0 0.0
  %126 = vmatprep.subr.mxu0 0.0
  %127 = vmatpush1.msra.mxu0 %v94
  %128 = vmatprep.subr.mxu0 0.0
  %129 = vmatpush1.msra.mxu0 %v93
  %130 = vmatprep.subr.mxu0 0.0
  %131 = vmatpush2.msra.mxu0 0.0
  %132 = vmatprep.subr.mxu0 0.0
  %133 = vmatpush2.msra.mxu0 0.0
  %134 = vmatprep.subr.mxu0 0.0
  %135 = vmatpush2.msra.mxu0 0.0
  %136 = vmatprep.subr.mxu0 0.0
  %137 = vmatpush2.msra.mxu0 0.0
  %138 = vmatprep.subr.mxu0 0.0
  %139 = vmatpush2.msra.mxu0 0.0
  %140 = vmatprep.subr.mxu0 0.0
  %141 = vmatpush2.msra.mxu0 0.0
  %142 = vmatprep.subr.mxu0 0.0
  %143 = vmatpush2.msra.mxu0 0.0
  %144 = vmatprep.subr.mxu0 0.0
  %145 = vmatpush2.msra.mxu0 0.0
  %146 = vmatprep.subr.mxu0 0.0
  %147 = vmatpush2.msra.mxu0 0.0
  %148 = vmatprep.subr.mxu0 0.0
  %149 = vmatpush2.msra.mxu0 0.0
  %150 = vmatprep.subr.mxu0 0.0
  %151 = vmatpush2.msra.mxu0 0.0
  %152 = vmatprep.subr.mxu0 0.0
  %153 = vmatpush2.msra.mxu0 0.0
  %154 = vmatprep.subr.mxu0 0.0
  %155 = vmatpush2.msra.mxu0 0.0
  %156 = vmatprep.subr.mxu0 0.0
  %157 = vmatpush2.msra.mxu0 0.0
  %158 = vmatprep.subr.mxu0 0.0
  %159 = vmatpush2.msra.mxu0 0.0
  %160 = vmatprep.subr.mxu0 0.0
  %161 = vmatpush2.msra.mxu0 0.0
  %162 = vmatprep.mubr.f32.mxu0 0.0
  %163 = vmatmul.mubr.f32.gmra.mxu0 %v96
  %v164 = vpop.f32.mrf.mxu0
  %v165 = vadd.f32 0.0, %v164
  %v166 = vpop.f32.mrf.mxu0
  %167 = vdwg.mxu0
  %s168 = scalar_lea.vmem %s2, 8
  %169 = vst.msk [vmem:[%s168] sm:$0xff] %vm88, %v165
  %s170 = scalar_lea.vmem %s0, 16
  %v171 = vld [vmem:[%s170] sm:$0xff]
  %s172 = scalar_lea.vmem %s1, 32
  %v173 = vld [vmem:[%s172] sm:$0xff]
  %v174 = vld [vmem:[%s172 + $0x8] sm:$0xff]
  %v176 = vsel %vm14, %v171, 0
  %178 = vmatprep.subr.mxu0 0.0
  %179 = vmatpush1.msra.mxu0 0.0
  %180 = vmatprep.subr.mxu0 0.0
  %181 = vmatpush1.msra.mxu0 0.0
  %182 = vmatprep.subr.mxu0 0.0
  %183 = vmatpush1.msra.mxu0 0.0
  %184 = vmatprep.subr.mxu0 0.0
  %185 = vmatpush1.msra.mxu0 0.0
  %186 = vmatprep.subr.mxu0 0.0
  %187 = vmatpush1.msra.mxu0 0.0
  %188 = vmatprep.subr.mxu0 0.0
  %189 = vmatpush1.msra.mxu0 0.0
  %190 = vmatprep.subr.mxu0 0.0
  %191 = vmatpush1.msra.mxu0 0.0
  %192 = vmatprep.subr.mxu0 0.0
  %193 = vmatpush1.msra.mxu0 0.0
  %194 = vmatprep.subr.mxu0 0.0
  %195 = vmatpush1.msra.mxu0 0.0
  %196 = vmatprep.subr.mxu0 0.0
  %197 = vmatpush1.msra.mxu0 0.0
  %198 = vmatprep.subr.mxu0 0.0
  %199 = vmatpush1.msra.mxu0 0.0
  %200 = vmatprep.subr.mxu0 0.0
  %201 = vmatpush1.msra.mxu0 0.0
  %202 = vmatprep.subr.mxu0 0.0
  %203 = vmatpush1.msra.mxu0 0.0
  %204 = vmatprep.subr.mxu0 0.0
  %205 = vmatpush1.msra.mxu0 0.0
  %206 = vmatprep.subr.mxu0 0.0
  %207 = vmatpush1.msra.mxu0 %v174
  %208 = vmatprep.subr.mxu0 0.0
  %209 = vmatpush1.msra.mxu0 %v173
  %210 = vmatprep.subr.mxu0 0.0
  %211 = vmatpush2.msra.mxu0 0.0
  %212 = vmatprep.subr.mxu0 0.0
  %213 = vmatpush2.msra.mxu0 0.0
  %214 = vmatprep.subr.mxu0 0.0
  %215 = vmatpush2.msra.mxu0 0.0
  %216 = vmatprep.subr.mxu0 0.0
  %217 = vmatpush2.msra.mxu0 0.0
  %218 = vmatprep.subr.mxu0 0.0
  %219 = vmatpush2.msra.mxu0 0.0
  %220 = vmatprep.subr.mxu0 0.0
  %221 = vmatpush2.msra.mxu0 0.0
  %222 = vmatprep.subr.mxu0 0.0
  %223 = vmatpush2.msra.mxu0 0.0
  %224 = vmatprep.subr.mxu0 0.0
  %225 = vmatpush2.msra.mxu0 0.0
  %226 = vmatprep.subr.mxu0 0.0
  %227 = vmatpush2.msra.mxu0 0.0
  %228 = vmatprep.subr.mxu0 0.0
  %229 = vmatpush2.msra.mxu0 0.0
  %230 = vmatprep.subr.mxu0 0.0
  %231 = vmatpush2.msra.mxu0 0.0
  %232 = vmatprep.subr.mxu0 0.0
  %233 = vmatpush2.msra.mxu0 0.0
  %234 = vmatprep.subr.mxu0 0.0
  %235 = vmatpush2.msra.mxu0 0.0
  %236 = vmatprep.subr.mxu0 0.0
  %237 = vmatpush2.msra.mxu0 0.0
  %238 = vmatprep.subr.mxu0 0.0
  %239 = vmatpush2.msra.mxu0 0.0
  %240 = vmatprep.subr.mxu0 0.0
  %241 = vmatpush2.msra.mxu0 0.0
  %242 = vmatprep.mubr.f32.mxu0 0.0
  %243 = vmatmul.mubr.f32.gmra.mxu0 %v176
  %v244 = vpop.f32.mrf.mxu0
  %v245 = vadd.f32 0.0, %v244
  %v246 = vpop.f32.mrf.mxu0
  %247 = vdwg.mxu0
  %s248 = scalar_lea.vmem %s2, 16
  %249 = vst.msk [vmem:[%s248] sm:$0xff] %vm88, %v245
  %s250 = scalar_lea.vmem %s0, 24
  %v251 = vld [vmem:[%s250] sm:$0xff]
  %s252 = scalar_lea.vmem %s1, 48
  %v253 = vld [vmem:[%s252] sm:$0xff]
  %v254 = vld [vmem:[%s252 + $0x8] sm:$0xff]
  %v256 = vsel %vm14, %v251, 0
  %258 = vmatprep.subr.mxu0 0.0
  %259 = vmatpush1.msra.mxu0 0.0
  %260 = vmatprep.subr.mxu0 0.0
  %261 = vmatpush1.msra.mxu0 0.0
  %262 = vmatprep.subr.mxu0 0.0
  %263 = vmatpush1.msra.mxu0 0.0
  %264 = vmatprep.subr.mxu0 0.0
  %265 = vmatpush1.msra.mxu0 0.0
  %266 = vmatprep.subr.mxu0 0.0
  %267 = vmatpush1.msra.mxu0 0.0
  %268 = vmatprep.subr.mxu0 0.0
  %269 = vmatpush1.msra.mxu0 0.0
  %270 = vmatprep.subr.mxu0 0.0
  %271 = vmatpush1.msra.mxu0 0.0
  %272 = vmatprep.subr.mxu0 0.0
  %273 = vmatpush1.msra.mxu0 0.0
  %274 = vmatprep.subr.mxu0 0.0
  %275 = vmatpush1.msra.mxu0 0.0
  %276 = vmatprep.subr.mxu0 0.0
  %277 = vmatpush1.msra.mxu0 0.0
  %278 = vmatprep.subr.mxu0 0.0
  %279 = vmatpush1.msra.mxu0 0.0
  %280 = vmatprep.subr.mxu0 0.0
  %281 = vmatpush1.msra.mxu0 0.0
  %282 = vmatprep.subr.mxu0 0.0
  %283 = vmatpush1.msra.mxu0 0.0
  %284 = vmatprep.subr.mxu0 0.0
  %285 = vmatpush1.msra.mxu0 0.0
  %286 = vmatprep.subr.mxu0 0.0
  %287 = vmatpush1.msra.mxu0 %v254
  %288 = vmatprep.subr.mxu0 0.0
  %289 = vmatpush1.msra.mxu0 %v253
  %290 = vmatprep.subr.mxu0 0.0
  %291 = vmatpush2.msra.mxu0 0.0
  %292 = vmatprep.subr.mxu0 0.0
  %293 = vmatpush2.msra.mxu0 0.0
  %294 = vmatprep.subr.mxu0 0.0
  %295 = vmatpush2.msra.mxu0 0.0
  %296 = vmatprep.subr.mxu0 0.0
  %297 = vmatpush2.msra.mxu0 0.0
  %298 = vmatprep.subr.mxu0 0.0
  %299 = vmatpush2.msra.mxu0 0.0
  %300 = vmatprep.subr.mxu0 0.0
  %301 = vmatpush2.msra.mxu0 0.0
  %302 = vmatprep.subr.mxu0 0.0
  %303 = vmatpush2.msra.mxu0 0.0
  %304 = vmatprep.subr.mxu0 0.0
  %305 = vmatpush2.msra.mxu0 0.0
  %306 = vmatprep.subr.mxu0 0.0
  %307 = vmatpush2.msra.mxu0 0.0
  %308 = vmatprep.subr.mxu0 0.0
  %309 = vmatpush2.msra.mxu0 0.0
  %310 = vmatprep.subr.mxu0 0.0
  %311 = vmatpush2.msra.mxu0 0.0
  %312 = vmatprep.subr.mxu0 0.0
  %313 = vmatpush2.msra.mxu0 0.0
  %314 = vmatprep.subr.mxu0 0.0
  %315 = vmatpush2.msra.mxu0 0.0
  %316 = vmatprep.subr.mxu0 0.0
  %317 = vmatpush2.msra.mxu0 0.0
  %318 = vmatprep.subr.mxu0 0.0
  %319 = vmatpush2.msra.mxu0 0.0
  %320 = vmatprep.subr.mxu0 0.0
  %321 = vmatpush2.msra.mxu0 0.0
  %322 = vmatprep.mubr.f32.mxu0 0.0
  %323 = vmatmul.mubr.f32.gmra.mxu0 %v256
  %v324 = vpop.f32.mrf.mxu0
  %v325 = vadd.f32 0.0, %v324
  %v326 = vpop.f32.mrf.mxu0
  %327 = vdwg.mxu0
  %s328 = scalar_lea.vmem %s2, 24
  %329 = vst.msk [vmem:[%s328] sm:$0xff] %vm88, %v325
  // Predicated region
  $region10: #{vits_generator_forward.63} parent=0 // pred_check
    _
  $region11: #{vits_generator_forward.63} parent=0 // pred_check_branch
    %331 = sbr.rel (0) target = $region13
  $region12: #{vits_generator_forward.63} parent=0 // pred_region
    _
  $region13: #{vits_generator_forward.63} parent=0 // pred_fallthru
    _
  // Predicated region
  $region14: #{vits_generator_forward.63} parent=0 // pred_check
    _
  $region15: #{vits_generator_forward.63} parent=0 // pred_check_branch
    %333 = sbr.rel (0) target = $region17
  $region16: #{vits_generator_forward.63} parent=0 // pred_region
    _
  $region17: #{vits_generator_forward.63} parent=0 // pred_fallthru
    _

// kernel: vits_generator_forward.65
$region0: #{vits_generator_forward.65}
  #allocation0 [shape = 'u32[]', space=smem, size = 0x4, offset = 0x4, fixed_abs, tag = 'smem constant byte address 0x4 - core index']
  #allocation1 [shape = 'u32[144,128]{1,0:T(1,128)}', space=vmem, size = 0x12000, scoped, tag = 'internal scratch']
  %s0 = inlined_call_operand.vmem [shape: f32[4,8,8], index: 0, kind: input, shape index: {}]
  %s1 = inlined_call_operand.vmem [shape: f32[4,8,16], index: 1, kind: input, shape index: {}]
  %s2 = inlined_call_operand.vmem [shape: f32[4,8,16], index: 2, kind: output, shape index: {}]
  %s3 = sld [smem:[#allocation0]]
  $region18: #{vits_generator_forward.65} parent=0
    _
  %s5 = ssub.s32 1, %s3
  %s6 = scalar_select 0, %s5, %s3
  // Predicated region
  $region2: #{vits_generator_forward.65} parent=0 // pred_check
    _
  $region3: #{vits_generator_forward.65} parent=0 // pred_check_branch
    %8 = sbr.rel (0) target = $region5
  $region4: #{vits_generator_forward.65} parent=0 // pred_region
    _
  $region5: #{vits_generator_forward.65} parent=0 // pred_fallthru
    _
  // Predicated region
  $region6: #{vits_generator_forward.65} parent=0 // pred_check
    _
  $region7: #{vits_generator_forward.65} parent=0 // pred_check_branch
    %10 = sbr.rel (0) target = $region9
  $region8: #{vits_generator_forward.65} parent=0 // pred_region
    _
  $region9: #{vits_generator_forward.65} parent=0 // pred_fallthru
    _
  %v11 = vld [vmem:[%s0] sm:$0xff]
  %v12 = vld [vmem:[%s1] sm:$0xff]
  %vm13 = vcmask 64512
  %v15 = vsel %vm13, %v11, 0
  %17 = vmatprep.subr.mxu0 0.0
  %18 = vmatpush1.msra.mxu0 0.0
  %19 = vmatprep.subr.mxu0 0.0
  %20 = vmatpush1.msra.mxu0 0.0
  %21 = vmatprep.subr.mxu0 0.0
  %22 = vmatpush1.msra.mxu0 0.0
  %23 = vmatprep.subr.mxu0 0.0
  %24 = vmatpush1.msra.mxu0 0.0
  %25 = vmatprep.subr.mxu0 0.0
  %26 = vmatpush1.msra.mxu0 0.0
  %27 = vmatprep.subr.mxu0 0.0
  %28 = vmatpush1.msra.mxu0 0.0
  %29 = vmatprep.subr.mxu0 0.0
  %30 = vmatpush1.msra.mxu0 0.0
  %31 = vmatprep.subr.mxu0 0.0
  %32 = vmatpush1.msra.mxu0 0.0
  %33 = vmatprep.subr.mxu0 0.0
  %34 = vmatpush1.msra.mxu0 0.0
  %35 = vmatprep.subr.mxu0 0.0
  %36 = vmatpush1.msra.mxu0 0.0
  %37 = vmatprep.subr.mxu0 0.0
  %38 = vmatpush1.msra.mxu0 0.0
  %39 = vmatprep.subr.mxu0 0.0
  %40 = vmatpush1.msra.mxu0 0.0
  %41 = vmatprep.subr.mxu0 0.0
  %42 = vmatpush1.msra.mxu0 0.0
  %43 = vmatprep.subr.mxu0 0.0
  %44 = vmatpush1.msra.mxu0 0.0
  %45 = vmatprep.subr.mxu0 0.0
  %46 = vmatpush1.msra.mxu0 0.0
  %47 = vmatprep.subr.mxu0 0.0
  %48 = vmatpush1.msra.mxu0 %v12
  %49 = vmatprep.subr.mxu0 0.0
  %50 = vmatpush2.msra.mxu0 0.0
  %51 = vmatprep.subr.mxu0 0.0
  %52 = vmatpush2.msra.mxu0 0.0
  %53 = vmatprep.subr.mxu0 0.0
  %54 = vmatpush2.msra.mxu0 0.0
  %55 = vmatprep.subr.mxu0 0.0
  %56 = vmatpush2.msra.mxu0 0.0
  %57 = vmatprep.subr.mxu0 0.0
  %58 = vmatpush2.msra.mxu0 0.0
  %59 = vmatprep.subr.mxu0 0.0
  %60 = vmatpush2.msra.mxu0 0.0
  %61 = vmatprep.subr.mxu0 0.0
  %62 = vmatpush2.msra.mxu0 0.0
  %63 = vmatprep.subr.mxu0 0.0
  %64 = vmatpush2.msra.mxu0 0.0
  %65 = vmatprep.subr.mxu0 0.0
  %66 = vmatpush2.msra.mxu0 0.0
  %67 = vmatprep.subr.mxu0 0.0
  %68 = vmatpush2.msra.mxu0 0.0
  %69 = vmatprep.subr.mxu0 0.0
  %70 = vmatpush2.msra.mxu0 0.0
  %71 = vmatprep.subr.mxu0 0.0
  %72 = vmatpush2.msra.mxu0 0.0
  %73 = vmatprep.subr.mxu0 0.0
  %74 = vmatpush2.msra.mxu0 0.0
  %75 = vmatprep.subr.mxu0 0.0
  %76 = vmatpush2.msra.mxu0 0.0
  %77 = vmatprep.subr.mxu0 0.0
  %78 = vmatpush2.msra.mxu0 0.0
  %79 = vmatprep.subr.mxu0 0.0
  %80 = vmatpush2.msra.mxu0 0.0
  %81 = vmatprep.mubr.f32.mxu0 0.0
  %82 = vmatmul.mubr.f32.gmra.mxu0 %v15
  %v83 = vpop.f32.mrf.mxu0
  %v84 = vadd.f32 0.0, %v83
  %v85 = vpop.f32.mrf.mxu0
  %86 = vdwg.mxu0
  %vm87 = vcmask 130048
  %88 = vst.msk [vmem:[%s2] sm:$0xff] %vm87, %v84
  %s89 = scalar_lea.vmem %s0, 8
  %v90 = vld [vmem:[%s89] sm:$0xff]
  %s91 = scalar_lea.vmem %s1, 8
  %v92 = vld [vmem:[%s91] sm:$0xff]
  %v94 = vsel %vm13, %v90, 0
  %96 = vmatprep.subr.mxu0 0.0
  %97 = vmatpush1.msra.mxu0 0.0
  %98 = vmatprep.subr.mxu0 0.0
  %99 = vmatpush1.msra.mxu0 0.0
  %100 = vmatprep.subr.mxu0 0.0
  %101 = vmatpush1.msra.mxu0 0.0
  %102 = vmatprep.subr.mxu0 0.0
  %103 = vmatpush1.msra.mxu0 0.0
  %104 = vmatprep.subr.mxu0 0.0
  %105 = vmatpush1.msra.mxu0 0.0
  %106 = vmatprep.subr.mxu0 0.0
  %107 = vmatpush1.msra.mxu0 0.0
  %108 = vmatprep.subr.mxu0 0.0
  %109 = vmatpush1.msra.mxu0 0.0
  %110 = vmatprep.subr.mxu0 0.0
  %111 = vmatpush1.msra.mxu0 0.0
  %112 = vmatprep.subr.mxu0 0.0
  %113 = vmatpush1.msra.mxu0 0.0
  %114 = vmatprep.subr.mxu0 0.0
  %115 = vmatpush1.msra.mxu0 0.0
  %116 = vmatprep.subr.mxu0 0.0
  %117 = vmatpush1.msra.mxu0 0.0
  %118 = vmatprep.subr.mxu0 0.0
  %119 = vmatpush1.msra.mxu0 0.0
  %120 = vmatprep.subr.mxu0 0.0
  %121 = vmatpush1.msra.mxu0 0.0
  %122 = vmatprep.subr.mxu0 0.0
  %123 = vmatpush1.msra.mxu0 0.0
  %124 = vmatprep.subr.mxu0 0.0
  %125 = vmatpush1.msra.mxu0 0.0
  %126 = vmatprep.subr.mxu0 0.0
  %127 = vmatpush1.msra.mxu0 %v92
  %128 = vmatprep.subr.mxu0 0.0
  %129 = vmatpush2.msra.mxu0 0.0
  %130 = vmatprep.subr.mxu0 0.0
  %131 = vmatpush2.msra.mxu0 0.0
  %132 = vmatprep.subr.mxu0 0.0
  %133 = vmatpush2.msra.mxu0 0.0
  %134 = vmatprep.subr.mxu0 0.0
  %135 = vmatpush2.msra.mxu0 0.0
  %136 = vmatprep.subr.mxu0 0.0
  %137 = vmatpush2.msra.mxu0 0.0
  %138 = vmatprep.subr.mxu0 0.0
  %139 = vmatpush2.msra.mxu0 0.0
  %140 = vmatprep.subr.mxu0 0.0
  %141 = vmatpush2.msra.mxu0 0.0
  %142 = vmatprep.subr.mxu0 0.0
  %143 = vmatpush2.msra.mxu0 0.0
  %144 = vmatprep.subr.mxu0 0.0
  %145 = vmatpush2.msra.mxu0 0.0
  %146 = vmatprep.subr.mxu0 0.0
  %147 = vmatpush2.msra.mxu0 0.0
  %148 = vmatprep.subr.mxu0 0.0
  %149 = vmatpush2.msra.mxu0 0.0
  %150 = vmatprep.subr.mxu0 0.0
  %151 = vmatpush2.msra.mxu0 0.0
  %152 = vmatprep.subr.mxu0 0.0
  %153 = vmatpush2.msra.mxu0 0.0
  %154 = vmatprep.subr.mxu0 0.0
  %155 = vmatpush2.msra.mxu0 0.0
  %156 = vmatprep.subr.mxu0 0.0
  %157 = vmatpush2.msra.mxu0 0.0
  %158 = vmatprep.subr.mxu0 0.0
  %159 = vmatpush2.msra.mxu0 0.0
  %160 = vmatprep.mubr.f32.mxu0 0.0
  %161 = vmatmul.mubr.f32.gmra.mxu0 %v94
  %v162 = vpop.f32.mrf.mxu0
  %v163 = vadd.f32 0.0, %v162
  %v164 = vpop.f32.mrf.mxu0
  %165 = vdwg.mxu0
  %s166 = scalar_lea.vmem %s2, 8
  %167 = vst.msk [vmem:[%s166] sm:$0xff] %vm87, %v163
  %s168 = scalar_lea.vmem %s0, 16
  %v169 = vld [vmem:[%s168] sm:$0xff]
  %s170 = scalar_lea.vmem %s1, 16
  %v171 = vld [vmem:[%s170] sm:$0xff]
  %v173 = vsel %vm13, %v169, 0
  %175 = vmatprep.subr.mxu0 0.0
  %176 = vmatpush1.msra.mxu0 0.0
  %177 = vmatprep.subr.mxu0 0.0
  %178 = vmatpush1.msra.mxu0 0.0
  %179 = vmatprep.subr.mxu0 0.0
  %180 = vmatpush1.msra.mxu0 0.0
  %181 = vmatprep.subr.mxu0 0.0
  %182 = vmatpush1.msra.mxu0 0.0
  %183 = vmatprep.subr.mxu0 0.0
  %184 = vmatpush1.msra.mxu0 0.0
  %185 = vmatprep.subr.mxu0 0.0
  %186 = vmatpush1.msra.mxu0 0.0
  %187 = vmatprep.subr.mxu0 0.0
  %188 = vmatpush1.msra.mxu0 0.0
  %189 = vmatprep.subr.mxu0 0.0
  %190 = vmatpush1.msra.mxu0 0.0
  %191 = vmatprep.subr.mxu0 0.0
  %192 = vmatpush1.msra.mxu0 0.0
  %193 = vmatprep.subr.mxu0 0.0
  %194 = vmatpush1.msra.mxu0 0.0
  %195 = vmatprep.subr.mxu0 0.0
  %196 = vmatpush1.msra.mxu0 0.0
  %197 = vmatprep.subr.mxu0 0.0
  %198 = vmatpush1.msra.mxu0 0.0
  %199 = vmatprep.subr.mxu0 0.0
  %200 = vmatpush1.msra.mxu0 0.0
  %201 = vmatprep.subr.mxu0 0.0
  %202 = vmatpush1.msra.mxu0 0.0
  %203 = vmatprep.subr.mxu0 0.0
  %204 = vmatpush1.msra.mxu0 0.0
  %205 = vmatprep.subr.mxu0 0.0
  %206 = vmatpush1.msra.mxu0 %v171
  %207 = vmatprep.subr.mxu0 0.0
  %208 = vmatpush2.msra.mxu0 0.0
  %209 = vmatprep.subr.mxu0 0.0
  %210 = vmatpush2.msra.mxu0 0.0
  %211 = vmatprep.subr.mxu0 0.0
  %212 = vmatpush2.msra.mxu0 0.0
  %213 = vmatprep.subr.mxu0 0.0
  %214 = vmatpush2.msra.mxu0 0.0
  %215 = vmatprep.subr.mxu0 0.0
  %216 = vmatpush2.msra.mxu0 0.0
  %217 = vmatprep.subr.mxu0 0.0
  %218 = vmatpush2.msra.mxu0 0.0
  %219 = vmatprep.subr.mxu0 0.0
  %220 = vmatpush2.msra.mxu0 0.0
  %221 = vmatprep.subr.mxu0 0.0
  %222 = vmatpush2.msra.mxu0 0.0
  %223 = vmatprep.subr.mxu0 0.0
  %224 = vmatpush2.msra.mxu0 0.0
  %225 = vmatprep.subr.mxu0 0.0
  %226 = vmatpush2.msra.mxu0 0.0
  %227 = vmatprep.subr.mxu0 0.0
  %228 = vmatpush2.msra.mxu0 0.0
  %229 = vmatprep.subr.mxu0 0.0
  %230 = vmatpush2.msra.mxu0 0.0
  %231 = vmatprep.subr.mxu0 0.0
  %232 = vmatpush2.msra.mxu0 0.0
  %233 = vmatprep.subr.mxu0 0.0
  %234 = vmatpush2.msra.mxu0 0.0
  %235 = vmatprep.subr.mxu0 0.0
  %236 = vmatpush2.msra.mxu0 0.0
  %237 = vmatprep.subr.mxu0 0.0
  %238 = vmatpush2.msra.mxu0 0.0
  %239 = vmatprep.mubr.f32.mxu0 0.0
  %240 = vmatmul.mubr.f32.gmra.mxu0 %v173
  %v241 = vpop.f32.mrf.mxu0
  %v242 = vadd.f32 0.0, %v241
  %v243 = vpop.f32.mrf.mxu0
  %244 = vdwg.mxu0
  %s245 = scalar_lea.vmem %s2, 16
  %246 = vst.msk [vmem:[%s245] sm:$0xff] %vm87, %v242
  %s247 = scalar_lea.vmem %s0, 24
  %v248 = vld [vmem:[%s247] sm:$0xff]
  %s249 = scalar_lea.vmem %s1, 24
  %v250 = vld [vmem:[%s249] sm:$0xff]
  %v252 = vsel %vm13, %v248, 0
  %254 = vmatprep.subr.mxu0 0.0
  %255 = vmatpush1.msra.mxu0 0.0
  %256 = vmatprep.subr.mxu0 0.0
  %257 = vmatpush1.msra.mxu0 0.0
  %258 = vmatprep.subr.mxu0 0.0
  %259 = vmatpush1.msra.mxu0 0.0
  %260 = vmatprep.subr.mxu0 0.0
  %261 = vmatpush1.msra.mxu0 0.0
  %262 = vmatprep.subr.mxu0 0.0
  %263 = vmatpush1.msra.mxu0 0.0
  %264 = vmatprep.subr.mxu0 0.0
  %265 = vmatpush1.msra.mxu0 0.0
  %266 = vmatprep.subr.mxu0 0.0
  %267 = vmatpush1.msra.mxu0 0.0
  %268 = vmatprep.subr.mxu0 0.0
  %269 = vmatpush1.msra.mxu0 0.0
  %270 = vmatprep.subr.mxu0 0.0
  %271 = vmatpush1.msra.mxu0 0.0
  %272 = vmatprep.subr.mxu0 0.0
  %273 = vmatpush1.msra.mxu0 0.0
  %274 = vmatprep.subr.mxu0 0.0
  %275 = vmatpush1.msra.mxu0 0.0
  %276 = vmatprep.subr.mxu0 0.0
  %277 = vmatpush1.msra.mxu0 0.0
  %278 = vmatprep.subr.mxu0 0.0
  %279 = vmatpush1.msra.mxu0 0.0
  %280 = vmatprep.subr.mxu0 0.0
  %281 = vmatpush1.msra.mxu0 0.0
  %282 = vmatprep.subr.mxu0 0.0
  %283 = vmatpush1.msra.mxu0 0.0
  %284 = vmatprep.subr.mxu0 0.0
  %285 = vmatpush1.msra.mxu0 %v250
  %286 = vmatprep.subr.mxu0 0.0
  %287 = vmatpush2.msra.mxu0 0.0
  %288 = vmatprep.subr.mxu0 0.0
  %289 = vmatpush2.msra.mxu0 0.0
  %290 = vmatprep.subr.mxu0 0.0
  %291 = vmatpush2.msra.mxu0 0.0
  %292 = vmatprep.subr.mxu0 0.0
  %293 = vmatpush2.msra.mxu0 0.0
  %294 = vmatprep.subr.mxu0 0.0
  %295 = vmatpush2.msra.mxu0 0.0
  %296 = vmatprep.subr.mxu0 0.0
  %297 = vmatpush2.msra.mxu0 0.0
  %298 = vmatprep.subr.mxu0 0.0
  %299 = vmatpush2.msra.mxu0 0.0
  %300 = vmatprep.subr.mxu0 0.0
  %301 = vmatpush2.msra.mxu0 0.0
  %302 = vmatprep.subr.mxu0 0.0
  %303 = vmatpush2.msra.mxu0 0.0
  %304 = vmatprep.subr.mxu0 0.0
  %305 = vmatpush2.msra.mxu0 0.0
  %306 = vmatprep.subr.mxu0 0.0
  %307 = vmatpush2.msra.mxu0 0.0
  %308 = vmatprep.subr.mxu0 0.0
  %309 = vmatpush2.msra.mxu0 0.0
  %310 = vmatprep.subr.mxu0 0.0
  %311 = vmatpush2.msra.mxu0 0.0
  %312 = vmatprep.subr.mxu0 0.0
  %313 = vmatpush2.msra.mxu0 0.0
  %314 = vmatprep.subr.mxu0 0.0
  %315 = vmatpush2.msra.mxu0 0.0
  %316 = vmatprep.subr.mxu0 0.0
  %317 = vmatpush2.msra.mxu0 0.0
  %318 = vmatprep.mubr.f32.mxu0 0.0
  %319 = vmatmul.mubr.f32.gmra.mxu0 %v252
  %v320 = vpop.f32.mrf.mxu0
  %v321 = vadd.f32 0.0, %v320
  %v322 = vpop.f32.mrf.mxu0
  %323 = vdwg.mxu0
  %s324 = scalar_lea.vmem %s2, 24
  %325 = vst.msk [vmem:[%s324] sm:$0xff] %vm87, %v321
  // Predicated region
  $region10: #{vits_generator_forward.65} parent=0 // pred_check
    _
  $region11: #{vits_generator_forward.65} parent=0 // pred_check_branch
    %327 = sbr.rel (0) target = $region13
  $region12: #{vits_generator_forward.65} parent=0 // pred_region
    _
  $region13: #{vits_generator_forward.65} parent=0 // pred_fallthru
    _
  // Predicated region
  $region14: #{vits_generator_forward.65} parent=0 // pred_check
    _
  $region15: #{vits_generator_forward.65} parent=0 // pred_check_branch
    %329 = sbr.rel (0) target = $region17
  $region16: #{vits_generator_forward.65} parent=0 // pred_region
    _
  $region17: #{vits_generator_forward.65} parent=0 // pred_fallthru
    _

// kernel: vits_generator_forward.67
$region0: #{vits_generator_forward.67}
  #allocation0 [shape = 'u32[]', space=smem, size = 0x4, offset = 0x4, fixed_abs, tag = 'smem constant byte address 0x4 - core index']
  #allocation1 [shape = 'u32[144,128]{1,0:T(1,128)}', space=vmem, size = 0x12000, scoped, tag = 'internal scratch']
  %s0 = inlined_call_operand.vmem [shape: f32[128,32], index: 0, kind: input, shape index: {}]
  %s1 = inlined_call_operand.vmem [shape: f32[32,16], index: 1, kind: input, shape index: {}]
  %s2 = inlined_call_operand.vmem [shape: f32[128,1], index: 2, kind: input, shape index: {}]
  %s3 = inlined_call_operand.vmem [shape: f32[128,16], index: 3, kind: output, shape index: {}]
  %s4 = sld [smem:[#allocation0]]
  $region22: #{vits_generator_forward.67} parent=0
    _
  %s6 = ssub.s32 1, %s4
  %s7 = scalar_select 0, %s6, %s4
  // Predicated region
  $region2: #{vits_generator_forward.67} parent=0 // pred_check
    _
  $region3: #{vits_generator_forward.67} parent=0 // pred_check_branch
    %9 = sbr.rel (0) target = $region5
  $region4: #{vits_generator_forward.67} parent=0 // pred_region
    _
  $region5: #{vits_generator_forward.67} parent=0 // pred_fallthru
    _
  // Predicated region
  $region6: #{vits_generator_forward.67} parent=0 // pred_check
    _
  $region7: #{vits_generator_forward.67} parent=0 // pred_check_branch
    %11 = sbr.rel (0) target = $region9
  $region8: #{vits_generator_forward.67} parent=0 // pred_region
    _
  $region9: #{vits_generator_forward.67} parent=0 // pred_fallthru
    _
  // Predicated region
  $region10: #{vits_generator_forward.67} parent=0 // pred_check
    _
  $region11: #{vits_generator_forward.67} parent=0 // pred_check_branch
    %13 = sbr.rel (0) target = $region13
  $region12: #{vits_generator_forward.67} parent=0 // pred_region
    _
  $region13: #{vits_generator_forward.67} parent=0 // pred_fallthru
    _
  %v14 = vld [vmem:[%s1] sm:$0xff]
  %v15 = vld [vmem:[%s1 + $0x8] sm:$0xff]
  %v16 = vld [vmem:[%s1 + $0x10] sm:$0xff]
  %v17 = vld [vmem:[%s1 + $0x18] sm:$0xff]
  %v18 = vld [vmem:[%s0] sm:$0xff]
  %v19 = vld [vmem:[%s0 + $0x8] sm:$0xff]
  %v20 = vld [vmem:[%s0 + $0x10] sm:$0xff]
  %v21 = vld [vmem:[%s0 + $0x18] sm:$0xff]
  %v22 = vld [vmem:[%s0 + $0x20] sm:$0xff]
  %v23 = vld [vmem:[%s0 + $0x28] sm:$0xff]
  %v24 = vld [vmem:[%s0 + $0x30] sm:$0xff]
  %v25 = vld [vmem:[%s0 + $0x38] sm:$0xff]
  %v26 = vld [vmem:[%s0 + $0x40] sm:$0xff]
  %v27 = vld [vmem:[%s0 + $0x48] sm:$0xff]
  %v28 = vld [vmem:[%s0 + $0x50] sm:$0xff]
  %v29 = vld [vmem:[%s0 + $0x58] sm:$0xff]
  %v30 = vld [vmem:[%s0 + $0x60] sm:$0xff]
  %v31 = vld [vmem:[%s0 + $0x68] sm:$0xff]
  %v32 = vld [vmem:[%s0 + $0x70] sm:$0xff]
  %v33 = vld [vmem:[%s0 + $0x78] sm:$0xff]
  %v34 = vld [vmem:[%s2] sm:$0xff]
  %v35 = vld [vmem:[%s2 + $0x8] sm:$0xff]
  %v36 = vld [vmem:[%s2 + $0x10] sm:$0xff]
  %v37 = vld [vmem:[%s2 + $0x18] sm:$0xff]
  %v38 = vld [vmem:[%s2 + $0x20] sm:$0xff]
  %v39 = vld [vmem:[%s2 + $0x28] sm:$0xff]
  %v40 = vld [vmem:[%s2 + $0x30] sm:$0xff]
  %v41 = vld [vmem:[%s2 + $0x38] sm:$0xff]
  %v42 = vld [vmem:[%s2 + $0x40] sm:$0xff]
  %v43 = vld [vmem:[%s2 + $0x48] sm:$0xff]
  %v44 = vld [vmem:[%s2 + $0x50] sm:$0xff]
  %v45 = vld [vmem:[%s2 + $0x58] sm:$0xff]
  %v46 = vld [vmem:[%s2 + $0x60] sm:$0xff]
  %v47 = vld [vmem:[%s2 + $0x68] sm:$0xff]
  %v48 = vld [vmem:[%s2 + $0x70] sm:$0xff]
  %v49 = vld [vmem:[%s2 + $0x78] sm:$0xff]
  %51 = vset.pattern.permute.xlu0 0
  %52 = vperm.xlu0 %51, %v34
  %v53 = vpop.permute.xlu0 %52
  %56 = vset.pattern.permute.xlu0 0
  %57 = vperm.xlu0 %56, %v35
  %v58 = vpop.permute.xlu0 %57
  %61 = vset.pattern.permute.xlu0 0
  %62 = vperm.xlu0 %61, %v36
  %v63 = vpop.permute.xlu0 %62
  %66 = vset.pattern.permute.xlu0 0
  %67 = vperm.xlu0 %66, %v37
  %v68 = vpop.permute.xlu0 %67
  %71 = vset.pattern.permute.xlu0 0
  %72 = vperm.xlu0 %71, %v38
  %v73 = vpop.permute.xlu0 %72
  %76 = vset.pattern.permute.xlu0 0
  %77 = vperm.xlu0 %76, %v39
  %v78 = vpop.permute.xlu0 %77
  %81 = vset.pattern.permute.xlu0 0
  %82 = vperm.xlu0 %81, %v40
  %v83 = vpop.permute.xlu0 %82
  %86 = vset.pattern.permute.xlu0 0
  %87 = vperm.xlu0 %86, %v41
  %v88 = vpop.permute.xlu0 %87
  %91 = vset.pattern.permute.xlu0 0
  %92 = vperm.xlu0 %91, %v42
  %v93 = vpop.permute.xlu0 %92
  %96 = vset.pattern.permute.xlu0 0
  %97 = vperm.xlu0 %96, %v43
  %v98 = vpop.permute.xlu0 %97
  %101 = vset.pattern.permute.xlu0 0
  %102 = vperm.xlu0 %101, %v44
  %v103 = vpop.permute.xlu0 %102
  %106 = vset.pattern.permute.xlu0 0
  %107 = vperm.xlu0 %106, %v45
  %v108 = vpop.permute.xlu0 %107
  %111 = vset.pattern.permute.xlu0 0
  %112 = vperm.xlu0 %111, %v46
  %v113 = vpop.permute.xlu0 %112
  %116 = vset.pattern.permute.xlu0 0
  %117 = vperm.xlu0 %116, %v47
  %v118 = vpop.permute.xlu0 %117
  %121 = vset.pattern.permute.xlu0 0
  %122 = vperm.xlu0 %121, %v48
  %v123 = vpop.permute.xlu0 %122
  %126 = vset.pattern.permute.xlu0 0
  %127 = vperm.xlu0 %126, %v49
  %v128 = vpop.permute.xlu0 %127
  %vm130 = vcmask 261120
  %v132 = vsel %vm130, %v18, 0
  %v135 = vsel %vm130, %v19, 0
  %v138 = vsel %vm130, %v20, 0
  %v141 = vsel %vm130, %v21, 0
  %v144 = vsel %vm130, %v22, 0
  %v147 = vsel %vm130, %v23, 0
  %v150 = vsel %vm130, %v24, 0
  %v153 = vsel %vm130, %v25, 0
  %v156 = vsel %vm130, %v26, 0
  %v159 = vsel %vm130, %v27, 0
  %v162 = vsel %vm130, %v28, 0
  %v165 = vsel %vm130, %v29, 0
  %v168 = vsel %vm130, %v30, 0
  %v171 = vsel %vm130, %v31, 0
  %v174 = vsel %vm130, %v32, 0
  %v177 = vsel %vm130, %v33, 0
  %179 = vmatprep.subr.mxu0 0.0
  %180 = vmatpush1.msra.mxu0 0.0
  %181 = vmatprep.subr.mxu0 0.0
  %182 = vmatpush1.msra.mxu0 0.0
  %183 = vmatprep.subr.mxu0 0.0
  %184 = vmatpush1.msra.mxu0 0.0
  %185 = vmatprep.subr.mxu0 0.0
  %186 = vmatpush1.msra.mxu0 0.0
  %187 = vmatprep.subr.mxu0 0.0
  %188 = vmatpush1.msra.mxu0 0.0
  %189 = vmatprep.subr.mxu0 0.0
  %190 = vmatpush1.msra.mxu0 0.0
  %191 = vmatprep.subr.mxu0 0.0
  %192 = vmatpush1.msra.mxu0 0.0
  %193 = vmatprep.subr.mxu0 0.0
  %194 = vmatpush1.msra.mxu0 0.0
  %195 = vmatprep.subr.mxu0 0.0
  %196 = vmatpush1.msra.mxu0 0.0
  %197 = vmatprep.subr.mxu0 0.0
  %198 = vmatpush1.msra.mxu0 0.0
  %199 = vmatprep.subr.mxu0 0.0
  %200 = vmatpush1.msra.mxu0 0.0
  %201 = vmatprep.subr.mxu0 0.0
  %202 = vmatpush1.msra.mxu0 0.0
  %203 = vmatprep.subr.mxu0 0.0
  %204 = vmatpush1.msra.mxu0 %v17
  %205 = vmatprep.subr.mxu0 0.0
  %206 = vmatpush1.msra.mxu0 %v16
  %207 = vmatprep.subr.mxu0 0.0
  %208 = vmatpush1.msra.mxu0 %v15
  %209 = vmatprep.subr.mxu0 0.0
  %210 = vmatpush1.msra.mxu0 %v14
  %211 = vmatprep.subr.mxu0 0.0
  %212 = vmatpush2.msra.mxu0 0.0
  %213 = vmatprep.subr.mxu0 0.0
  %214 = vmatpush2.msra.mxu0 0.0
  %215 = vmatprep.subr.mxu0 0.0
  %216 = vmatpush2.msra.mxu0 0.0
  %217 = vmatprep.subr.mxu0 0.0
  %218 = vmatpush2.msra.mxu0 0.0
  %219 = vmatprep.subr.mxu0 0.0
  %220 = vmatpush2.msra.mxu0 0.0
  %221 = vmatprep.subr.mxu0 0.0
  %222 = vmatpush2.msra.mxu0 0.0
  %223 = vmatprep.subr.mxu0 0.0
  %224 = vmatpush2.msra.mxu0 0.0
  %225 = vmatprep.subr.mxu0 0.0
  %226 = vmatpush2.msra.mxu0 0.0
  %227 = vmatprep.subr.mxu0 0.0
  %228 = vmatpush2.msra.mxu0 0.0
  %229 = vmatprep.subr.mxu0 0.0
  %230 = vmatpush2.msra.mxu0 0.0
  %231 = vmatprep.subr.mxu0 0.0
  %232 = vmatpush2.msra.mxu0 0.0
  %233 = vmatprep.subr.mxu0 0.0
  %234 = vmatpush2.msra.mxu0 0.0
  %235 = vmatprep.subr.mxu0 0.0
  %236 = vmatpush2.msra.mxu0 0.0
  %237 = vmatprep.subr.mxu0 0.0
  %238 = vmatpush2.msra.mxu0 0.0
  %239 = vmatprep.subr.mxu0 0.0
  %240 = vmatpush2.msra.mxu0 0.0
  %241 = vmatprep.subr.mxu0 0.0
  %242 = vmatpush2.msra.mxu0 0.0
  %243 = vmatprep.mubr.f32.mxu0 0.0
  %244 = vmatmul.mubr.f32.gmra.mxu0 %v132
  %v245 = vpop.f32.mrf.mxu0
  %v246 = vadd.f32 %v53, %v245
  %v247 = vpop.f32.mrf.mxu0
  %248 = vmatprep.mubr.f32.mxu0 0.0
  %249 = vmatmul.mubr.f32.gmra.mxu0 %v135
  %v250 = vpop.f32.mrf.mxu0
  %v251 = vadd.f32 %v58, %v250
  %v252 = vpop.f32.mrf.mxu0
  %253 = vmatprep.mubr.f32.mxu0 0.0
  %254 = vmatmul.mubr.f32.gmra.mxu0 %v138
  %v255 = vpop.f32.mrf.mxu0
  %v256 = vadd.f32 %v63, %v255
  %v257 = vpop.f32.mrf.mxu0
  %258 = vmatprep.mubr.f32.mxu0 0.0
  %259 = vmatmul.mubr.f32.gmra.mxu0 %v141
  %v260 = vpop.f32.mrf.mxu0
  %v261 = vadd.f32 %v68, %v260
  %v262 = vpop.f32.mrf.mxu0
  %263 = vmatprep.mubr.f32.mxu0 0.0
  %264 = vmatmul.mubr.f32.gmra.mxu0 %v144
  %v265 = vpop.f32.mrf.mxu0
  %v266 = vadd.f32 %v73, %v265
  %v267 = vpop.f32.mrf.mxu0
  %268 = vmatprep.mubr.f32.mxu0 0.0
  %269 = vmatmul.mubr.f32.gmra.mxu0 %v147
  %v270 = vpop.f32.mrf.mxu0
  %v271 = vadd.f32 %v78, %v270
  %v272 = vpop.f32.mrf.mxu0
  %273 = vmatprep.mubr.f32.mxu0 0.0
  %274 = vmatmul.mubr.f32.gmra.mxu0 %v150
  %v275 = vpop.f32.mrf.mxu0
  %v276 = vadd.f32 %v83, %v275
  %v277 = vpop.f32.mrf.mxu0
  %278 = vmatprep.mubr.f32.mxu0 0.0
  %279 = vmatmul.mubr.f32.gmra.mxu0 %v153
  %v280 = vpop.f32.mrf.mxu0
  %v281 = vadd.f32 %v88, %v280
  %v282 = vpop.f32.mrf.mxu0
  %283 = vmatprep.mubr.f32.mxu0 0.0
  %284 = vmatmul.mubr.f32.gmra.mxu0 %v156
  %v285 = vpop.f32.mrf.mxu0
  %v286 = vadd.f32 %v93, %v285
  %v287 = vpop.f32.mrf.mxu0
  %288 = vmatprep.mubr.f32.mxu0 0.0
  %289 = vmatmul.mubr.f32.gmra.mxu0 %v159
  %v290 = vpop.f32.mrf.mxu0
  %v291 = vadd.f32 %v98, %v290
  %v292 = vpop.f32.mrf.mxu0
  %293 = vmatprep.mubr.f32.mxu0 0.0
  %294 = vmatmul.mubr.f32.gmra.mxu0 %v162
  %v295 = vpop.f32.mrf.mxu0
  %v296 = vadd.f32 %v103, %v295
  %v297 = vpop.f32.mrf.mxu0
  %298 = vmatprep.mubr.f32.mxu0 0.0
  %299 = vmatmul.mubr.f32.gmra.mxu0 %v165
  %v300 = vpop.f32.mrf.mxu0
  %v301 = vadd.f32 %v108, %v300
  %v302 = vpop.f32.mrf.mxu0
  %303 = vmatprep.mubr.f32.mxu0 0.0
  %304 = vmatmul.mubr.f32.gmra.mxu0 %v168
  %v305 = vpop.f32.mrf.mxu0
  %v306 = vadd.f32 %v113, %v305
  %v307 = vpop.f32.mrf.mxu0
  %308 = vmatprep.mubr.f32.mxu0 0.0
  %309 = vmatmul.mubr.f32.gmra.mxu0 %v171
  %v310 = vpop.f32.mrf.mxu0
  %v311 = vadd.f32 %v118, %v310
  %v312 = vpop.f32.mrf.mxu0
  %313 = vmatprep.mubr.f32.mxu0 0.0
  %314 = vmatmul.mubr.f32.gmra.mxu0 %v174
  %v315 = vpop.f32.mrf.mxu0
  %v316 = vadd.f32 %v123, %v315
  %v317 = vpop.f32.mrf.mxu0
  %318 = vmatprep.mubr.f32.mxu0 0.0
  %319 = vmatmul.mubr.f32.gmra.mxu0 %v177
  %v320 = vpop.f32.mrf.mxu0
  %v321 = vadd.f32 %v128, %v320
  %v322 = vpop.f32.mrf.mxu0
  %323 = vdwg.mxu0
  %v324 = vmax.f32 %v246, 0.0
  %v325 = vmax.f32 %v251, 0.0
  %v326 = vmax.f32 %v256, 0.0
  %v327 = vmax.f32 %v261, 0.0
  %v328 = vmax.f32 %v266, 0.0
  %v329 = vmax.f32 %v271, 0.0
  %v330 = vmax.f32 %v276, 0.0
  %v331 = vmax.f32 %v281, 0.0
  %v332 = vmax.f32 %v286, 0.0
  %v333 = vmax.f32 %v291, 0.0
  %v334 = vmax.f32 %v296, 0.0
  %v335 = vmax.f32 %v301, 0.0
  %v336 = vmax.f32 %v306, 0.0
  %v337 = vmax.f32 %v311, 0.0
  %v338 = vmax.f32 %v316, 0.0
  %v339 = vmax.f32 %v321, 0.0
  %vm340 = vcmask 130048
  %341 = vst.msk [vmem:[%s3] sm:$0xff] %vm340, %v324
  %342 = vst.msk [vmem:[%s3 + $0x8] sm:$0xff] %vm340, %v325
  %343 = vst.msk [vmem:[%s3 + $0x10] sm:$0xff] %vm340, %v326
  %344 = vst.msk [vmem:[%s3 + $0x18] sm:$0xff] %vm340, %v327
  %345 = vst.msk [vmem:[%s3 + $0x20] sm:$0xff] %vm340, %v328
  %346 = vst.msk [vmem:[%s3 + $0x28] sm:$0xff] %vm340, %v329
  %347 = vst.msk [vmem:[%s3 + $0x30] sm:$0xff] %vm340, %v330
  %348 = vst.msk [vmem:[%s3 + $0x38] sm:$0xff] %vm340, %v331
  %349 = vst.msk [vmem:[%s3 + $0x40] sm:$0xff] %vm340, %v332
  %350 = vst.msk [vmem:[%s3 + $0x48] sm:$0xff] %vm340, %v333
  %351 = vst.msk [vmem:[%s3 + $0x50] sm:$0xff] %vm340, %v334
  %352 = vst.msk [vmem:[%s3 + $0x58] sm:$0xff] %vm340, %v335
  %353 = vst.msk [vmem:[%s3 + $0x60] sm:$0xff] %vm340, %v336
  %354 = vst.msk [vmem:[%s3 + $0x68] sm:$0xff] %vm340, %v337
  %355 = vst.msk [vmem:[%s3 + $0x70] sm:$0xff] %vm340, %v338
  %356 = vst.msk [vmem:[%s3 + $0x78] sm:$0xff] %vm340, %v339
  // Predicated region
  $region14: #{vits_generator_forward.67} parent=0 // pred_check
    _
  $region15: #{vits_generator_forward.67} parent=0 // pred_check_branch
    %358 = sbr.rel (0) target = $region17
  $region16: #{vits_generator_forward.67} parent=0 // pred_region
    _
  $region17: #{vits_generator_forward.67} parent=0 // pred_fallthru
    _
  // Predicated region
  $region18: #{vits_generator_forward.67} parent=0 // pred_check
    _
  $region19: #{vits_generator_forward.67} parent=0 // pred_check_branch
    %360 = sbr.rel (0) target = $region21
  $region20: #{vits_generator_forward.67} parent=0 // pred_region
    _
  $region21: #{vits_generator_forward.67} parent=0 // pred_fallthru
    _

// kernel: vits_generator_forward.68
$region0: #{vits_generator_forward.68}
  #allocation0 [shape = 'u32[]', space=smem, size = 0x4, offset = 0x4, fixed_abs, tag = 'smem constant byte address 0x4 - core index']
  #allocation1 [shape = 'u32[144,128]{1,0:T(1,128)}', space=vmem, size = 0x12000, scoped, tag = 'internal scratch']
  %s0 = inlined_call_operand.vmem [shape: f32[32,128], index: 0, kind: input, shape index: {}]
  %s1 = inlined_call_operand.vmem [shape: f32[128,16], index: 1, kind: input, shape index: {}]
  %s2 = inlined_call_operand.vmem [shape: f32[32,1], index: 2, kind: input, shape index: {}]
  %s3 = inlined_call_operand.vmem [shape: f32[32,16], index: 3, kind: output, shape index: {}]
  %s4 = sld [smem:[#allocation0]]
  $region22: #{vits_generator_forward.68} parent=0
    _
  %s6 = ssub.s32 1, %s4
  %s7 = scalar_select 0, %s6, %s4
  // Predicated region
  $region2: #{vits_generator_forward.68} parent=0 // pred_check
    _
  $region3: #{vits_generator_forward.68} parent=0 // pred_check_branch
    %9 = sbr.rel (0) target = $region5
  $region4: #{vits_generator_forward.68} parent=0 // pred_region
    _
  $region5: #{vits_generator_forward.68} parent=0 // pred_fallthru
    _
  // Predicated region
  $region6: #{vits_generator_forward.68} parent=0 // pred_check
    _
  $region7: #{vits_generator_forward.68} parent=0 // pred_check_branch
    %11 = sbr.rel (0) target = $region9
  $region8: #{vits_generator_forward.68} parent=0 // pred_region
    _
  $region9: #{vits_generator_forward.68} parent=0 // pred_fallthru
    _
  // Predicated region
  $region10: #{vits_generator_forward.68} parent=0 // pred_check
    _
  $region11: #{vits_generator_forward.68} parent=0 // pred_check_branch
    %13 = sbr.rel (0) target = $region13
  $region12: #{vits_generator_forward.68} parent=0 // pred_region
    _
  $region13: #{vits_generator_forward.68} parent=0 // pred_fallthru
    _
  %v14 = vld [vmem:[%s1] sm:$0xff]
  %v15 = vld [vmem:[%s1 + $0x8] sm:$0xff]
  %v16 = vld [vmem:[%s1 + $0x10] sm:$0xff]
  %v17 = vld [vmem:[%s1 + $0x18] sm:$0xff]
  %v18 = vld [vmem:[%s1 + $0x20] sm:$0xff]
  %v19 = vld [vmem:[%s1 + $0x28] sm:$0xff]
  %v20 = vld [vmem:[%s1 + $0x30] sm:$0xff]
  %v21 = vld [vmem:[%s1 + $0x38] sm:$0xff]
  %v22 = vld [vmem:[%s1 + $0x40] sm:$0xff]
  %v23 = vld [vmem:[%s1 + $0x48] sm:$0xff]
  %v24 = vld [vmem:[%s1 + $0x50] sm:$0xff]
  %v25 = vld [vmem:[%s1 + $0x58] sm:$0xff]
  %v26 = vld [vmem:[%s1 + $0x60] sm:$0xff]
  %v27 = vld [vmem:[%s1 + $0x68] sm:$0xff]
  %v28 = vld [vmem:[%s1 + $0x70] sm:$0xff]
  %v29 = vld [vmem:[%s1 + $0x78] sm:$0xff]
  %v30 = vld [vmem:[%s0] sm:$0xff]
  %v31 = vld [vmem:[%s0 + $0x8] sm:$0xff]
  %v32 = vld [vmem:[%s0 + $0x10] sm:$0xff]
  %v33 = vld [vmem:[%s0 + $0x18] sm:$0xff]
  %v34 = vld [vmem:[%s2] sm:$0xff]
  %v35 = vld [vmem:[%s2 + $0x8] sm:$0xff]
  %v36 = vld [vmem:[%s2 + $0x10] sm:$0xff]
  %v37 = vld [vmem:[%s2 + $0x18] sm:$0xff]
  %39 = vset.pattern.permute.xlu0 0
  %40 = vperm.xlu0 %39, %v34
  %v41 = vpop.permute.xlu0 %40
  %44 = vset.pattern.permute.xlu0 0
  %45 = vperm.xlu0 %44, %v35
  %v46 = vpop.permute.xlu0 %45
  %49 = vset.pattern.permute.xlu0 0
  %50 = vperm.xlu0 %49, %v36
  %v51 = vpop.permute.xlu0 %50
  %54 = vset.pattern.permute.xlu0 0
  %55 = vperm.xlu0 %54, %v37
  %v56 = vpop.permute.xlu0 %55
  %58 = vmatprep.subr.mxu0 0.0
  %59 = vmatpush1.msra.mxu0 %v29
  %60 = vmatprep.subr.mxu0 0.0
  %61 = vmatpush1.msra.mxu0 %v28
  %62 = vmatprep.subr.mxu0 0.0
  %63 = vmatpush1.msra.mxu0 %v27
  %64 = vmatprep.subr.mxu0 0.0
  %65 = vmatpush1.msra.mxu0 %v26
  %66 = vmatprep.subr.mxu0 0.0
  %67 = vmatpush1.msra.mxu0 %v25
  %68 = vmatprep.subr.mxu0 0.0
  %69 = vmatpush1.msra.mxu0 %v24
  %70 = vmatprep.subr.mxu0 0.0
  %71 = vmatpush1.msra.mxu0 %v23
  %72 = vmatprep.subr.mxu0 0.0
  %73 = vmatpush1.msra.mxu0 %v22
  %74 = vmatprep.subr.mxu0 0.0
  %75 = vmatpush1.msra.mxu0 %v21
  %76 = vmatprep.subr.mxu0 0.0
  %77 = vmatpush1.msra.mxu0 %v20
  %78 = vmatprep.subr.mxu0 0.0
  %79 = vmatpush1.msra.mxu0 %v19
  %80 = vmatprep.subr.mxu0 0.0
  %81 = vmatpush1.msra.mxu0 %v18
  %82 = vmatprep.subr.mxu0 0.0
  %83 = vmatpush1.msra.mxu0 %v17
  %84 = vmatprep.subr.mxu0 0.0
  %85 = vmatpush1.msra.mxu0 %v16
  %86 = vmatprep.subr.mxu0 0.0
  %87 = vmatpush1.msra.mxu0 %v15
  %88 = vmatprep.subr.mxu0 0.0
  %89 = vmatpush1.msra.mxu0 %v14
  %90 = vmatprep.subr.mxu0 0.0
  %91 = vmatpush2.msra.mxu0 0.0
  %92 = vmatprep.subr.mxu0 0.0
  %93 = vmatpush2.msra.mxu0 0.0
  %94 = vmatprep.subr.mxu0 0.0
  %95 = vmatpush2.msra.mxu0 0.0
  %96 = vmatprep.subr.mxu0 0.0
  %97 = vmatpush2.msra.mxu0 0.0
  %98 = vmatprep.subr.mxu0 0.0
  %99 = vmatpush2.msra.mxu0 0.0
  %100 = vmatprep.subr.mxu0 0.0
  %101 = vmatpush2.msra.mxu0 0.0
  %102 = vmatprep.subr.mxu0 0.0
  %103 = vmatpush2.msra.mxu0 0.0
  %104 = vmatprep.subr.mxu0 0.0
  %105 = vmatpush2.msra.mxu0 0.0
  %106 = vmatprep.subr.mxu0 0.0
  %107 = vmatpush2.msra.mxu0 0.0
  %108 = vmatprep.subr.mxu0 0.0
  %109 = vmatpush2.msra.mxu0 0.0
  %110 = vmatprep.subr.mxu0 0.0
  %111 = vmatpush2.msra.mxu0 0.0
  %112 = vmatprep.subr.mxu0 0.0
  %113 = vmatpush2.msra.mxu0 0.0
  %114 = vmatprep.subr.mxu0 0.0
  %115 = vmatpush2.msra.mxu0 0.0
  %116 = vmatprep.subr.mxu0 0.0
  %117 = vmatpush2.msra.mxu0 0.0
  %118 = vmatprep.subr.mxu0 0.0
  %119 = vmatpush2.msra.mxu0 0.0
  %120 = vmatprep.subr.mxu0 0.0
  %121 = vmatpush2.msra.mxu0 0.0
  %122 = vmatprep.mubr.f32.mxu0 0.0
  %123 = vmatmul.mubr.f32.gmra.mxu0 %v30
  %v124 = vpop.f32.mrf.mxu0
  %v125 = vadd.f32 %v41, %v124
  %v126 = vpop.f32.mrf.mxu0
  %127 = vmatprep.mubr.f32.mxu0 0.0
  %128 = vmatmul.mubr.f32.gmra.mxu0 %v31
  %v129 = vpop.f32.mrf.mxu0
  %v130 = vadd.f32 %v46, %v129
  %v131 = vpop.f32.mrf.mxu0
  %132 = vmatprep.mubr.f32.mxu0 0.0
  %133 = vmatmul.mubr.f32.gmra.mxu0 %v32
  %v134 = vpop.f32.mrf.mxu0
  %v135 = vadd.f32 %v51, %v134
  %v136 = vpop.f32.mrf.mxu0
  %137 = vmatprep.mubr.f32.mxu0 0.0
  %138 = vmatmul.mubr.f32.gmra.mxu0 %v33
  %v139 = vpop.f32.mrf.mxu0
  %v140 = vadd.f32 %v56, %v139
  %v141 = vpop.f32.mrf.mxu0
  %142 = vdwg.mxu0
  %vm143 = vcmask 130048
  %144 = vst.msk [vmem:[%s3] sm:$0xff] %vm143, %v125
  %145 = vst.msk [vmem:[%s3 + $0x8] sm:$0xff] %vm143, %v130
  %146 = vst.msk [vmem:[%s3 + $0x10] sm:$0xff] %vm143, %v135
  %147 = vst.msk [vmem:[%s3 + $0x18] sm:$0xff] %vm143, %v140
  // Predicated region
  $region14: #{vits_generator_forward.68} parent=0 // pred_check
    _
  $region15: #{vits_generator_forward.68} parent=0 // pred_check_branch
    %149 = sbr.rel (0) target = $region17
  $region16: #{vits_generator_forward.68} parent=0 // pred_region
    _
  $region17: #{vits_generator_forward.68} parent=0 // pred_fallthru
    _
  // Predicated region
  $region18: #{vits_generator_forward.68} parent=0 // pred_check
    _
  $region19: #{vits_generator_forward.68} parent=0 // pred_check_branch
    %151 = sbr.rel (0) target = $region21
  $region20: #{vits_generator_forward.68} parent=0 // pred_region
    _
  $region21: #{vits_generator_forward.68} parent=0 // pred_fallthru
    _

// kernel: vits_generator_forward.69
$region0: #{vits_generator_forward.69}
  #allocation0 [shape = 'u32[]', space=smem, size = 0x4, offset = 0x4, fixed_abs, tag = 'smem constant byte address 0x4 - core index']
  #allocation1 [shape = 'u32[144,128]{1,0:T(1,128)}', space=vmem, size = 0x12000, scoped, tag = 'internal scratch']
  %s0 = inlined_call_operand.vmem [shape: f32[64,32], index: 0, kind: input, shape index: {}]
  %s1 = inlined_call_operand.vmem [shape: f32[32,16], index: 1, kind: input, shape index: {}]
  %s2 = inlined_call_operand.vmem [shape: f32[64,1], index: 2, kind: input, shape index: {}]
  %s3 = inlined_call_operand.vmem [shape: f32[1,16], index: 3, kind: input, shape index: {}]
  %s4 = inlined_call_operand.vmem [shape: f32[64,16], index: 4, kind: output, shape index: {}]
  %s5 = sld [smem:[#allocation0]]
  $region26: #{vits_generator_forward.69} parent=0
    _
  %s7 = ssub.s32 1, %s5
  %s8 = scalar_select 0, %s7, %s5
  // Predicated region
  $region2: #{vits_generator_forward.69} parent=0 // pred_check
    _
  $region3: #{vits_generator_forward.69} parent=0 // pred_check_branch
    %10 = sbr.rel (0) target = $region5
  $region4: #{vits_generator_forward.69} parent=0 // pred_region
    _
  $region5: #{vits_generator_forward.69} parent=0 // pred_fallthru
    _
  // Predicated region
  $region6: #{vits_generator_forward.69} parent=0 // pred_check
    _
  $region7: #{vits_generator_forward.69} parent=0 // pred_check_branch
    %12 = sbr.rel (0) target = $region9
  $region8: #{vits_generator_forward.69} parent=0 // pred_region
    _
  $region9: #{vits_generator_forward.69} parent=0 // pred_fallthru
    _
  // Predicated region
  $region10: #{vits_generator_forward.69} parent=0 // pred_check
    _
  $region11: #{vits_generator_forward.69} parent=0 // pred_check_branch
    %14 = sbr.rel (0) target = $region13
  $region12: #{vits_generator_forward.69} parent=0 // pred_region
    _
  $region13: #{vits_generator_forward.69} parent=0 // pred_fallthru
    _
  // Predicated region
  $region14: #{vits_generator_forward.69} parent=0 // pred_check
    _
  $region15: #{vits_generator_forward.69} parent=0 // pred_check_branch
    %16 = sbr.rel (0) target = $region17
  $region16: #{vits_generator_forward.69} parent=0 // pred_region
    _
  $region17: #{vits_generator_forward.69} parent=0 // pred_fallthru
    _
  %v17 = vld [vmem:[%s1] sm:$0xff]
  %v18 = vld [vmem:[%s1 + $0x8] sm:$0xff]
  %v19 = vld [vmem:[%s1 + $0x10] sm:$0xff]
  %v20 = vld [vmem:[%s1 + $0x18] sm:$0xff]
  %v21 = vld [vmem:[%s0] sm:$0xff]
  %v22 = vld [vmem:[%s0 + $0x8] sm:$0xff]
  %v23 = vld [vmem:[%s0 + $0x10] sm:$0xff]
  %v24 = vld [vmem:[%s0 + $0x18] sm:$0xff]
  %v25 = vld [vmem:[%s0 + $0x20] sm:$0xff]
  %v26 = vld [vmem:[%s0 + $0x28] sm:$0xff]
  %v27 = vld [vmem:[%s0 + $0x30] sm:$0xff]
  %v28 = vld [vmem:[%s0 + $0x38] sm:$0xff]
  %v29 = vld [vmem:[%s2] sm:$0xff]
  %v30 = vld [vmem:[%s2 + $0x8] sm:$0xff]
  %v31 = vld [vmem:[%s2 + $0x10] sm:$0xff]
  %v32 = vld [vmem:[%s2 + $0x18] sm:$0xff]
  %v33 = vld [vmem:[%s2 + $0x20] sm:$0xff]
  %v34 = vld [vmem:[%s2 + $0x28] sm:$0xff]
  %v35 = vld [vmem:[%s2 + $0x30] sm:$0xff]
  %v36 = vld [vmem:[%s2 + $0x38] sm:$0xff]
  %38 = vset.pattern.permute.xlu0 0
  %39 = vperm.xlu0 %38, %v29
  %v40 = vpop.permute.xlu0 %39
  %43 = vset.pattern.permute.xlu0 0
  %44 = vperm.xlu0 %43, %v30
  %v45 = vpop.permute.xlu0 %44
  %48 = vset.pattern.permute.xlu0 0
  %49 = vperm.xlu0 %48, %v31
  %v50 = vpop.permute.xlu0 %49
  %53 = vset.pattern.permute.xlu0 0
  %54 = vperm.xlu0 %53, %v32
  %v55 = vpop.permute.xlu0 %54
  %58 = vset.pattern.permute.xlu0 0
  %59 = vperm.xlu0 %58, %v33
  %v60 = vpop.permute.xlu0 %59
  %63 = vset.pattern.permute.xlu0 0
  %64 = vperm.xlu0 %63, %v34
  %v65 = vpop.permute.xlu0 %64
  %68 = vset.pattern.permute.xlu0 0
  %69 = vperm.xlu0 %68, %v35
  %v70 = vpop.permute.xlu0 %69
  %73 = vset.pattern.permute.xlu0 0
  %74 = vperm.xlu0 %73, %v36
  %v75 = vpop.permute.xlu0 %74
  %vm77 = vcmask 261120
  %v79 = vsel %vm77, %v21, 0
  %v82 = vsel %vm77, %v22, 0
  %v85 = vsel %vm77, %v23, 0
  %v88 = vsel %vm77, %v24, 0
  %v91 = vsel %vm77, %v25, 0
  %v94 = vsel %vm77, %v26, 0
  %v97 = vsel %vm77, %v27, 0
  %v100 = vsel %vm77, %v28, 0
  %102 = vmatprep.subr.mxu0 0.0
  %103 = vmatpush1.msra.mxu0 0.0
  %104 = vmatprep.subr.mxu0 0.0
  %105 = vmatpush1.msra.mxu0 0.0
  %106 = vmatprep.subr.mxu0 0.0
  %107 = vmatpush1.msra.mxu0 0.0
  %108 = vmatprep.subr.mxu0 0.0
  %109 = vmatpush1.msra.mxu0 0.0
  %110 = vmatprep.subr.mxu0 0.0
  %111 = vmatpush1.msra.mxu0 0.0
  %112 = vmatprep.subr.mxu0 0.0
  %113 = vmatpush1.msra.mxu0 0.0
  %114 = vmatprep.subr.mxu0 0.0
  %115 = vmatpush1.msra.mxu0 0.0
  %116 = vmatprep.subr.mxu0 0.0
  %117 = vmatpush1.msra.mxu0 0.0
  %118 = vmatprep.subr.mxu0 0.0
  %119 = vmatpush1.msra.mxu0 0.0
  %120 = vmatprep.subr.mxu0 0.0
  %121 = vmatpush1.msra.mxu0 0.0
  %122 = vmatprep.subr.mxu0 0.0
  %123 = vmatpush1.msra.mxu0 0.0
  %124 = vmatprep.subr.mxu0 0.0
  %125 = vmatpush1.msra.mxu0 0.0
  %126 = vmatprep.subr.mxu0 0.0
  %127 = vmatpush1.msra.mxu0 %v20
  %128 = vmatprep.subr.mxu0 0.0
  %129 = vmatpush1.msra.mxu0 %v19
  %130 = vmatprep.subr.mxu0 0.0
  %131 = vmatpush1.msra.mxu0 %v18
  %132 = vmatprep.subr.mxu0 0.0
  %133 = vmatpush1.msra.mxu0 %v17
  %134 = vmatprep.subr.mxu0 0.0
  %135 = vmatpush2.msra.mxu0 0.0
  %136 = vmatprep.subr.mxu0 0.0
  %137 = vmatpush2.msra.mxu0 0.0
  %138 = vmatprep.subr.mxu0 0.0
  %139 = vmatpush2.msra.mxu0 0.0
  %140 = vmatprep.subr.mxu0 0.0
  %141 = vmatpush2.msra.mxu0 0.0
  %142 = vmatprep.subr.mxu0 0.0
  %143 = vmatpush2.msra.mxu0 0.0
  %144 = vmatprep.subr.mxu0 0.0
  %145 = vmatpush2.msra.mxu0 0.0
  %146 = vmatprep.subr.mxu0 0.0
  %147 = vmatpush2.msra.mxu0 0.0
  %148 = vmatprep.subr.mxu0 0.0
  %149 = vmatpush2.msra.mxu0 0.0
  %150 = vmatprep.subr.mxu0 0.0
  %151 = vmatpush2.msra.mxu0 0.0
  %152 = vmatprep.subr.mxu0 0.0
  %153 = vmatpush2.msra.mxu0 0.0
  %154 = vmatprep.subr.mxu0 0.0
  %155 = vmatpush2.msra.mxu0 0.0
  %156 = vmatprep.subr.mxu0 0.0
  %157 = vmatpush2.msra.mxu0 0.0
  %158 = vmatprep.subr.mxu0 0.0
  %159 = vmatpush2.msra.mxu0 0.0
  %160 = vmatprep.subr.mxu0 0.0
  %161 = vmatpush2.msra.mxu0 0.0
  %162 = vmatprep.subr.mxu0 0.0
  %163 = vmatpush2.msra.mxu0 0.0
  %164 = vmatprep.subr.mxu0 0.0
  %165 = vmatpush2.msra.mxu0 0.0
  %166 = vmatprep.mubr.f32.mxu0 0.0
  %167 = vmatmul.mubr.f32.gmra.mxu0 %v79
  %v168 = vpop.f32.mrf.mxu0
  %v169 = vadd.f32 %v40, %v168
  %v170 = vpop.f32.mrf.mxu0
  %171 = vmatprep.mubr.f32.mxu0 0.0
  %172 = vmatmul.mubr.f32.gmra.mxu0 %v82
  %v173 = vpop.f32.mrf.mxu0
  %v174 = vadd.f32 %v45, %v173
  %v175 = vpop.f32.mrf.mxu0
  %176 = vmatprep.mubr.f32.mxu0 0.0
  %177 = vmatmul.mubr.f32.gmra.mxu0 %v85
  %v178 = vpop.f32.mrf.mxu0
  %v179 = vadd.f32 %v50, %v178
  %v180 = vpop.f32.mrf.mxu0
  %181 = vmatprep.mubr.f32.mxu0 0.0
  %182 = vmatmul.mubr.f32.gmra.mxu0 %v88
  %v183 = vpop.f32.mrf.mxu0
  %v184 = vadd.f32 %v55, %v183
  %v185 = vpop.f32.mrf.mxu0
  %186 = vmatprep.mubr.f32.mxu0 0.0
  %187 = vmatmul.mubr.f32.gmra.mxu0 %v91
  %v188 = vpop.f32.mrf.mxu0
  %v189 = vadd.f32 %v60, %v188
  %v190 = vpop.f32.mrf.mxu0
  %191 = vmatprep.mubr.f32.mxu0 0.0
  %192 = vmatmul.mubr.f32.gmra.mxu0 %v94
  %v193 = vpop.f32.mrf.mxu0
  %v194 = vadd.f32 %v65, %v193
  %v195 = vpop.f32.mrf.mxu0
  %196 = vmatprep.mubr.f32.mxu0 0.0
  %197 = vmatmul.mubr.f32.gmra.mxu0 %v97
  %v198 = vpop.f32.mrf.mxu0
  %v199 = vadd.f32 %v70, %v198
  %v200 = vpop.f32.mrf.mxu0
  %201 = vmatprep.mubr.f32.mxu0 0.0
  %202 = vmatmul.mubr.f32.gmra.mxu0 %v100
  %v203 = vpop.f32.mrf.mxu0
  %v204 = vadd.f32 %v75, %v203
  %v205 = vpop.f32.mrf.mxu0
  %206 = vdwg.mxu0
  %v207 = vld [vmem:[%s3] sm:$0x1]
  %v209 = vlaneseq
  %v210 = vshrl.u32 %v209, 7
  %v211 = vsub.s32 0, %v210
  %v212 = vrot.slane %v207, %v211
  %v214 = vmul.f32 %v169, %v212
  %v215 = vmul.f32 %v174, %v212
  %v216 = vmul.f32 %v179, %v212
  %v217 = vmul.f32 %v184, %v212
  %v218 = vmul.f32 %v189, %v212
  %v219 = vmul.f32 %v194, %v212
  %v220 = vmul.f32 %v199, %v212
  %v221 = vmul.f32 %v204, %v212
  %vm222 = vcmask 130048
  %223 = vst.msk [vmem:[%s4] sm:$0xff] %vm222, %v214
  %224 = vst.msk [vmem:[%s4 + $0x8] sm:$0xff] %vm222, %v215
  %225 = vst.msk [vmem:[%s4 + $0x10] sm:$0xff] %vm222, %v216
  %226 = vst.msk [vmem:[%s4 + $0x18] sm:$0xff] %vm222, %v217
  %227 = vst.msk [vmem:[%s4 + $0x20] sm:$0xff] %vm222, %v218
  %228 = vst.msk [vmem:[%s4 + $0x28] sm:$0xff] %vm222, %v219
  %229 = vst.msk [vmem:[%s4 + $0x30] sm:$0xff] %vm222, %v220
  %230 = vst.msk [vmem:[%s4 + $0x38] sm:$0xff] %vm222, %v221
  // Predicated region
  $region18: #{vits_generator_forward.69} parent=0 // pred_check
    _
  $region19: #{vits_generator_forward.69} parent=0 // pred_check_branch
    %232 = sbr.rel (0) target = $region21
  $region20: #{vits_generator_forward.69} parent=0 // pred_region
    _
  $region21: #{vits_generator_forward.69} parent=0 // pred_fallthru
    _
  // Predicated region
  $region22: #{vits_generator_forward.69} parent=0 // pred_check
    _
  $region23: #{vits_generator_forward.69} parent=0 // pred_check_branch
    %234 = sbr.rel (0) target = $region25
  $region24: #{vits_generator_forward.69} parent=0 // pred_region
    _
  $region25: #{vits_generator_forward.69} parent=0 // pred_fallthru
    _

// kernel: custom-call.14
$region0: #{custom-call.14}
  %s0 = inlined_call_operand.vmem [shape: f32[16,2,8], index: 0, kind: output, shape index: {}]

// kernel: custom-call.6
$region0: #{custom-call.6}
  %s0 = inlined_call_operand.vmem [shape: f32[2,8], index: 0, kind: output, shape index: {}]

// kernel: vits_generator_forward.78
$region0: #{vits_generator_forward.78}
  #allocation0 [shape = 'u32[]', space=smem, size = 0x4, offset = 0x4, fixed_abs, tag = 'smem constant byte address 0x4 - core index']
  #allocation1 [shape = 'u32[144,128]{1,0:T(1,128)}', space=vmem, size = 0x12000, scoped, tag = 'internal scratch']
  %s0 = inlined_call_operand.vmem [shape: f32[2,16,32], index: 0, kind: input, shape index: {}]
  %s1 = inlined_call_operand.vmem [shape: f32[2,32,8], index: 1, kind: input, shape index: {}]
  %s2 = inlined_call_operand.vmem [shape: f32[2,16,8], index: 2, kind: output, shape index: {}]
  %s3 = sld [smem:[#allocation0]]
  $region18: #{vits_generator_forward.78} parent=0
    _
  %s5 = ssub.s32 1, %s3
  %s6 = scalar_select 0, %s5, %s3
  // Predicated region
  $region2: #{vits_generator_forward.78} parent=0 // pred_check
    _
  $region3: #{vits_generator_forward.78} parent=0 // pred_check_branch
    %8 = sbr.rel (0) target = $region5
  $region4: #{vits_generator_forward.78} parent=0 // pred_region
    _
  $region5: #{vits_generator_forward.78} parent=0 // pred_fallthru
    _
  // Predicated region
  $region6: #{vits_generator_forward.78} parent=0 // pred_check
    _
  $region7: #{vits_generator_forward.78} parent=0 // pred_check_branch
    %10 = sbr.rel (0) target = $region9
  $region8: #{vits_generator_forward.78} parent=0 // pred_region
    _
  $region9: #{vits_generator_forward.78} parent=0 // pred_fallthru
    _
  %v11 = vld [vmem:[%s0] sm:$0xff]
  %v12 = vld [vmem:[%s0 + $0x8] sm:$0xff]
  %v13 = vld [vmem:[%s1] sm:$0xff]
  %v14 = vld [vmem:[%s1 + $0x8] sm:$0xff]
  %v15 = vld [vmem:[%s1 + $0x10] sm:$0xff]
  %v16 = vld [vmem:[%s1 + $0x18] sm:$0xff]
  %vm17 = vcmask 261120
  %v19 = vsel %vm17, %v11, 0
  %v22 = vsel %vm17, %v12, 0
  %24 = vmatprep.subr.mxu0 0.0
  %25 = vmatpush1.msra.mxu0 0.0
  %26 = vmatprep.subr.mxu0 0.0
  %27 = vmatpush1.msra.mxu0 0.0
  %28 = vmatprep.subr.mxu0 0.0
  %29 = vmatpush1.msra.mxu0 0.0
  %30 = vmatprep.subr.mxu0 0.0
  %31 = vmatpush1.msra.mxu0 0.0
  %32 = vmatprep.subr.mxu0 0.0
  %33 = vmatpush1.msra.mxu0 0.0
  %34 = vmatprep.subr.mxu0 0.0
  %35 = vmatpush1.msra.mxu0 0.0
  %36 = vmatprep.subr.mxu0 0.0
  %37 = vmatpush1.msra.mxu0 0.0
  %38 = vmatprep.subr.mxu0 0.0
  %39 = vmatpush1.msra.mxu0 0.0
  %40 = vmatprep.subr.mxu0 0.0
  %41 = vmatpush1.msra.mxu0 0.0
  %42 = vmatprep.subr.mxu0 0.0
  %43 = vmatpush1.msra.mxu0 0.0
  %44 = vmatprep.subr.mxu0 0.0
  %45 = vmatpush1.msra.mxu0 0.0
  %46 = vmatprep.subr.mxu0 0.0
  %47 = vmatpush1.msra.mxu0 0.0
  %48 = vmatprep.subr.mxu0 0.0
  %49 = vmatpush1.msra.mxu0 %v16
  %50 = vmatprep.subr.mxu0 0.0
  %51 = vmatpush1.msra.mxu0 %v15
  %52 = vmatprep.subr.mxu0 0.0
  %53 = vmatpush1.msra.mxu0 %v14
  %54 = vmatprep.subr.mxu0 0.0
  %55 = vmatpush1.msra.mxu0 %v13
  %56 = vmatprep.subr.mxu0 0.0
  %57 = vmatpush2.msra.mxu0 0.0
  %58 = vmatprep.subr.mxu0 0.0
  %59 = vmatpush2.msra.mxu0 0.0
  %60 = vmatprep.subr.mxu0 0.0
  %61 = vmatpush2.msra.mxu0 0.0
  %62 = vmatprep.subr.mxu0 0.0
  %63 = vmatpush2.msra.mxu0 0.0
  %64 = vmatprep.subr.mxu0 0.0
  %65 = vmatpush2.msra.mxu0 0.0
  %66 = vmatprep.subr.mxu0 0.0
  %67 = vmatpush2.msra.mxu0 0.0
  %68 = vmatprep.subr.mxu0 0.0
  %69 = vmatpush2.msra.mxu0 0.0
  %70 = vmatprep.subr.mxu0 0.0
  %71 = vmatpush2.msra.mxu0 0.0
  %72 = vmatprep.subr.mxu0 0.0
  %73 = vmatpush2.msra.mxu0 0.0
  %74 = vmatprep.subr.mxu0 0.0
  %75 = vmatpush2.msra.mxu0 0.0
  %76 = vmatprep.subr.mxu0 0.0
  %77 = vmatpush2.msra.mxu0 0.0
  %78 = vmatprep.subr.mxu0 0.0
  %79 = vmatpush2.msra.mxu0 0.0
  %80 = vmatprep.subr.mxu0 0.0
  %81 = vmatpush2.msra.mxu0 0.0
  %82 = vmatprep.subr.mxu0 0.0
  %83 = vmatpush2.msra.mxu0 0.0
  %84 = vmatprep.subr.mxu0 0.0
  %85 = vmatpush2.msra.mxu0 0.0
  %86 = vmatprep.subr.mxu0 0.0
  %87 = vmatpush2.msra.mxu0 0.0
  %88 = vmatprep.mubr.f32.mxu0 0.0
  %89 = vmatmul.mubr.f32.gmra.mxu0 %v19
  %v90 = vpop.f32.mrf.mxu0
  %v91 = vadd.f32 0.0, %v90
  %v92 = vpop.f32.mrf.mxu0
  %93 = vmatprep.mubr.f32.mxu0 0.0
  %94 = vmatmul.mubr.f32.gmra.mxu0 %v22
  %v95 = vpop.f32.mrf.mxu0
  %v96 = vadd.f32 0.0, %v95
  %v97 = vpop.f32.mrf.mxu0
  %98 = vdwg.mxu0
  %vm99 = vcmask 64512
  %100 = vst.msk [vmem:[%s2] sm:$0xff] %vm99, %v91
  %101 = vst.msk [vmem:[%s2 + $0x8] sm:$0xff] %vm99, %v96
  %s102 = scalar_lea.vmem %s0, 16
  %v103 = vld [vmem:[%s102] sm:$0xff]
  %v104 = vld [vmem:[%s102 + $0x8] sm:$0xff]
  %s105 = scalar_lea.vmem %s1, 32
  %v106 = vld [vmem:[%s105] sm:$0xff]
  %v107 = vld [vmem:[%s105 + $0x8] sm:$0xff]
  %v108 = vld [vmem:[%s105 + $0x10] sm:$0xff]
  %v109 = vld [vmem:[%s105 + $0x18] sm:$0xff]
  %v111 = vsel %vm17, %v103, 0
  %v114 = vsel %vm17, %v104, 0
  %116 = vmatprep.subr.mxu0 0.0
  %117 = vmatpush1.msra.mxu0 0.0
  %118 = vmatprep.subr.mxu0 0.0
  %119 = vmatpush1.msra.mxu0 0.0
  %120 = vmatprep.subr.mxu0 0.0
  %121 = vmatpush1.msra.mxu0 0.0
  %122 = vmatprep.subr.mxu0 0.0
  %123 = vmatpush1.msra.mxu0 0.0
  %124 = vmatprep.subr.mxu0 0.0
  %125 = vmatpush1.msra.mxu0 0.0
  %126 = vmatprep.subr.mxu0 0.0
  %127 = vmatpush1.msra.mxu0 0.0
  %128 = vmatprep.subr.mxu0 0.0
  %129 = vmatpush1.msra.mxu0 0.0
  %130 = vmatprep.subr.mxu0 0.0
  %131 = vmatpush1.msra.mxu0 0.0
  %132 = vmatprep.subr.mxu0 0.0
  %133 = vmatpush1.msra.mxu0 0.0
  %134 = vmatprep.subr.mxu0 0.0
  %135 = vmatpush1.msra.mxu0 0.0
  %136 = vmatprep.subr.mxu0 0.0
  %137 = vmatpush1.msra.mxu0 0.0
  %138 = vmatprep.subr.mxu0 0.0
  %139 = vmatpush1.msra.mxu0 0.0
  %140 = vmatprep.subr.mxu0 0.0
  %141 = vmatpush1.msra.mxu0 %v109
  %142 = vmatprep.subr.mxu0 0.0
  %143 = vmatpush1.msra.mxu0 %v108
  %144 = vmatprep.subr.mxu0 0.0
  %145 = vmatpush1.msra.mxu0 %v107
  %146 = vmatprep.subr.mxu0 0.0
  %147 = vmatpush1.msra.mxu0 %v106
  %148 = vmatprep.subr.mxu0 0.0
  %149 = vmatpush2.msra.mxu0 0.0
  %150 = vmatprep.subr.mxu0 0.0
  %151 = vmatpush2.msra.mxu0 0.0
  %152 = vmatprep.subr.mxu0 0.0
  %153 = vmatpush2.msra.mxu0 0.0
  %154 = vmatprep.subr.mxu0 0.0
  %155 = vmatpush2.msra.mxu0 0.0
  %156 = vmatprep.subr.mxu0 0.0
  %157 = vmatpush2.msra.mxu0 0.0
  %158 = vmatprep.subr.mxu0 0.0
  %159 = vmatpush2.msra.mxu0 0.0
  %160 = vmatprep.subr.mxu0 0.0
  %161 = vmatpush2.msra.mxu0 0.0
  %162 = vmatprep.subr.mxu0 0.0
  %163 = vmatpush2.msra.mxu0 0.0
  %164 = vmatprep.subr.mxu0 0.0
  %165 = vmatpush2.msra.mxu0 0.0
  %166 = vmatprep.subr.mxu0 0.0
  %167 = vmatpush2.msra.mxu0 0.0
  %168 = vmatprep.subr.mxu0 0.0
  %169 = vmatpush2.msra.mxu0 0.0
  %170 = vmatprep.subr.mxu0 0.0
  %171 = vmatpush2.msra.mxu0 0.0
  %172 = vmatprep.subr.mxu0 0.0
  %173 = vmatpush2.msra.mxu0 0.0
  %174 = vmatprep.subr.mxu0 0.0
  %175 = vmatpush2.msra.mxu0 0.0
  %176 = vmatprep.subr.mxu0 0.0
  %177 = vmatpush2.msra.mxu0 0.0
  %178 = vmatprep.subr.mxu0 0.0
  %179 = vmatpush2.msra.mxu0 0.0
  %180 = vmatprep.mubr.f32.mxu0 0.0
  %181 = vmatmul.mubr.f32.gmra.mxu0 %v111
  %v182 = vpop.f32.mrf.mxu0
  %v183 = vadd.f32 0.0, %v182
  %v184 = vpop.f32.mrf.mxu0
  %185 = vmatprep.mubr.f32.mxu0 0.0
  %186 = vmatmul.mubr.f32.gmra.mxu0 %v114
  %v187 = vpop.f32.mrf.mxu0
  %v188 = vadd.f32 0.0, %v187
  %v189 = vpop.f32.mrf.mxu0
  %190 = vdwg.mxu0
  %s191 = scalar_lea.vmem %s2, 16
  %192 = vst.msk [vmem:[%s191] sm:$0xff] %vm99, %v183
  %193 = vst.msk [vmem:[%s191 + $0x8] sm:$0xff] %vm99, %v188
  // Predicated region
  $region10: #{vits_generator_forward.78} parent=0 // pred_check
    _
  $region11: #{vits_generator_forward.78} parent=0 // pred_check_branch
    %195 = sbr.rel (0) target = $region13
  $region12: #{vits_generator_forward.78} parent=0 // pred_region
    _
  $region13: #{vits_generator_forward.78} parent=0 // pred_fallthru
    _
  // Predicated region
  $region14: #{vits_generator_forward.78} parent=0 // pred_check
    _
  $region15: #{vits_generator_forward.78} parent=0 // pred_check_branch
    %197 = sbr.rel (0) target = $region17
  $region16: #{vits_generator_forward.78} parent=0 // pred_region
    _
  $region17: #{vits_generator_forward.78} parent=0 // pred_fallthru
    _

// kernel: custom-call.13
$region0: #{custom-call.13}
  %s0 = inlined_call_operand.vmem [shape: f32[16,2,8], index: 0, kind: output, shape index: {}]

// kernel: vits_generator_forward.85
$region0: #{vits_generator_forward.85}
  #allocation0 [shape = 'u32[]', space=smem, size = 0x4, offset = 0x4, fixed_abs, tag = 'smem constant byte address 0x4 - core index']
  #allocation1 [shape = 'u32[144,128]{1,0:T(1,128)}', space=vmem, size = 0x12000, scoped, tag = 'internal scratch']
  %s0 = inlined_call_operand.vmem [shape: f32[2,16,8], index: 0, kind: input, shape index: {}]
  %s1 = inlined_call_operand.vmem [shape: f32[2,8,32], index: 1, kind: input, shape index: {}]
  %s2 = inlined_call_operand.hbm [shape: f32[2,16,32], index: 2, kind: output, shape index: {}]
  %s3 = sld [smem:[#allocation0]]
  $region18: #{vits_generator_forward.85} parent=0
    _
  %s5 = ssub.s32 1, %s3
  %s6 = scalar_select 0, %s5, %s3
  $region1: #{vits_generator_forward.85} parent=0
    #allocation2 [shape = 'u8[16384]{0}', space=vmem, size = 0x4000, scoped, tag = 'output window, operand 0, single buffered']
    #allocation3 [shape = 's32[1]{0}', space=sflag, size = 0x4, scoped, tag = 'scoped memory for vits_generator_forward.85']
    %7 = vsyncpa [#allocation3], 0
    // Predicated region
    $region2: #{vits_generator_forward.85} parent=1 // pred_check
      _
    $region3: #{vits_generator_forward.85} parent=1 // pred_check_branch
      %9 = sbr.rel (0) target = $region5
    $region4: #{vits_generator_forward.85} parent=1 // pred_region
      _
    $region5: #{vits_generator_forward.85} parent=1 // pred_fallthru
      _
    // Predicated region
    $region6: #{vits_generator_forward.85} parent=1 // pred_check
      _
    $region7: #{vits_generator_forward.85} parent=1 // pred_check_branch
      %11 = sbr.rel (0) target = $region9
    $region8: #{vits_generator_forward.85} parent=1 // pred_region
      _
    $region9: #{vits_generator_forward.85} parent=1 // pred_fallthru
      _
    %v12 = vld [vmem:[%s0] sm:$0xff]
    %v13 = vld [vmem:[%s0 + $0x8] sm:$0xff]
    %v14 = vld [vmem:[%s1] sm:$0xff]
    %vm15 = vcmask 64512
    %v17 = vsel %vm15, %v12, 0
    %v20 = vsel %vm15, %v13, 0
    %22 = vmatprep.subr.mxu0 0.0
    %23 = vmatpush1.msra.mxu0 0.0
    %24 = vmatprep.subr.mxu0 0.0
    %25 = vmatpush1.msra.mxu0 0.0
    %26 = vmatprep.subr.mxu0 0.0
    %27 = vmatpush1.msra.mxu0 0.0
    %28 = vmatprep.subr.mxu0 0.0
    %29 = vmatpush1.msra.mxu0 0.0
    %30 = vmatprep.subr.mxu0 0.0
    %31 = vmatpush1.msra.mxu0 0.0
    %32 = vmatprep.subr.mxu0 0.0
    %33 = vmatpush1.msra.mxu0 0.0
    %34 = vmatprep.subr.mxu0 0.0
    %35 = vmatpush1.msra.mxu0 0.0
    %36 = vmatprep.subr.mxu0 0.0
    %37 = vmatpush1.msra.mxu0 0.0
    %38 = vmatprep.subr.mxu0 0.0
    %39 = vmatpush1.msra.mxu0 0.0
    %40 = vmatprep.subr.mxu0 0.0
    %41 = vmatpush1.msra.mxu0 0.0
    %42 = vmatprep.subr.mxu0 0.0
    %43 = vmatpush1.msra.mxu0 0.0
    %44 = vmatprep.subr.mxu0 0.0
    %45 = vmatpush1.msra.mxu0 0.0
    %46 = vmatprep.subr.mxu0 0.0
    %47 = vmatpush1.msra.mxu0 0.0
    %48 = vmatprep.subr.mxu0 0.0
    %49 = vmatpush1.msra.mxu0 0.0
    %50 = vmatprep.subr.mxu0 0.0
    %51 = vmatpush1.msra.mxu0 0.0
    %52 = vmatprep.subr.mxu0 0.0
    %53 = vmatpush1.msra.mxu0 %v14
    %54 = vmatprep.subr.mxu0 0.0
    %55 = vmatpush2.msra.mxu0 0.0
    %56 = vmatprep.subr.mxu0 0.0
    %57 = vmatpush2.msra.mxu0 0.0
    %58 = vmatprep.subr.mxu0 0.0
    %59 = vmatpush2.msra.mxu0 0.0
    %60 = vmatprep.subr.mxu0 0.0
    %61 = vmatpush2.msra.mxu0 0.0
    %62 = vmatprep.subr.mxu0 0.0
    %63 = vmatpush2.msra.mxu0 0.0
    %64 = vmatprep.subr.mxu0 0.0
    %65 = vmatpush2.msra.mxu0 0.0
    %66 = vmatprep.subr.mxu0 0.0
    %67 = vmatpush2.msra.mxu0 0.0
    %68 = vmatprep.subr.mxu0 0.0
    %69 = vmatpush2.msra.mxu0 0.0
    %70 = vmatprep.subr.mxu0 0.0
    %71 = vmatpush2.msra.mxu0 0.0
    %72 = vmatprep.subr.mxu0 0.0
    %73 = vmatpush2.msra.mxu0 0.0
    %74 = vmatprep.subr.mxu0 0.0
    %75 = vmatpush2.msra.mxu0 0.0
    %76 = vmatprep.subr.mxu0 0.0
    %77 = vmatpush2.msra.mxu0 0.0
    %78 = vmatprep.subr.mxu0 0.0
    %79 = vmatpush2.msra.mxu0 0.0
    %80 = vmatprep.subr.mxu0 0.0
    %81 = vmatpush2.msra.mxu0 0.0
    %82 = vmatprep.subr.mxu0 0.0
    %83 = vmatpush2.msra.mxu0 0.0
    %84 = vmatprep.subr.mxu0 0.0
    %85 = vmatpush2.msra.mxu0 0.0
    %86 = vmatprep.mubr.f32.mxu0 0.0
    %87 = vmatmul.mubr.f32.gmra.mxu0 %v17
    %v88 = vpop.f32.mrf.mxu0
    %v89 = vadd.f32 0.0, %v88
    %v90 = vpop.f32.mrf.mxu0
    %91 = vmatprep.mubr.f32.mxu0 0.0
    %92 = vmatmul.mubr.f32.gmra.mxu0 %v20
    %v93 = vpop.f32.mrf.mxu0
    %v94 = vadd.f32 0.0, %v93
    %v95 = vpop.f32.mrf.mxu0
    %96 = vdwg.mxu0
    %vm97 = vcmask 261120
    %98 = vst.msk [vmem:[#allocation2] sm:$0xff] %vm97, %v89
    %99 = vst.msk [vmem:[#allocation2 + $0x8] sm:$0xff] %vm97, %v94
    %s100 = scalar_lea.vmem %s0, 16
    %v101 = vld [vmem:[%s100] sm:$0xff]
    %v102 = vld [vmem:[%s100 + $0x8] sm:$0xff]
    %s103 = scalar_lea.vmem %s1, 8
    %v104 = vld [vmem:[%s103] sm:$0xff]
    %v106 = vsel %vm15, %v101, 0
    %v109 = vsel %vm15, %v102, 0
    %111 = vmatprep.subr.mxu0 0.0
    %112 = vmatpush1.msra.mxu0 0.0
    %113 = vmatprep.subr.mxu0 0.0
    %114 = vmatpush1.msra.mxu0 0.0
    %115 = vmatprep.subr.mxu0 0.0
    %116 = vmatpush1.msra.mxu0 0.0
    %117 = vmatprep.subr.mxu0 0.0
    %118 = vmatpush1.msra.mxu0 0.0
    %119 = vmatprep.subr.mxu0 0.0
    %120 = vmatpush1.msra.mxu0 0.0
    %121 = vmatprep.subr.mxu0 0.0
    %122 = vmatpush1.msra.mxu0 0.0
    %123 = vmatprep.subr.mxu0 0.0
    %124 = vmatpush1.msra.mxu0 0.0
    %125 = vmatprep.subr.mxu0 0.0
    %126 = vmatpush1.msra.mxu0 0.0
    %127 = vmatprep.subr.mxu0 0.0
    %128 = vmatpush1.msra.mxu0 0.0
    %129 = vmatprep.subr.mxu0 0.0
    %130 = vmatpush1.msra.mxu0 0.0
    %131 = vmatprep.subr.mxu0 0.0
    %132 = vmatpush1.msra.mxu0 0.0
    %133 = vmatprep.subr.mxu0 0.0
    %134 = vmatpush1.msra.mxu0 0.0
    %135 = vmatprep.subr.mxu0 0.0
    %136 = vmatpush1.msra.mxu0 0.0
    %137 = vmatprep.subr.mxu0 0.0
    %138 = vmatpush1.msra.mxu0 0.0
    %139 = vmatprep.subr.mxu0 0.0
    %140 = vmatpush1.msra.mxu0 0.0
    %141 = vmatprep.subr.mxu0 0.0
    %142 = vmatpush1.msra.mxu0 %v104
    %143 = vmatprep.subr.mxu0 0.0
    %144 = vmatpush2.msra.mxu0 0.0
    %145 = vmatprep.subr.mxu0 0.0
    %146 = vmatpush2.msra.mxu0 0.0
    %147 = vmatprep.subr.mxu0 0.0
    %148 = vmatpush2.msra.mxu0 0.0
    %149 = vmatprep.subr.mxu0 0.0
    %150 = vmatpush2.msra.mxu0 0.0
    %151 = vmatprep.subr.mxu0 0.0
    %152 = vmatpush2.msra.mxu0 0.0
    %153 = vmatprep.subr.mxu0 0.0
    %154 = vmatpush2.msra.mxu0 0.0
    %155 = vmatprep.subr.mxu0 0.0
    %156 = vmatpush2.msra.mxu0 0.0
    %157 = vmatprep.subr.mxu0 0.0
    %158 = vmatpush2.msra.mxu0 0.0
    %159 = vmatprep.subr.mxu0 0.0
    %160 = vmatpush2.msra.mxu0 0.0
    %161 = vmatprep.subr.mxu0 0.0
    %162 = vmatpush2.msra.mxu0 0.0
    %163 = vmatprep.subr.mxu0 0.0
    %164 = vmatpush2.msra.mxu0 0.0
    %165 = vmatprep.subr.mxu0 0.0
    %166 = vmatpush2.msra.mxu0 0.0
    %167 = vmatprep.subr.mxu0 0.0
    %168 = vmatpush2.msra.mxu0 0.0
    %169 = vmatprep.subr.mxu0 0.0
    %170 = vmatpush2.msra.mxu0 0.0
    %171 = vmatprep.subr.mxu0 0.0
    %172 = vmatpush2.msra.mxu0 0.0
    %173 = vmatprep.subr.mxu0 0.0
    %174 = vmatpush2.msra.mxu0 0.0
    %175 = vmatprep.mubr.f32.mxu0 0.0
    %176 = vmatmul.mubr.f32.gmra.mxu0 %v106
    %v177 = vpop.f32.mrf.mxu0
    %v178 = vadd.f32 0.0, %v177
    %v179 = vpop.f32.mrf.mxu0
    %180 = vmatprep.mubr.f32.mxu0 0.0
    %181 = vmatmul.mubr.f32.gmra.mxu0 %v109
    %v182 = vpop.f32.mrf.mxu0
    %v183 = vadd.f32 0.0, %v182
    %v184 = vpop.f32.mrf.mxu0
    %185 = vdwg.mxu0
    %s186 = scalar_lea.vmem [#allocation2], 16
    %187 = vst.msk [vmem:[%s186] sm:$0xff] %vm97, %v178
    %188 = vst.msk [vmem:[%s186 + $0x8] sm:$0xff] %vm97, %v183
    // Predicated region
    $region10: #{vits_generator_forward.85} parent=1 // pred_check
      _
    $region11: #{vits_generator_forward.85} parent=1 // pred_check_branch
      %190 = sbr.rel (0) target = $region13
    $region12: #{vits_generator_forward.85} parent=1 // pred_region
      %s192 = ssub.s32 512, 512
      %193 = vsyncadd [#allocation3], %s192
      %s194 = sshll.u32 [#allocation2], 4
      %s195 = int_to_ptr.vmem [resolvable:$true] %s194
      %200 = dma.vmem_to_hbm [thread:$0]  %s195, 512, %s2, [#allocation3], 128, 128, 8
    $region13: #{vits_generator_forward.85} parent=1 // pred_fallthru
      _
    // Predicated region
    $region14: #{vits_generator_forward.85} parent=1 // pred_check
      _
    $region15: #{vits_generator_forward.85} parent=1 // pred_check_branch
      %202 = sbr.rel (0) target = $region17
    $region16: #{vits_generator_forward.85} parent=1 // pred_region
      %203 = dma.done [#allocation3], 512
    $region17: #{vits_generator_forward.85} parent=1 // pred_fallthru
      _
    %204 = vsyncpa [#allocation3], 1

// kernel: vits_generator_forward.80
$region0: #{vits_generator_forward.80}
  #allocation0 [shape = 'u32[]', space=smem, size = 0x4, offset = 0x4, fixed_abs, tag = 'smem constant byte address 0x4 - core index']
  #allocation1 [shape = 'u32[144,128]{1,0:T(1,128)}', space=vmem, size = 0x12000, scoped, tag = 'internal scratch']
  %s0 = inlined_call_operand.vmem [shape: f32[32,32], index: 0, kind: input, shape index: {}]
  %s1 = inlined_call_operand.vmem [shape: f32[32,16], index: 1, kind: input, shape index: {}]
  %s2 = inlined_call_operand.vmem [shape: f32[32,1], index: 2, kind: input, shape index: {}]
  %s3 = inlined_call_operand.vmem [shape: f32[1,16], index: 3, kind: input, shape index: {}]
  %s4 = inlined_call_operand.vmem [shape: f32[32,16], index: 4, kind: output, shape index: {}]
  %s5 = sld [smem:[#allocation0]]
  $region26: #{vits_generator_forward.80} parent=0
    _
  %s7 = ssub.s32 1, %s5
  %s8 = scalar_select 0, %s7, %s5
  // Predicated region
  $region2: #{vits_generator_forward.80} parent=0 // pred_check
    _
  $region3: #{vits_generator_forward.80} parent=0 // pred_check_branch
    %10 = sbr.rel (0) target = $region5
  $region4: #{vits_generator_forward.80} parent=0 // pred_region
    _
  $region5: #{vits_generator_forward.80} parent=0 // pred_fallthru
    _
  // Predicated region
  $region6: #{vits_generator_forward.80} parent=0 // pred_check
    _
  $region7: #{vits_generator_forward.80} parent=0 // pred_check_branch
    %12 = sbr.rel (0) target = $region9
  $region8: #{vits_generator_forward.80} parent=0 // pred_region
    _
  $region9: #{vits_generator_forward.80} parent=0 // pred_fallthru
    _
  // Predicated region
  $region10: #{vits_generator_forward.80} parent=0 // pred_check
    _
  $region11: #{vits_generator_forward.80} parent=0 // pred_check_branch
    %14 = sbr.rel (0) target = $region13
  $region12: #{vits_generator_forward.80} parent=0 // pred_region
    _
  $region13: #{vits_generator_forward.80} parent=0 // pred_fallthru
    _
  // Predicated region
  $region14: #{vits_generator_forward.80} parent=0 // pred_check
    _
  $region15: #{vits_generator_forward.80} parent=0 // pred_check_branch
    %16 = sbr.rel (0) target = $region17
  $region16: #{vits_generator_forward.80} parent=0 // pred_region
    _
  $region17: #{vits_generator_forward.80} parent=0 // pred_fallthru
    _
  %v17 = vld [vmem:[%s1] sm:$0xff]
  %v18 = vld [vmem:[%s1 + $0x8] sm:$0xff]
  %v19 = vld [vmem:[%s1 + $0x10] sm:$0xff]
  %v20 = vld [vmem:[%s1 + $0x18] sm:$0xff]
  %v21 = vld [vmem:[%s0] sm:$0xff]
  %v22 = vld [vmem:[%s0 + $0x8] sm:$0xff]
  %v23 = vld [vmem:[%s0 + $0x10] sm:$0xff]
  %v24 = vld [vmem:[%s0 + $0x18] sm:$0xff]
  %v25 = vld [vmem:[%s2] sm:$0xff]
  %v26 = vld [vmem:[%s2 + $0x8] sm:$0xff]
  %v27 = vld [vmem:[%s2 + $0x10] sm:$0xff]
  %v28 = vld [vmem:[%s2 + $0x18] sm:$0xff]
  %30 = vset.pattern.permute.xlu0 0
  %31 = vperm.xlu0 %30, %v25
  %v32 = vpop.permute.xlu0 %31
  %35 = vset.pattern.permute.xlu0 0
  %36 = vperm.xlu0 %35, %v26
  %v37 = vpop.permute.xlu0 %36
  %40 = vset.pattern.permute.xlu0 0
  %41 = vperm.xlu0 %40, %v27
  %v42 = vpop.permute.xlu0 %41
  %45 = vset.pattern.permute.xlu0 0
  %46 = vperm.xlu0 %45, %v28
  %v47 = vpop.permute.xlu0 %46
  %vm49 = vcmask 261120
  %v51 = vsel %vm49, %v21, 0
  %v54 = vsel %vm49, %v22, 0
  %v57 = vsel %vm49, %v23, 0
  %v60 = vsel %vm49, %v24, 0
  %62 = vmatprep.subr.mxu0 0.0
  %63 = vmatpush1.msra.mxu0 0.0
  %64 = vmatprep.subr.mxu0 0.0
  %65 = vmatpush1.msra.mxu0 0.0
  %66 = vmatprep.subr.mxu0 0.0
  %67 = vmatpush1.msra.mxu0 0.0
  %68 = vmatprep.subr.mxu0 0.0
  %69 = vmatpush1.msra.mxu0 0.0
  %70 = vmatprep.subr.mxu0 0.0
  %71 = vmatpush1.msra.mxu0 0.0
  %72 = vmatprep.subr.mxu0 0.0
  %73 = vmatpush1.msra.mxu0 0.0
  %74 = vmatprep.subr.mxu0 0.0
  %75 = vmatpush1.msra.mxu0 0.0
  %76 = vmatprep.subr.mxu0 0.0
  %77 = vmatpush1.msra.mxu0 0.0
  %78 = vmatprep.subr.mxu0 0.0
  %79 = vmatpush1.msra.mxu0 0.0
  %80 = vmatprep.subr.mxu0 0.0
  %81 = vmatpush1.msra.mxu0 0.0
  %82 = vmatprep.subr.mxu0 0.0
  %83 = vmatpush1.msra.mxu0 0.0
  %84 = vmatprep.subr.mxu0 0.0
  %85 = vmatpush1.msra.mxu0 0.0
  %86 = vmatprep.subr.mxu0 0.0
  %87 = vmatpush1.msra.mxu0 %v20
  %88 = vmatprep.subr.mxu0 0.0
  %89 = vmatpush1.msra.mxu0 %v19
  %90 = vmatprep.subr.mxu0 0.0
  %91 = vmatpush1.msra.mxu0 %v18
  %92 = vmatprep.subr.mxu0 0.0
  %93 = vmatpush1.msra.mxu0 %v17
  %94 = vmatprep.subr.mxu0 0.0
  %95 = vmatpush2.msra.mxu0 0.0
  %96 = vmatprep.subr.mxu0 0.0
  %97 = vmatpush2.msra.mxu0 0.0
  %98 = vmatprep.subr.mxu0 0.0
  %99 = vmatpush2.msra.mxu0 0.0
  %100 = vmatprep.subr.mxu0 0.0
  %101 = vmatpush2.msra.mxu0 0.0
  %102 = vmatprep.subr.mxu0 0.0
  %103 = vmatpush2.msra.mxu0 0.0
  %104 = vmatprep.subr.mxu0 0.0
  %105 = vmatpush2.msra.mxu0 0.0
  %106 = vmatprep.subr.mxu0 0.0
  %107 = vmatpush2.msra.mxu0 0.0
  %108 = vmatprep.subr.mxu0 0.0
  %109 = vmatpush2.msra.mxu0 0.0
  %110 = vmatprep.subr.mxu0 0.0
  %111 = vmatpush2.msra.mxu0 0.0
  %112 = vmatprep.subr.mxu0 0.0
  %113 = vmatpush2.msra.mxu0 0.0
  %114 = vmatprep.subr.mxu0 0.0
  %115 = vmatpush2.msra.mxu0 0.0
  %116 = vmatprep.subr.mxu0 0.0
  %117 = vmatpush2.msra.mxu0 0.0
  %118 = vmatprep.subr.mxu0 0.0
  %119 = vmatpush2.msra.mxu0 0.0
  %120 = vmatprep.subr.mxu0 0.0
  %121 = vmatpush2.msra.mxu0 0.0
  %122 = vmatprep.subr.mxu0 0.0
  %123 = vmatpush2.msra.mxu0 0.0
  %124 = vmatprep.subr.mxu0 0.0
  %125 = vmatpush2.msra.mxu0 0.0
  %126 = vmatprep.mubr.f32.mxu0 0.0
  %127 = vmatmul.mubr.f32.gmra.mxu0 %v51
  %v128 = vpop.f32.mrf.mxu0
  %v129 = vadd.f32 %v32, %v128
  %v130 = vpop.f32.mrf.mxu0
  %131 = vmatprep.mubr.f32.mxu0 0.0
  %132 = vmatmul.mubr.f32.gmra.mxu0 %v54
  %v133 = vpop.f32.mrf.mxu0
  %v134 = vadd.f32 %v37, %v133
  %v135 = vpop.f32.mrf.mxu0
  %136 = vmatprep.mubr.f32.mxu0 0.0
  %137 = vmatmul.mubr.f32.gmra.mxu0 %v57
  %v138 = vpop.f32.mrf.mxu0
  %v139 = vadd.f32 %v42, %v138
  %v140 = vpop.f32.mrf.mxu0
  %141 = vmatprep.mubr.f32.mxu0 0.0
  %142 = vmatmul.mubr.f32.gmra.mxu0 %v60
  %v143 = vpop.f32.mrf.mxu0
  %v144 = vadd.f32 %v47, %v143
  %v145 = vpop.f32.mrf.mxu0
  %146 = vdwg.mxu0
  %v147 = vld [vmem:[%s3] sm:$0x1]
  %v149 = vlaneseq
  %v150 = vshrl.u32 %v149, 7
  %v151 = vsub.s32 0, %v150
  %v152 = vrot.slane %v147, %v151
  %v154 = vmul.f32 %v129, %v152
  %v155 = vmul.f32 %v134, %v152
  %v156 = vmul.f32 %v139, %v152
  %v157 = vmul.f32 %v144, %v152
  %vm158 = vcmask 130048
  %159 = vst.msk [vmem:[%s4] sm:$0xff] %vm158, %v154
  %160 = vst.msk [vmem:[%s4 + $0x8] sm:$0xff] %vm158, %v155
  %161 = vst.msk [vmem:[%s4 + $0x10] sm:$0xff] %vm158, %v156
  %162 = vst.msk [vmem:[%s4 + $0x18] sm:$0xff] %vm158, %v157
  // Predicated region
  $region18: #{vits_generator_forward.80} parent=0 // pred_check
    _
  $region19: #{vits_generator_forward.80} parent=0 // pred_check_branch
    %164 = sbr.rel (0) target = $region21
  $region20: #{vits_generator_forward.80} parent=0 // pred_region
    _
  $region21: #{vits_generator_forward.80} parent=0 // pred_fallthru
    _
  // Predicated region
  $region22: #{vits_generator_forward.80} parent=0 // pred_check
    _
  $region23: #{vits_generator_forward.80} parent=0 // pred_check_branch
    %166 = sbr.rel (0) target = $region25
  $region24: #{vits_generator_forward.80} parent=0 // pred_region
    _
  $region25: #{vits_generator_forward.80} parent=0 // pred_fallthru
    _

// kernel: vits_generator_forward.83
$region0: #{vits_generator_forward.83}
  #allocation0 [shape = 'u32[]', space=smem, size = 0x4, offset = 0x4, fixed_abs, tag = 'smem constant byte address 0x4 - core index']
  #allocation1 [shape = 'u32[144,128]{1,0:T(1,128)}', space=vmem, size = 0x12000, scoped, tag = 'internal scratch']
  %s0 = inlined_call_operand.vmem [shape: f32[2,32], index: 0, kind: input, shape index: {}]
  %s1 = inlined_call_operand.vmem [shape: f32[32,16], index: 1, kind: input, shape index: {}]
  %s2 = inlined_call_operand.vmem [shape: f32[2,1], index: 2, kind: input, shape index: {}]
  %s3 = inlined_call_operand.vmem [shape: f32[1,16], index: 3, kind: input, shape index: {}]
  %s4 = inlined_call_operand.vmem [shape: f32[2,16], index: 4, kind: output, shape index: {}]
  %s5 = sld [smem:[#allocation0]]
  $region26: #{vits_generator_forward.83} parent=0
    _
  %s7 = ssub.s32 1, %s5
  %s8 = scalar_select 0, %s7, %s5
  // Predicated region
  $region2: #{vits_generator_forward.83} parent=0 // pred_check
    _
  $region3: #{vits_generator_forward.83} parent=0 // pred_check_branch
    %10 = sbr.rel (0) target = $region5
  $region4: #{vits_generator_forward.83} parent=0 // pred_region
    _
  $region5: #{vits_generator_forward.83} parent=0 // pred_fallthru
    _
  // Predicated region
  $region6: #{vits_generator_forward.83} parent=0 // pred_check
    _
  $region7: #{vits_generator_forward.83} parent=0 // pred_check_branch
    %12 = sbr.rel (0) target = $region9
  $region8: #{vits_generator_forward.83} parent=0 // pred_region
    _
  $region9: #{vits_generator_forward.83} parent=0 // pred_fallthru
    _
  // Predicated region
  $region10: #{vits_generator_forward.83} parent=0 // pred_check
    _
  $region11: #{vits_generator_forward.83} parent=0 // pred_check_branch
    %14 = sbr.rel (0) target = $region13
  $region12: #{vits_generator_forward.83} parent=0 // pred_region
    _
  $region13: #{vits_generator_forward.83} parent=0 // pred_fallthru
    _
  // Predicated region
  $region14: #{vits_generator_forward.83} parent=0 // pred_check
    _
  $region15: #{vits_generator_forward.83} parent=0 // pred_check_branch
    %16 = sbr.rel (0) target = $region17
  $region16: #{vits_generator_forward.83} parent=0 // pred_region
    _
  $region17: #{vits_generator_forward.83} parent=0 // pred_fallthru
    _
  %v17 = vld [vmem:[%s1] sm:$0xff]
  %v18 = vld [vmem:[%s1 + $0x8] sm:$0xff]
  %v19 = vld [vmem:[%s1 + $0x10] sm:$0xff]
  %v20 = vld [vmem:[%s1 + $0x18] sm:$0xff]
  %v21 = vld [vmem:[%s0] sm:$0x3]
  %v22 = vld [vmem:[%s2] sm:$0x3]
  %24 = vset.pattern.permute.xlu0 0
  %25 = vperm.xlu0 %24, %v22
  %v26 = vpop.permute.xlu0 %25
  %vm28 = vcmask 261120
  %v30 = vsel %vm28, %v21, 0
  %32 = vmatprep.subr.mxu0 0.0
  %33 = vmatpush1.msra.mxu0 0.0
  %34 = vmatprep.subr.mxu0 0.0
  %35 = vmatpush1.msra.mxu0 0.0
  %36 = vmatprep.subr.mxu0 0.0
  %37 = vmatpush1.msra.mxu0 0.0
  %38 = vmatprep.subr.mxu0 0.0
  %39 = vmatpush1.msra.mxu0 0.0
  %40 = vmatprep.subr.mxu0 0.0
  %41 = vmatpush1.msra.mxu0 0.0
  %42 = vmatprep.subr.mxu0 0.0
  %43 = vmatpush1.msra.mxu0 0.0
  %44 = vmatprep.subr.mxu0 0.0
  %45 = vmatpush1.msra.mxu0 0.0
  %46 = vmatprep.subr.mxu0 0.0
  %47 = vmatpush1.msra.mxu0 0.0
  %48 = vmatprep.subr.mxu0 0.0
  %49 = vmatpush1.msra.mxu0 0.0
  %50 = vmatprep.subr.mxu0 0.0
  %51 = vmatpush1.msra.mxu0 0.0
  %52 = vmatprep.subr.mxu0 0.0
  %53 = vmatpush1.msra.mxu0 0.0
  %54 = vmatprep.subr.mxu0 0.0
  %55 = vmatpush1.msra.mxu0 0.0
  %56 = vmatprep.subr.mxu0 0.0
  %57 = vmatpush1.msra.mxu0 %v20
  %58 = vmatprep.subr.mxu0 0.0
  %59 = vmatpush1.msra.mxu0 %v19
  %60 = vmatprep.subr.mxu0 0.0
  %61 = vmatpush1.msra.mxu0 %v18
  %62 = vmatprep.subr.mxu0 0.0
  %63 = vmatpush1.msra.mxu0 %v17
  %64 = vmatprep.subr.mxu0 0.0
  %65 = vmatpush2.msra.mxu0 0.0
  %66 = vmatprep.subr.mxu0 0.0
  %67 = vmatpush2.msra.mxu0 0.0
  %68 = vmatprep.subr.mxu0 0.0
  %69 = vmatpush2.msra.mxu0 0.0
  %70 = vmatprep.subr.mxu0 0.0
  %71 = vmatpush2.msra.mxu0 0.0
  %72 = vmatprep.subr.mxu0 0.0
  %73 = vmatpush2.msra.mxu0 0.0
  %74 = vmatprep.subr.mxu0 0.0
  %75 = vmatpush2.msra.mxu0 0.0
  %76 = vmatprep.subr.mxu0 0.0
  %77 = vmatpush2.msra.mxu0 0.0
  %78 = vmatprep.subr.mxu0 0.0
  %79 = vmatpush2.msra.mxu0 0.0
  %80 = vmatprep.subr.mxu0 0.0
  %81 = vmatpush2.msra.mxu0 0.0
  %82 = vmatprep.subr.mxu0 0.0
  %83 = vmatpush2.msra.mxu0 0.0
  %84 = vmatprep.subr.mxu0 0.0
  %85 = vmatpush2.msra.mxu0 0.0
  %86 = vmatprep.subr.mxu0 0.0
  %87 = vmatpush2.msra.mxu0 0.0
  %88 = vmatprep.subr.mxu0 0.0
  %89 = vmatpush2.msra.mxu0 0.0
  %90 = vmatprep.subr.mxu0 0.0
  %91 = vmatpush2.msra.mxu0 0.0
  %92 = vmatprep.subr.mxu0 0.0
  %93 = vmatpush2.msra.mxu0 0.0
  %94 = vmatprep.subr.mxu0 0.0
  %95 = vmatpush2.msra.mxu0 0.0
  %96 = vmatprep.mubr.f32.mxu0 0.0
  %97 = vmatmul.mubr.f32.gmra.mxu0 %v30
  %v98 = vpop.f32.mrf.mxu0
  %v99 = vadd.f32 %v26, %v98
  %v100 = vpop.f32.mrf.mxu0
  %101 = vdwg.mxu0
  %v102 = vld [vmem:[%s3] sm:$0x1]
  %v104 = vlaneseq
  %v105 = vshrl.u32 %v104, 7
  %v106 = vsub.s32 0, %v105
  %v107 = vrot.slane %v102, %v106
  %v109 = vmul.f32 %v99, %v107
  %vm110 = vcmask 123904
  %111 = vst.msk [vmem:[%s4] sm:$0x3] %vm110, %v109
  // Predicated region
  $region18: #{vits_generator_forward.83} parent=0 // pred_check
    _
  $region19: #{vits_generator_forward.83} parent=0 // pred_check_branch
    %113 = sbr.rel (0) target = $region21
  $region20: #{vits_generator_forward.83} parent=0 // pred_region
    _
  $region21: #{vits_generator_forward.83} parent=0 // pred_fallthru
    _
  // Predicated region
  $region22: #{vits_generator_forward.83} parent=0 // pred_check
    _
  $region23: #{vits_generator_forward.83} parent=0 // pred_check_branch
    %115 = sbr.rel (0) target = $region25
  $region24: #{vits_generator_forward.83} parent=0 // pred_region
    _
  $region25: #{vits_generator_forward.83} parent=0 // pred_fallthru
    _

// kernel: vits_generator_forward.81
$region0: #{vits_generator_forward.81}
  #allocation0 [shape = 'u32[]', space=smem, size = 0x4, offset = 0x4, fixed_abs, tag = 'smem constant byte address 0x4 - core index']
  #allocation1 [shape = 'u32[144,128]{1,0:T(1,128)}', space=vmem, size = 0x12000, scoped, tag = 'internal scratch']
  %s0 = inlined_call_operand.vmem [shape: f32[32,96], index: 0, kind: input, shape index: {}]
  %s1 = inlined_call_operand.vmem [shape: f32[96,16], index: 1, kind: input, shape index: {}]
  %s2 = inlined_call_operand.vmem [shape: f32[32,1], index: 2, kind: input, shape index: {}]
  %s3 = inlined_call_operand.vmem [shape: f32[1,16], index: 3, kind: input, shape index: {}]
  %s4 = inlined_call_operand.vmem [shape: f32[32,16], index: 4, kind: output, shape index: {}]
  %s5 = sld [smem:[#allocation0]]
  $region26: #{vits_generator_forward.81} parent=0
    _
  %s7 = ssub.s32 1, %s5
  %s8 = scalar_select 0, %s7, %s5
  // Predicated region
  $region2: #{vits_generator_forward.81} parent=0 // pred_check
    _
  $region3: #{vits_generator_forward.81} parent=0 // pred_check_branch
    %10 = sbr.rel (0) target = $region5
  $region4: #{vits_generator_forward.81} parent=0 // pred_region
    _
  $region5: #{vits_generator_forward.81} parent=0 // pred_fallthru
    _
  // Predicated region
  $region6: #{vits_generator_forward.81} parent=0 // pred_check
    _
  $region7: #{vits_generator_forward.81} parent=0 // pred_check_branch
    %12 = sbr.rel (0) target = $region9
  $region8: #{vits_generator_forward.81} parent=0 // pred_region
    _
  $region9: #{vits_generator_forward.81} parent=0 // pred_fallthru
    _
  // Predicated region
  $region10: #{vits_generator_forward.81} parent=0 // pred_check
    _
  $region11: #{vits_generator_forward.81} parent=0 // pred_check_branch
    %14 = sbr.rel (0) target = $region13
  $region12: #{vits_generator_forward.81} parent=0 // pred_region
    _
  $region13: #{vits_generator_forward.81} parent=0 // pred_fallthru
    _
  // Predicated region
  $region14: #{vits_generator_forward.81} parent=0 // pred_check
    _
  $region15: #{vits_generator_forward.81} parent=0 // pred_check_branch
    %16 = sbr.rel (0) target = $region17
  $region16: #{vits_generator_forward.81} parent=0 // pred_region
    _
  $region17: #{vits_generator_forward.81} parent=0 // pred_fallthru
    _
  %v17 = vld [vmem:[%s1] sm:$0xff]
  %v18 = vld [vmem:[%s1 + $0x8] sm:$0xff]
  %v19 = vld [vmem:[%s1 + $0x10] sm:$0xff]
  %v20 = vld [vmem:[%s1 + $0x18] sm:$0xff]
  %v21 = vld [vmem:[%s1 + $0x20] sm:$0xff]
  %v22 = vld [vmem:[%s1 + $0x28] sm:$0xff]
  %v23 = vld [vmem:[%s1 + $0x30] sm:$0xff]
  %v24 = vld [vmem:[%s1 + $0x38] sm:$0xff]
  %v25 = vld [vmem:[%s1 + $0x40] sm:$0xff]
  %v26 = vld [vmem:[%s1 + $0x48] sm:$0xff]
  %v27 = vld [vmem:[%s1 + $0x50] sm:$0xff]
  %v28 = vld [vmem:[%s1 + $0x58] sm:$0xff]
  %v29 = vld [vmem:[%s0] sm:$0xff]
  %v30 = vld [vmem:[%s0 + $0x8] sm:$0xff]
  %v31 = vld [vmem:[%s0 + $0x10] sm:$0xff]
  %v32 = vld [vmem:[%s0 + $0x18] sm:$0xff]
  %v33 = vld [vmem:[%s2] sm:$0xff]
  %v34 = vld [vmem:[%s2 + $0x8] sm:$0xff]
  %v35 = vld [vmem:[%s2 + $0x10] sm:$0xff]
  %v36 = vld [vmem:[%s2 + $0x18] sm:$0xff]
  %38 = vset.pattern.permute.xlu0 0
  %39 = vperm.xlu0 %38, %v33
  %v40 = vpop.permute.xlu0 %39
  %43 = vset.pattern.permute.xlu0 0
  %44 = vperm.xlu0 %43, %v34
  %v45 = vpop.permute.xlu0 %44
  %48 = vset.pattern.permute.xlu0 0
  %49 = vperm.xlu0 %48, %v35
  %v50 = vpop.permute.xlu0 %49
  %53 = vset.pattern.permute.xlu0 0
  %54 = vperm.xlu0 %53, %v36
  %v55 = vpop.permute.xlu0 %54
  %vm57 = vcmask 785408
  %v59 = vsel %vm57, %v29, 0
  %v62 = vsel %vm57, %v30, 0
  %v65 = vsel %vm57, %v31, 0
  %v68 = vsel %vm57, %v32, 0
  %70 = vmatprep.subr.mxu0 0.0
  %71 = vmatpush1.msra.mxu0 0.0
  %72 = vmatprep.subr.mxu0 0.0
  %73 = vmatpush1.msra.mxu0 0.0
  %74 = vmatprep.subr.mxu0 0.0
  %75 = vmatpush1.msra.mxu0 0.0
  %76 = vmatprep.subr.mxu0 0.0
  %77 = vmatpush1.msra.mxu0 0.0
  %78 = vmatprep.subr.mxu0 0.0
  %79 = vmatpush1.msra.mxu0 %v28
  %80 = vmatprep.subr.mxu0 0.0
  %81 = vmatpush1.msra.mxu0 %v27
  %82 = vmatprep.subr.mxu0 0.0
  %83 = vmatpush1.msra.mxu0 %v26
  %84 = vmatprep.subr.mxu0 0.0
  %85 = vmatpush1.msra.mxu0 %v25
  %86 = vmatprep.subr.mxu0 0.0
  %87 = vmatpush1.msra.mxu0 %v24
  %88 = vmatprep.subr.mxu0 0.0
  %89 = vmatpush1.msra.mxu0 %v23
  %90 = vmatprep.subr.mxu0 0.0
  %91 = vmatpush1.msra.mxu0 %v22
  %92 = vmatprep.subr.mxu0 0.0
  %93 = vmatpush1.msra.mxu0 %v21
  %94 = vmatprep.subr.mxu0 0.0
  %95 = vmatpush1.msra.mxu0 %v20
  %96 = vmatprep.subr.mxu0 0.0
  %97 = vmatpush1.msra.mxu0 %v19
  %98 = vmatprep.subr.mxu0 0.0
  %99 = vmatpush1.msra.mxu0 %v18
  %100 = vmatprep.subr.mxu0 0.0
  %101 = vmatpush1.msra.mxu0 %v17
  %102 = vmatprep.subr.mxu0 0.0
  %103 = vmatpush2.msra.mxu0 0.0
  %104 = vmatprep.subr.mxu0 0.0
  %105 = vmatpush2.msra.mxu0 0.0
  %106 = vmatprep.subr.mxu0 0.0
  %107 = vmatpush2.msra.mxu0 0.0
  %108 = vmatprep.subr.mxu0 0.0
  %109 = vmatpush2.msra.mxu0 0.0
  %110 = vmatprep.subr.mxu0 0.0
  %111 = vmatpush2.msra.mxu0 0.0
  %112 = vmatprep.subr.mxu0 0.0
  %113 = vmatpush2.msra.mxu0 0.0
  %114 = vmatprep.subr.mxu0 0.0
  %115 = vmatpush2.msra.mxu0 0.0
  %116 = vmatprep.subr.mxu0 0.0
  %117 = vmatpush2.msra.mxu0 0.0
  %118 = vmatprep.subr.mxu0 0.0
  %119 = vmatpush2.msra.mxu0 0.0
  %120 = vmatprep.subr.mxu0 0.0
  %121 = vmatpush2.msra.mxu0 0.0
  %122 = vmatprep.subr.mxu0 0.0
  %123 = vmatpush2.msra.mxu0 0.0
  %124 = vmatprep.subr.mxu0 0.0
  %125 = vmatpush2.msra.mxu0 0.0
  %126 = vmatprep.subr.mxu0 0.0
  %127 = vmatpush2.msra.mxu0 0.0
  %128 = vmatprep.subr.mxu0 0.0
  %129 = vmatpush2.msra.mxu0 0.0
  %130 = vmatprep.subr.mxu0 0.0
  %131 = vmatpush2.msra.mxu0 0.0
  %132 = vmatprep.subr.mxu0 0.0
  %133 = vmatpush2.msra.mxu0 0.0
  %134 = vmatprep.mubr.f32.mxu0 0.0
  %135 = vmatmul.mubr.f32.gmra.mxu0 %v59
  %v136 = vpop.f32.mrf.mxu0
  %v137 = vadd.f32 %v40, %v136
  %v138 = vpop.f32.mrf.mxu0
  %139 = vmatprep.mubr.f32.mxu0 0.0
  %140 = vmatmul.mubr.f32.gmra.mxu0 %v62
  %v141 = vpop.f32.mrf.mxu0
  %v142 = vadd.f32 %v45, %v141
  %v143 = vpop.f32.mrf.mxu0
  %144 = vmatprep.mubr.f32.mxu0 0.0
  %145 = vmatmul.mubr.f32.gmra.mxu0 %v65
  %v146 = vpop.f32.mrf.mxu0
  %v147 = vadd.f32 %v50, %v146
  %v148 = vpop.f32.mrf.mxu0
  %149 = vmatprep.mubr.f32.mxu0 0.0
  %150 = vmatmul.mubr.f32.gmra.mxu0 %v68
  %v151 = vpop.f32.mrf.mxu0
  %v152 = vadd.f32 %v55, %v151
  %v153 = vpop.f32.mrf.mxu0
  %154 = vdwg.mxu0
  %v155 = vmul.f32 %v137, %v137
  %v156 = vmul.f32 %v142, %v142
  %v157 = vmul.f32 %v147, %v147
  %v158 = vmul.f32 %v152, %v152
  %v159 = vmul.f32 %v137, %v155
  %v160 = vmul.f32 %v142, %v156
  %v161 = vmul.f32 %v147, %v157
  %v162 = vmul.f32 %v152, %v158
  %v163 = vmul.f32 %v159, 0.044715
  %v164 = vmul.f32 %v160, 0.044715
  %v165 = vmul.f32 %v161, 0.044715
  %v166 = vmul.f32 %v162, 0.044715
  %v167 = vadd.f32 %v137, %v163
  %v168 = vadd.f32 %v142, %v164
  %v169 = vadd.f32 %v147, %v165
  %v170 = vadd.f32 %v152, %v166
  %v171 = vmul.f32 %v167, 0.7978846
  %v172 = vmul.f32 %v168, 0.7978846
  %v173 = vmul.f32 %v169, 0.7978846
  %v174 = vmul.f32 %v170, 0.7978846
  %v175 = vtanh.pop %v171
  %v176 = vtanh.pop %v172
  %v177 = vtanh.pop %v173
  %v178 = vtanh.pop %v174
  %v179 = vadd.f32 %v175, 1.0
  %v180 = vadd.f32 %v176, 1.0
  %v181 = vadd.f32 %v177, 1.0
  %v182 = vadd.f32 %v178, 1.0
  %v183 = vmul.f32 %v179, 0.5
  %v184 = vmul.f32 %v180, 0.5
  %v185 = vmul.f32 %v181, 0.5
  %v186 = vmul.f32 %v182, 0.5
  %v187 = vmul.f32 %v137, %v183
  %v188 = vmul.f32 %v142, %v184
  %v189 = vmul.f32 %v147, %v185
  %v190 = vmul.f32 %v152, %v186
  %v191 = vld [vmem:[%s3] sm:$0x1]
  %v193 = vlaneseq
  %v194 = vshrl.u32 %v193, 7
  %v195 = vsub.s32 0, %v194
  %v196 = vrot.slane %v191, %v195
  %v198 = vmul.f32 %v187, %v196
  %v199 = vmul.f32 %v188, %v196
  %v200 = vmul.f32 %v189, %v196
  %v201 = vmul.f32 %v190, %v196
  %vm202 = vcmask 130048
  %203 = vst.msk [vmem:[%s4] sm:$0xff] %vm202, %v198
  %204 = vst.msk [vmem:[%s4 + $0x8] sm:$0xff] %vm202, %v199
  %205 = vst.msk [vmem:[%s4 + $0x10] sm:$0xff] %vm202, %v200
  %206 = vst.msk [vmem:[%s4 + $0x18] sm:$0xff] %vm202, %v201
  // Predicated region
  $region18: #{vits_generator_forward.81} parent=0 // pred_check
    _
  $region19: #{vits_generator_forward.81} parent=0 // pred_check_branch
    %208 = sbr.rel (0) target = $region21
  $region20: #{vits_generator_forward.81} parent=0 // pred_region
    _
  $region21: #{vits_generator_forward.81} parent=0 // pred_fallthru
    _
  // Predicated region
  $region22: #{vits_generator_forward.81} parent=0 // pred_check
    _
  $region23: #{vits_generator_forward.81} parent=0 // pred_check_branch
    %210 = sbr.rel (0) target = $region25
  $region24: #{vits_generator_forward.81} parent=0 // pred_region
    _
  $region25: #{vits_generator_forward.81} parent=0 // pred_fallthru
    _

// kernel: vits_generator_forward.47
$region0: #{vits_generator_forward.47}
  #allocation0 [shape = 'u32[]', space=smem, size = 0x4, offset = 0x4, fixed_abs, tag = 'smem constant byte address 0x4 - core index']
  #allocation1 [shape = 'u32[144,128]{1,0:T(1,128)}', space=vmem, size = 0x12000, scoped, tag = 'internal scratch']
  %s0 = inlined_call_operand.vmem [shape: f32[32,224], index: 0, kind: input, shape index: {}]
  %s1 = inlined_call_operand.vmem [shape: f32[224,8], index: 1, kind: input, shape index: {}]
  %s2 = inlined_call_operand.vmem [shape: f32[32,1], index: 2, kind: input, shape index: {}]
  %s3 = inlined_call_operand.vmem [shape: f32[32,8], index: 3, kind: output, shape index: {}]
  %s4 = sld [smem:[#allocation0]]
  $region22: #{vits_generator_forward.47} parent=0
    _
  %s6 = ssub.s32 1, %s4
  %s7 = scalar_select 0, %s6, %s4
  // Predicated region
  $region2: #{vits_generator_forward.47} parent=0 // pred_check
    _
  $region3: #{vits_generator_forward.47} parent=0 // pred_check_branch
    %9 = sbr.rel (0) target = $region5
  $region4: #{vits_generator_forward.47} parent=0 // pred_region
    _
  $region5: #{vits_generator_forward.47} parent=0 // pred_fallthru
    _
  // Predicated region
  $region6: #{vits_generator_forward.47} parent=0 // pred_check
    _
  $region7: #{vits_generator_forward.47} parent=0 // pred_check_branch
    %11 = sbr.rel (0) target = $region9
  $region8: #{vits_generator_forward.47} parent=0 // pred_region
    _
  $region9: #{vits_generator_forward.47} parent=0 // pred_fallthru
    _
  // Predicated region
  $region10: #{vits_generator_forward.47} parent=0 // pred_check
    _
  $region11: #{vits_generator_forward.47} parent=0 // pred_check_branch
    %13 = sbr.rel (0) target = $region13
  $region12: #{vits_generator_forward.47} parent=0 // pred_region
    _
  $region13: #{vits_generator_forward.47} parent=0 // pred_fallthru
    _
  %v14 = vld [vmem:[%s1] sm:$0xff]
  %v15 = vld [vmem:[%s1 + $0x8] sm:$0xff]
  %v16 = vld [vmem:[%s1 + $0x10] sm:$0xff]
  %v17 = vld [vmem:[%s1 + $0x18] sm:$0xff]
  %v18 = vld [vmem:[%s1 + $0x20] sm:$0xff]
  %v19 = vld [vmem:[%s1 + $0x28] sm:$0xff]
  %v20 = vld [vmem:[%s1 + $0x30] sm:$0xff]
  %v21 = vld [vmem:[%s1 + $0x38] sm:$0xff]
  %v22 = vld [vmem:[%s1 + $0x40] sm:$0xff]
  %v23 = vld [vmem:[%s1 + $0x48] sm:$0xff]
  %v24 = vld [vmem:[%s1 + $0x50] sm:$0xff]
  %v25 = vld [vmem:[%s1 + $0x58] sm:$0xff]
  %v26 = vld [vmem:[%s1 + $0x60] sm:$0xff]
  %v27 = vld [vmem:[%s1 + $0x68] sm:$0xff]
  %v28 = vld [vmem:[%s1 + $0x70] sm:$0xff]
  %v29 = vld [vmem:[%s1 + $0x78] sm:$0xff]
  %v30 = vld [vmem:[%s1 + $0x80] sm:$0xff]
  %v31 = vld [vmem:[%s1 + $0x88] sm:$0xff]
  %v32 = vld [vmem:[%s1 + $0x90] sm:$0xff]
  %v33 = vld [vmem:[%s1 + $0x98] sm:$0xff]
  %v34 = vld [vmem:[%s1 + $0xa0] sm:$0xff]
  %v35 = vld [vmem:[%s1 + $0xa8] sm:$0xff]
  %v36 = vld [vmem:[%s1 + $0xb0] sm:$0xff]
  %v37 = vld [vmem:[%s1 + $0xb8] sm:$0xff]
  %v38 = vld [vmem:[%s1 + $0xc0] sm:$0xff]
  %v39 = vld [vmem:[%s1 + $0xc8] sm:$0xff]
  %v40 = vld [vmem:[%s1 + $0xd0] sm:$0xff]
  %v41 = vld [vmem:[%s1 + $0xd8] sm:$0xff]
  %v42 = vld [vmem:[%s0] sm:$0xff]
  %v43 = vld [vmem:[%s0 + $0x8] sm:$0xff]
  %v44 = vld [vmem:[%s0 + $0x10] sm:$0xff]
  %v45 = vld [vmem:[%s0 + $0x18] sm:$0xff]
  %v46 = vld [vmem:[%s0 + $0x20] sm:$0xff]
  %v47 = vld [vmem:[%s0 + $0x28] sm:$0xff]
  %v48 = vld [vmem:[%s0 + $0x30] sm:$0xff]
  %v49 = vld [vmem:[%s0 + $0x38] sm:$0xff]
  %v50 = vld [vmem:[%s2] sm:$0xff]
  %v51 = vld [vmem:[%s2 + $0x8] sm:$0xff]
  %v52 = vld [vmem:[%s2 + $0x10] sm:$0xff]
  %v53 = vld [vmem:[%s2 + $0x18] sm:$0xff]
  %55 = vset.pattern.permute.xlu0 0
  %56 = vperm.xlu0 %55, %v50
  %v57 = vpop.permute.xlu0 %56
  %60 = vset.pattern.permute.xlu0 0
  %61 = vperm.xlu0 %60, %v51
  %v62 = vpop.permute.xlu0 %61
  %65 = vset.pattern.permute.xlu0 0
  %66 = vperm.xlu0 %65, %v52
  %v67 = vpop.permute.xlu0 %66
  %70 = vset.pattern.permute.xlu0 0
  %71 = vperm.xlu0 %70, %v53
  %v72 = vpop.permute.xlu0 %71
  %vm74 = vcmask 785408
  %v76 = vsel %vm74, %v43, 0
  %v79 = vsel %vm74, %v45, 0
  %v82 = vsel %vm74, %v47, 0
  %v85 = vsel %vm74, %v49, 0
  %87 = vmatprep.subr.mxu0 0.0
  %88 = vmatpush1.msra.mxu0 %v29
  %89 = vmatprep.subr.mxu0 0.0
  %90 = vmatpush1.msra.mxu0 %v28
  %91 = vmatprep.subr.mxu0 0.0
  %92 = vmatpush1.msra.mxu0 %v27
  %93 = vmatprep.subr.mxu0 0.0
  %94 = vmatpush1.msra.mxu0 %v26
  %95 = vmatprep.subr.mxu0 0.0
  %96 = vmatpush1.msra.mxu0 %v25
  %97 = vmatprep.subr.mxu0 0.0
  %98 = vmatpush1.msra.mxu0 %v24
  %99 = vmatprep.subr.mxu0 0.0
  %100 = vmatpush1.msra.mxu0 %v23
  %101 = vmatprep.subr.mxu0 0.0
  %102 = vmatpush1.msra.mxu0 %v22
  %103 = vmatprep.subr.mxu0 0.0
  %104 = vmatpush1.msra.mxu0 %v21
  %105 = vmatprep.subr.mxu0 0.0
  %106 = vmatpush1.msra.mxu0 %v20
  %107 = vmatprep.subr.mxu0 0.0
  %108 = vmatpush1.msra.mxu0 %v19
  %109 = vmatprep.subr.mxu0 0.0
  %110 = vmatpush1.msra.mxu0 %v18
  %111 = vmatprep.subr.mxu0 0.0
  %112 = vmatpush1.msra.mxu0 %v17
  %113 = vmatprep.subr.mxu0 0.0
  %114 = vmatpush1.msra.mxu0 %v16
  %115 = vmatprep.subr.mxu0 0.0
  %116 = vmatpush1.msra.mxu0 %v15
  %117 = vmatprep.subr.mxu0 0.0
  %118 = vmatpush1.msra.mxu0 %v14
  %119 = vmatprep.subr.mxu0 0.0
  %120 = vmatpush2.msra.mxu0 0.0
  %121 = vmatprep.subr.mxu0 0.0
  %122 = vmatpush2.msra.mxu0 0.0
  %123 = vmatprep.subr.mxu0 0.0
  %124 = vmatpush2.msra.mxu0 0.0
  %125 = vmatprep.subr.mxu0 0.0
  %126 = vmatpush2.msra.mxu0 0.0
  %127 = vmatprep.subr.mxu0 0.0
  %128 = vmatpush2.msra.mxu0 %v41
  %129 = vmatprep.subr.mxu0 0.0
  %130 = vmatpush2.msra.mxu0 %v40
  %131 = vmatprep.subr.mxu0 0.0
  %132 = vmatpush2.msra.mxu0 %v39
  %133 = vmatprep.subr.mxu0 0.0
  %134 = vmatpush2.msra.mxu0 %v38
  %135 = vmatprep.subr.mxu0 0.0
  %136 = vmatpush2.msra.mxu0 %v37
  %137 = vmatprep.subr.mxu0 0.0
  %138 = vmatpush2.msra.mxu0 %v36
  %139 = vmatprep.subr.mxu0 0.0
  %140 = vmatpush2.msra.mxu0 %v35
  %141 = vmatprep.subr.mxu0 0.0
  %142 = vmatpush2.msra.mxu0 %v34
  %143 = vmatprep.subr.mxu0 0.0
  %144 = vmatpush2.msra.mxu0 %v33
  %145 = vmatprep.subr.mxu0 0.0
  %146 = vmatpush2.msra.mxu0 %v32
  %147 = vmatprep.subr.mxu0 0.0
  %148 = vmatpush2.msra.mxu0 %v31
  %149 = vmatprep.subr.mxu0 0.0
  %150 = vmatpush2.msra.mxu0 %v30
  %151 = vmatprep.mubr.f32.mxu0 %v76
  %152 = vmatmul.mubr.f32.gmra.mxu0 %v42
  %v153 = vpop.f32.mrf.mxu0
  %v154 = vadd.f32 %v57, %v153
  %v155 = vpop.f32.mrf.mxu0
  %156 = vmatprep.mubr.f32.mxu0 %v79
  %157 = vmatmul.mubr.f32.gmra.mxu0 %v44
  %v158 = vpop.f32.mrf.mxu0
  %v159 = vadd.f32 %v62, %v158
  %v160 = vpop.f32.mrf.mxu0
  %161 = vmatprep.mubr.f32.mxu0 %v82
  %162 = vmatmul.mubr.f32.gmra.mxu0 %v46
  %v163 = vpop.f32.mrf.mxu0
  %v164 = vadd.f32 %v67, %v163
  %v165 = vpop.f32.mrf.mxu0
  %166 = vmatprep.mubr.f32.mxu0 %v85
  %167 = vmatmul.mubr.f32.gmra.mxu0 %v48
  %v168 = vpop.f32.mrf.mxu0
  %v169 = vadd.f32 %v72, %v168
  %v170 = vpop.f32.mrf.mxu0
  %171 = vdwg.mxu0
  %vm172 = vcmask 64512
  %173 = vst.msk [vmem:[%s3] sm:$0xff] %vm172, %v154
  %174 = vst.msk [vmem:[%s3 + $0x8] sm:$0xff] %vm172, %v159
  %175 = vst.msk [vmem:[%s3 + $0x10] sm:$0xff] %vm172, %v164
  %176 = vst.msk [vmem:[%s3 + $0x18] sm:$0xff] %vm172, %v169
  // Predicated region
  $region14: #{vits_generator_forward.47} parent=0 // pred_check
    _
  $region15: #{vits_generator_forward.47} parent=0 // pred_check_branch
    %178 = sbr.rel (0) target = $region17
  $region16: #{vits_generator_forward.47} parent=0 // pred_region
    _
  $region17: #{vits_generator_forward.47} parent=0 // pred_fallthru
    _
  // Predicated region
  $region18: #{vits_generator_forward.47} parent=0 // pred_check
    _
  $region19: #{vits_generator_forward.47} parent=0 // pred_check_branch
    %180 = sbr.rel (0) target = $region21
  $region20: #{vits_generator_forward.47} parent=0 // pred_region
    _
  $region21: #{vits_generator_forward.47} parent=0 // pred_fallthru
    _

// kernel: vits_generator_forward.48
$region0: #{vits_generator_forward.48}
  #allocation0 [shape = 'u32[]', space=smem, size = 0x4, offset = 0x4, fixed_abs, tag = 'smem constant byte address 0x4 - core index']
  #allocation1 [shape = 'u32[144,128]{1,0:T(1,128)}', space=vmem, size = 0x12000, scoped, tag = 'internal scratch']
  %s0 = inlined_call_operand.vmem [shape: f32[16,64], index: 0, kind: input, shape index: {}]
  %s1 = inlined_call_operand.vmem [shape: f32[64,10], index: 1, kind: input, shape index: {}]
  %s2 = inlined_call_operand.vmem [shape: f32[16,1], index: 2, kind: input, shape index: {}]
  %s3 = inlined_call_operand.vmem [shape: f32[16,10], index: 3, kind: output, shape index: {}]
  %s4 = sld [smem:[#allocation0]]
  $region22: #{vits_generator_forward.48} parent=0
    _
  %s6 = ssub.s32 1, %s4
  %s7 = scalar_select 0, %s6, %s4
  // Predicated region
  $region2: #{vits_generator_forward.48} parent=0 // pred_check
    _
  $region3: #{vits_generator_forward.48} parent=0 // pred_check_branch
    %9 = sbr.rel (0) target = $region5
  $region4: #{vits_generator_forward.48} parent=0 // pred_region
    _
  $region5: #{vits_generator_forward.48} parent=0 // pred_fallthru
    _
  // Predicated region
  $region6: #{vits_generator_forward.48} parent=0 // pred_check
    _
  $region7: #{vits_generator_forward.48} parent=0 // pred_check_branch
    %11 = sbr.rel (0) target = $region9
  $region8: #{vits_generator_forward.48} parent=0 // pred_region
    _
  $region9: #{vits_generator_forward.48} parent=0 // pred_fallthru
    _
  // Predicated region
  $region10: #{vits_generator_forward.48} parent=0 // pred_check
    _
  $region11: #{vits_generator_forward.48} parent=0 // pred_check_branch
    %13 = sbr.rel (0) target = $region13
  $region12: #{vits_generator_forward.48} parent=0 // pred_region
    _
  $region13: #{vits_generator_forward.48} parent=0 // pred_fallthru
    _
  %v14 = vld [vmem:[%s1] sm:$0xff]
  %v15 = vld [vmem:[%s1 + $0x8] sm:$0xff]
  %v16 = vld [vmem:[%s1 + $0x10] sm:$0xff]
  %v17 = vld [vmem:[%s1 + $0x18] sm:$0xff]
  %v18 = vld [vmem:[%s1 + $0x20] sm:$0xff]
  %v19 = vld [vmem:[%s1 + $0x28] sm:$0xff]
  %v20 = vld [vmem:[%s1 + $0x30] sm:$0xff]
  %v21 = vld [vmem:[%s1 + $0x38] sm:$0xff]
  %vm22 = vcmp.ge.f32.partialorder %v14, 0.0
  %vm23 = vcmp.ge.f32.partialorder %v15, 0.0
  %vm24 = vcmp.ge.f32.partialorder %v16, 0.0
  %vm25 = vcmp.ge.f32.partialorder %v17, 0.0
  %vm26 = vcmp.ge.f32.partialorder %v18, 0.0
  %vm27 = vcmp.ge.f32.partialorder %v19, 0.0
  %vm28 = vcmp.ge.f32.partialorder %v20, 0.0
  %vm29 = vcmp.ge.f32.partialorder %v21, 0.0
  %v30 = vmul.f32 %v14, 0.1
  %v31 = vmul.f32 %v15, 0.1
  %v32 = vmul.f32 %v16, 0.1
  %v33 = vmul.f32 %v17, 0.1
  %v34 = vmul.f32 %v18, 0.1
  %v35 = vmul.f32 %v19, 0.1
  %v36 = vmul.f32 %v20, 0.1
  %v37 = vmul.f32 %v21, 0.1
  %v38 = vsel %vm22, %v14, %v30
  %v39 = vsel %vm23, %v15, %v31
  %v40 = vsel %vm24, %v16, %v32
  %v41 = vsel %vm25, %v17, %v33
  %v42 = vsel %vm26, %v18, %v34
  %v43 = vsel %vm27, %v19, %v35
  %v44 = vsel %vm28, %v20, %v36
  %v45 = vsel %vm29, %v21, %v37
  %v46 = vld [vmem:[%s0] sm:$0xff]
  %v47 = vld [vmem:[%s0 + $0x8] sm:$0xff]
  %v48 = vld [vmem:[%s2] sm:$0xff]
  %v49 = vld [vmem:[%s2 + $0x8] sm:$0xff]
  %51 = vset.pattern.permute.xlu0 0
  %52 = vperm.xlu0 %51, %v48
  %v53 = vpop.permute.xlu0 %52
  %56 = vset.pattern.permute.xlu0 0
  %57 = vperm.xlu0 %56, %v49
  %v58 = vpop.permute.xlu0 %57
  %vm60 = vcmask 523264
  %v62 = vsel %vm60, %v46, 0
  %v65 = vsel %vm60, %v47, 0
  %67 = vmatprep.subr.mxu0 0.0
  %68 = vmatpush1.msra.mxu0 0.0
  %69 = vmatprep.subr.mxu0 0.0
  %70 = vmatpush1.msra.mxu0 0.0
  %71 = vmatprep.subr.mxu0 0.0
  %72 = vmatpush1.msra.mxu0 0.0
  %73 = vmatprep.subr.mxu0 0.0
  %74 = vmatpush1.msra.mxu0 0.0
  %75 = vmatprep.subr.mxu0 0.0
  %76 = vmatpush1.msra.mxu0 0.0
  %77 = vmatprep.subr.mxu0 0.0
  %78 = vmatpush1.msra.mxu0 0.0
  %79 = vmatprep.subr.mxu0 0.0
  %80 = vmatpush1.msra.mxu0 0.0
  %81 = vmatprep.subr.mxu0 0.0
  %82 = vmatpush1.msra.mxu0 0.0
  %83 = vmatprep.subr.mxu0 0.0
  %84 = vmatpush1.msra.mxu0 %v45
  %85 = vmatprep.subr.mxu0 0.0
  %86 = vmatpush1.msra.mxu0 %v44
  %87 = vmatprep.subr.mxu0 0.0
  %88 = vmatpush1.msra.mxu0 %v43
  %89 = vmatprep.subr.mxu0 0.0
  %90 = vmatpush1.msra.mxu0 %v42
  %91 = vmatprep.subr.mxu0 0.0
  %92 = vmatpush1.msra.mxu0 %v41
  %93 = vmatprep.subr.mxu0 0.0
  %94 = vmatpush1.msra.mxu0 %v40
  %95 = vmatprep.subr.mxu0 0.0
  %96 = vmatpush1.msra.mxu0 %v39
  %97 = vmatprep.subr.mxu0 0.0
  %98 = vmatpush1.msra.mxu0 %v38
  %99 = vmatprep.subr.mxu0 0.0
  %100 = vmatpush2.msra.mxu0 0.0
  %101 = vmatprep.subr.mxu0 0.0
  %102 = vmatpush2.msra.mxu0 0.0
  %103 = vmatprep.subr.mxu0 0.0
  %104 = vmatpush2.msra.mxu0 0.0
  %105 = vmatprep.subr.mxu0 0.0
  %106 = vmatpush2.msra.mxu0 0.0
  %107 = vmatprep.subr.mxu0 0.0
  %108 = vmatpush2.msra.mxu0 0.0
  %109 = vmatprep.subr.mxu0 0.0
  %110 = vmatpush2.msra.mxu0 0.0
  %111 = vmatprep.subr.mxu0 0.0
  %112 = vmatpush2.msra.mxu0 0.0
  %113 = vmatprep.subr.mxu0 0.0
  %114 = vmatpush2.msra.mxu0 0.0
  %115 = vmatprep.subr.mxu0 0.0
  %116 = vmatpush2.msra.mxu0 0.0
  %117 = vmatprep.subr.mxu0 0.0
  %118 = vmatpush2.msra.mxu0 0.0
  %119 = vmatprep.subr.mxu0 0.0
  %120 = vmatpush2.msra.mxu0 0.0
  %121 = vmatprep.subr.mxu0 0.0
  %122 = vmatpush2.msra.mxu0 0.0
  %123 = vmatprep.subr.mxu0 0.0
  %124 = vmatpush2.msra.mxu0 0.0
  %125 = vmatprep.subr.mxu0 0.0
  %126 = vmatpush2.msra.mxu0 0.0
  %127 = vmatprep.subr.mxu0 0.0
  %128 = vmatpush2.msra.mxu0 0.0
  %129 = vmatprep.subr.mxu0 0.0
  %130 = vmatpush2.msra.mxu0 0.0
  %131 = vmatprep.mubr.f32.mxu0 0.0
  %132 = vmatmul.mubr.f32.gmra.mxu0 %v62
  %v133 = vpop.f32.mrf.mxu0
  %v134 = vadd.f32 %v53, %v133
  %v135 = vpop.f32.mrf.mxu0
  %136 = vmatprep.mubr.f32.mxu0 0.0
  %137 = vmatmul.mubr.f32.gmra.mxu0 %v65
  %v138 = vpop.f32.mrf.mxu0
  %v139 = vadd.f32 %v58, %v138
  %v140 = vpop.f32.mrf.mxu0
  %141 = vdwg.mxu0
  %vm142 = vcmask 80896
  %143 = vst.msk [vmem:[%s3] sm:$0xff] %vm142, %v134
  %144 = vst.msk [vmem:[%s3 + $0x8] sm:$0xff] %vm142, %v139
  // Predicated region
  $region14: #{vits_generator_forward.48} parent=0 // pred_check
    _
  $region15: #{vits_generator_forward.48} parent=0 // pred_check_branch
    %146 = sbr.rel (0) target = $region17
  $region16: #{vits_generator_forward.48} parent=0 // pred_region
    _
  $region17: #{vits_generator_forward.48} parent=0 // pred_fallthru
    _
  // Predicated region
  $region18: #{vits_generator_forward.48} parent=0 // pred_check
    _
  $region19: #{vits_generator_forward.48} parent=0 // pred_check_branch
    %148 = sbr.rel (0) target = $region21
  $region20: #{vits_generator_forward.48} parent=0 // pred_region
    _
  $region21: #{vits_generator_forward.48} parent=0 // pred_fallthru
    _

// kernel: vits_generator_forward.50
$region0: #{vits_generator_forward.50}
  #allocation0 [shape = 'u32[]', space=smem, size = 0x4, offset = 0x4, fixed_abs, tag = 'smem constant byte address 0x4 - core index']
  #allocation1 [shape = 'u32[144,128]{1,0:T(1,128)}', space=vmem, size = 0x12000, scoped, tag = 'internal scratch']
  %s0 = inlined_call_operand.vmem [shape: f32[16,48], index: 0, kind: input, shape index: {}]
  %s1 = inlined_call_operand.vmem [shape: f32[48,16], index: 1, kind: input, shape index: {}]
  %s2 = inlined_call_operand.vmem [shape: f32[16,1], index: 2, kind: input, shape index: {}]
  %s3 = inlined_call_operand.vmem [shape: f32[16,16], index: 3, kind: output, shape index: {}]
  %s4 = sld [smem:[#allocation0]]
  $region22: #{vits_generator_forward.50} parent=0
    _
  %s6 = ssub.s32 1, %s4
  %s7 = scalar_select 0, %s6, %s4
  // Predicated region
  $region2: #{vits_generator_forward.50} parent=0 // pred_check
    _
  $region3: #{vits_generator_forward.50} parent=0 // pred_check_branch
    %9 = sbr.rel (0) target = $region5
  $region4: #{vits_generator_forward.50} parent=0 // pred_region
    _
  $region5: #{vits_generator_forward.50} parent=0 // pred_fallthru
    _
  // Predicated region
  $region6: #{vits_generator_forward.50} parent=0 // pred_check
    _
  $region7: #{vits_generator_forward.50} parent=0 // pred_check_branch
    %11 = sbr.rel (0) target = $region9
  $region8: #{vits_generator_forward.50} parent=0 // pred_region
    _
  $region9: #{vits_generator_forward.50} parent=0 // pred_fallthru
    _
  // Predicated region
  $region10: #{vits_generator_forward.50} parent=0 // pred_check
    _
  $region11: #{vits_generator_forward.50} parent=0 // pred_check_branch
    %13 = sbr.rel (0) target = $region13
  $region12: #{vits_generator_forward.50} parent=0 // pred_region
    _
  $region13: #{vits_generator_forward.50} parent=0 // pred_fallthru
    _
  %v14 = vld [vmem:[%s1] sm:$0xff]
  %v15 = vld [vmem:[%s1 + $0x8] sm:$0xff]
  %v16 = vld [vmem:[%s1 + $0x10] sm:$0xff]
  %v17 = vld [vmem:[%s1 + $0x18] sm:$0xff]
  %v18 = vld [vmem:[%s1 + $0x20] sm:$0xff]
  %v19 = vld [vmem:[%s1 + $0x28] sm:$0xff]
  %vm20 = vcmp.ge.f32.partialorder %v14, 0.0
  %vm21 = vcmp.ge.f32.partialorder %v15, 0.0
  %vm22 = vcmp.ge.f32.partialorder %v16, 0.0
  %vm23 = vcmp.ge.f32.partialorder %v17, 0.0
  %vm24 = vcmp.ge.f32.partialorder %v18, 0.0
  %vm25 = vcmp.ge.f32.partialorder %v19, 0.0
  %v26 = vmul.f32 %v14, 0.1
  %v27 = vmul.f32 %v15, 0.1
  %v28 = vmul.f32 %v16, 0.1
  %v29 = vmul.f32 %v17, 0.1
  %v30 = vmul.f32 %v18, 0.1
  %v31 = vmul.f32 %v19, 0.1
  %v32 = vsel %vm20, %v14, %v26
  %v33 = vsel %vm21, %v15, %v27
  %v34 = vsel %vm22, %v16, %v28
  %v35 = vsel %vm23, %v17, %v29
  %v36 = vsel %vm24, %v18, %v30
  %v37 = vsel %vm25, %v19, %v31
  %v38 = vld [vmem:[%s0] sm:$0xff]
  %v39 = vld [vmem:[%s0 + $0x8] sm:$0xff]
  %v40 = vld [vmem:[%s2] sm:$0xff]
  %v41 = vld [vmem:[%s2 + $0x8] sm:$0xff]
  %43 = vset.pattern.permute.xlu0 0
  %44 = vperm.xlu0 %43, %v40
  %v45 = vpop.permute.xlu0 %44
  %48 = vset.pattern.permute.xlu0 0
  %49 = vperm.xlu0 %48, %v41
  %v50 = vpop.permute.xlu0 %49
  %vm52 = vcmask 392192
  %v54 = vsel %vm52, %v38, 0
  %v57 = vsel %vm52, %v39, 0
  %59 = vmatprep.subr.mxu0 0.0
  %60 = vmatpush1.msra.mxu0 0.0
  %61 = vmatprep.subr.mxu0 0.0
  %62 = vmatpush1.msra.mxu0 0.0
  %63 = vmatprep.subr.mxu0 0.0
  %64 = vmatpush1.msra.mxu0 0.0
  %65 = vmatprep.subr.mxu0 0.0
  %66 = vmatpush1.msra.mxu0 0.0
  %67 = vmatprep.subr.mxu0 0.0
  %68 = vmatpush1.msra.mxu0 0.0
  %69 = vmatprep.subr.mxu0 0.0
  %70 = vmatpush1.msra.mxu0 0.0
  %71 = vmatprep.subr.mxu0 0.0
  %72 = vmatpush1.msra.mxu0 0.0
  %73 = vmatprep.subr.mxu0 0.0
  %74 = vmatpush1.msra.mxu0 0.0
  %75 = vmatprep.subr.mxu0 0.0
  %76 = vmatpush1.msra.mxu0 0.0
  %77 = vmatprep.subr.mxu0 0.0
  %78 = vmatpush1.msra.mxu0 0.0
  %79 = vmatprep.subr.mxu0 0.0
  %80 = vmatpush1.msra.mxu0 %v37
  %81 = vmatprep.subr.mxu0 0.0
  %82 = vmatpush1.msra.mxu0 %v36
  %83 = vmatprep.subr.mxu0 0.0
  %84 = vmatpush1.msra.mxu0 %v35
  %85 = vmatprep.subr.mxu0 0.0
  %86 = vmatpush1.msra.mxu0 %v34
  %87 = vmatprep.subr.mxu0 0.0
  %88 = vmatpush1.msra.mxu0 %v33
  %89 = vmatprep.subr.mxu0 0.0
  %90 = vmatpush1.msra.mxu0 %v32
  %91 = vmatprep.subr.mxu0 0.0
  %92 = vmatpush2.msra.mxu0 0.0
  %93 = vmatprep.subr.mxu0 0.0
  %94 = vmatpush2.msra.mxu0 0.0
  %95 = vmatprep.subr.mxu0 0.0
  %96 = vmatpush2.msra.mxu0 0.0
  %97 = vmatprep.subr.mxu0 0.0
  %98 = vmatpush2.msra.mxu0 0.0
  %99 = vmatprep.subr.mxu0 0.0
  %100 = vmatpush2.msra.mxu0 0.0
  %101 = vmatprep.subr.mxu0 0.0
  %102 = vmatpush2.msra.mxu0 0.0
  %103 = vmatprep.subr.mxu0 0.0
  %104 = vmatpush2.msra.mxu0 0.0
  %105 = vmatprep.subr.mxu0 0.0
  %106 = vmatpush2.msra.mxu0 0.0
  %107 = vmatprep.subr.mxu0 0.0
  %108 = vmatpush2.msra.mxu0 0.0
  %109 = vmatprep.subr.mxu0 0.0
  %110 = vmatpush2.msra.mxu0 0.0
  %111 = vmatprep.subr.mxu0 0.0
  %112 = vmatpush2.msra.mxu0 0.0
  %113 = vmatprep.subr.mxu0 0.0
  %114 = vmatpush2.msra.mxu0 0.0
  %115 = vmatprep.subr.mxu0 0.0
  %116 = vmatpush2.msra.mxu0 0.0
  %117 = vmatprep.subr.mxu0 0.0
  %118 = vmatpush2.msra.mxu0 0.0
  %119 = vmatprep.subr.mxu0 0.0
  %120 = vmatpush2.msra.mxu0 0.0
  %121 = vmatprep.subr.mxu0 0.0
  %122 = vmatpush2.msra.mxu0 0.0
  %123 = vmatprep.mubr.f32.mxu0 0.0
  %124 = vmatmul.mubr.f32.gmra.mxu0 %v54
  %v125 = vpop.f32.mrf.mxu0
  %v126 = vadd.f32 %v45, %v125
  %v127 = vpop.f32.mrf.mxu0
  %128 = vmatprep.mubr.f32.mxu0 0.0
  %129 = vmatmul.mubr.f32.gmra.mxu0 %v57
  %v130 = vpop.f32.mrf.mxu0
  %v131 = vadd.f32 %v50, %v130
  %v132 = vpop.f32.mrf.mxu0
  %133 = vdwg.mxu0
  %vm134 = vcmask 130048
  %135 = vst.msk [vmem:[%s3] sm:$0xff] %vm134, %v126
  %136 = vst.msk [vmem:[%s3 + $0x8] sm:$0xff] %vm134, %v131
  // Predicated region
  $region14: #{vits_generator_forward.50} parent=0 // pred_check
    _
  $region15: #{vits_generator_forward.50} parent=0 // pred_check_branch
    %138 = sbr.rel (0) target = $region17
  $region16: #{vits_generator_forward.50} parent=0 // pred_region
    _
  $region17: #{vits_generator_forward.50} parent=0 // pred_fallthru
    _
  // Predicated region
  $region18: #{vits_generator_forward.50} parent=0 // pred_check
    _
  $region19: #{vits_generator_forward.50} parent=0 // pred_check_branch
    %140 = sbr.rel (0) target = $region21
  $region20: #{vits_generator_forward.50} parent=0 // pred_region
    _
  $region21: #{vits_generator_forward.50} parent=0 // pred_fallthru
    _

// kernel: vits_generator_forward.51
$region0: #{vits_generator_forward.51}
  #allocation0 [shape = 'u32[]', space=smem, size = 0x4, offset = 0x4, fixed_abs, tag = 'smem constant byte address 0x4 - core index']
  #allocation1 [shape = 'u32[144,128]{1,0:T(1,128)}', space=vmem, size = 0x12000, scoped, tag = 'internal scratch']
  %s0 = inlined_call_operand.vmem [shape: f32[16,48], index: 0, kind: input, shape index: {}]
  %s1 = inlined_call_operand.vmem [shape: f32[48,16], index: 1, kind: input, shape index: {}]
  %s2 = inlined_call_operand.vmem [shape: f32[16,1], index: 2, kind: input, shape index: {}]
  %s3 = inlined_call_operand.vmem [shape: f32[16,16], index: 3, kind: input, shape index: {}]
  %s4 = inlined_call_operand.vmem [shape: f32[16,16], index: 4, kind: output, shape index: {}]
  %s5 = sld [smem:[#allocation0]]
  $region26: #{vits_generator_forward.51} parent=0
    _
  %s7 = ssub.s32 1, %s5
  %s8 = scalar_select 0, %s7, %s5
  // Predicated region
  $region2: #{vits_generator_forward.51} parent=0 // pred_check
    _
  $region3: #{vits_generator_forward.51} parent=0 // pred_check_branch
    %10 = sbr.rel (0) target = $region5
  $region4: #{vits_generator_forward.51} parent=0 // pred_region
    _
  $region5: #{vits_generator_forward.51} parent=0 // pred_fallthru
    _
  // Predicated region
  $region6: #{vits_generator_forward.51} parent=0 // pred_check
    _
  $region7: #{vits_generator_forward.51} parent=0 // pred_check_branch
    %12 = sbr.rel (0) target = $region9
  $region8: #{vits_generator_forward.51} parent=0 // pred_region
    _
  $region9: #{vits_generator_forward.51} parent=0 // pred_fallthru
    _
  // Predicated region
  $region10: #{vits_generator_forward.51} parent=0 // pred_check
    _
  $region11: #{vits_generator_forward.51} parent=0 // pred_check_branch
    %14 = sbr.rel (0) target = $region13
  $region12: #{vits_generator_forward.51} parent=0 // pred_region
    _
  $region13: #{vits_generator_forward.51} parent=0 // pred_fallthru
    _
  // Predicated region
  $region14: #{vits_generator_forward.51} parent=0 // pred_check
    _
  $region15: #{vits_generator_forward.51} parent=0 // pred_check_branch
    %16 = sbr.rel (0) target = $region17
  $region16: #{vits_generator_forward.51} parent=0 // pred_region
    _
  $region17: #{vits_generator_forward.51} parent=0 // pred_fallthru
    _
  %v17 = vld [vmem:[%s1] sm:$0xff]
  %v18 = vld [vmem:[%s1 + $0x8] sm:$0xff]
  %v19 = vld [vmem:[%s1 + $0x10] sm:$0xff]
  %v20 = vld [vmem:[%s1 + $0x18] sm:$0xff]
  %v21 = vld [vmem:[%s1 + $0x20] sm:$0xff]
  %v22 = vld [vmem:[%s1 + $0x28] sm:$0xff]
  %vm23 = vcmp.ge.f32.partialorder %v17, 0.0
  %vm24 = vcmp.ge.f32.partialorder %v18, 0.0
  %vm25 = vcmp.ge.f32.partialorder %v19, 0.0
  %vm26 = vcmp.ge.f32.partialorder %v20, 0.0
  %vm27 = vcmp.ge.f32.partialorder %v21, 0.0
  %vm28 = vcmp.ge.f32.partialorder %v22, 0.0
  %v29 = vmul.f32 %v17, 0.1
  %v30 = vmul.f32 %v18, 0.1
  %v31 = vmul.f32 %v19, 0.1
  %v32 = vmul.f32 %v20, 0.1
  %v33 = vmul.f32 %v21, 0.1
  %v34 = vmul.f32 %v22, 0.1
  %v35 = vsel %vm23, %v17, %v29
  %v36 = vsel %vm24, %v18, %v30
  %v37 = vsel %vm25, %v19, %v31
  %v38 = vsel %vm26, %v20, %v32
  %v39 = vsel %vm27, %v21, %v33
  %v40 = vsel %vm28, %v22, %v34
  %v41 = vld [vmem:[%s0] sm:$0xff]
  %v42 = vld [vmem:[%s0 + $0x8] sm:$0xff]
  %v43 = vld [vmem:[%s2] sm:$0xff]
  %v44 = vld [vmem:[%s2 + $0x8] sm:$0xff]
  %46 = vset.pattern.permute.xlu0 0
  %47 = vperm.xlu0 %46, %v43
  %v48 = vpop.permute.xlu0 %47
  %51 = vset.pattern.permute.xlu0 0
  %52 = vperm.xlu0 %51, %v44
  %v53 = vpop.permute.xlu0 %52
  %vm55 = vcmask 392192
  %v57 = vsel %vm55, %v41, 0
  %v60 = vsel %vm55, %v42, 0
  %62 = vmatprep.subr.mxu0 0.0
  %63 = vmatpush1.msra.mxu0 0.0
  %64 = vmatprep.subr.mxu0 0.0
  %65 = vmatpush1.msra.mxu0 0.0
  %66 = vmatprep.subr.mxu0 0.0
  %67 = vmatpush1.msra.mxu0 0.0
  %68 = vmatprep.subr.mxu0 0.0
  %69 = vmatpush1.msra.mxu0 0.0
  %70 = vmatprep.subr.mxu0 0.0
  %71 = vmatpush1.msra.mxu0 0.0
  %72 = vmatprep.subr.mxu0 0.0
  %73 = vmatpush1.msra.mxu0 0.0
  %74 = vmatprep.subr.mxu0 0.0
  %75 = vmatpush1.msra.mxu0 0.0
  %76 = vmatprep.subr.mxu0 0.0
  %77 = vmatpush1.msra.mxu0 0.0
  %78 = vmatprep.subr.mxu0 0.0
  %79 = vmatpush1.msra.mxu0 0.0
  %80 = vmatprep.subr.mxu0 0.0
  %81 = vmatpush1.msra.mxu0 0.0
  %82 = vmatprep.subr.mxu0 0.0
  %83 = vmatpush1.msra.mxu0 %v40
  %84 = vmatprep.subr.mxu0 0.0
  %85 = vmatpush1.msra.mxu0 %v39
  %86 = vmatprep.subr.mxu0 0.0
  %87 = vmatpush1.msra.mxu0 %v38
  %88 = vmatprep.subr.mxu0 0.0
  %89 = vmatpush1.msra.mxu0 %v37
  %90 = vmatprep.subr.mxu0 0.0
  %91 = vmatpush1.msra.mxu0 %v36
  %92 = vmatprep.subr.mxu0 0.0
  %93 = vmatpush1.msra.mxu0 %v35
  %94 = vmatprep.subr.mxu0 0.0
  %95 = vmatpush2.msra.mxu0 0.0
  %96 = vmatprep.subr.mxu0 0.0
  %97 = vmatpush2.msra.mxu0 0.0
  %98 = vmatprep.subr.mxu0 0.0
  %99 = vmatpush2.msra.mxu0 0.0
  %100 = vmatprep.subr.mxu0 0.0
  %101 = vmatpush2.msra.mxu0 0.0
  %102 = vmatprep.subr.mxu0 0.0
  %103 = vmatpush2.msra.mxu0 0.0
  %104 = vmatprep.subr.mxu0 0.0
  %105 = vmatpush2.msra.mxu0 0.0
  %106 = vmatprep.subr.mxu0 0.0
  %107 = vmatpush2.msra.mxu0 0.0
  %108 = vmatprep.subr.mxu0 0.0
  %109 = vmatpush2.msra.mxu0 0.0
  %110 = vmatprep.subr.mxu0 0.0
  %111 = vmatpush2.msra.mxu0 0.0
  %112 = vmatprep.subr.mxu0 0.0
  %113 = vmatpush2.msra.mxu0 0.0
  %114 = vmatprep.subr.mxu0 0.0
  %115 = vmatpush2.msra.mxu0 0.0
  %116 = vmatprep.subr.mxu0 0.0
  %117 = vmatpush2.msra.mxu0 0.0
  %118 = vmatprep.subr.mxu0 0.0
  %119 = vmatpush2.msra.mxu0 0.0
  %120 = vmatprep.subr.mxu0 0.0
  %121 = vmatpush2.msra.mxu0 0.0
  %122 = vmatprep.subr.mxu0 0.0
  %123 = vmatpush2.msra.mxu0 0.0
  %124 = vmatprep.subr.mxu0 0.0
  %125 = vmatpush2.msra.mxu0 0.0
  %126 = vmatprep.mubr.f32.mxu0 0.0
  %127 = vmatmul.mubr.f32.gmra.mxu0 %v57
  %v128 = vpop.f32.mrf.mxu0
  %v129 = vadd.f32 %v48, %v128
  %v130 = vpop.f32.mrf.mxu0
  %131 = vmatprep.mubr.f32.mxu0 0.0
  %132 = vmatmul.mubr.f32.gmra.mxu0 %v60
  %v133 = vpop.f32.mrf.mxu0
  %v134 = vadd.f32 %v53, %v133
  %v135 = vpop.f32.mrf.mxu0
  %136 = vdwg.mxu0
  %v137 = vld [vmem:[%s3] sm:$0xff]
  %v138 = vld [vmem:[%s3 + $0x8] sm:$0xff]
  %v139 = vadd.f32 %v129, %v137
  %v140 = vadd.f32 %v134, %v138
  %vm141 = vcmask 130048
  %142 = vst.msk [vmem:[%s4] sm:$0xff] %vm141, %v139
  %143 = vst.msk [vmem:[%s4 + $0x8] sm:$0xff] %vm141, %v140
  // Predicated region
  $region18: #{vits_generator_forward.51} parent=0 // pred_check
    _
  $region19: #{vits_generator_forward.51} parent=0 // pred_check_branch
    %145 = sbr.rel (0) target = $region21
  $region20: #{vits_generator_forward.51} parent=0 // pred_region
    _
  $region21: #{vits_generator_forward.51} parent=0 // pred_fallthru
    _
  // Predicated region
  $region22: #{vits_generator_forward.51} parent=0 // pred_check
    _
  $region23: #{vits_generator_forward.51} parent=0 // pred_check_branch
    %147 = sbr.rel (0) target = $region25
  $region24: #{vits_generator_forward.51} parent=0 // pred_region
    _
  $region25: #{vits_generator_forward.51} parent=0 // pred_fallthru
    _

// kernel: vits_generator_forward.54
$region0: #{vits_generator_forward.54}
  #allocation0 [shape = 'u32[]', space=smem, size = 0x4, offset = 0x4, fixed_abs, tag = 'smem constant byte address 0x4 - core index']
  #allocation1 [shape = 'u32[144,128]{1,0:T(1,128)}', space=vmem, size = 0x12000, scoped, tag = 'internal scratch']
  %s0 = inlined_call_operand.vmem [shape: f32[8,32], index: 0, kind: input, shape index: {}]
  %s1 = inlined_call_operand.vmem [shape: f32[32,18], index: 1, kind: input, shape index: {}]
  %s2 = inlined_call_operand.vmem [shape: f32[8,1], index: 2, kind: input, shape index: {}]
  %s3 = inlined_call_operand.vmem [shape: f32[8,18], index: 3, kind: output, shape index: {}]
  %s4 = sld [smem:[#allocation0]]
  $region22: #{vits_generator_forward.54} parent=0
    _
  %s6 = ssub.s32 1, %s4
  %s7 = scalar_select 0, %s6, %s4
  // Predicated region
  $region2: #{vits_generator_forward.54} parent=0 // pred_check
    _
  $region3: #{vits_generator_forward.54} parent=0 // pred_check_branch
    %9 = sbr.rel (0) target = $region5
  $region4: #{vits_generator_forward.54} parent=0 // pred_region
    _
  $region5: #{vits_generator_forward.54} parent=0 // pred_fallthru
    _
  // Predicated region
  $region6: #{vits_generator_forward.54} parent=0 // pred_check
    _
  $region7: #{vits_generator_forward.54} parent=0 // pred_check_branch
    %11 = sbr.rel (0) target = $region9
  $region8: #{vits_generator_forward.54} parent=0 // pred_region
    _
  $region9: #{vits_generator_forward.54} parent=0 // pred_fallthru
    _
  // Predicated region
  $region10: #{vits_generator_forward.54} parent=0 // pred_check
    _
  $region11: #{vits_generator_forward.54} parent=0 // pred_check_branch
    %13 = sbr.rel (0) target = $region13
  $region12: #{vits_generator_forward.54} parent=0 // pred_region
    _
  $region13: #{vits_generator_forward.54} parent=0 // pred_fallthru
    _
  %v14 = vld [vmem:[%s1] sm:$0xff]
  %v15 = vld [vmem:[%s1 + $0x8] sm:$0xff]
  %v16 = vld [vmem:[%s1 + $0x10] sm:$0xff]
  %v17 = vld [vmem:[%s1 + $0x18] sm:$0xff]
  %vm18 = vcmp.ge.f32.partialorder %v14, 0.0
  %vm19 = vcmp.ge.f32.partialorder %v15, 0.0
  %vm20 = vcmp.ge.f32.partialorder %v16, 0.0
  %vm21 = vcmp.ge.f32.partialorder %v17, 0.0
  %v22 = vmul.f32 %v14, 0.1
  %v23 = vmul.f32 %v15, 0.1
  %v24 = vmul.f32 %v16, 0.1
  %v25 = vmul.f32 %v17, 0.1
  %v26 = vsel %vm18, %v14, %v22
  %v27 = vsel %vm19, %v15, %v23
  %v28 = vsel %vm20, %v16, %v24
  %v29 = vsel %vm21, %v17, %v25
  %v30 = vld [vmem:[%s0] sm:$0xff]
  %v31 = vld [vmem:[%s2] sm:$0xff]
  %33 = vset.pattern.permute.xlu0 0
  %34 = vperm.xlu0 %33, %v31
  %v35 = vpop.permute.xlu0 %34
  %vm37 = vcmask 261120
  %v39 = vsel %vm37, %v30, 0
  %41 = vmatprep.subr.mxu0 0.0
  %42 = vmatpush1.msra.mxu0 0.0
  %43 = vmatprep.subr.mxu0 0.0
  %44 = vmatpush1.msra.mxu0 0.0
  %45 = vmatprep.subr.mxu0 0.0
  %46 = vmatpush1.msra.mxu0 0.0
  %47 = vmatprep.subr.mxu0 0.0
  %48 = vmatpush1.msra.mxu0 0.0
  %49 = vmatprep.subr.mxu0 0.0
  %50 = vmatpush1.msra.mxu0 0.0
  %51 = vmatprep.subr.mxu0 0.0
  %52 = vmatpush1.msra.mxu0 0.0
  %53 = vmatprep.subr.mxu0 0.0
  %54 = vmatpush1.msra.mxu0 0.0
  %55 = vmatprep.subr.mxu0 0.0
  %56 = vmatpush1.msra.mxu0 0.0
  %57 = vmatprep.subr.mxu0 0.0
  %58 = vmatpush1.msra.mxu0 0.0
  %59 = vmatprep.subr.mxu0 0.0
  %60 = vmatpush1.msra.mxu0 0.0
  %61 = vmatprep.subr.mxu0 0.0
  %62 = vmatpush1.msra.mxu0 0.0
  %63 = vmatprep.subr.mxu0 0.0
  %64 = vmatpush1.msra.mxu0 0.0
  %65 = vmatprep.subr.mxu0 0.0
  %66 = vmatpush1.msra.mxu0 %v29
  %67 = vmatprep.subr.mxu0 0.0
  %68 = vmatpush1.msra.mxu0 %v28
  %69 = vmatprep.subr.mxu0 0.0
  %70 = vmatpush1.msra.mxu0 %v27
  %71 = vmatprep.subr.mxu0 0.0
  %72 = vmatpush1.msra.mxu0 %v26
  %73 = vmatprep.subr.mxu0 0.0
  %74 = vmatpush2.msra.mxu0 0.0
  %75 = vmatprep.subr.mxu0 0.0
  %76 = vmatpush2.msra.mxu0 0.0
  %77 = vmatprep.subr.mxu0 0.0
  %78 = vmatpush2.msra.mxu0 0.0
  %79 = vmatprep.subr.mxu0 0.0
  %80 = vmatpush2.msra.mxu0 0.0
  %81 = vmatprep.subr.mxu0 0.0
  %82 = vmatpush2.msra.mxu0 0.0
  %83 = vmatprep.subr.mxu0 0.0
  %84 = vmatpush2.msra.mxu0 0.0
  %85 = vmatprep.subr.mxu0 0.0
  %86 = vmatpush2.msra.mxu0 0.0
  %87 = vmatprep.subr.mxu0 0.0
  %88 = vmatpush2.msra.mxu0 0.0
  %89 = vmatprep.subr.mxu0 0.0
  %90 = vmatpush2.msra.mxu0 0.0
  %91 = vmatprep.subr.mxu0 0.0
  %92 = vmatpush2.msra.mxu0 0.0
  %93 = vmatprep.subr.mxu0 0.0
  %94 = vmatpush2.msra.mxu0 0.0
  %95 = vmatprep.subr.mxu0 0.0
  %96 = vmatpush2.msra.mxu0 0.0
  %97 = vmatprep.subr.mxu0 0.0
  %98 = vmatpush2.msra.mxu0 0.0
  %99 = vmatprep.subr.mxu0 0.0
  %100 = vmatpush2.msra.mxu0 0.0
  %101 = vmatprep.subr.mxu0 0.0
  %102 = vmatpush2.msra.mxu0 0.0
  %103 = vmatprep.subr.mxu0 0.0
  %104 = vmatpush2.msra.mxu0 0.0
  %105 = vmatprep.mubr.f32.mxu0 0.0
  %106 = vmatmul.mubr.f32.gmra.mxu0 %v39
  %v107 = vpop.f32.mrf.mxu0
  %v108 = vadd.f32 %v35, %v107
  %v109 = vpop.f32.mrf.mxu0
  %110 = vdwg.mxu0
  %vm111 = vcmask 146432
  %112 = vst.msk [vmem:[%s3] sm:$0xff] %vm111, %v108
  // Predicated region
  $region14: #{vits_generator_forward.54} parent=0 // pred_check
    _
  $region15: #{vits_generator_forward.54} parent=0 // pred_check_branch
    %114 = sbr.rel (0) target = $region17
  $region16: #{vits_generator_forward.54} parent=0 // pred_region
    _
  $region17: #{vits_generator_forward.54} parent=0 // pred_fallthru
    _
  // Predicated region
  $region18: #{vits_generator_forward.54} parent=0 // pred_check
    _
  $region19: #{vits_generator_forward.54} parent=0 // pred_check_branch
    %116 = sbr.rel (0) target = $region21
  $region20: #{vits_generator_forward.54} parent=0 // pred_region
    _
  $region21: #{vits_generator_forward.54} parent=0 // pred_fallthru
    _

// kernel: vits_generator_forward.56
$region0: #{vits_generator_forward.56}
  #allocation0 [shape = 'u32[]', space=smem, size = 0x4, offset = 0x4, fixed_abs, tag = 'smem constant byte address 0x4 - core index']
  #allocation1 [shape = 'u32[144,128]{1,0:T(1,128)}', space=vmem, size = 0x12000, scoped, tag = 'internal scratch']
  %s0 = inlined_call_operand.vmem [shape: f32[8,24], index: 0, kind: input, shape index: {}]
  %s1 = inlined_call_operand.vmem [shape: f32[24,32], index: 1, kind: input, shape index: {}]
  %s2 = inlined_call_operand.vmem [shape: f32[8,1], index: 2, kind: input, shape index: {}]
  %s3 = inlined_call_operand.vmem [shape: f32[8,32], index: 3, kind: output, shape index: {}]
  %s4 = sld [smem:[#allocation0]]
  $region22: #{vits_generator_forward.56} parent=0
    _
  %s6 = ssub.s32 1, %s4
  %s7 = scalar_select 0, %s6, %s4
  // Predicated region
  $region2: #{vits_generator_forward.56} parent=0 // pred_check
    _
  $region3: #{vits_generator_forward.56} parent=0 // pred_check_branch
    %9 = sbr.rel (0) target = $region5
  $region4: #{vits_generator_forward.56} parent=0 // pred_region
    _
  $region5: #{vits_generator_forward.56} parent=0 // pred_fallthru
    _
  // Predicated region
  $region6: #{vits_generator_forward.56} parent=0 // pred_check
    _
  $region7: #{vits_generator_forward.56} parent=0 // pred_check_branch
    %11 = sbr.rel (0) target = $region9
  $region8: #{vits_generator_forward.56} parent=0 // pred_region
    _
  $region9: #{vits_generator_forward.56} parent=0 // pred_fallthru
    _
  // Predicated region
  $region10: #{vits_generator_forward.56} parent=0 // pred_check
    _
  $region11: #{vits_generator_forward.56} parent=0 // pred_check_branch
    %13 = sbr.rel (0) target = $region13
  $region12: #{vits_generator_forward.56} parent=0 // pred_region
    _
  $region13: #{vits_generator_forward.56} parent=0 // pred_fallthru
    _
  %v14 = vld [vmem:[%s1] sm:$0xff]
  %v15 = vld [vmem:[%s1 + $0x8] sm:$0xff]
  %v16 = vld [vmem:[%s1 + $0x10] sm:$0xff]
  %vm17 = vcmp.ge.f32.partialorder %v14, 0.0
  %vm18 = vcmp.ge.f32.partialorder %v15, 0.0
  %vm19 = vcmp.ge.f32.partialorder %v16, 0.0
  %v20 = vmul.f32 %v14, 0.1
  %v21 = vmul.f32 %v15, 0.1
  %v22 = vmul.f32 %v16, 0.1
  %v23 = vsel %vm17, %v14, %v20
  %v24 = vsel %vm18, %v15, %v21
  %v25 = vsel %vm19, %v16, %v22
  %v26 = vld [vmem:[%s0] sm:$0xff]
  %v27 = vld [vmem:[%s2] sm:$0xff]
  %29 = vset.pattern.permute.xlu0 0
  %30 = vperm.xlu0 %29, %v27
  %v31 = vpop.permute.xlu0 %30
  %vm33 = vcmask 195584
  %v35 = vsel %vm33, %v26, 0
  %37 = vmatprep.subr.mxu0 0.0
  %38 = vmatpush1.msra.mxu0 0.0
  %39 = vmatprep.subr.mxu0 0.0
  %40 = vmatpush1.msra.mxu0 0.0
  %41 = vmatprep.subr.mxu0 0.0
  %42 = vmatpush1.msra.mxu0 0.0
  %43 = vmatprep.subr.mxu0 0.0
  %44 = vmatpush1.msra.mxu0 0.0
  %45 = vmatprep.subr.mxu0 0.0
  %46 = vmatpush1.msra.mxu0 0.0
  %47 = vmatprep.subr.mxu0 0.0
  %48 = vmatpush1.msra.mxu0 0.0
  %49 = vmatprep.subr.mxu0 0.0
  %50 = vmatpush1.msra.mxu0 0.0
  %51 = vmatprep.subr.mxu0 0.0
  %52 = vmatpush1.msra.mxu0 0.0
  %53 = vmatprep.subr.mxu0 0.0
  %54 = vmatpush1.msra.mxu0 0.0
  %55 = vmatprep.subr.mxu0 0.0
  %56 = vmatpush1.msra.mxu0 0.0
  %57 = vmatprep.subr.mxu0 0.0
  %58 = vmatpush1.msra.mxu0 0.0
  %59 = vmatprep.subr.mxu0 0.0
  %60 = vmatpush1.msra.mxu0 0.0
  %61 = vmatprep.subr.mxu0 0.0
  %62 = vmatpush1.msra.mxu0 0.0
  %63 = vmatprep.subr.mxu0 0.0
  %64 = vmatpush1.msra.mxu0 %v25
  %65 = vmatprep.subr.mxu0 0.0
  %66 = vmatpush1.msra.mxu0 %v24
  %67 = vmatprep.subr.mxu0 0.0
  %68 = vmatpush1.msra.mxu0 %v23
  %69 = vmatprep.subr.mxu0 0.0
  %70 = vmatpush2.msra.mxu0 0.0
  %71 = vmatprep.subr.mxu0 0.0
  %72 = vmatpush2.msra.mxu0 0.0
  %73 = vmatprep.subr.mxu0 0.0
  %74 = vmatpush2.msra.mxu0 0.0
  %75 = vmatprep.subr.mxu0 0.0
  %76 = vmatpush2.msra.mxu0 0.0
  %77 = vmatprep.subr.mxu0 0.0
  %78 = vmatpush2.msra.mxu0 0.0
  %79 = vmatprep.subr.mxu0 0.0
  %80 = vmatpush2.msra.mxu0 0.0
  %81 = vmatprep.subr.mxu0 0.0
  %82 = vmatpush2.msra.mxu0 0.0
  %83 = vmatprep.subr.mxu0 0.0
  %84 = vmatpush2.msra.mxu0 0.0
  %85 = vmatprep.subr.mxu0 0.0
  %86 = vmatpush2.msra.mxu0 0.0
  %87 = vmatprep.subr.mxu0 0.0
  %88 = vmatpush2.msra.mxu0 0.0
  %89 = vmatprep.subr.mxu0 0.0
  %90 = vmatpush2.msra.mxu0 0.0
  %91 = vmatprep.subr.mxu0 0.0
  %92 = vmatpush2.msra.mxu0 0.0
  %93 = vmatprep.subr.mxu0 0.0
  %94 = vmatpush2.msra.mxu0 0.0
  %95 = vmatprep.subr.mxu0 0.0
  %96 = vmatpush2.msra.mxu0 0.0
  %97 = vmatprep.subr.mxu0 0.0
  %98 = vmatpush2.msra.mxu0 0.0
  %99 = vmatprep.subr.mxu0 0.0
  %100 = vmatpush2.msra.mxu0 0.0
  %101 = vmatprep.mubr.f32.mxu0 0.0
  %102 = vmatmul.mubr.f32.gmra.mxu0 %v35
  %v103 = vpop.f32.mrf.mxu0
  %v104 = vadd.f32 %v31, %v103
  %v105 = vpop.f32.mrf.mxu0
  %106 = vdwg.mxu0
  %vm107 = vcmask 261120
  %108 = vst.msk [vmem:[%s3] sm:$0xff] %vm107, %v104
  // Predicated region
  $region14: #{vits_generator_forward.56} parent=0 // pred_check
    _
  $region15: #{vits_generator_forward.56} parent=0 // pred_check_branch
    %110 = sbr.rel (0) target = $region17
  $region16: #{vits_generator_forward.56} parent=0 // pred_region
    _
  $region17: #{vits_generator_forward.56} parent=0 // pred_fallthru
    _
  // Predicated region
  $region18: #{vits_generator_forward.56} parent=0 // pred_check
    _
  $region19: #{vits_generator_forward.56} parent=0 // pred_check_branch
    %112 = sbr.rel (0) target = $region21
  $region20: #{vits_generator_forward.56} parent=0 // pred_region
    _
  $region21: #{vits_generator_forward.56} parent=0 // pred_fallthru
    _

// kernel: vits_generator_forward.57
$region0: #{vits_generator_forward.57}
  #allocation0 [shape = 'u32[]', space=smem, size = 0x4, offset = 0x4, fixed_abs, tag = 'smem constant byte address 0x4 - core index']
  #allocation1 [shape = 'u32[144,128]{1,0:T(1,128)}', space=vmem, size = 0x12000, scoped, tag = 'internal scratch']
  %s0 = inlined_call_operand.vmem [shape: f32[8,24], index: 0, kind: input, shape index: {}]
  %s1 = inlined_call_operand.vmem [shape: f32[24,32], index: 1, kind: input, shape index: {}]
  %s2 = inlined_call_operand.vmem [shape: f32[8,1], index: 2, kind: input, shape index: {}]
  %s3 = inlined_call_operand.vmem [shape: f32[8,32], index: 3, kind: input, shape index: {}]
  %s4 = inlined_call_operand.vmem [shape: f32[8,32], index: 4, kind: output, shape index: {}]
  %s5 = sld [smem:[#allocation0]]
  $region26: #{vits_generator_forward.57} parent=0
    _
  %s7 = ssub.s32 1, %s5
  %s8 = scalar_select 0, %s7, %s5
  // Predicated region
  $region2: #{vits_generator_forward.57} parent=0 // pred_check
    _
  $region3: #{vits_generator_forward.57} parent=0 // pred_check_branch
    %10 = sbr.rel (0) target = $region5
  $region4: #{vits_generator_forward.57} parent=0 // pred_region
    _
  $region5: #{vits_generator_forward.57} parent=0 // pred_fallthru
    _
  // Predicated region
  $region6: #{vits_generator_forward.57} parent=0 // pred_check
    _
  $region7: #{vits_generator_forward.57} parent=0 // pred_check_branch
    %12 = sbr.rel (0) target = $region9
  $region8: #{vits_generator_forward.57} parent=0 // pred_region
    _
  $region9: #{vits_generator_forward.57} parent=0 // pred_fallthru
    _
  // Predicated region
  $region10: #{vits_generator_forward.57} parent=0 // pred_check
    _
  $region11: #{vits_generator_forward.57} parent=0 // pred_check_branch
    %14 = sbr.rel (0) target = $region13
  $region12: #{vits_generator_forward.57} parent=0 // pred_region
    _
  $region13: #{vits_generator_forward.57} parent=0 // pred_fallthru
    _
  // Predicated region
  $region14: #{vits_generator_forward.57} parent=0 // pred_check
    _
  $region15: #{vits_generator_forward.57} parent=0 // pred_check_branch
    %16 = sbr.rel (0) target = $region17
  $region16: #{vits_generator_forward.57} parent=0 // pred_region
    _
  $region17: #{vits_generator_forward.57} parent=0 // pred_fallthru
    _
  %v17 = vld [vmem:[%s1] sm:$0xff]
  %v18 = vld [vmem:[%s1 + $0x8] sm:$0xff]
  %v19 = vld [vmem:[%s1 + $0x10] sm:$0xff]
  %vm20 = vcmp.ge.f32.partialorder %v17, 0.0
  %vm21 = vcmp.ge.f32.partialorder %v18, 0.0
  %vm22 = vcmp.ge.f32.partialorder %v19, 0.0
  %v23 = vmul.f32 %v17, 0.1
  %v24 = vmul.f32 %v18, 0.1
  %v25 = vmul.f32 %v19, 0.1
  %v26 = vsel %vm20, %v17, %v23
  %v27 = vsel %vm21, %v18, %v24
  %v28 = vsel %vm22, %v19, %v25
  %v29 = vld [vmem:[%s0] sm:$0xff]
  %v30 = vld [vmem:[%s2] sm:$0xff]
  %32 = vset.pattern.permute.xlu0 0
  %33 = vperm.xlu0 %32, %v30
  %v34 = vpop.permute.xlu0 %33
  %vm36 = vcmask 195584
  %v38 = vsel %vm36, %v29, 0
  %40 = vmatprep.subr.mxu0 0.0
  %41 = vmatpush1.msra.mxu0 0.0
  %42 = vmatprep.subr.mxu0 0.0
  %43 = vmatpush1.msra.mxu0 0.0
  %44 = vmatprep.subr.mxu0 0.0
  %45 = vmatpush1.msra.mxu0 0.0
  %46 = vmatprep.subr.mxu0 0.0
  %47 = vmatpush1.msra.mxu0 0.0
  %48 = vmatprep.subr.mxu0 0.0
  %49 = vmatpush1.msra.mxu0 0.0
  %50 = vmatprep.subr.mxu0 0.0
  %51 = vmatpush1.msra.mxu0 0.0
  %52 = vmatprep.subr.mxu0 0.0
  %53 = vmatpush1.msra.mxu0 0.0
  %54 = vmatprep.subr.mxu0 0.0
  %55 = vmatpush1.msra.mxu0 0.0
  %56 = vmatprep.subr.mxu0 0.0
  %57 = vmatpush1.msra.mxu0 0.0
  %58 = vmatprep.subr.mxu0 0.0
  %59 = vmatpush1.msra.mxu0 0.0
  %60 = vmatprep.subr.mxu0 0.0
  %61 = vmatpush1.msra.mxu0 0.0
  %62 = vmatprep.subr.mxu0 0.0
  %63 = vmatpush1.msra.mxu0 0.0
  %64 = vmatprep.subr.mxu0 0.0
  %65 = vmatpush1.msra.mxu0 0.0
  %66 = vmatprep.subr.mxu0 0.0
  %67 = vmatpush1.msra.mxu0 %v28
  %68 = vmatprep.subr.mxu0 0.0
  %69 = vmatpush1.msra.mxu0 %v27
  %70 = vmatprep.subr.mxu0 0.0
  %71 = vmatpush1.msra.mxu0 %v26
  %72 = vmatprep.subr.mxu0 0.0
  %73 = vmatpush2.msra.mxu0 0.0
  %74 = vmatprep.subr.mxu0 0.0
  %75 = vmatpush2.msra.mxu0 0.0
  %76 = vmatprep.subr.mxu0 0.0
  %77 = vmatpush2.msra.mxu0 0.0
  %78 = vmatprep.subr.mxu0 0.0
  %79 = vmatpush2.msra.mxu0 0.0
  %80 = vmatprep.subr.mxu0 0.0
  %81 = vmatpush2.msra.mxu0 0.0
  %82 = vmatprep.subr.mxu0 0.0
  %83 = vmatpush2.msra.mxu0 0.0
  %84 = vmatprep.subr.mxu0 0.0
  %85 = vmatpush2.msra.mxu0 0.0
  %86 = vmatprep.subr.mxu0 0.0
  %87 = vmatpush2.msra.mxu0 0.0
  %88 = vmatprep.subr.mxu0 0.0
  %89 = vmatpush2.msra.mxu0 0.0
  %90 = vmatprep.subr.mxu0 0.0
  %91 = vmatpush2.msra.mxu0 0.0
  %92 = vmatprep.subr.mxu0 0.0
  %93 = vmatpush2.msra.mxu0 0.0
  %94 = vmatprep.subr.mxu0 0.0
  %95 = vmatpush2.msra.mxu0 0.0
  %96 = vmatprep.subr.mxu0 0.0
  %97 = vmatpush2.msra.mxu0 0.0
  %98 = vmatprep.subr.mxu0 0.0
  %99 = vmatpush2.msra.mxu0 0.0
  %100 = vmatprep.subr.mxu0 0.0
  %101 = vmatpush2.msra.mxu0 0.0
  %102 = vmatprep.subr.mxu0 0.0
  %103 = vmatpush2.msra.mxu0 0.0
  %104 = vmatprep.mubr.f32.mxu0 0.0
  %105 = vmatmul.mubr.f32.gmra.mxu0 %v38
  %v106 = vpop.f32.mrf.mxu0
  %v107 = vadd.f32 %v34, %v106
  %v108 = vpop.f32.mrf.mxu0
  %109 = vdwg.mxu0
  %v110 = vld [vmem:[%s3] sm:$0xff]
  %v111 = vadd.f32 %v107, %v110
  %vm112 = vcmask 261120
  %113 = vst.msk [vmem:[%s4] sm:$0xff] %vm112, %v111
  // Predicated region
  $region18: #{vits_generator_forward.57} parent=0 // pred_check
    _
  $region19: #{vits_generator_forward.57} parent=0 // pred_check_branch
    %115 = sbr.rel (0) target = $region21
  $region20: #{vits_generator_forward.57} parent=0 // pred_region
    _
  $region21: #{vits_generator_forward.57} parent=0 // pred_fallthru
    _
  // Predicated region
  $region22: #{vits_generator_forward.57} parent=0 // pred_check
    _
  $region23: #{vits_generator_forward.57} parent=0 // pred_check_branch
    %117 = sbr.rel (0) target = $region25
  $region24: #{vits_generator_forward.57} parent=0 // pred_region
    _
  $region25: #{vits_generator_forward.57} parent=0 // pred_fallthru
    _

// kernel: vits_generator_forward.60
$region0: #{vits_generator_forward.60}
  #allocation0 [shape = 'u32[]', space=smem, size = 0x4, offset = 0x4, fixed_abs, tag = 'smem constant byte address 0x4 - core index']
  #allocation1 [shape = 'u32[144,128]{1,0:T(1,128)}', space=vmem, size = 0x12000, scoped, tag = 'internal scratch']
  #allocation2 [shape = 'f32[1,1]{1,0:T(1,128)S(1)}', space=vmem, size = 0x200, scoped, tag = 'scoped memory for vits_generator_forward.60']
  %s0 = inlined_call_operand.vmem [shape: f32[1,56], index: 0, kind: input, shape index: {}]
  %s1 = inlined_call_operand.vmem [shape: f32[56,32], index: 1, kind: input, shape index: {}]
  %s2 = inlined_call_operand.<no memory space> [shape: f32[1,1], index: 2, kind: input, shape index: {}]
  %s3 = inlined_call_operand.vmem [shape: f32[1,32], index: 3, kind: output, shape index: {}]
  %s4 = sld [smem:[#allocation0]]
  $region22: #{vits_generator_forward.60} parent=0
    _
  %s6 = ssub.s32 1, %s4
  %s7 = scalar_select 0, %s6, %s4
  %v8 = vstv %s2
  %9 = vst [vmem:[#allocation2] sm:$0x1] %v8
  // Predicated region
  $region2: #{vits_generator_forward.60} parent=0 // pred_check
    _
  $region3: #{vits_generator_forward.60} parent=0 // pred_check_branch
    %11 = sbr.rel (0) target = $region5
  $region4: #{vits_generator_forward.60} parent=0 // pred_region
    _
  $region5: #{vits_generator_forward.60} parent=0 // pred_fallthru
    _
  // Predicated region
  $region6: #{vits_generator_forward.60} parent=0 // pred_check
    _
  $region7: #{vits_generator_forward.60} parent=0 // pred_check_branch
    %13 = sbr.rel (0) target = $region9
  $region8: #{vits_generator_forward.60} parent=0 // pred_region
    _
  $region9: #{vits_generator_forward.60} parent=0 // pred_fallthru
    _
  // Predicated region
  $region10: #{vits_generator_forward.60} parent=0 // pred_check
    _
  $region11: #{vits_generator_forward.60} parent=0 // pred_check_branch
    %15 = sbr.rel (0) target = $region13
  $region12: #{vits_generator_forward.60} parent=0 // pred_region
    _
  $region13: #{vits_generator_forward.60} parent=0 // pred_fallthru
    _
  %v16 = vld [vmem:[%s1] sm:$0xff]
  %v17 = vld [vmem:[%s1 + $0x8] sm:$0xff]
  %v18 = vld [vmem:[%s1 + $0x10] sm:$0xff]
  %v19 = vld [vmem:[%s1 + $0x18] sm:$0xff]
  %v20 = vld [vmem:[%s1 + $0x20] sm:$0xff]
  %v21 = vld [vmem:[%s1 + $0x28] sm:$0xff]
  %v22 = vld [vmem:[%s1 + $0x30] sm:$0xff]
  %vm23 = vcmp.ge.f32.partialorder %v16, 0.0
  %vm24 = vcmp.ge.f32.partialorder %v17, 0.0
  %vm25 = vcmp.ge.f32.partialorder %v18, 0.0
  %vm26 = vcmp.ge.f32.partialorder %v19, 0.0
  %vm27 = vcmp.ge.f32.partialorder %v20, 0.0
  %vm28 = vcmp.ge.f32.partialorder %v21, 0.0
  %vm29 = vcmp.ge.f32.partialorder %v22, 0.0
  %v30 = vmul.f32 %v16, 0.1
  %v31 = vmul.f32 %v17, 0.1
  %v32 = vmul.f32 %v18, 0.1
  %v33 = vmul.f32 %v19, 0.1
  %v34 = vmul.f32 %v20, 0.1
  %v35 = vmul.f32 %v21, 0.1
  %v36 = vmul.f32 %v22, 0.1
  %v37 = vsel %vm23, %v16, %v30
  %v38 = vsel %vm24, %v17, %v31
  %v39 = vsel %vm25, %v18, %v32
  %v40 = vsel %vm26, %v19, %v33
  %v41 = vsel %vm27, %v20, %v34
  %v42 = vsel %vm28, %v21, %v35
  %v43 = vsel %vm29, %v22, %v36
  %v44 = vld [vmem:[%s0] sm:$0x1]
  %v45 = vld [vmem:[#allocation2] sm:$0x1]
  %47 = vset.pattern.permute.xlu0 0
  %48 = vperm.xlu0 %47, %v45
  %v49 = vpop.permute.xlu0 %48
  %v51 = vlaneseq
  %v52 = vshrl.u32 %v51, 7
  %v53 = vsub.s32 0, %v52
  %v54 = vrot.slane %v49, %v53
  %vm55 = vcmask 457728
  %v57 = vsel %vm55, %v44, 0
  %59 = vmatprep.subr.mxu0 0.0
  %60 = vmatpush1.msra.mxu0 0.0
  %61 = vmatprep.subr.mxu0 0.0
  %62 = vmatpush1.msra.mxu0 0.0
  %63 = vmatprep.subr.mxu0 0.0
  %64 = vmatpush1.msra.mxu0 0.0
  %65 = vmatprep.subr.mxu0 0.0
  %66 = vmatpush1.msra.mxu0 0.0
  %67 = vmatprep.subr.mxu0 0.0
  %68 = vmatpush1.msra.mxu0 0.0
  %69 = vmatprep.subr.mxu0 0.0
  %70 = vmatpush1.msra.mxu0 0.0
  %71 = vmatprep.subr.mxu0 0.0
  %72 = vmatpush1.msra.mxu0 0.0
  %73 = vmatprep.subr.mxu0 0.0
  %74 = vmatpush1.msra.mxu0 0.0
  %75 = vmatprep.subr.mxu0 0.0
  %76 = vmatpush1.msra.mxu0 0.0
  %77 = vmatprep.subr.mxu0 0.0
  %78 = vmatpush1.msra.mxu0 %v43
  %79 = vmatprep.subr.mxu0 0.0
  %80 = vmatpush1.msra.mxu0 %v42
  %81 = vmatprep.subr.mxu0 0.0
  %82 = vmatpush1.msra.mxu0 %v41
  %83 = vmatprep.subr.mxu0 0.0
  %84 = vmatpush1.msra.mxu0 %v40
  %85 = vmatprep.subr.mxu0 0.0
  %86 = vmatpush1.msra.mxu0 %v39
  %87 = vmatprep.subr.mxu0 0.0
  %88 = vmatpush1.msra.mxu0 %v38
  %89 = vmatprep.subr.mxu0 0.0
  %90 = vmatpush1.msra.mxu0 %v37
  %91 = vmatprep.subr.mxu0 0.0
  %92 = vmatpush2.msra.mxu0 0.0
  %93 = vmatprep.subr.mxu0 0.0
  %94 = vmatpush2.msra.mxu0 0.0
  %95 = vmatprep.subr.mxu0 0.0
  %96 = vmatpush2.msra.mxu0 0.0
  %97 = vmatprep.subr.mxu0 0.0
  %98 = vmatpush2.msra.mxu0 0.0
  %99 = vmatprep.subr.mxu0 0.0
  %100 = vmatpush2.msra.mxu0 0.0
  %101 = vmatprep.subr.mxu0 0.0
  %102 = vmatpush2.msra.mxu0 0.0
  %103 = vmatprep.subr.mxu0 0.0
  %104 = vmatpush2.msra.mxu0 0.0
  %105 = vmatprep.subr.mxu0 0.0
  %106 = vmatpush2.msra.mxu0 0.0
  %107 = vmatprep.subr.mxu0 0.0
  %108 = vmatpush2.msra.mxu0 0.0
  %109 = vmatprep.subr.mxu0 0.0
  %110 = vmatpush2.msra.mxu0 0.0
  %111 = vmatprep.subr.mxu0 0.0
  %112 = vmatpush2.msra.mxu0 0.0
  %113 = vmatprep.subr.mxu0 0.0
  %114 = vmatpush2.msra.mxu0 0.0
  %115 = vmatprep.subr.mxu0 0.0
  %116 = vmatpush2.msra.mxu0 0.0
  %117 = vmatprep.subr.mxu0 0.0
  %118 = vmatpush2.msra.mxu0 0.0
  %119 = vmatprep.subr.mxu0 0.0
  %120 = vmatpush2.msra.mxu0 0.0
  %121 = vmatprep.subr.mxu0 0.0
  %122 = vmatpush2.msra.mxu0 0.0
  %123 = vmatprep.mubr.f32.mxu0 0.0
  %124 = vmatmul.mubr.f32.gmra.mxu0 %v57
  %v125 = vpop.f32.mrf.mxu0
  %v126 = vadd.f32 %v54, %v125
  %v127 = vpop.f32.mrf.mxu0
  %128 = vdwg.mxu0
  %v129 = vtanh.pop %v126
  %vm130 = vcmask 253952
  %131 = vst.msk [vmem:[%s3] sm:$0x1] %vm130, %v129
  // Predicated region
  $region14: #{vits_generator_forward.60} parent=0 // pred_check
    _
  $region15: #{vits_generator_forward.60} parent=0 // pred_check_branch
    %133 = sbr.rel (0) target = $region17
  $region16: #{vits_generator_forward.60} parent=0 // pred_region
    _
  $region17: #{vits_generator_forward.60} parent=0 // pred_fallthru
    _
  // Predicated region
  $region18: #{vits_generator_forward.60} parent=0 // pred_check
    _
  $region19: #{vits_generator_forward.60} parent=0 // pred_check_branch
    %135 = sbr.rel (0) target = $region21
  $region20: #{vits_generator_forward.60} parent=0 // pred_region
    _
  $region21: #{vits_generator_forward.60} parent=0 // pred_fallthru
    _

</llo_original>
